<compile_context>
chip_gen: v6e
topology: v6e:2x2x1
jax: 0.10.0
libtpu: 0.0.40
codegen_flags: <defaults>
</compile_context>

<pallas_src>
import functools

import jax
import jax.numpy as jnp
from jax.experimental import pallas as pl
from jax.experimental.pallas import tpu as pltpu

_LN_EPS = 1e-5
_VMEM_TILE_BUDGET = 8 * 1024 * 1024      # per-grid-step activation budget
_VMEM_LIMIT_BYTES = 32 * 1024 * 1024     # explicit scoped-VMEM limit (all gens)


def _pick_tile(total, per_unit_bytes, budget_bytes, multiple=1):
    """Largest divisor of `total` whose per-grid-step working set fits the VMEM
    budget.  When tiling (tile < total) the tile must be a multiple of
    `multiple` so block shapes respect the TPU (8, 128) rules."""
    candidates = [d for d in range(1, total + 1)
                  if total % d == 0 and (d == total or multiple == 1
                                         or d % multiple == 0)]
    fitting = [d for d in candidates if d * per_unit_bytes <= budget_bytes]
    return max(fitting) if fitting else min(candidates)


# ----------------------------------------------------------------------------
# Kernel 1: 3x3 conv (padding='same') + LayerNorm([C, H, W]) + tanh.
# One im2col matmul (K = 9*Cin) over Nb samples per grid step.
# ----------------------------------------------------------------------------
def _conv3x3_ln_tanh_kernel(xp_ref, w_ref, b_ref, g_ref, beta_ref, o_ref,
                            *, H, W):
    # xp_ref : (Nb, H+2, W+2, Cin)   bf16, zero-padded, channels-last
    # w_ref  : (9*Cin, Cout)         bf16, K order = (dh, dw, ci)
    # b_ref  : (1, Cout)             f32
    # g_ref, beta_ref : (1, H*W, Cout) f32  LayerNorm([C,H,W]) affine, (h,w) flat
    # o_ref  : (Nb, H*W, Cout)       bf16
    Nb = xp_ref.shape[0]
    Cin = xp_ref.shape[3]
    Cout = w_ref.shape[1]

    xp = xp_ref[...]                                  # (Nb, H+2, W+2, Cin)
    # im2col: concat the 9 shifted views along channels -> one MXU matmul.
    taps = [xp[:, dh:dh + H, dw:dw + W, :]
            for dh in range(3) for dw in range(3)]
    patch = jnp.concatenate(taps, axis=-1).reshape(Nb * H * W, 9 * Cin)

    acc = jnp.dot(patch, w_ref[...], preferred_element_type=jnp.float32)
    acc = (acc + b_ref[...]).reshape(Nb, H * W, Cout)  # f32

    # LayerNorm over all C*H*W elements of each sample (f32 statistics).
    denom = float(H * W * Cout)
    s = jnp.sum(jnp.sum(acc, axis=2, keepdims=True), axis=1, keepdims=True)
    mean = s / denom                                   # (Nb, 1, 1)
    d = acc - mean
    s2 = jnp.sum(jnp.sum(d * d, axis=2, keepdims=True), axis=1, keepdims=True)
    var = s2 / denom
    y = d * jax.lax.rsqrt(var + _LN_EPS)
    y = y * g_ref[...] + beta_ref[...]
    o_ref[...] = jnp.tanh(y).astype(o_ref.dtype)


def conv3x3_ln_tanh(x_pad, w9, bias, gamma, beta):
    # x_pad: (N, H+2, W+2, Cin) bf16
    N, Hp, Wp, Cin = x_pad.shape
    H, W = Hp - 2, Wp - 2
    Cout = w9.shape[1]

    per_sample = (Hp * Wp * Cin * 2 * 2          # padded input (double buffered)
                  + H * W * Cout * 2 * 2         # bf16 output (double buffered)
                  + H * W * 9 * Cin * 2          # im2col patch
                  + H * W * Cout * 4 * 3)        # f32 acc / LN temps
    Nb = _pick_tile(N, per_sample, _VMEM_TILE_BUDGET)

    kern = functools.partial(_conv3x3_ln_tanh_kernel, H=H, W=W)
    return pl.pallas_call(
        kern,
        out_shape=jax.ShapeDtypeStruct((N, H * W, Cout), jnp.bfloat16),
        grid=(N // Nb,),
        in_specs=[
            pl.BlockSpec((Nb, Hp, Wp, Cin), lambda i: (i, 0, 0, 0)),
            pl.BlockSpec((9 * Cin, Cout), lambda i: (0, 0)),
            pl.BlockSpec((1, Cout), lambda i: (0, 0)),
            pl.BlockSpec((1, H * W, Cout), lambda i: (0, 0, 0)),
            pl.BlockSpec((1, H * W, Cout), lambda i: (0, 0, 0)),
        ],
        out_specs=pl.BlockSpec((Nb, H * W, Cout), lambda i: (i, 0, 0)),
        compiler_params=pltpu.CompilerParams(
            dimension_semantics=("parallel",),
            vmem_limit_bytes=_VMEM_LIMIT_BYTES),
    )(x_pad, w9, bias, gamma, beta)


# ----------------------------------------------------------------------------
# Kernel 2 ("Enhancer"): (3,1) temporal conv (padding='same' along t)
#                        + LayerNorm([out_channels]).
# Temporal zero-padding happens in VMEM; one im2col matmul (K = 3*C).
# Grid is (batch, spatial tiles) so large H*W never blows VMEM (v7x: 64 MiB).
# ----------------------------------------------------------------------------
def _tconv_ln_kernel(x_ref, w_ref, b_ref, g_ref, beta_ref, o_ref, xp_ref, *, T):
    # x_ref  : (1, T, S_tile, C)   bf16
    # w_ref  : (3*C, Cout)         bf16, K order = (dt, ci)
    # b_ref, g_ref, beta_ref : (1, Cout) f32
    # o_ref  : (1, T, S_tile, Cout) f32
    # xp_ref : (T+2, S_tile, C)    bf16 VMEM scratch (temporally zero-padded)
    S_tile = x_ref.shape[2]
    C = x_ref.shape[3]
    Cout = w_ref.shape[1]

    # In-VMEM 'same' temporal padding; written every step -> safe with
    # "parallel" grid semantics (no cross-step scratch state).
    zero_page = jnp.zeros((1, S_tile, C), xp_ref.dtype)
    xp_ref[0:1] = zero_page
    xp_ref[T + 1:T + 2] = zero_page
    xp_ref[1:T + 1] = x_ref[0]

    xp = xp_ref[...]                                   # (T+2, S_tile, C)
    taps = [xp[dt:dt + T] for dt in range(3)]
    patch = jnp.concatenate(taps, axis=-1).reshape(T * S_tile, 3 * C)

    acc = jnp.dot(patch, w_ref[...], preferred_element_type=jnp.float32)
    acc = acc + b_ref[...]                             # (T*S_tile, Cout) f32

    # LayerNorm over the channel (last) dim, f32 statistics.
    mean = jnp.mean(acc, axis=-1, keepdims=True)
    var = jnp.mean((acc - mean) ** 2, axis=-1, keepdims=True)
    y = (acc - mean) * jax.lax.rsqrt(var + _LN_EPS)
    y = y * g_ref[...] + beta_ref[...]
    o_ref[0] = y.reshape(T, S_tile, Cout).astype(o_ref.dtype)


def tconv_ln(x, wt, bias, gamma, beta):
    # x: (B, T, S, C) bf16  (S = H*W)
    B, T, S, C = x.shape
    Cout = wt.shape[1]

    per_s = (T * C * 2 * 2            # bf16 input block (double buffered)
             + T * Cout * 4 * 2       # f32 output block (double buffered)
             + (T + 2) * C * 2        # padded VMEM scratch
             + T * 3 * C * 2          # im2col patch
             + T * Cout * 4 * 2)      # f32 acc / temps
    S_tile = _pick_tile(S, per_s, _VMEM_TILE_BUDGET, multiple=8)

    kern = functools.partial(_tconv_ln_kernel, T=T)
    return pl.pallas_call(
        kern,
        out_shape=jax.ShapeDtypeStruct((B, T, S, Cout), jnp.float32),
        grid=(B, S // S_tile),
        in_specs=[
            pl.BlockSpec((1, T, S_tile, C), lambda b, s: (b, 0, s, 0)),
            pl.BlockSpec((3 * C, Cout), lambda b, s: (0, 0)),
            pl.BlockSpec((1, Cout), lambda b, s: (0, 0)),
            pl.BlockSpec((1, Cout), lambda b, s: (0, 0)),
            pl.BlockSpec((1, Cout), lambda b, s: (0, 0)),
        ],
        out_specs=pl.BlockSpec((1, T, S_tile, Cout), lambda b, s: (b, 0, s, 0)),
        scratch_shapes=[pltpu.VMEM((T + 2, S_tile, C), x.dtype)],
        compiler_params=pltpu.CompilerParams(
            dimension_semantics=("parallel", "parallel"),
            vmem_limit_bytes=_VMEM_LIMIT_BYTES),
    )(x, wt, bias, gamma, beta)


# ----------------------------------------------------------------------------
# Wrapper glue (pure data movement in plain JAX; fused by XLA under jit)
# ----------------------------------------------------------------------------
def _tsm_channels_last(x, fold_div=8):
    # Temporal Shift Module expressed as a single gather/concat (no scatter),
    # so XLA fuses it with the NCHW->NHWC transpose + pad + bf16 cast below.
    b, t, c, h, w = x.shape
    fold = max(c // fold_div, 1)
    zeros = jnp.zeros((b, 1, fold, h, w), x.dtype)
    left = jnp.concatenate([x[:, 1:, :fold], zeros], axis=1)             # t+1
    right = jnp.concatenate([zeros, x[:, :-1, fold:2 * fold]], axis=1)   # t-1
    shifted = jnp.concatenate([left, right, x[:, :, 2 * fold:]], axis=2)
    return jnp.transpose(shifted, (0, 1, 3, 4, 2))                       # NHWC


def tim_block_forward(x, params, skip=True, fold_div=8):
    b, t, c, h, w = x.shape
    cout = params["w9"].shape[1]

    # F0 = tsm(x): fused TSM + NCHW->NHWC + spatial 'same' pad + bf16 cast.
    # (One HBM materialization; the spatial pad rides the same fusion, the
    #  temporal pad of stage 2 is done in VMEM inside the kernel.)
    f0 = _tsm_channels_last(x, fold_div)                         # (b,t,h,w,c)
    x1 = jnp.pad(f0.reshape(b * t, h, w, c),
                 ((0, 0), (1, 1), (1, 1), (0, 0))).astype(jnp.bfloat16)

    # F1 = conv_2d(F0): 3x3 conv (single im2col matmul) + LN([C,H,W]) + Tanh.
    f1 = conv3x3_ln_tanh(x1, params["w9"], params["b3"],
                         params["ln1_g"], params["ln1_b"])       # (b*t, h*w, cout) bf16

    # F2 = Enhancer(F1): (3,1) temporal conv + LN([C]).
    f2 = tconv_ln(f1.reshape(b, t, h * w, cout), params["wt"], params["bt"],
                  params["ln2_g"], params["ln2_b"])              # (b, t, h*w, cout) f32

    out = jnp.transpose(f2.reshape(b, t, h, w, cout), (0, 1, 4, 2, 3))
    if skip:
        # Residual in the original NCHW layout (fuses with the transpose above);
        # requires in_channels == out_channels, as in the PyTorch module.
        out = out + x
    return out


# ----------------------------------------------------------------------------
# Parameters (PyTorch-native shapes) and their TPU-friendly preparation
# ----------------------------------------------------------------------------
def init_torch_params(key, cin, cout, h, w):
    ks = jax.random.split(key, 8)
    return {
        "conv2d_w": 0.1 * jax.random.normal(ks[0], (cout, cin, 3, 3), jnp.float32),
        "conv2d_b": 0.1 * jax.random.normal(ks[1], (cout,), jnp.float32),
        "ln1_g": 1.0 + 0.1 * jax.random.normal(ks[2], (cout, h, w), jnp.float32),
        "ln1_b": 0.1 * jax.random.normal(ks[3], (cout, h, w), jnp.float32),
        "tim_w": 0.1 * jax.random.normal(ks[4], (cout, cin, 3, 1), jnp.float32),
        "tim_b": 0.1 * jax.random.normal(ks[5], (cout,), jnp.float32),
        "ln2_g": 1.0 + 0.1 * jax.random.normal(ks[6], (cout,), jnp.float32),
        "ln2_b": 0.1 * jax.random.normal(ks[7], (cout,), jnp.float32),
    }


def prepare_params(p):
    cout, cin = p["conv2d_w"].shape[:2]
    h, w = p["ln1_g"].shape[1:]
    # Conv2d(3,3) weight (Cout,Cin,3,3) -> im2col (9*Cin, Cout), K=(dh,dw,ci).
    w9 = jnp.transpose(p["conv2d_w"], (2, 3, 1, 0)).reshape(9 * cin, cout)
    # Conv2d(3,1) weight (Cout,Cin,3,1) -> (3*Cin, Cout), K=(dt,ci).
    wt = jnp.transpose(p["tim_w"][:, :, :, 0], (2, 1, 0)).reshape(3 * cin, cout)
    return {
        "w9": w9.astype(jnp.bfloat16),
        "b3": p["conv2d_b"].reshape(1, cout),
        "ln1_g": jnp.transpose(p["ln1_g"], (1, 2, 0)).reshape(1, h * w, cout),
        "ln1_b": jnp.transpose(p["ln1_b"], (1, 2, 0)).reshape(1, h * w, cout),
        "wt": wt.astype(jnp.bfloat16),
        "bt": p["tim_b"].reshape(1, cout),
        "ln2_g": p["ln2_g"].reshape(1, cout),
        "ln2_b": p["ln2_b"].reshape(1, cout),
    }


if __name__ == "__main__":
    key = jax.random.PRNGKey(0)
    k_x, k_p = jax.random.split(key)

    # Small demo shapes; channels = 128 (a multiple of 128) so every Pallas
    # block is lane-dense.  in_channels == out_channels (skip path).
    b, t, c, h, w = 2, 8, 128, 8, 8
    x = jax.random.normal(k_x, (b, t, c, h, w), jnp.float32)
    params = prepare_params(init_torch_params(k_p, c, c, h, w))

    fwd = jax.jit(functools.partial(tim_block_forward, skip=True))
    out = jax.block_until_ready(fwd(x, params))
    assert out.shape == (b, t, c, h, w), out.shape
    assert bool(jnp.all(jnp.isfinite(out)))
    print("KERNEL_OK")
</pallas_src>

<mosaic_0001>
module attributes {stable_mosaic.version = 11 : i64} {
  func.func @_conv3x3_ln_tanh_kernel(%arg0: i32, %arg1: memref<16x10x10x128xbf16, #tpu.memory_space<vmem>>, %arg2: memref<1152x128xbf16, #tpu.memory_space<vmem>>, %arg3: memref<1x128xf32, #tpu.memory_space<vmem>>, %arg4: memref<1x64x128xf32, #tpu.memory_space<vmem>>, %arg5: memref<1x64x128xf32, #tpu.memory_space<vmem>>, %arg6: memref<16x64x128xbf16, #tpu.memory_space<vmem>>) attributes {dimension_semantics = [#tpu.dimension_semantics<parallel>], iteration_bounds = array<i64: 1>, scalar_prefetch = 0 : i64, scratch_operands = 0 : i64, tpu.core_type = #tpu.core_type<tc>, window_params = [{transform_indices = @transform_0, window_bounds = array<i64: 16, 10, 10, 128>}, {pipeline_mode = #tpu.pipeline_mode<synchronous>, transform_indices = @transform_1, window_bounds = array<i64: 1152, 128>}, {pipeline_mode = #tpu.pipeline_mode<synchronous>, transform_indices = @transform_2, window_bounds = array<i64: 1, 128>}, {pipeline_mode = #tpu.pipeline_mode<synchronous>, transform_indices = @transform_3, window_bounds = array<i64: 1, 64, 128>}, {pipeline_mode = #tpu.pipeline_mode<synchronous>, transform_indices = @transform_4, window_bounds = array<i64: 1, 64, 128>}, {transform_indices = @transform_5, window_bounds = array<i64: 16, 64, 128>}]} {
    %c0 = arith.constant 0 : index
    %c0_0 = arith.constant 0 : index
    %c0_1 = arith.constant 0 : index
    %c0_2 = arith.constant 0 : index
    %0 = vector.load %arg1[%c0, %c0_0, %c0_1, %c0_2] : memref<16x10x10x128xbf16, #tpu.memory_space<vmem>>, vector<16x10x10x128xbf16>
    %1 = vector.extract_strided_slice %0 {offsets = [0, 0, 0, 0], sizes = [16, 8, 8, 128], strides = [1, 1, 1, 1]} : vector<16x10x10x128xbf16> to vector<16x8x8x128xbf16>
    %2 = vector.extract_strided_slice %0 {offsets = [0, 0, 1, 0], sizes = [16, 8, 8, 128], strides = [1, 1, 1, 1]} : vector<16x10x10x128xbf16> to vector<16x8x8x128xbf16>
    %3 = vector.extract_strided_slice %0 {offsets = [0, 0, 2, 0], sizes = [16, 8, 8, 128], strides = [1, 1, 1, 1]} : vector<16x10x10x128xbf16> to vector<16x8x8x128xbf16>
    %4 = vector.extract_strided_slice %0 {offsets = [0, 1, 0, 0], sizes = [16, 8, 8, 128], strides = [1, 1, 1, 1]} : vector<16x10x10x128xbf16> to vector<16x8x8x128xbf16>
    %5 = vector.extract_strided_slice %0 {offsets = [0, 1, 1, 0], sizes = [16, 8, 8, 128], strides = [1, 1, 1, 1]} : vector<16x10x10x128xbf16> to vector<16x8x8x128xbf16>
    %6 = vector.extract_strided_slice %0 {offsets = [0, 1, 2, 0], sizes = [16, 8, 8, 128], strides = [1, 1, 1, 1]} : vector<16x10x10x128xbf16> to vector<16x8x8x128xbf16>
    %7 = vector.extract_strided_slice %0 {offsets = [0, 2, 0, 0], sizes = [16, 8, 8, 128], strides = [1, 1, 1, 1]} : vector<16x10x10x128xbf16> to vector<16x8x8x128xbf16>
    %8 = vector.extract_strided_slice %0 {offsets = [0, 2, 1, 0], sizes = [16, 8, 8, 128], strides = [1, 1, 1, 1]} : vector<16x10x10x128xbf16> to vector<16x8x8x128xbf16>
    %9 = vector.extract_strided_slice %0 {offsets = [0, 2, 2, 0], sizes = [16, 8, 8, 128], strides = [1, 1, 1, 1]} : vector<16x10x10x128xbf16> to vector<16x8x8x128xbf16>
    %10 = tpu.concatenate %1, %2, %3, %4, %5, %6, %7, %8, %9 in 3 : vector<16x8x8x128xbf16>, vector<16x8x8x128xbf16>, vector<16x8x8x128xbf16>, vector<16x8x8x128xbf16>, vector<16x8x8x128xbf16>, vector<16x8x8x128xbf16>, vector<16x8x8x128xbf16>, vector<16x8x8x128xbf16>, vector<16x8x8x128xbf16> -> vector<16x8x8x1152xbf16>
    %11 = vector.shape_cast %10 : vector<16x8x8x1152xbf16> to vector<1024x1152xbf16>
    %c0_3 = arith.constant 0 : index
    %c0_4 = arith.constant 0 : index
    %12 = vector.load %arg2[%c0_3, %c0_4] : memref<1152x128xbf16, #tpu.memory_space<vmem>>, vector<1152x128xbf16>
    %cst = arith.constant dense<0.000000e+00> : vector<1024x128xf32>
    %13 = tpu.matmul %11, %12, %cst {dimension_numbers = #tpu.dot_dimension_numbers<[1], [0], [0], [1], [0, 0, 1, 1], [], []>} : vector<1024x1152xbf16>, vector<1152x128xbf16>, vector<1024x128xf32> -> vector<1024x128xf32>
    %c0_5 = arith.constant 0 : index
    %c0_6 = arith.constant 0 : index
    %14 = vector.load %arg3[%c0_5, %c0_6] : memref<1x128xf32, #tpu.memory_space<vmem>>, vector<1x128xf32>
    %15 = vector.broadcast %14 : vector<1x128xf32> to vector<1024x128xf32>
    %16 = arith.addf %13, %15 : vector<1024x128xf32>
    %17 = vector.shape_cast %16 : vector<1024x128xf32> to vector<16x64x128xf32>
    %cst_7 = arith.constant dense<0.000000e+00> : vector<16x64xf32>
    %18 = vector.multi_reduction <add>, %17, %cst_7 [2] : vector<16x64x128xf32> to vector<16x64xf32>
    %19 = vector.shape_cast %18 : vector<16x64xf32> to vector<16x64x1xf32>
    %cst_8 = arith.constant dense<0.000000e+00> : vector<16x1xf32>
    %20 = vector.multi_reduction <add>, %19, %cst_8 [1] : vector<16x64x1xf32> to vector<16x1xf32>
    %21 = vector.shape_cast %20 : vector<16x1xf32> to vector<16x1x1xf32>
    %cst_9 = arith.constant 8.192000e+03 : f32
    %22 = vector.broadcast %cst_9 : f32 to vector<16x1x1xf32>
    %23 = arith.divf %21, %22 : vector<16x1x1xf32>
    %24 = vector.broadcast %23 : vector<16x1x1xf32> to vector<16x64x128xf32>
    %25 = arith.subf %17, %24 : vector<16x64x128xf32>
    %26 = arith.mulf %25, %25 : vector<16x64x128xf32>
    %cst_10 = arith.constant dense<0.000000e+00> : vector<16x64xf32>
    %27 = vector.multi_reduction <add>, %26, %cst_10 [2] : vector<16x64x128xf32> to vector<16x64xf32>
    %28 = vector.shape_cast %27 : vector<16x64xf32> to vector<16x64x1xf32>
    %cst_11 = arith.constant dense<0.000000e+00> : vector<16x1xf32>
    %29 = vector.multi_reduction <add>, %28, %cst_11 [1] : vector<16x64x1xf32> to vector<16x1xf32>
    %30 = vector.shape_cast %29 : vector<16x1xf32> to vector<16x1x1xf32>
    %cst_12 = arith.constant 8.192000e+03 : f32
    %31 = vector.broadcast %cst_12 : f32 to vector<16x1x1xf32>
    %32 = arith.divf %30, %31 : vector<16x1x1xf32>
    %cst_13 = arith.constant 9.99999974E-6 : f32
    %33 = vector.broadcast %cst_13 : f32 to vector<16x1x1xf32>
    %34 = arith.addf %32, %33 : vector<16x1x1xf32>
    %35 = math.rsqrt %34 : vector<16x1x1xf32>
    %36 = vector.broadcast %35 : vector<16x1x1xf32> to vector<16x64x128xf32>
    %37 = arith.mulf %25, %36 : vector<16x64x128xf32>
    %c0_14 = arith.constant 0 : index
    %c0_15 = arith.constant 0 : index
    %c0_16 = arith.constant 0 : index
    %38 = vector.load %arg4[%c0_14, %c0_15, %c0_16] : memref<1x64x128xf32, #tpu.memory_space<vmem>>, vector<1x64x128xf32>
    %39 = vector.broadcast %38 : vector<1x64x128xf32> to vector<16x64x128xf32>
    %40 = arith.mulf %37, %39 : vector<16x64x128xf32>
    %c0_17 = arith.constant 0 : index
    %c0_18 = arith.constant 0 : index
    %c0_19 = arith.constant 0 : index
    %41 = vector.load %arg5[%c0_17, %c0_18, %c0_19] : memref<1x64x128xf32, #tpu.memory_space<vmem>>, vector<1x64x128xf32>
    %42 = vector.broadcast %41 : vector<1x64x128xf32> to vector<16x64x128xf32>
    %43 = arith.addf %40, %42 : vector<16x64x128xf32>
    %44 = math.tanh %43 : vector<16x64x128xf32>
    %45 = arith.truncf %44 : vector<16x64x128xf32> to vector<16x64x128xbf16>
    %c0_20 = arith.constant 0 : index
    %c0_21 = arith.constant 0 : index
    %c0_22 = arith.constant 0 : index
    %46 = vector.load %arg6[%c0_20, %c0_21, %c0_22] : memref<16x64x128xbf16, #tpu.memory_space<vmem>>, vector<16x64x128xbf16>
    tpu.vector_store %arg6[%c0_20, %c0_21, %c0_22], %45 {strides = array<i32>} : memref<16x64x128xbf16, #tpu.memory_space<vmem>>, vector<16x64x128xbf16>,
    return
  }
  func.func @transform_0(%arg0: i32) -> (i32, i32, i32, i32) {
    %c0_i32 = arith.constant 0 : i32
    %c0_i32_0 = arith.constant 0 : i32
    %c0_i32_1 = arith.constant 0 : i32
    %c0_i32_2 = arith.constant 0 : i32
    return %arg0, %c0_i32, %c0_i32_0, %c0_i32_1 : i32, i32, i32, i32
  }
  func.func @transform_1(%arg0: i32) -> (i32, i32) {
    %c0_i32 = arith.constant 0 : i32
    %c0_i32_0 = arith.constant 0 : i32
    %c0_i32_1 = arith.constant 0 : i32
    return %c0_i32, %c0_i32_0 : i32, i32
  }
  func.func @transform_2(%arg0: i32) -> (i32, i32) {
    %c0_i32 = arith.constant 0 : i32
    %c0_i32_0 = arith.constant 0 : i32
    %c0_i32_1 = arith.constant 0 : i32
    return %c0_i32, %c0_i32_0 : i32, i32
  }
  func.func @transform_3(%arg0: i32) -> (i32, i32, i32) {
    %c0_i32 = arith.constant 0 : i32
    %c0_i32_0 = arith.constant 0 : i32
    %c0_i32_1 = arith.constant 0 : i32
    %c0_i32_2 = arith.constant 0 : i32
    return %c0_i32, %c0_i32_0, %c0_i32_1 : i32, i32, i32
  }
  func.func @transform_4(%arg0: i32) -> (i32, i32, i32) {
    %c0_i32 = arith.constant 0 : i32
    %c0_i32_0 = arith.constant 0 : i32
    %c0_i32_1 = arith.constant 0 : i32
    %c0_i32_2 = arith.constant 0 : i32
    return %c0_i32, %c0_i32_0, %c0_i32_1 : i32, i32, i32
  }
  func.func @transform_5(%arg0: i32) -> (i32, i32, i32) {
    %c0_i32 = arith.constant 0 : i32
    %c0_i32_0 = arith.constant 0 : i32
    %c0_i32_1 = arith.constant 0 : i32
    return %arg0, %c0_i32, %c0_i32_0 : i32, i32, i32
  }
}

module attributes {stable_mosaic.version = 11 : i64} {
  func.func @_tconv_ln_kernel(%arg0: i32, %arg1: i32, %arg2: memref<1x8x64x128xbf16, #tpu.memory_space<vmem>>, %arg3: memref<384x128xbf16, #tpu.memory_space<vmem>>, %arg4: memref<1x128xf32, #tpu.memory_space<vmem>>, %arg5: memref<1x128xf32, #tpu.memory_space<vmem>>, %arg6: memref<1x128xf32, #tpu.memory_space<vmem>>, %arg7: memref<1x8x64x128xf32, #tpu.memory_space<vmem>>, %arg8: memref<10x64x128xbf16, #tpu.memory_space<vmem>>) attributes {dimension_semantics = [#tpu.dimension_semantics<parallel>, #tpu.dimension_semantics<parallel>], iteration_bounds = array<i64: 2, 1>, scalar_prefetch = 0 : i64, scratch_operands = 1 : i64, tpu.core_type = #tpu.core_type<tc>, window_params = [{transform_indices = @transform_0, window_bounds = array<i64: 1, 8, 64, 128>}, {pipeline_mode = #tpu.pipeline_mode<synchronous>, transform_indices = @transform_1, window_bounds = array<i64: 384, 128>}, {pipeline_mode = #tpu.pipeline_mode<synchronous>, transform_indices = @transform_2, window_bounds = array<i64: 1, 128>}, {pipeline_mode = #tpu.pipeline_mode<synchronous>, transform_indices = @transform_3, window_bounds = array<i64: 1, 128>}, {pipeline_mode = #tpu.pipeline_mode<synchronous>, transform_indices = @transform_4, window_bounds = array<i64: 1, 128>}, {transform_indices = @transform_5, window_bounds = array<i64: 1, 8, 64, 128>}]} {
    %cst = arith.constant 0.000000e+00 : bf16
    %0 = vector.broadcast %cst : bf16 to vector<1x64x128xbf16>
    %c0 = arith.constant 0 : index
    %c0_0 = arith.constant 0 : index
    %c0_1 = arith.constant 0 : index
    %1 = vector.load %arg8[%c0, %c0_0, %c0_1] : memref<10x64x128xbf16, #tpu.memory_space<vmem>>, vector<1x64x128xbf16>
    tpu.vector_store %arg8[%c0, %c0_0, %c0_1], %0 {strides = array<i32>} : memref<10x64x128xbf16, #tpu.memory_space<vmem>>, vector<1x64x128xbf16>,
    %c9 = arith.constant 9 : index
    %c0_2 = arith.constant 0 : index
    %c0_3 = arith.constant 0 : index
    %2 = vector.load %arg8[%c9, %c0_2, %c0_3] : memref<10x64x128xbf16, #tpu.memory_space<vmem>>, vector<1x64x128xbf16>
    tpu.vector_store %arg8[%c9, %c0_2, %c0_3], %0 {strides = array<i32>} : memref<10x64x128xbf16, #tpu.memory_space<vmem>>, vector<1x64x128xbf16>,
    %c0_4 = arith.constant 0 : index
    %c0_5 = arith.constant 0 : index
    %c0_6 = arith.constant 0 : index
    %c0_7 = arith.constant 0 : index
    %3 = vector.load %arg2[%c0_4, %c0_5, %c0_6, %c0_7] : memref<1x8x64x128xbf16, #tpu.memory_space<vmem>>, vector<1x8x64x128xbf16>
    %4 = vector.shape_cast %3 : vector<1x8x64x128xbf16> to vector<8x64x128xbf16>
    %c1 = arith.constant 1 : index
    %c0_8 = arith.constant 0 : index
    %c0_9 = arith.constant 0 : index
    %5 = vector.load %arg8[%c1, %c0_8, %c0_9] : memref<10x64x128xbf16, #tpu.memory_space<vmem>>, vector<8x64x128xbf16>
    tpu.vector_store %arg8[%c1, %c0_8, %c0_9], %4 {strides = array<i32>} : memref<10x64x128xbf16, #tpu.memory_space<vmem>>, vector<8x64x128xbf16>,
    %c0_10 = arith.constant 0 : index
    %c0_11 = arith.constant 0 : index
    %c0_12 = arith.constant 0 : index
    %6 = vector.load %arg8[%c0_10, %c0_11, %c0_12] : memref<10x64x128xbf16, #tpu.memory_space<vmem>>, vector<10x64x128xbf16>
    %7 = vector.extract_strided_slice %6 {offsets = [0, 0, 0], sizes = [8, 64, 128], strides = [1, 1, 1]} : vector<10x64x128xbf16> to vector<8x64x128xbf16>
    %8 = vector.extract_strided_slice %6 {offsets = [1, 0, 0], sizes = [8, 64, 128], strides = [1, 1, 1]} : vector<10x64x128xbf16> to vector<8x64x128xbf16>
    %9 = vector.extract_strided_slice %6 {offsets = [2, 0, 0], sizes = [8, 64, 128], strides = [1, 1, 1]} : vector<10x64x128xbf16> to vector<8x64x128xbf16>
    %10 = tpu.concatenate %7, %8, %9 in 2 : vector<8x64x128xbf16>, vector<8x64x128xbf16>, vector<8x64x128xbf16> -> vector<8x64x384xbf16>
    %11 = vector.shape_cast %10 : vector<8x64x384xbf16> to vector<512x384xbf16>
    %c0_13 = arith.constant 0 : index
    %c0_14 = arith.constant 0 : index
    %12 = vector.load %arg3[%c0_13, %c0_14] : memref<384x128xbf16, #tpu.memory_space<vmem>>, vector<384x128xbf16>
    %cst_15 = arith.constant dense<0.000000e+00> : vector<512x128xf32>
    %13 = tpu.matmul %11, %12, %cst_15 {dimension_numbers = #tpu.dot_dimension_numbers<[1], [0], [0], [1], [0, 0, 1, 1], [], []>} : vector<512x384xbf16>, vector<384x128xbf16>, vector<512x128xf32> -> vector<512x128xf32>
    %c0_16 = arith.constant 0 : index
    %c0_17 = arith.constant 0 : index
    %14 = vector.load %arg4[%c0_16, %c0_17] : memref<1x128xf32, #tpu.memory_space<vmem>>, vector<1x128xf32>
    %15 = vector.broadcast %14 : vector<1x128xf32> to vector<512x128xf32>
    %16 = arith.addf %13, %15 : vector<512x128xf32>
    %cst_18 = arith.constant dense<0.000000e+00> : vector<512xf32>
    %17 = vector.multi_reduction <add>, %16, %cst_18 [1] : vector<512x128xf32> to vector<512xf32>
    %18 = vector.shape_cast %17 : vector<512xf32> to vector<512x1xf32>
    %cst_19 = arith.constant 1.280000e+02 : f32
    %19 = vector.broadcast %cst_19 : f32 to vector<512x1xf32>
    %20 = arith.divf %18, %19 : vector<512x1xf32>
    %21 = vector.broadcast %20 : vector<512x1xf32> to vector<512x128xf32>
    %22 = arith.subf %16, %21 : vector<512x128xf32>
    %23 = arith.mulf %22, %22 : vector<512x128xf32>
    %cst_20 = arith.constant dense<0.000000e+00> : vector<512xf32>
    %24 = vector.multi_reduction <add>, %23, %cst_20 [1] : vector<512x128xf32> to vector<512xf32>
    %25 = vector.shape_cast %24 : vector<512xf32> to vector<512x1xf32>
    %cst_21 = arith.constant 1.280000e+02 : f32
    %26 = vector.broadcast %cst_21 : f32 to vector<512x1xf32>
    %27 = arith.divf %25, %26 : vector<512x1xf32>
    %28 = vector.broadcast %20 : vector<512x1xf32> to vector<512x128xf32>
    %29 = arith.subf %16, %28 : vector<512x128xf32>
    %cst_22 = arith.constant 9.99999974E-6 : f32
    %30 = vector.broadcast %cst_22 : f32 to vector<512x1xf32>
    %31 = arith.addf %27, %30 : vector<512x1xf32>
    %32 = math.rsqrt %31 : vector<512x1xf32>
    %33 = vector.broadcast %32 : vector<512x1xf32> to vector<512x128xf32>
    %34 = arith.mulf %29, %33 : vector<512x128xf32>
    %c0_23 = arith.constant 0 : index
    %c0_24 = arith.constant 0 : index
    %35 = vector.load %arg5[%c0_23, %c0_24] : memref<1x128xf32, #tpu.memory_space<vmem>>, vector<1x128xf32>
    %36 = vector.broadcast %35 : vector<1x128xf32> to vector<512x128xf32>
    %37 = arith.mulf %34, %36 : vector<512x128xf32>
    %c0_25 = arith.constant 0 : index
    %c0_26 = arith.constant 0 : index
    %38 = vector.load %arg6[%c0_25, %c0_26] : memref<1x128xf32, #tpu.memory_space<vmem>>, vector<1x128xf32>
    %39 = vector.broadcast %38 : vector<1x128xf32> to vector<512x128xf32>
    %40 = arith.addf %37, %39 : vector<512x128xf32>
    %41 = vector.shape_cast %40 : vector<512x128xf32> to vector<8x64x128xf32>
    %c0_27 = arith.constant 0 : index
    %c0_28 = arith.constant 0 : index
    %c0_29 = arith.constant 0 : index
    %c0_30 = arith.constant 0 : index
    %42 = vector.load %arg7[%c0_27, %c0_28, %c0_29, %c0_30] : memref<1x8x64x128xf32, #tpu.memory_space<vmem>>, vector<1x8x64x128xf32>
    %43 = vector.shape_cast %42 : vector<1x8x64x128xf32> to vector<8x64x128xf32>
    %44 = vector.shape_cast %41 : vector<8x64x128xf32> to vector<1x8x64x128xf32>
    tpu.vector_store %arg7[%c0_27, %c0_28, %c0_29, %c0_30], %44 {strides = array<i32>} : memref<1x8x64x128xf32, #tpu.memory_space<vmem>>, vector<1x8x64x128xf32>,
    return
  }
  func.func @transform_0(%arg0: i32, %arg1: i32) -> (i32, i32, i32, i32) {
    %c0_i32 = arith.constant 0 : i32
    %c0_i32_0 = arith.constant 0 : i32
    %c0_i32_1 = arith.constant 0 : i32
    return %arg0, %c0_i32, %arg1, %c0_i32_0 : i32, i32, i32, i32
  }
  func.func @transform_1(%arg0: i32, %arg1: i32) -> (i32, i32) {
    %c0_i32 = arith.constant 0 : i32
    %c0_i32_0 = arith.constant 0 : i32
    %c0_i32_1 = arith.constant 0 : i32
    return %c0_i32, %c0_i32_0 : i32, i32
  }
  func.func @transform_2(%arg0: i32, %arg1: i32) -> (i32, i32) {
    %c0_i32 = arith.constant 0 : i32
    %c0_i32_0 = arith.constant 0 : i32
    %c0_i32_1 = arith.constant 0 : i32
    return %c0_i32, %c0_i32_0 : i32, i32
  }
  func.func @transform_3(%arg0: i32, %arg1: i32) -> (i32, i32) {
    %c0_i32 = arith.constant 0 : i32
    %c0_i32_0 = arith.constant 0 : i32
    %c0_i32_1 = arith.constant 0 : i32
    return %c0_i32, %c0_i32_0 : i32, i32
  }
  func.func @transform_4(%arg0: i32, %arg1: i32) -> (i32, i32) {
    %c0_i32 = arith.constant 0 : i32
    %c0_i32_0 = arith.constant 0 : i32
    %c0_i32_1 = arith.constant 0 : i32
    return %c0_i32, %c0_i32_0 : i32, i32
  }
  func.func @transform_5(%arg0: i32, %arg1: i32) -> (i32, i32, i32, i32) {
    %c0_i32 = arith.constant 0 : i32
    %c0_i32_0 = arith.constant 0 : i32
    %c0_i32_1 = arith.constant 0 : i32
    return %arg0, %c0_i32, %arg1, %c0_i32_0 : i32, i32, i32, i32
  }
}

</mosaic_0001>

<llo_original>
// kernel: tim_block_forward.3
$region0: #{tim_block_forward.3}
  #allocation0 [shape = 'u32[]', space=smem, size = 0x4, offset = 0x4, fixed_abs, tag = 'smem constant byte address 0x4 - core index']
  #allocation1 [shape = 'u32[144,128]{1,0:T(1,128)}', space=vmem, size = 0x12000, scoped, tag = 'internal scratch']
  #allocation2 [shape = 'bf16[10,64,128]{2,1,0:T(8,128)(2,1)}', space=vmem, size = 0x28000, scoped, tag = 'scratch operand']
  %s0 = inlined_call_operand.vmem [shape: bf16[2,8,64,128], index: 0, kind: input, shape index: {}]
  %s1 = inlined_call_operand.vmem [shape: bf16[384,128], index: 1, kind: input, shape index: {}]
  %s2 = inlined_call_operand.vmem [shape: f32[1,128], index: 2, kind: input, shape index: {}]
  %s3 = inlined_call_operand.vmem [shape: f32[1,128], index: 3, kind: input, shape index: {}]
  %s4 = inlined_call_operand.vmem [shape: f32[1,128], index: 4, kind: input, shape index: {}]
  %s5 = inlined_call_operand.vmem [shape: f32[2,8,64,128], index: 5, kind: output, shape index: {}]
  %s6 = sld [smem:[#allocation0]]
  $region53: #{tim_block_forward.3} parent=0
    _
  %s8 = ssub.s32 1, %s6
  %s9 = scalar_select 0, %s8, %s6
  loop: start=0, step=1, limit=4
  $region2: #{tim_block_forward.3} parent=0 // loop_pre_header
    _
  $region3: #{tim_block_forward.3} parent=0 // loop_header
    %s11 = sphi 0, %s15
    %p12 = scmp.ge.s32.totalorder %s11, 4
    %s18 = sphi 0, %s30
    %s19 = sphi 0, %s26
    %s20 = sphi 0, %s18
    %s21 = sphi 0, %s19
    %s22 = sphi 0, %s20
    %s23 = sphi 0, %s21
    %s35 = sphi 0, %s37
    %s38 = sphi 0, %s35
    %s39 = sphi 0, %s38
    %s55 = sphi 0, %s39
    %s59 = sphi 0, %s59
    %s61 = sphi 0, %s59
    %s62 = sphi 0, %s61
    %s76 = sphi 0, %s62
    %s80 = sphi 0, %s80
    %s82 = sphi 0, %s80
    %s83 = sphi 0, %s82
    %s97 = sphi 0, %s83
    %s101 = sphi 0, %s101
    %s103 = sphi 0, %s101
    %s104 = sphi 0, %s103
    %s118 = sphi 0, %s104
    %s122 = sphi 0, %s122
    %s124 = sphi 0, %s122
    %s125 = sphi 0, %s124
    %s139 = sphi 0, %s125
    %s147 = sphi 0, %s149
    %s150 = sphi 0, %s147
    %s151 = sphi 0, %s150
    %s167 = sphi 0, %s151
  $region4: #{tim_block_forward.3} parent=0 // loop_header_branch
    %14 = sbr.rel (%p12) target = $region8
  $region5: #{tim_block_forward.3} parent=0 // loop_body
    %s16 = ssub.s32 %s11, 1
    %s17 = ssub.s32 %s11, 2
    %s24 = sadd.s32 1, %s19
    %p25 = scmp.ge.s32.totalorder %s24, 1
    %s26 = scalar_select %p25, 0, %s24
    %s27 = sadd.s32 1, %s18
    %s28 = scalar_select %p25, %s27, %s18
    %p29 = scmp.ge.s32.totalorder %s28, 2
    %s30 = scalar_select %p29, 0, %s28
    %s31 = ssub.s32 %s18, %s30
    %s32 = ssub.s32 %s19, %s26
    %s33 = sor.u32 %s31, %s32
    %p34 = scmp.eq.s32.totalorder %s33, 0
    %s36 = sadd.s32 %s35, 1
    %s37 = scalar_select %p34, %s35, %s36
    %p40 = pneg %p34
    %p41 = scmp.eq.s32.totalorder %s11, 1
    %p42 = por %p40, %p41
    %p43 = scmp.ne.s32.totalorder %s35, %s38
    %p44 = scmp.eq.s32.totalorder %s11, 0
    %p45 = por %p43, %p44
    %p46 = scmp.ne.s32.totalorder %s35, %s38
    %p47 = scmp.eq.s32.totalorder %s16, 1
    %p48 = por %p46, %p47
    %p49 = scmp.ne.s32.totalorder %s38, %s39
    %p50 = scmp.eq.s32.totalorder %s16, 0
    %p51 = por %p49, %p50
    %p52 = scmp.ne.s32.totalorder %s38, %s39
    %p53 = scmp.eq.s32.totalorder %s17, 1
    %p54 = por %p52, %p53
    %p56 = scmp.ne.s32.totalorder %s39, %s55
    %p57 = scmp.eq.s32.totalorder %s17, 0
    %p58 = por %p56, %p57
    %s60 = sadd.s32 %s59, 1
    %p63 = scmp.eq.s32.totalorder %s11, 1
    %p64 = scmp.ne.s32.totalorder %s59, %s61
    %p65 = scmp.eq.s32.totalorder %s11, 0
    %p66 = por %p64, %p65
    %p67 = scmp.ne.s32.totalorder %s59, %s61
    %p68 = scmp.eq.s32.totalorder %s16, 1
    %p69 = por %p67, %p68
    %p70 = scmp.ne.s32.totalorder %s61, %s62
    %p71 = scmp.eq.s32.totalorder %s16, 0
    %p72 = por %p70, %p71
    %p73 = scmp.ne.s32.totalorder %s61, %s62
    %p74 = scmp.eq.s32.totalorder %s17, 1
    %p75 = por %p73, %p74
    %p77 = scmp.ne.s32.totalorder %s62, %s76
    %p78 = scmp.eq.s32.totalorder %s17, 0
    %p79 = por %p77, %p78
    %s81 = sadd.s32 %s80, 1
    %p84 = scmp.eq.s32.totalorder %s11, 1
    %p85 = scmp.ne.s32.totalorder %s80, %s82
    %p86 = scmp.eq.s32.totalorder %s11, 0
    %p87 = por %p85, %p86
    %p88 = scmp.ne.s32.totalorder %s80, %s82
    %p89 = scmp.eq.s32.totalorder %s16, 1
    %p90 = por %p88, %p89
    %p91 = scmp.ne.s32.totalorder %s82, %s83
    %p92 = scmp.eq.s32.totalorder %s16, 0
    %p93 = por %p91, %p92
    %p94 = scmp.ne.s32.totalorder %s82, %s83
    %p95 = scmp.eq.s32.totalorder %s17, 1
    %p96 = por %p94, %p95
    %p98 = scmp.ne.s32.totalorder %s83, %s97
    %p99 = scmp.eq.s32.totalorder %s17, 0
    %p100 = por %p98, %p99
    %s102 = sadd.s32 %s101, 1
    %p105 = scmp.eq.s32.totalorder %s11, 1
    %p106 = scmp.ne.s32.totalorder %s101, %s103
    %p107 = scmp.eq.s32.totalorder %s11, 0
    %p108 = por %p106, %p107
    %p109 = scmp.ne.s32.totalorder %s101, %s103
    %p110 = scmp.eq.s32.totalorder %s16, 1
    %p111 = por %p109, %p110
    %p112 = scmp.ne.s32.totalorder %s103, %s104
    %p113 = scmp.eq.s32.totalorder %s16, 0
    %p114 = por %p112, %p113
    %p115 = scmp.ne.s32.totalorder %s103, %s104
    %p116 = scmp.eq.s32.totalorder %s17, 1
    %p117 = por %p115, %p116
    %p119 = scmp.ne.s32.totalorder %s104, %s118
    %p120 = scmp.eq.s32.totalorder %s17, 0
    %p121 = por %p119, %p120
    %s123 = sadd.s32 %s122, 1
    %p126 = scmp.eq.s32.totalorder %s11, 1
    %p127 = scmp.ne.s32.totalorder %s122, %s124
    %p128 = scmp.eq.s32.totalorder %s11, 0
    %p129 = por %p127, %p128
    %p130 = scmp.ne.s32.totalorder %s122, %s124
    %p131 = scmp.eq.s32.totalorder %s16, 1
    %p132 = por %p130, %p131
    %p133 = scmp.ne.s32.totalorder %s124, %s125
    %p134 = scmp.eq.s32.totalorder %s16, 0
    %p135 = por %p133, %p134
    %p136 = scmp.ne.s32.totalorder %s124, %s125
    %p137 = scmp.eq.s32.totalorder %s17, 1
    %p138 = por %p136, %p137
    %p140 = scmp.ne.s32.totalorder %s125, %s139
    %p141 = scmp.eq.s32.totalorder %s17, 0
    %p142 = por %p140, %p141
    %s143 = ssub.s32 %s18, %s30
    %s144 = ssub.s32 %s19, %s26
    %s145 = sor.u32 %s143, %s144
    %p146 = scmp.eq.s32.totalorder %s145, 0
    %s148 = sadd.s32 %s147, 1
    %s149 = scalar_select %p146, %s147, %s148
    %p152 = pneg %p146
    %p153 = scmp.eq.s32.totalorder %s11, 1
    %p154 = por %p152, %p153
    %p155 = scmp.ne.s32.totalorder %s147, %s150
    %p156 = scmp.eq.s32.totalorder %s11, 0
    %p157 = por %p155, %p156
    %p158 = scmp.ne.s32.totalorder %s147, %s150
    %p159 = scmp.eq.s32.totalorder %s16, 1
    %p160 = por %p158, %p159
    %p161 = scmp.ne.s32.totalorder %s150, %s151
    %p162 = scmp.eq.s32.totalorder %s16, 0
    %p163 = por %p161, %p162
    %p164 = scmp.ne.s32.totalorder %s150, %s151
    %p165 = scmp.eq.s32.totalorder %s17, 1
    %p166 = por %p164, %p165
    %p168 = scmp.ne.s32.totalorder %s151, %s167
    %p169 = scmp.eq.s32.totalorder %s17, 0
    %p170 = por %p168, %p169
    %p171 = scmp.le.s32.totalorder 1, %s11
    %p172 = scmp.lt.s32.totalorder %s11, 3
    %p173 = pnand %p171, %p172
    %p174 = pneg %p173
    // Predicated region
    $region9: #{tim_block_forward.3} parent=5 // pred_check
      _
    $region10: #{tim_block_forward.3} parent=5 // pred_check_branch
      %176 = sbr.rel (%p173) target = $region12
    $region11: #{tim_block_forward.3} parent=5 // pred_region
      %s177 = ssub.s32 %s11, 1
      // Predicated region
      $region13: #{tim_block_forward.3} parent=11 // pred_check
        %p178 = pneg %p72
      $region14: #{tim_block_forward.3} parent=11 // pred_check_branch
        %180 = sbr.rel (%p178) target = $region16
      $region15: #{tim_block_forward.3} parent=11 // pred_region
        _
      $region16: #{tim_block_forward.3} parent=11 // pred_fallthru
        _
      // Predicated region
      $region17: #{tim_block_forward.3} parent=11 // pred_check
        %p181 = pneg %p93
      $region18: #{tim_block_forward.3} parent=11 // pred_check_branch
        %183 = sbr.rel (%p181) target = $region20
      $region19: #{tim_block_forward.3} parent=11 // pred_region
        _
      $region20: #{tim_block_forward.3} parent=11 // pred_fallthru
        _
      // Predicated region
      $region21: #{tim_block_forward.3} parent=11 // pred_check
        %p184 = pneg %p114
      $region22: #{tim_block_forward.3} parent=11 // pred_check_branch
        %186 = sbr.rel (%p184) target = $region24
      $region23: #{tim_block_forward.3} parent=11 // pred_region
        _
      $region24: #{tim_block_forward.3} parent=11 // pred_fallthru
        _
      // Predicated region
      $region25: #{tim_block_forward.3} parent=11 // pred_check
        %p187 = pneg %p135
      $region26: #{tim_block_forward.3} parent=11 // pred_check_branch
        %189 = sbr.rel (%p187) target = $region28
      $region27: #{tim_block_forward.3} parent=11 // pred_region
        _
      $region28: #{tim_block_forward.3} parent=11 // pred_fallthru
        _
    $region12: #{tim_block_forward.3} parent=5 // pred_fallthru
      _
    %p190 = scmp.lt.s32.totalorder %s11, 2
    // Predicated region
    $region29: #{tim_block_forward.3} parent=5 // pred_check
      %p191 = pneg %p190
    $region30: #{tim_block_forward.3} parent=5 // pred_check_branch
      %193 = sbr.rel (%p191) target = $region32
    $region31: #{tim_block_forward.3} parent=5 // pred_region
      // Predicated region
      $region33: #{tim_block_forward.3} parent=31 // pred_check
        %p194 = pneg %p45
      $region34: #{tim_block_forward.3} parent=31 // pred_check_branch
        %196 = sbr.rel (%p194) target = $region36
      $region35: #{tim_block_forward.3} parent=31 // pred_region
        %s197 = smul.u32 8, %s19
        %p198 = scmp.lt.s32.totalorder %s18, 1
        %s199 = scalar_select %p198, %s18, 1
        %p200 = scmp.lt.s32.totalorder %s197, 7
        %s201 = scalar_select %p200, %s197, 7
        %s202 = smul.addr %s199, 64
        %s203 = sadd.s32 %s201, %s202
        %s204 = smul.addr %s203, 4
        %s205 = scalar_lea.vmem %s0, %s204
        %s206 = smul.u32 8, %s19
      $region36: #{tim_block_forward.3} parent=31 // pred_fallthru
        _
    $region32: #{tim_block_forward.3} parent=5 // pred_fallthru
      _
    %p207 = scmp.le.s32.totalorder 1, %s11
    %p208 = scmp.lt.s32.totalorder %s11, 3
    %p209 = pnand %p207, %p208
    %p210 = pneg %p209
    // Predicated region
    $region37: #{tim_block_forward.3} parent=5 // pred_check
      _
    $region38: #{tim_block_forward.3} parent=5 // pred_check_branch
      %212 = sbr.rel (%p209) target = $region40
    $region39: #{tim_block_forward.3} parent=5 // pred_region
      %s213 = ssub.s32 %s11, 1
      %s214 = smul.u32 8, %s21
      %p215 = scmp.lt.s32.totalorder %s20, 1
      %s216 = scalar_select %p215, %s20, 1
      %p217 = scmp.lt.s32.totalorder %s214, 7
      %s218 = scalar_select %p217, %s214, 7
      %s219 = smul.addr %s216, 64
      %s220 = sadd.s32 %s218, %s219
      %s221 = smul.addr %s220, 4
      %s222 = scalar_lea.vmem %s0, %s221
      %p223 = pneg %p51
      %p224 = pneg %p48
      %p225 = pneg %p72
      %p226 = pneg %p69
      %p227 = pneg %p93
      %p228 = pneg %p90
      %p229 = pneg %p114
      %p230 = pneg %p111
      %p231 = pneg %p135
      %p232 = pneg %p132
      %p233 = pneg %p163
      %p234 = pneg %p160
      %s235 = smul.u32 8, %s21
      %p236 = scmp.lt.s32.totalorder %s20, 1
      %s237 = scalar_select %p236, %s20, 1
      %p238 = scmp.lt.s32.totalorder %s235, 7
      %s239 = scalar_select %p238, %s235, 7
      %s240 = smul.addr %s237, 64
      %s241 = sadd.s32 %s239, %s240
      %s242 = smul.addr %s241, 8
      %s243 = scalar_lea.vmem %s5, %s242
      %s244 = smul.u32 8, %s21
      %p245 = scmp.lt.s32.totalorder %s20, 1
      %s246 = scalar_select %p245, %s20, 1
      %p247 = scmp.lt.s32.totalorder %s244, 7
      %s248 = scalar_select %p247, %s244, 7
      %s249 = smul.addr %s246, 64
      %s250 = sadd.s32 %s248, %s249
      %s251 = smul.addr %s250, 4
      %s252 = scalar_lea.vmem %s0, %s251
      %s253 = smul.u32 8, %s21
      %s254 = smul.u32 8, %s21
      %p255 = scmp.lt.s32.totalorder %s20, 1
      %s256 = scalar_select %p255, %s20, 1
      %p257 = scmp.lt.s32.totalorder %s254, 7
      %s258 = scalar_select %p257, %s254, 7
      %s259 = smul.addr %s256, 64
      %s260 = sadd.s32 %s258, %s259
      %s261 = smul.addr %s260, 8
      %s262 = scalar_lea.vmem %s5, %s261
      %s263 = smul.u32 8, %s21
      %265 = vst [vmem:[#allocation2] sm:$0xf] 0
      %266 = vst [vmem:[#allocation2 + $0x4] sm:$0xf] 0
      %267 = vst [vmem:[#allocation2 + $0x8] sm:$0xf] 0
      %268 = vst [vmem:[#allocation2 + $0xc] sm:$0xf] 0
      %269 = vst [vmem:[#allocation2 + $0x10] sm:$0xf] 0
      %270 = vst [vmem:[#allocation2 + $0x14] sm:$0xf] 0
      %271 = vst [vmem:[#allocation2 + $0x18] sm:$0xf] 0
      %272 = vst [vmem:[#allocation2 + $0x1c] sm:$0xf] 0
      %s273 = scalar_lea.vmem [#allocation2], 288
      %274 = vst [vmem:[%s273] sm:$0xf] 0
      %275 = vst [vmem:[%s273 + $0x4] sm:$0xf] 0
      %276 = vst [vmem:[%s273 + $0x8] sm:$0xf] 0
      %277 = vst [vmem:[%s273 + $0xc] sm:$0xf] 0
      %278 = vst [vmem:[%s273 + $0x10] sm:$0xf] 0
      %279 = vst [vmem:[%s273 + $0x14] sm:$0xf] 0
      %280 = vst [vmem:[%s273 + $0x18] sm:$0xf] 0
      %281 = vst [vmem:[%s273 + $0x1c] sm:$0xf] 0
      %v282 = vld [vmem:[%s252] sm:$0xf]
      %v283 = vld [vmem:[%s252 + $0x4] sm:$0xf]
      %v284 = vld [vmem:[%s252 + $0x8] sm:$0xf]
      %v285 = vld [vmem:[%s252 + $0xc] sm:$0xf]
      %v286 = vld [vmem:[%s252 + $0x10] sm:$0xf]
      %v287 = vld [vmem:[%s252 + $0x14] sm:$0xf]
      %v288 = vld [vmem:[%s252 + $0x18] sm:$0xf]
      %v289 = vld [vmem:[%s252 + $0x1c] sm:$0xf]
      %v290 = vld [vmem:[%s252 + $0x20] sm:$0xf]
      %v291 = vld [vmem:[%s252 + $0x24] sm:$0xf]
      %v292 = vld [vmem:[%s252 + $0x28] sm:$0xf]
      %v293 = vld [vmem:[%s252 + $0x2c] sm:$0xf]
      %v294 = vld [vmem:[%s252 + $0x30] sm:$0xf]
      %v295 = vld [vmem:[%s252 + $0x34] sm:$0xf]
      %v296 = vld [vmem:[%s252 + $0x38] sm:$0xf]
      %v297 = vld [vmem:[%s252 + $0x3c] sm:$0xf]
      %v298 = vld [vmem:[%s252 + $0x40] sm:$0xf]
      %v299 = vld [vmem:[%s252 + $0x44] sm:$0xf]
      %v300 = vld [vmem:[%s252 + $0x48] sm:$0xf]
      %v301 = vld [vmem:[%s252 + $0x4c] sm:$0xf]
      %v302 = vld [vmem:[%s252 + $0x50] sm:$0xf]
      %v303 = vld [vmem:[%s252 + $0x54] sm:$0xf]
      %v304 = vld [vmem:[%s252 + $0x58] sm:$0xf]
      %v305 = vld [vmem:[%s252 + $0x5c] sm:$0xf]
      %v306 = vld [vmem:[%s252 + $0x60] sm:$0xf]
      %v307 = vld [vmem:[%s252 + $0x64] sm:$0xf]
      %v308 = vld [vmem:[%s252 + $0x68] sm:$0xf]
      %v309 = vld [vmem:[%s252 + $0x6c] sm:$0xf]
      %v310 = vld [vmem:[%s252 + $0x70] sm:$0xf]
      %v311 = vld [vmem:[%s252 + $0x74] sm:$0xf]
      %v312 = vld [vmem:[%s252 + $0x78] sm:$0xf]
      %v313 = vld [vmem:[%s252 + $0x7c] sm:$0xf]
      %v314 = vld [vmem:[%s252 + $0x80] sm:$0xf]
      %v315 = vld [vmem:[%s252 + $0x84] sm:$0xf]
      %v316 = vld [vmem:[%s252 + $0x88] sm:$0xf]
      %v317 = vld [vmem:[%s252 + $0x8c] sm:$0xf]
      %v318 = vld [vmem:[%s252 + $0x90] sm:$0xf]
      %v319 = vld [vmem:[%s252 + $0x94] sm:$0xf]
      %v320 = vld [vmem:[%s252 + $0x98] sm:$0xf]
      %v321 = vld [vmem:[%s252 + $0x9c] sm:$0xf]
      %v322 = vld [vmem:[%s252 + $0xa0] sm:$0xf]
      %v323 = vld [vmem:[%s252 + $0xa4] sm:$0xf]
      %v324 = vld [vmem:[%s252 + $0xa8] sm:$0xf]
      %v325 = vld [vmem:[%s252 + $0xac] sm:$0xf]
      %v326 = vld [vmem:[%s252 + $0xb0] sm:$0xf]
      %v327 = vld [vmem:[%s252 + $0xb4] sm:$0xf]
      %v328 = vld [vmem:[%s252 + $0xb8] sm:$0xf]
      %v329 = vld [vmem:[%s252 + $0xbc] sm:$0xf]
      %v330 = vld [vmem:[%s252 + $0xc0] sm:$0xf]
      %v331 = vld [vmem:[%s252 + $0xc4] sm:$0xf]
      %v332 = vld [vmem:[%s252 + $0xc8] sm:$0xf]
      %v333 = vld [vmem:[%s252 + $0xcc] sm:$0xf]
      %v334 = vld [vmem:[%s252 + $0xd0] sm:$0xf]
      %v335 = vld [vmem:[%s252 + $0xd4] sm:$0xf]
      %v336 = vld [vmem:[%s252 + $0xd8] sm:$0xf]
      %v337 = vld [vmem:[%s252 + $0xdc] sm:$0xf]
      %v338 = vld [vmem:[%s252 + $0xe0] sm:$0xf]
      %v339 = vld [vmem:[%s252 + $0xe4] sm:$0xf]
      %v340 = vld [vmem:[%s252 + $0xe8] sm:$0xf]
      %v341 = vld [vmem:[%s252 + $0xec] sm:$0xf]
      %v342 = vld [vmem:[%s252 + $0xf0] sm:$0xf]
      %v343 = vld [vmem:[%s252 + $0xf4] sm:$0xf]
      %v344 = vld [vmem:[%s252 + $0xf8] sm:$0xf]
      %v345 = vld [vmem:[%s252 + $0xfc] sm:$0xf]
      %s346 = scalar_lea.vmem [#allocation2], 32
      %347 = vst [vmem:[%s346] sm:$0xf] %v282
      %348 = vst [vmem:[%s346 + $0x4] sm:$0xf] %v283
      %349 = vst [vmem:[%s346 + $0x8] sm:$0xf] %v284
      %350 = vst [vmem:[%s346 + $0xc] sm:$0xf] %v285
      %351 = vst [vmem:[%s346 + $0x10] sm:$0xf] %v286
      %352 = vst [vmem:[%s346 + $0x14] sm:$0xf] %v287
      %353 = vst [vmem:[%s346 + $0x18] sm:$0xf] %v288
      %354 = vst [vmem:[%s346 + $0x1c] sm:$0xf] %v289
      %355 = vst [vmem:[%s346 + $0x20] sm:$0xf] %v290
      %356 = vst [vmem:[%s346 + $0x24] sm:$0xf] %v291
      %357 = vst [vmem:[%s346 + $0x28] sm:$0xf] %v292
      %358 = vst [vmem:[%s346 + $0x2c] sm:$0xf] %v293
      %359 = vst [vmem:[%s346 + $0x30] sm:$0xf] %v294
      %360 = vst [vmem:[%s346 + $0x34] sm:$0xf] %v295
      %361 = vst [vmem:[%s346 + $0x38] sm:$0xf] %v296
      %362 = vst [vmem:[%s346 + $0x3c] sm:$0xf] %v297
      %363 = vst [vmem:[%s346 + $0x40] sm:$0xf] %v298
      %364 = vst [vmem:[%s346 + $0x44] sm:$0xf] %v299
      %365 = vst [vmem:[%s346 + $0x48] sm:$0xf] %v300
      %366 = vst [vmem:[%s346 + $0x4c] sm:$0xf] %v301
      %367 = vst [vmem:[%s346 + $0x50] sm:$0xf] %v302
      %368 = vst [vmem:[%s346 + $0x54] sm:$0xf] %v303
      %369 = vst [vmem:[%s346 + $0x58] sm:$0xf] %v304
      %370 = vst [vmem:[%s346 + $0x5c] sm:$0xf] %v305
      %371 = vst [vmem:[%s346 + $0x60] sm:$0xf] %v306
      %372 = vst [vmem:[%s346 + $0x64] sm:$0xf] %v307
      %373 = vst [vmem:[%s346 + $0x68] sm:$0xf] %v308
      %374 = vst [vmem:[%s346 + $0x6c] sm:$0xf] %v309
      %375 = vst [vmem:[%s346 + $0x70] sm:$0xf] %v310
      %376 = vst [vmem:[%s346 + $0x74] sm:$0xf] %v311
      %377 = vst [vmem:[%s346 + $0x78] sm:$0xf] %v312
      %378 = vst [vmem:[%s346 + $0x7c] sm:$0xf] %v313
      %379 = vst [vmem:[%s346 + $0x80] sm:$0xf] %v314
      %380 = vst [vmem:[%s346 + $0x84] sm:$0xf] %v315
      %381 = vst [vmem:[%s346 + $0x88] sm:$0xf] %v316
      %382 = vst [vmem:[%s346 + $0x8c] sm:$0xf] %v317
      %383 = vst [vmem:[%s346 + $0x90] sm:$0xf] %v318
      %384 = vst [vmem:[%s346 + $0x94] sm:$0xf] %v319
      %385 = vst [vmem:[%s346 + $0x98] sm:$0xf] %v320
      %386 = vst [vmem:[%s346 + $0x9c] sm:$0xf] %v321
      %387 = vst [vmem:[%s346 + $0xa0] sm:$0xf] %v322
      %388 = vst [vmem:[%s346 + $0xa4] sm:$0xf] %v323
      %389 = vst [vmem:[%s346 + $0xa8] sm:$0xf] %v324
      %390 = vst [vmem:[%s346 + $0xac] sm:$0xf] %v325
      %391 = vst [vmem:[%s346 + $0xb0] sm:$0xf] %v326
      %392 = vst [vmem:[%s346 + $0xb4] sm:$0xf] %v327
      %393 = vst [vmem:[%s346 + $0xb8] sm:$0xf] %v328
      %394 = vst [vmem:[%s346 + $0xbc] sm:$0xf] %v329
      %395 = vst [vmem:[%s346 + $0xc0] sm:$0xf] %v330
      %396 = vst [vmem:[%s346 + $0xc4] sm:$0xf] %v331
      %397 = vst [vmem:[%s346 + $0xc8] sm:$0xf] %v332
      %398 = vst [vmem:[%s346 + $0xcc] sm:$0xf] %v333
      %399 = vst [vmem:[%s346 + $0xd0] sm:$0xf] %v334
      %400 = vst [vmem:[%s346 + $0xd4] sm:$0xf] %v335
      %401 = vst [vmem:[%s346 + $0xd8] sm:$0xf] %v336
      %402 = vst [vmem:[%s346 + $0xdc] sm:$0xf] %v337
      %403 = vst [vmem:[%s346 + $0xe0] sm:$0xf] %v338
      %404 = vst [vmem:[%s346 + $0xe4] sm:$0xf] %v339
      %405 = vst [vmem:[%s346 + $0xe8] sm:$0xf] %v340
      %406 = vst [vmem:[%s346 + $0xec] sm:$0xf] %v341
      %407 = vst [vmem:[%s346 + $0xf0] sm:$0xf] %v342
      %408 = vst [vmem:[%s346 + $0xf4] sm:$0xf] %v343
      %409 = vst [vmem:[%s346 + $0xf8] sm:$0xf] %v344
      %410 = vst [vmem:[%s346 + $0xfc] sm:$0xf] %v345
      %v411 = vld [vmem:[#allocation2] sm:$0xf]
      %v412 = vld [vmem:[#allocation2 + $0x4] sm:$0xf]
      %v413 = vld [vmem:[#allocation2 + $0x8] sm:$0xf]
      %v414 = vld [vmem:[#allocation2 + $0xc] sm:$0xf]
      %v415 = vld [vmem:[#allocation2 + $0x10] sm:$0xf]
      %v416 = vld [vmem:[#allocation2 + $0x14] sm:$0xf]
      %v417 = vld [vmem:[#allocation2 + $0x18] sm:$0xf]
      %v418 = vld [vmem:[#allocation2 + $0x1c] sm:$0xf]
      %v419 = vld [vmem:[#allocation2 + $0x20] sm:$0xf]
      %v420 = vld [vmem:[#allocation2 + $0x24] sm:$0xf]
      %v421 = vld [vmem:[#allocation2 + $0x28] sm:$0xf]
      %v422 = vld [vmem:[#allocation2 + $0x2c] sm:$0xf]
      %v423 = vld [vmem:[#allocation2 + $0x30] sm:$0xf]
      %v424 = vld [vmem:[#allocation2 + $0x34] sm:$0xf]
      %v425 = vld [vmem:[#allocation2 + $0x38] sm:$0xf]
      %v426 = vld [vmem:[#allocation2 + $0x3c] sm:$0xf]
      %v427 = vld [vmem:[#allocation2 + $0x40] sm:$0xf]
      %v428 = vld [vmem:[#allocation2 + $0x44] sm:$0xf]
      %v429 = vld [vmem:[#allocation2 + $0x48] sm:$0xf]
      %v430 = vld [vmem:[#allocation2 + $0x4c] sm:$0xf]
      %v431 = vld [vmem:[#allocation2 + $0x50] sm:$0xf]
      %v432 = vld [vmem:[#allocation2 + $0x54] sm:$0xf]
      %v433 = vld [vmem:[#allocation2 + $0x58] sm:$0xf]
      %v434 = vld [vmem:[#allocation2 + $0x5c] sm:$0xf]
      %v435 = vld [vmem:[#allocation2 + $0x60] sm:$0xf]
      %v436 = vld [vmem:[#allocation2 + $0x64] sm:$0xf]
      %v437 = vld [vmem:[#allocation2 + $0x68] sm:$0xf]
      %v438 = vld [vmem:[#allocation2 + $0x6c] sm:$0xf]
      %v439 = vld [vmem:[#allocation2 + $0x70] sm:$0xf]
      %v440 = vld [vmem:[#allocation2 + $0x74] sm:$0xf]
      %v441 = vld [vmem:[#allocation2 + $0x78] sm:$0xf]
      %v442 = vld [vmem:[#allocation2 + $0x7c] sm:$0xf]
      %v443 = vld [vmem:[#allocation2 + $0x80] sm:$0xf]
      %v444 = vld [vmem:[#allocation2 + $0x84] sm:$0xf]
      %v445 = vld [vmem:[#allocation2 + $0x88] sm:$0xf]
      %v446 = vld [vmem:[#allocation2 + $0x8c] sm:$0xf]
      %v447 = vld [vmem:[#allocation2 + $0x90] sm:$0xf]
      %v448 = vld [vmem:[#allocation2 + $0x94] sm:$0xf]
      %v449 = vld [vmem:[#allocation2 + $0x98] sm:$0xf]
      %v450 = vld [vmem:[#allocation2 + $0x9c] sm:$0xf]
      %v451 = vld [vmem:[#allocation2 + $0xa0] sm:$0xf]
      %v452 = vld [vmem:[#allocation2 + $0xa4] sm:$0xf]
      %v453 = vld [vmem:[#allocation2 + $0xa8] sm:$0xf]
      %v454 = vld [vmem:[#allocation2 + $0xac] sm:$0xf]
      %v455 = vld [vmem:[#allocation2 + $0xb0] sm:$0xf]
      %v456 = vld [vmem:[#allocation2 + $0xb4] sm:$0xf]
      %v457 = vld [vmem:[#allocation2 + $0xb8] sm:$0xf]
      %v458 = vld [vmem:[#allocation2 + $0xbc] sm:$0xf]
      %v459 = vld [vmem:[#allocation2 + $0xc0] sm:$0xf]
      %v460 = vld [vmem:[#allocation2 + $0xc4] sm:$0xf]
      %v461 = vld [vmem:[#allocation2 + $0xc8] sm:$0xf]
      %v462 = vld [vmem:[#allocation2 + $0xcc] sm:$0xf]
      %v463 = vld [vmem:[#allocation2 + $0xd0] sm:$0xf]
      %v464 = vld [vmem:[#allocation2 + $0xd4] sm:$0xf]
      %v465 = vld [vmem:[#allocation2 + $0xd8] sm:$0xf]
      %v466 = vld [vmem:[#allocation2 + $0xdc] sm:$0xf]
      %v467 = vld [vmem:[#allocation2 + $0xe0] sm:$0xf]
      %v468 = vld [vmem:[#allocation2 + $0xe4] sm:$0xf]
      %v469 = vld [vmem:[#allocation2 + $0xe8] sm:$0xf]
      %v470 = vld [vmem:[#allocation2 + $0xec] sm:$0xf]
      %v471 = vld [vmem:[#allocation2 + $0xf0] sm:$0xf]
      %v472 = vld [vmem:[#allocation2 + $0xf4] sm:$0xf]
      %v473 = vld [vmem:[#allocation2 + $0xf8] sm:$0xf]
      %v474 = vld [vmem:[#allocation2 + $0xfc] sm:$0xf]
      %v475 = vld [vmem:[#allocation2 + $0x100] sm:$0xf]
      %v476 = vld [vmem:[#allocation2 + $0x104] sm:$0xf]
      %v477 = vld [vmem:[#allocation2 + $0x108] sm:$0xf]
      %v478 = vld [vmem:[#allocation2 + $0x10c] sm:$0xf]
      %v479 = vld [vmem:[#allocation2 + $0x110] sm:$0xf]
      %v480 = vld [vmem:[#allocation2 + $0x114] sm:$0xf]
      %v481 = vld [vmem:[#allocation2 + $0x118] sm:$0xf]
      %v482 = vld [vmem:[#allocation2 + $0x11c] sm:$0xf]
      %v483 = vld [vmem:[#allocation2 + $0x120] sm:$0xf]
      %v484 = vld [vmem:[#allocation2 + $0x124] sm:$0xf]
      %v485 = vld [vmem:[#allocation2 + $0x128] sm:$0xf]
      %v486 = vld [vmem:[#allocation2 + $0x12c] sm:$0xf]
      %v487 = vld [vmem:[#allocation2 + $0x130] sm:$0xf]
      %v488 = vld [vmem:[#allocation2 + $0x134] sm:$0xf]
      %v489 = vld [vmem:[#allocation2 + $0x138] sm:$0xf]
      %v490 = vld [vmem:[#allocation2 + $0x13c] sm:$0xf]
      %v555 = vunpack.c.l.b16 %v411
      %v556 = vunpack.c.l.b16 %v412
      %v557 = vunpack.c.l.b16 %v413
      %v558 = vunpack.c.l.b16 %v414
      %v559 = vunpack.c.l.b16 %v415
      %v560 = vunpack.c.l.b16 %v416
      %v561 = vunpack.c.l.b16 %v417
      %v562 = vunpack.c.l.b16 %v418
      %v563 = vunpack.c.l.b16 %v419
      %v564 = vunpack.c.l.b16 %v420
      %v565 = vunpack.c.l.b16 %v421
      %v566 = vunpack.c.l.b16 %v422
      %v567 = vunpack.c.l.b16 %v423
      %v568 = vunpack.c.l.b16 %v424
      %v569 = vunpack.c.l.b16 %v425
      %v570 = vunpack.c.l.b16 %v426
      %v571 = vunpack.c.l.b16 %v427
      %v572 = vunpack.c.l.b16 %v428
      %v573 = vunpack.c.l.b16 %v429
      %v574 = vunpack.c.l.b16 %v430
      %v575 = vunpack.c.l.b16 %v431
      %v576 = vunpack.c.l.b16 %v432
      %v577 = vunpack.c.l.b16 %v433
      %v578 = vunpack.c.l.b16 %v434
      %v579 = vunpack.c.l.b16 %v435
      %v580 = vunpack.c.l.b16 %v436
      %v581 = vunpack.c.l.b16 %v437
      %v582 = vunpack.c.l.b16 %v438
      %v583 = vunpack.c.l.b16 %v439
      %v584 = vunpack.c.l.b16 %v440
      %v585 = vunpack.c.l.b16 %v441
      %v586 = vunpack.c.l.b16 %v442
      %v587 = vunpack.c.l.b16 %v443
      %v588 = vunpack.c.l.b16 %v444
      %v589 = vunpack.c.l.b16 %v445
      %v590 = vunpack.c.l.b16 %v446
      %v591 = vunpack.c.l.b16 %v447
      %v592 = vunpack.c.l.b16 %v448
      %v593 = vunpack.c.l.b16 %v449
      %v594 = vunpack.c.l.b16 %v450
      %v595 = vunpack.c.l.b16 %v451
      %v596 = vunpack.c.l.b16 %v452
      %v597 = vunpack.c.l.b16 %v453
      %v598 = vunpack.c.l.b16 %v454
      %v599 = vunpack.c.l.b16 %v455
      %v600 = vunpack.c.l.b16 %v456
      %v601 = vunpack.c.l.b16 %v457
      %v602 = vunpack.c.l.b16 %v458
      %v603 = vunpack.c.l.b16 %v459
      %v604 = vunpack.c.l.b16 %v460
      %v605 = vunpack.c.l.b16 %v461
      %v606 = vunpack.c.l.b16 %v462
      %v607 = vunpack.c.l.b16 %v463
      %v608 = vunpack.c.l.b16 %v464
      %v609 = vunpack.c.l.b16 %v465
      %v610 = vunpack.c.l.b16 %v466
      %v611 = vunpack.c.l.b16 %v467
      %v612 = vunpack.c.l.b16 %v468
      %v613 = vunpack.c.l.b16 %v469
      %v614 = vunpack.c.l.b16 %v470
      %v615 = vunpack.c.l.b16 %v471
      %v616 = vunpack.c.l.b16 %v472
      %v617 = vunpack.c.l.b16 %v473
      %v618 = vunpack.c.l.b16 %v474
      %v619 = vpack.c.b16 %v556, %v555
      %v620 = vpack.c.b16 %v558, %v557
      %v621 = vpack.c.b16 %v560, %v559
      %v622 = vpack.c.b16 %v562, %v561
      %v623 = vpack.c.b16 %v564, %v563
      %v624 = vpack.c.b16 %v566, %v565
      %v625 = vpack.c.b16 %v568, %v567
      %v626 = vpack.c.b16 %v570, %v569
      %v627 = vpack.c.b16 %v572, %v571
      %v628 = vpack.c.b16 %v574, %v573
      %v629 = vpack.c.b16 %v576, %v575
      %v630 = vpack.c.b16 %v578, %v577
      %v631 = vpack.c.b16 %v580, %v579
      %v632 = vpack.c.b16 %v582, %v581
      %v633 = vpack.c.b16 %v584, %v583
      %v634 = vpack.c.b16 %v586, %v585
      %v635 = vpack.c.b16 %v588, %v587
      %v636 = vpack.c.b16 %v590, %v589
      %v637 = vpack.c.b16 %v592, %v591
      %v638 = vpack.c.b16 %v594, %v593
      %v639 = vpack.c.b16 %v596, %v595
      %v640 = vpack.c.b16 %v598, %v597
      %v641 = vpack.c.b16 %v600, %v599
      %v642 = vpack.c.b16 %v602, %v601
      %v643 = vpack.c.b16 %v604, %v603
      %v644 = vpack.c.b16 %v606, %v605
      %v645 = vpack.c.b16 %v608, %v607
      %v646 = vpack.c.b16 %v610, %v609
      %v647 = vpack.c.b16 %v612, %v611
      %v648 = vpack.c.b16 %v614, %v613
      %v649 = vpack.c.b16 %v616, %v615
      %v650 = vpack.c.b16 %v618, %v617
      %v691 = vunpack.c.l.b16 %v475
      %v692 = vunpack.c.l.b16 %v476
      %v693 = vunpack.c.l.b16 %v477
      %v694 = vunpack.c.l.b16 %v478
      %v695 = vunpack.c.l.b16 %v479
      %v696 = vunpack.c.l.b16 %v480
      %v697 = vunpack.c.l.b16 %v481
      %v698 = vunpack.c.l.b16 %v482
      %v699 = vpack.c.b16 %v692, %v691
      %v700 = vpack.c.b16 %v694, %v693
      %v701 = vpack.c.b16 %v696, %v695
      %v702 = vpack.c.b16 %v698, %v697
      %v715 = vunpack.c.l.b16 %v483
      %v716 = vunpack.c.l.b16 %v484
      %v717 = vunpack.c.l.b16 %v485
      %v718 = vunpack.c.l.b16 %v486
      %v719 = vunpack.c.l.b16 %v487
      %v720 = vunpack.c.l.b16 %v488
      %v721 = vunpack.c.l.b16 %v489
      %v722 = vunpack.c.l.b16 %v490
      %v723 = vpack.c.b16 %v716, %v715
      %v724 = vpack.c.b16 %v718, %v717
      %v725 = vpack.c.b16 %v720, %v719
      %v726 = vpack.c.b16 %v722, %v721
      %v731 = vld [vmem:[%s1] sm:$0xf]
      %v732 = vld [vmem:[%s1 + $0x4] sm:$0xf]
      %v733 = vld [vmem:[%s1 + $0x8] sm:$0xf]
      %v734 = vld [vmem:[%s1 + $0xc] sm:$0xf]
      %v735 = vld [vmem:[%s1 + $0x10] sm:$0xf]
      %v736 = vld [vmem:[%s1 + $0x14] sm:$0xf]
      %v737 = vld [vmem:[%s1 + $0x18] sm:$0xf]
      %v738 = vld [vmem:[%s1 + $0x1c] sm:$0xf]
      %v739 = vld [vmem:[%s1 + $0x20] sm:$0xf]
      %v740 = vld [vmem:[%s1 + $0x24] sm:$0xf]
      %v741 = vld [vmem:[%s1 + $0x28] sm:$0xf]
      %v742 = vld [vmem:[%s1 + $0x2c] sm:$0xf]
      %v743 = vld [vmem:[%s1 + $0x30] sm:$0xf]
      %v744 = vld [vmem:[%s1 + $0x34] sm:$0xf]
      %v745 = vld [vmem:[%s1 + $0x38] sm:$0xf]
      %v746 = vld [vmem:[%s1 + $0x3c] sm:$0xf]
      %v747 = vld [vmem:[%s1 + $0x40] sm:$0xf]
      %v748 = vld [vmem:[%s1 + $0x44] sm:$0xf]
      %v749 = vld [vmem:[%s1 + $0x48] sm:$0xf]
      %v750 = vld [vmem:[%s1 + $0x4c] sm:$0xf]
      %v751 = vld [vmem:[%s1 + $0x50] sm:$0xf]
      %v752 = vld [vmem:[%s1 + $0x54] sm:$0xf]
      %v753 = vld [vmem:[%s1 + $0x58] sm:$0xf]
      %v754 = vld [vmem:[%s1 + $0x5c] sm:$0xf]
      %v755 = vld [vmem:[%s1 + $0x60] sm:$0xf]
      %v756 = vld [vmem:[%s1 + $0x64] sm:$0xf]
      %v757 = vld [vmem:[%s1 + $0x68] sm:$0xf]
      %v758 = vld [vmem:[%s1 + $0x6c] sm:$0xf]
      %v759 = vld [vmem:[%s1 + $0x70] sm:$0xf]
      %v760 = vld [vmem:[%s1 + $0x74] sm:$0xf]
      %v761 = vld [vmem:[%s1 + $0x78] sm:$0xf]
      %v762 = vld [vmem:[%s1 + $0x7c] sm:$0xf]
      %v763 = vld [vmem:[%s1 + $0x80] sm:$0xf]
      %v764 = vld [vmem:[%s1 + $0x84] sm:$0xf]
      %v765 = vld [vmem:[%s1 + $0x88] sm:$0xf]
      %v766 = vld [vmem:[%s1 + $0x8c] sm:$0xf]
      %v767 = vld [vmem:[%s1 + $0x90] sm:$0xf]
      %v768 = vld [vmem:[%s1 + $0x94] sm:$0xf]
      %v769 = vld [vmem:[%s1 + $0x98] sm:$0xf]
      %v770 = vld [vmem:[%s1 + $0x9c] sm:$0xf]
      %v771 = vld [vmem:[%s1 + $0xa0] sm:$0xf]
      %v772 = vld [vmem:[%s1 + $0xa4] sm:$0xf]
      %v773 = vld [vmem:[%s1 + $0xa8] sm:$0xf]
      %v774 = vld [vmem:[%s1 + $0xac] sm:$0xf]
      %v775 = vld [vmem:[%s1 + $0xb0] sm:$0xf]
      %v776 = vld [vmem:[%s1 + $0xb4] sm:$0xf]
      %v777 = vld [vmem:[%s1 + $0xb8] sm:$0xf]
      %v778 = vld [vmem:[%s1 + $0xbc] sm:$0xf]
      %v779 = vld [vmem:[%s2] sm:$0x1]
      %v781 = vlaneseq
      %v782 = vshrl.u32 %v781, 7
      %v783 = vsub.s32 0, %v782
      %v784 = vrot.slane %v779, %v783
      %v834 = vunpack.c.l.b16 %v731
      %v835 = vunpack.c.l.b16 %v732
      %v836 = vunpack.c.l.b16 %v733
      %v837 = vunpack.c.l.b16 %v734
      %v838 = vunpack.c.l.b16 %v735
      %v839 = vunpack.c.l.b16 %v736
      %v840 = vunpack.c.l.b16 %v737
      %v841 = vunpack.c.l.b16 %v738
      %v842 = vunpack.c.l.b16 %v739
      %v843 = vunpack.c.l.b16 %v740
      %v844 = vunpack.c.l.b16 %v741
      %v845 = vunpack.c.l.b16 %v742
      %v846 = vunpack.c.l.b16 %v743
      %v847 = vunpack.c.l.b16 %v744
      %v848 = vunpack.c.l.b16 %v745
      %v849 = vunpack.c.l.b16 %v746
      %v850 = vunpack.c.l.b16 %v747
      %v851 = vunpack.c.l.b16 %v748
      %v852 = vunpack.c.l.b16 %v749
      %v853 = vunpack.c.l.b16 %v750
      %v854 = vunpack.c.l.b16 %v751
      %v855 = vunpack.c.l.b16 %v752
      %v856 = vunpack.c.l.b16 %v753
      %v857 = vunpack.c.l.b16 %v754
      %v858 = vunpack.c.l.b16 %v755
      %v859 = vunpack.c.l.b16 %v756
      %v860 = vunpack.c.l.b16 %v757
      %v861 = vunpack.c.l.b16 %v758
      %v862 = vunpack.c.l.b16 %v759
      %v863 = vunpack.c.l.b16 %v760
      %v864 = vunpack.c.l.b16 %v761
      %v865 = vunpack.c.l.b16 %v762
      %v866 = vunpack.c.l.b16 %v763
      %v867 = vunpack.c.l.b16 %v764
      %v868 = vunpack.c.l.b16 %v765
      %v869 = vunpack.c.l.b16 %v766
      %v870 = vunpack.c.l.b16 %v767
      %v871 = vunpack.c.l.b16 %v768
      %v872 = vunpack.c.l.b16 %v769
      %v873 = vunpack.c.l.b16 %v770
      %v874 = vunpack.c.l.b16 %v771
      %v875 = vunpack.c.l.b16 %v772
      %v876 = vunpack.c.l.b16 %v773
      %v877 = vunpack.c.l.b16 %v774
      %v878 = vunpack.c.l.b16 %v775
      %v879 = vunpack.c.l.b16 %v776
      %v880 = vunpack.c.l.b16 %v777
      %v881 = vunpack.c.l.b16 %v778
      %v882 = vpack.c.b16 %v835, %v834
      %v883 = vpack.c.b16 %v837, %v836
      %v884 = vpack.c.b16 %v839, %v838
      %v885 = vpack.c.b16 %v841, %v840
      %v886 = vpack.c.b16 %v843, %v842
      %v887 = vpack.c.b16 %v845, %v844
      %v888 = vpack.c.b16 %v847, %v846
      %v889 = vpack.c.b16 %v849, %v848
      %v890 = vpack.c.b16 %v851, %v850
      %v891 = vpack.c.b16 %v853, %v852
      %v892 = vpack.c.b16 %v855, %v854
      %v893 = vpack.c.b16 %v857, %v856
      %v894 = vpack.c.b16 %v859, %v858
      %v895 = vpack.c.b16 %v861, %v860
      %v896 = vpack.c.b16 %v863, %v862
      %v897 = vpack.c.b16 %v865, %v864
      %v898 = vpack.c.b16 %v867, %v866
      %v899 = vpack.c.b16 %v869, %v868
      %v900 = vpack.c.b16 %v871, %v870
      %v901 = vpack.c.b16 %v873, %v872
      %v902 = vpack.c.b16 %v875, %v874
      %v903 = vpack.c.b16 %v877, %v876
      %v904 = vpack.c.b16 %v879, %v878
      %v905 = vpack.c.b16 %v881, %v880
      %930 = vmatprep.subr.bf16.mxu0 0
      %931 = vmatpush1.bf16.msra.mxu0 %v889
      %932 = vmatprep.subr.bf16.mxu0 0
      %933 = vmatpush1.bf16.msra.mxu0 %v888
      %934 = vmatprep.subr.bf16.mxu0 0
      %935 = vmatpush1.bf16.msra.mxu0 %v887
      %936 = vmatprep.subr.bf16.mxu0 0
      %937 = vmatpush1.bf16.msra.mxu0 %v886
      %938 = vmatprep.subr.bf16.mxu0 0
      %939 = vmatpush1.bf16.msra.mxu0 %v885
      %940 = vmatprep.subr.bf16.mxu0 0
      %941 = vmatpush1.bf16.msra.mxu0 %v884
      %942 = vmatprep.subr.bf16.mxu0 0
      %943 = vmatpush1.bf16.msra.mxu0 %v883
      %944 = vmatprep.subr.bf16.mxu0 0
      %945 = vmatpush1.bf16.msra.mxu0 %v882
      %946 = vmatprep.subr.bf16.mxu0 0
      %947 = vmatpush2.bf16.msra.mxu0 %v897
      %948 = vmatprep.subr.bf16.mxu0 0
      %949 = vmatpush2.bf16.msra.mxu0 %v896
      %950 = vmatprep.subr.bf16.mxu0 0
      %951 = vmatpush2.bf16.msra.mxu0 %v895
      %952 = vmatprep.subr.bf16.mxu0 0
      %953 = vmatpush2.bf16.msra.mxu0 %v894
      %954 = vmatprep.subr.bf16.mxu0 0
      %955 = vmatpush2.bf16.msra.mxu0 %v893
      %956 = vmatprep.subr.bf16.mxu0 0
      %957 = vmatpush2.bf16.msra.mxu0 %v892
      %958 = vmatprep.subr.bf16.mxu0 0
      %959 = vmatpush2.bf16.msra.mxu0 %v891
      %960 = vmatprep.subr.bf16.mxu0 0
      %961 = vmatpush2.bf16.msra.mxu0 %v890
      %962 = vmatprep.mubr.bf16.mxu0 %v623
      %963 = vmatmul.mubr.bf16.gmra.mxu0 %v619
      %v964 = vpop.f32.mrf.mxu0
      %v965 = vadd.f32 %v784, %v964
      %v966 = vpop.f32.mrf.mxu0
      %v967 = vpop.f32.mrf.mxu0
      %v968 = vadd.f32 %v784, %v967
      %v969 = vpop.f32.mrf.mxu0
      %970 = vmatprep.mubr.bf16.mxu0 %v624
      %971 = vmatmul.mubr.bf16.gmra.mxu0 %v620
      %v972 = vpop.f32.mrf.mxu0
      %v973 = vadd.f32 %v784, %v972
      %v974 = vpop.f32.mrf.mxu0
      %v975 = vpop.f32.mrf.mxu0
      %v976 = vadd.f32 %v784, %v975
      %v977 = vpop.f32.mrf.mxu0
      %978 = vmatprep.mubr.bf16.mxu0 %v625
      %979 = vmatmul.mubr.bf16.gmra.mxu0 %v621
      %v980 = vpop.f32.mrf.mxu0
      %v981 = vadd.f32 %v784, %v980
      %v982 = vpop.f32.mrf.mxu0
      %v983 = vpop.f32.mrf.mxu0
      %v984 = vadd.f32 %v784, %v983
      %v985 = vpop.f32.mrf.mxu0
      %986 = vmatprep.mubr.bf16.mxu0 %v626
      %987 = vmatmul.mubr.bf16.gmra.mxu0 %v622
      %v988 = vpop.f32.mrf.mxu0
      %v989 = vadd.f32 %v784, %v988
      %v990 = vpop.f32.mrf.mxu0
      %v991 = vpop.f32.mrf.mxu0
      %v992 = vadd.f32 %v784, %v991
      %v993 = vpop.f32.mrf.mxu0
      %994 = vmatprep.mubr.bf16.mxu0 %v627
      %995 = vmatmul.mubr.bf16.gmra.mxu0 %v623
      %v996 = vpop.f32.mrf.mxu0
      %v997 = vadd.f32 %v784, %v996
      %v998 = vpop.f32.mrf.mxu0
      %v999 = vpop.f32.mrf.mxu0
      %v1000 = vadd.f32 %v784, %v999
      %v1001 = vpop.f32.mrf.mxu0
      %1002 = vmatprep.mubr.bf16.mxu0 %v628
      %1003 = vmatmul.mubr.bf16.gmra.mxu0 %v624
      %v1004 = vpop.f32.mrf.mxu0
      %v1005 = vadd.f32 %v784, %v1004
      %v1006 = vpop.f32.mrf.mxu0
      %v1007 = vpop.f32.mrf.mxu0
      %v1008 = vadd.f32 %v784, %v1007
      %v1009 = vpop.f32.mrf.mxu0
      %1010 = vmatprep.mubr.bf16.mxu0 %v629
      %1011 = vmatmul.mubr.bf16.gmra.mxu0 %v625
      %v1012 = vpop.f32.mrf.mxu0
      %v1013 = vadd.f32 %v784, %v1012
      %v1014 = vpop.f32.mrf.mxu0
      %v1015 = vpop.f32.mrf.mxu0
      %v1016 = vadd.f32 %v784, %v1015
      %v1017 = vpop.f32.mrf.mxu0
      %1018 = vmatprep.mubr.bf16.mxu0 %v630
      %1019 = vmatmul.mubr.bf16.gmra.mxu0 %v626
      %v1020 = vpop.f32.mrf.mxu0
      %v1021 = vadd.f32 %v784, %v1020
      %v1022 = vpop.f32.mrf.mxu0
      %v1023 = vpop.f32.mrf.mxu0
      %v1024 = vadd.f32 %v784, %v1023
      %v1025 = vpop.f32.mrf.mxu0
      %1026 = vmatprep.mubr.bf16.mxu0 %v631
      %1027 = vmatmul.mubr.bf16.gmra.mxu0 %v627
      %v1028 = vpop.f32.mrf.mxu0
      %v1029 = vadd.f32 %v784, %v1028
      %v1030 = vpop.f32.mrf.mxu0
      %v1031 = vpop.f32.mrf.mxu0
      %v1032 = vadd.f32 %v784, %v1031
      %v1033 = vpop.f32.mrf.mxu0
      %1034 = vmatprep.mubr.bf16.mxu0 %v632
      %1035 = vmatmul.mubr.bf16.gmra.mxu0 %v628
      %v1036 = vpop.f32.mrf.mxu0
      %v1037 = vadd.f32 %v784, %v1036
      %v1038 = vpop.f32.mrf.mxu0
      %v1039 = vpop.f32.mrf.mxu0
      %v1040 = vadd.f32 %v784, %v1039
      %v1041 = vpop.f32.mrf.mxu0
      %1042 = vmatprep.mubr.bf16.mxu0 %v633
      %1043 = vmatmul.mubr.bf16.gmra.mxu0 %v629
      %v1044 = vpop.f32.mrf.mxu0
      %v1045 = vadd.f32 %v784, %v1044
      %v1046 = vpop.f32.mrf.mxu0
      %v1047 = vpop.f32.mrf.mxu0
      %v1048 = vadd.f32 %v784, %v1047
      %v1049 = vpop.f32.mrf.mxu0
      %1050 = vmatprep.mubr.bf16.mxu0 %v634
      %1051 = vmatmul.mubr.bf16.gmra.mxu0 %v630
      %v1052 = vpop.f32.mrf.mxu0
      %v1053 = vadd.f32 %v784, %v1052
      %v1054 = vpop.f32.mrf.mxu0
      %v1055 = vpop.f32.mrf.mxu0
      %v1056 = vadd.f32 %v784, %v1055
      %v1057 = vpop.f32.mrf.mxu0
      %1058 = vmatprep.mubr.bf16.mxu0 %v635
      %1059 = vmatmul.mubr.bf16.gmra.mxu0 %v631
      %v1060 = vpop.f32.mrf.mxu0
      %v1061 = vadd.f32 %v784, %v1060
      %v1062 = vpop.f32.mrf.mxu0
      %v1063 = vpop.f32.mrf.mxu0
      %v1064 = vadd.f32 %v784, %v1063
      %v1065 = vpop.f32.mrf.mxu0
      %1066 = vmatprep.mubr.bf16.mxu0 %v636
      %1067 = vmatmul.mubr.bf16.gmra.mxu0 %v632
      %v1068 = vpop.f32.mrf.mxu0
      %v1069 = vadd.f32 %v784, %v1068
      %v1070 = vpop.f32.mrf.mxu0
      %v1071 = vpop.f32.mrf.mxu0
      %v1072 = vadd.f32 %v784, %v1071
      %v1073 = vpop.f32.mrf.mxu0
      %1074 = vmatprep.mubr.bf16.mxu0 %v637
      %1075 = vmatmul.mubr.bf16.gmra.mxu0 %v633
      %v1076 = vpop.f32.mrf.mxu0
      %v1077 = vadd.f32 %v784, %v1076
      %v1078 = vpop.f32.mrf.mxu0
      %v1079 = vpop.f32.mrf.mxu0
      %v1080 = vadd.f32 %v784, %v1079
      %v1081 = vpop.f32.mrf.mxu0
      %1082 = vmatprep.mubr.bf16.mxu0 %v638
      %1083 = vmatmul.mubr.bf16.gmra.mxu0 %v634
      %v1084 = vpop.f32.mrf.mxu0
      %v1085 = vadd.f32 %v784, %v1084
      %v1086 = vpop.f32.mrf.mxu0
      %v1087 = vpop.f32.mrf.mxu0
      %v1088 = vadd.f32 %v784, %v1087
      %v1089 = vpop.f32.mrf.mxu0
      %1090 = vmatprep.mubr.bf16.mxu0 %v639
      %1091 = vmatmul.mubr.bf16.gmra.mxu0 %v635
      %v1092 = vpop.f32.mrf.mxu0
      %v1093 = vadd.f32 %v784, %v1092
      %v1094 = vpop.f32.mrf.mxu0
      %v1095 = vpop.f32.mrf.mxu0
      %v1096 = vadd.f32 %v784, %v1095
      %v1097 = vpop.f32.mrf.mxu0
      %1098 = vmatprep.mubr.bf16.mxu0 %v640
      %1099 = vmatmul.mubr.bf16.gmra.mxu0 %v636
      %v1100 = vpop.f32.mrf.mxu0
      %v1101 = vadd.f32 %v784, %v1100
      %v1102 = vpop.f32.mrf.mxu0
      %v1103 = vpop.f32.mrf.mxu0
      %v1104 = vadd.f32 %v784, %v1103
      %v1105 = vpop.f32.mrf.mxu0
      %1106 = vmatprep.mubr.bf16.mxu0 %v641
      %1107 = vmatmul.mubr.bf16.gmra.mxu0 %v637
      %v1108 = vpop.f32.mrf.mxu0
      %v1109 = vadd.f32 %v784, %v1108
      %v1110 = vpop.f32.mrf.mxu0
      %v1111 = vpop.f32.mrf.mxu0
      %v1112 = vadd.f32 %v784, %v1111
      %v1113 = vpop.f32.mrf.mxu0
      %1114 = vmatprep.mubr.bf16.mxu0 %v642
      %1115 = vmatmul.mubr.bf16.gmra.mxu0 %v638
      %v1116 = vpop.f32.mrf.mxu0
      %v1117 = vadd.f32 %v784, %v1116
      %v1118 = vpop.f32.mrf.mxu0
      %v1119 = vpop.f32.mrf.mxu0
      %v1120 = vadd.f32 %v784, %v1119
      %v1121 = vpop.f32.mrf.mxu0
      %1122 = vmatprep.mubr.bf16.mxu0 %v643
      %1123 = vmatmul.mubr.bf16.gmra.mxu0 %v639
      %v1124 = vpop.f32.mrf.mxu0
      %v1125 = vadd.f32 %v784, %v1124
      %v1126 = vpop.f32.mrf.mxu0
      %v1127 = vpop.f32.mrf.mxu0
      %v1128 = vadd.f32 %v784, %v1127
      %v1129 = vpop.f32.mrf.mxu0
      %1130 = vmatprep.mubr.bf16.mxu0 %v644
      %1131 = vmatmul.mubr.bf16.gmra.mxu0 %v640
      %v1132 = vpop.f32.mrf.mxu0
      %v1133 = vadd.f32 %v784, %v1132
      %v1134 = vpop.f32.mrf.mxu0
      %v1135 = vpop.f32.mrf.mxu0
      %v1136 = vadd.f32 %v784, %v1135
      %v1137 = vpop.f32.mrf.mxu0
      %1138 = vmatprep.mubr.bf16.mxu0 %v645
      %1139 = vmatmul.mubr.bf16.gmra.mxu0 %v641
      %v1140 = vpop.f32.mrf.mxu0
      %v1141 = vadd.f32 %v784, %v1140
      %v1142 = vpop.f32.mrf.mxu0
      %v1143 = vpop.f32.mrf.mxu0
      %v1144 = vadd.f32 %v784, %v1143
      %v1145 = vpop.f32.mrf.mxu0
      %1146 = vmatprep.mubr.bf16.mxu0 %v646
      %1147 = vmatmul.mubr.bf16.gmra.mxu0 %v642
      %v1148 = vpop.f32.mrf.mxu0
      %v1149 = vadd.f32 %v784, %v1148
      %v1150 = vpop.f32.mrf.mxu0
      %v1151 = vpop.f32.mrf.mxu0
      %v1152 = vadd.f32 %v784, %v1151
      %v1153 = vpop.f32.mrf.mxu0
      %1154 = vmatprep.mubr.bf16.mxu0 %v647
      %1155 = vmatmul.mubr.bf16.gmra.mxu0 %v643
      %v1156 = vpop.f32.mrf.mxu0
      %v1157 = vadd.f32 %v784, %v1156
      %v1158 = vpop.f32.mrf.mxu0
      %v1159 = vpop.f32.mrf.mxu0
      %v1160 = vadd.f32 %v784, %v1159
      %v1161 = vpop.f32.mrf.mxu0
      %1162 = vmatprep.mubr.bf16.mxu0 %v648
      %1163 = vmatmul.mubr.bf16.gmra.mxu0 %v644
      %v1164 = vpop.f32.mrf.mxu0
      %v1165 = vadd.f32 %v784, %v1164
      %v1166 = vpop.f32.mrf.mxu0
      %v1167 = vpop.f32.mrf.mxu0
      %v1168 = vadd.f32 %v784, %v1167
      %v1169 = vpop.f32.mrf.mxu0
      %1170 = vmatprep.mubr.bf16.mxu0 %v649
      %1171 = vmatmul.mubr.bf16.gmra.mxu0 %v645
      %v1172 = vpop.f32.mrf.mxu0
      %v1173 = vadd.f32 %v784, %v1172
      %v1174 = vpop.f32.mrf.mxu0
      %v1175 = vpop.f32.mrf.mxu0
      %v1176 = vadd.f32 %v784, %v1175
      %v1177 = vpop.f32.mrf.mxu0
      %1178 = vmatprep.mubr.bf16.mxu0 %v650
      %1179 = vmatmul.mubr.bf16.gmra.mxu0 %v646
      %v1180 = vpop.f32.mrf.mxu0
      %v1181 = vadd.f32 %v784, %v1180
      %v1182 = vpop.f32.mrf.mxu0
      %v1183 = vpop.f32.mrf.mxu0
      %v1184 = vadd.f32 %v784, %v1183
      %v1185 = vpop.f32.mrf.mxu0
      %1186 = vmatprep.mubr.bf16.mxu0 %v699
      %1187 = vmatmul.mubr.bf16.gmra.mxu0 %v647
      %v1188 = vpop.f32.mrf.mxu0
      %v1189 = vadd.f32 %v784, %v1188
      %v1190 = vpop.f32.mrf.mxu0
      %v1191 = vpop.f32.mrf.mxu0
      %v1192 = vadd.f32 %v784, %v1191
      %v1193 = vpop.f32.mrf.mxu0
      %1194 = vmatprep.mubr.bf16.mxu0 %v700
      %1195 = vmatmul.mubr.bf16.gmra.mxu0 %v648
      %v1196 = vpop.f32.mrf.mxu0
      %v1197 = vadd.f32 %v784, %v1196
      %v1198 = vpop.f32.mrf.mxu0
      %v1199 = vpop.f32.mrf.mxu0
      %v1200 = vadd.f32 %v784, %v1199
      %v1201 = vpop.f32.mrf.mxu0
      %1202 = vmatprep.mubr.bf16.mxu0 %v701
      %1203 = vmatmul.mubr.bf16.gmra.mxu0 %v649
      %v1204 = vpop.f32.mrf.mxu0
      %v1205 = vadd.f32 %v784, %v1204
      %v1206 = vpop.f32.mrf.mxu0
      %v1207 = vpop.f32.mrf.mxu0
      %v1208 = vadd.f32 %v784, %v1207
      %v1209 = vpop.f32.mrf.mxu0
      %1210 = vmatprep.mubr.bf16.mxu0 %v702
      %1211 = vmatmul.mubr.bf16.gmra.mxu0 %v650
      %v1212 = vpop.f32.mrf.mxu0
      %v1213 = vadd.f32 %v784, %v1212
      %v1214 = vpop.f32.mrf.mxu0
      %v1215 = vpop.f32.mrf.mxu0
      %v1216 = vadd.f32 %v784, %v1215
      %v1217 = vpop.f32.mrf.mxu0
      %1218 = vdwg.mxu0
      %1219 = vmatprep.subr.bf16.mxu0 0
      %1220 = vmatpush1.bf16.msra.mxu0 %v905
      %1221 = vmatprep.subr.bf16.mxu0 0
      %1222 = vmatpush1.bf16.msra.mxu0 %v904
      %1223 = vmatprep.subr.bf16.mxu0 0
      %1224 = vmatpush1.bf16.msra.mxu0 %v903
      %1225 = vmatprep.subr.bf16.mxu0 0
      %1226 = vmatpush1.bf16.msra.mxu0 %v902
      %1227 = vmatprep.subr.bf16.mxu0 0
      %1228 = vmatpush1.bf16.msra.mxu0 %v901
      %1229 = vmatprep.subr.bf16.mxu0 0
      %1230 = vmatpush1.bf16.msra.mxu0 %v900
      %1231 = vmatprep.subr.bf16.mxu0 0
      %1232 = vmatpush1.bf16.msra.mxu0 %v899
      %1233 = vmatprep.subr.bf16.mxu0 0
      %1234 = vmatpush1.bf16.msra.mxu0 %v898
      %1235 = vmatprep.subr.bf16.mxu0 0
      %1236 = vmatpush2.bf16.msra.mxu0 0
      %1237 = vmatprep.subr.bf16.mxu0 0
      %1238 = vmatpush2.bf16.msra.mxu0 0
      %1239 = vmatprep.subr.bf16.mxu0 0
      %1240 = vmatpush2.bf16.msra.mxu0 0
      %1241 = vmatprep.subr.bf16.mxu0 0
      %1242 = vmatpush2.bf16.msra.mxu0 0
      %1243 = vmatprep.subr.bf16.mxu0 0
      %1244 = vmatpush2.bf16.msra.mxu0 0
      %1245 = vmatprep.subr.bf16.mxu0 0
      %1246 = vmatpush2.bf16.msra.mxu0 0
      %1247 = vmatprep.subr.bf16.mxu0 0
      %1248 = vmatpush2.bf16.msra.mxu0 0
      %1249 = vmatprep.subr.bf16.mxu0 0
      %1250 = vmatpush2.bf16.msra.mxu0 0
      %1251 = vmatprep.mubr.bf16.mxu0 0
      %1252 = vmatmul.mubr.bf16.gmra.mxu0 %v627
      %v1253 = vpop.f32.mrf.mxu0
      %v1254 = vadd.f32 %v965, %v1253
      %v1255 = vpop.f32.mrf.mxu0
      %v1256 = vpop.f32.mrf.mxu0
      %v1257 = vadd.f32 %v968, %v1256
      %v1258 = vpop.f32.mrf.mxu0
      %1259 = vmatprep.mubr.bf16.mxu0 0
      %1260 = vmatmul.mubr.bf16.gmra.mxu0 %v628
      %v1261 = vpop.f32.mrf.mxu0
      %v1262 = vadd.f32 %v973, %v1261
      %v1263 = vpop.f32.mrf.mxu0
      %v1264 = vpop.f32.mrf.mxu0
      %v1265 = vadd.f32 %v976, %v1264
      %v1266 = vpop.f32.mrf.mxu0
      %1267 = vmatprep.mubr.bf16.mxu0 0
      %1268 = vmatmul.mubr.bf16.gmra.mxu0 %v629
      %v1269 = vpop.f32.mrf.mxu0
      %v1270 = vadd.f32 %v981, %v1269
      %v1271 = vpop.f32.mrf.mxu0
      %v1272 = vpop.f32.mrf.mxu0
      %v1273 = vadd.f32 %v984, %v1272
      %v1274 = vpop.f32.mrf.mxu0
      %1275 = vmatprep.mubr.bf16.mxu0 0
      %1276 = vmatmul.mubr.bf16.gmra.mxu0 %v630
      %v1277 = vpop.f32.mrf.mxu0
      %v1278 = vadd.f32 %v989, %v1277
      %v1279 = vpop.f32.mrf.mxu0
      %v1280 = vpop.f32.mrf.mxu0
      %v1281 = vadd.f32 %v992, %v1280
      %v1282 = vpop.f32.mrf.mxu0
      %1283 = vmatprep.mubr.bf16.mxu0 0
      %1284 = vmatmul.mubr.bf16.gmra.mxu0 %v631
      %v1285 = vpop.f32.mrf.mxu0
      %v1286 = vadd.f32 %v997, %v1285
      %v1287 = vpop.f32.mrf.mxu0
      %v1288 = vpop.f32.mrf.mxu0
      %v1289 = vadd.f32 %v1000, %v1288
      %v1290 = vpop.f32.mrf.mxu0
      %1291 = vmatprep.mubr.bf16.mxu0 0
      %1292 = vmatmul.mubr.bf16.gmra.mxu0 %v632
      %v1293 = vpop.f32.mrf.mxu0
      %v1294 = vadd.f32 %v1005, %v1293
      %v1295 = vpop.f32.mrf.mxu0
      %v1296 = vpop.f32.mrf.mxu0
      %v1297 = vadd.f32 %v1008, %v1296
      %v1298 = vpop.f32.mrf.mxu0
      %1299 = vmatprep.mubr.bf16.mxu0 0
      %1300 = vmatmul.mubr.bf16.gmra.mxu0 %v633
      %v1301 = vpop.f32.mrf.mxu0
      %v1302 = vadd.f32 %v1013, %v1301
      %v1303 = vpop.f32.mrf.mxu0
      %v1304 = vpop.f32.mrf.mxu0
      %v1305 = vadd.f32 %v1016, %v1304
      %v1306 = vpop.f32.mrf.mxu0
      %1307 = vmatprep.mubr.bf16.mxu0 0
      %1308 = vmatmul.mubr.bf16.gmra.mxu0 %v634
      %v1309 = vpop.f32.mrf.mxu0
      %v1310 = vadd.f32 %v1021, %v1309
      %v1311 = vpop.f32.mrf.mxu0
      %v1312 = vpop.f32.mrf.mxu0
      %v1313 = vadd.f32 %v1024, %v1312
      %v1314 = vpop.f32.mrf.mxu0
      %1315 = vmatprep.mubr.bf16.mxu0 0
      %1316 = vmatmul.mubr.bf16.gmra.mxu0 %v635
      %v1317 = vpop.f32.mrf.mxu0
      %v1318 = vadd.f32 %v1029, %v1317
      %v1319 = vpop.f32.mrf.mxu0
      %v1320 = vpop.f32.mrf.mxu0
      %v1321 = vadd.f32 %v1032, %v1320
      %v1322 = vpop.f32.mrf.mxu0
      %1323 = vmatprep.mubr.bf16.mxu0 0
      %1324 = vmatmul.mubr.bf16.gmra.mxu0 %v636
      %v1325 = vpop.f32.mrf.mxu0
      %v1326 = vadd.f32 %v1037, %v1325
      %v1327 = vpop.f32.mrf.mxu0
      %v1328 = vpop.f32.mrf.mxu0
      %v1329 = vadd.f32 %v1040, %v1328
      %v1330 = vpop.f32.mrf.mxu0
      %1331 = vmatprep.mubr.bf16.mxu0 0
      %1332 = vmatmul.mubr.bf16.gmra.mxu0 %v637
      %v1333 = vpop.f32.mrf.mxu0
      %v1334 = vadd.f32 %v1045, %v1333
      %v1335 = vpop.f32.mrf.mxu0
      %v1336 = vpop.f32.mrf.mxu0
      %v1337 = vadd.f32 %v1048, %v1336
      %v1338 = vpop.f32.mrf.mxu0
      %1339 = vmatprep.mubr.bf16.mxu0 0
      %1340 = vmatmul.mubr.bf16.gmra.mxu0 %v638
      %v1341 = vpop.f32.mrf.mxu0
      %v1342 = vadd.f32 %v1053, %v1341
      %v1343 = vpop.f32.mrf.mxu0
      %v1344 = vpop.f32.mrf.mxu0
      %v1345 = vadd.f32 %v1056, %v1344
      %v1346 = vpop.f32.mrf.mxu0
      %1347 = vmatprep.mubr.bf16.mxu0 0
      %1348 = vmatmul.mubr.bf16.gmra.mxu0 %v639
      %v1349 = vpop.f32.mrf.mxu0
      %v1350 = vadd.f32 %v1061, %v1349
      %v1351 = vpop.f32.mrf.mxu0
      %v1352 = vpop.f32.mrf.mxu0
      %v1353 = vadd.f32 %v1064, %v1352
      %v1354 = vpop.f32.mrf.mxu0
      %1355 = vmatprep.mubr.bf16.mxu0 0
      %1356 = vmatmul.mubr.bf16.gmra.mxu0 %v640
      %v1357 = vpop.f32.mrf.mxu0
      %v1358 = vadd.f32 %v1069, %v1357
      %v1359 = vpop.f32.mrf.mxu0
      %v1360 = vpop.f32.mrf.mxu0
      %v1361 = vadd.f32 %v1072, %v1360
      %v1362 = vpop.f32.mrf.mxu0
      %1363 = vmatprep.mubr.bf16.mxu0 0
      %1364 = vmatmul.mubr.bf16.gmra.mxu0 %v641
      %v1365 = vpop.f32.mrf.mxu0
      %v1366 = vadd.f32 %v1077, %v1365
      %v1367 = vpop.f32.mrf.mxu0
      %v1368 = vpop.f32.mrf.mxu0
      %v1369 = vadd.f32 %v1080, %v1368
      %v1370 = vpop.f32.mrf.mxu0
      %1371 = vmatprep.mubr.bf16.mxu0 0
      %1372 = vmatmul.mubr.bf16.gmra.mxu0 %v642
      %v1373 = vpop.f32.mrf.mxu0
      %v1374 = vadd.f32 %v1085, %v1373
      %v1375 = vpop.f32.mrf.mxu0
      %v1376 = vpop.f32.mrf.mxu0
      %v1377 = vadd.f32 %v1088, %v1376
      %v1378 = vpop.f32.mrf.mxu0
      %1379 = vmatprep.mubr.bf16.mxu0 0
      %1380 = vmatmul.mubr.bf16.gmra.mxu0 %v643
      %v1381 = vpop.f32.mrf.mxu0
      %v1382 = vadd.f32 %v1093, %v1381
      %v1383 = vpop.f32.mrf.mxu0
      %v1384 = vpop.f32.mrf.mxu0
      %v1385 = vadd.f32 %v1096, %v1384
      %v1386 = vpop.f32.mrf.mxu0
      %1387 = vmatprep.mubr.bf16.mxu0 0
      %1388 = vmatmul.mubr.bf16.gmra.mxu0 %v644
      %v1389 = vpop.f32.mrf.mxu0
      %v1390 = vadd.f32 %v1101, %v1389
      %v1391 = vpop.f32.mrf.mxu0
      %v1392 = vpop.f32.mrf.mxu0
      %v1393 = vadd.f32 %v1104, %v1392
      %v1394 = vpop.f32.mrf.mxu0
      %1395 = vmatprep.mubr.bf16.mxu0 0
      %1396 = vmatmul.mubr.bf16.gmra.mxu0 %v645
      %v1397 = vpop.f32.mrf.mxu0
      %v1398 = vadd.f32 %v1109, %v1397
      %v1399 = vpop.f32.mrf.mxu0
      %v1400 = vpop.f32.mrf.mxu0
      %v1401 = vadd.f32 %v1112, %v1400
      %v1402 = vpop.f32.mrf.mxu0
      %1403 = vmatprep.mubr.bf16.mxu0 0
      %1404 = vmatmul.mubr.bf16.gmra.mxu0 %v646
      %v1405 = vpop.f32.mrf.mxu0
      %v1406 = vadd.f32 %v1117, %v1405
      %v1407 = vpop.f32.mrf.mxu0
      %v1408 = vpop.f32.mrf.mxu0
      %v1409 = vadd.f32 %v1120, %v1408
      %v1410 = vpop.f32.mrf.mxu0
      %1411 = vmatprep.mubr.bf16.mxu0 0
      %1412 = vmatmul.mubr.bf16.gmra.mxu0 %v647
      %v1413 = vpop.f32.mrf.mxu0
      %v1414 = vadd.f32 %v1125, %v1413
      %v1415 = vpop.f32.mrf.mxu0
      %v1416 = vpop.f32.mrf.mxu0
      %v1417 = vadd.f32 %v1128, %v1416
      %v1418 = vpop.f32.mrf.mxu0
      %1419 = vmatprep.mubr.bf16.mxu0 0
      %1420 = vmatmul.mubr.bf16.gmra.mxu0 %v648
      %v1421 = vpop.f32.mrf.mxu0
      %v1422 = vadd.f32 %v1133, %v1421
      %v1423 = vpop.f32.mrf.mxu0
      %v1424 = vpop.f32.mrf.mxu0
      %v1425 = vadd.f32 %v1136, %v1424
      %v1426 = vpop.f32.mrf.mxu0
      %1427 = vmatprep.mubr.bf16.mxu0 0
      %1428 = vmatmul.mubr.bf16.gmra.mxu0 %v649
      %v1429 = vpop.f32.mrf.mxu0
      %v1430 = vadd.f32 %v1141, %v1429
      %v1431 = vpop.f32.mrf.mxu0
      %v1432 = vpop.f32.mrf.mxu0
      %v1433 = vadd.f32 %v1144, %v1432
      %v1434 = vpop.f32.mrf.mxu0
      %1435 = vmatprep.mubr.bf16.mxu0 0
      %1436 = vmatmul.mubr.bf16.gmra.mxu0 %v650
      %v1437 = vpop.f32.mrf.mxu0
      %v1438 = vadd.f32 %v1149, %v1437
      %v1439 = vpop.f32.mrf.mxu0
      %v1440 = vpop.f32.mrf.mxu0
      %v1441 = vadd.f32 %v1152, %v1440
      %v1442 = vpop.f32.mrf.mxu0
      %1443 = vmatprep.mubr.bf16.mxu0 0
      %1444 = vmatmul.mubr.bf16.gmra.mxu0 %v699
      %v1445 = vpop.f32.mrf.mxu0
      %v1446 = vadd.f32 %v1157, %v1445
      %v1447 = vpop.f32.mrf.mxu0
      %v1448 = vpop.f32.mrf.mxu0
      %v1449 = vadd.f32 %v1160, %v1448
      %v1450 = vpop.f32.mrf.mxu0
      %1451 = vmatprep.mubr.bf16.mxu0 0
      %1452 = vmatmul.mubr.bf16.gmra.mxu0 %v700
      %v1453 = vpop.f32.mrf.mxu0
      %v1454 = vadd.f32 %v1165, %v1453
      %v1455 = vpop.f32.mrf.mxu0
      %v1456 = vpop.f32.mrf.mxu0
      %v1457 = vadd.f32 %v1168, %v1456
      %v1458 = vpop.f32.mrf.mxu0
      %1459 = vmatprep.mubr.bf16.mxu0 0
      %1460 = vmatmul.mubr.bf16.gmra.mxu0 %v701
      %v1461 = vpop.f32.mrf.mxu0
      %v1462 = vadd.f32 %v1173, %v1461
      %v1463 = vpop.f32.mrf.mxu0
      %v1464 = vpop.f32.mrf.mxu0
      %v1465 = vadd.f32 %v1176, %v1464
      %v1466 = vpop.f32.mrf.mxu0
      %1467 = vmatprep.mubr.bf16.mxu0 0
      %1468 = vmatmul.mubr.bf16.gmra.mxu0 %v702
      %v1469 = vpop.f32.mrf.mxu0
      %v1470 = vadd.f32 %v1181, %v1469
      %v1471 = vpop.f32.mrf.mxu0
      %v1472 = vpop.f32.mrf.mxu0
      %v1473 = vadd.f32 %v1184, %v1472
      %v1474 = vpop.f32.mrf.mxu0
      %1475 = vmatprep.mubr.bf16.mxu0 0
      %1476 = vmatmul.mubr.bf16.gmra.mxu0 %v723
      %v1477 = vpop.f32.mrf.mxu0
      %v1478 = vadd.f32 %v1189, %v1477
      %v1479 = vpop.f32.mrf.mxu0
      %v1480 = vpop.f32.mrf.mxu0
      %v1481 = vadd.f32 %v1192, %v1480
      %v1482 = vpop.f32.mrf.mxu0
      %1483 = vmatprep.mubr.bf16.mxu0 0
      %1484 = vmatmul.mubr.bf16.gmra.mxu0 %v724
      %v1485 = vpop.f32.mrf.mxu0
      %v1486 = vadd.f32 %v1197, %v1485
      %v1487 = vpop.f32.mrf.mxu0
      %v1488 = vpop.f32.mrf.mxu0
      %v1489 = vadd.f32 %v1200, %v1488
      %v1490 = vpop.f32.mrf.mxu0
      %1491 = vmatprep.mubr.bf16.mxu0 0
      %1492 = vmatmul.mubr.bf16.gmra.mxu0 %v725
      %v1493 = vpop.f32.mrf.mxu0
      %v1494 = vadd.f32 %v1205, %v1493
      %v1495 = vpop.f32.mrf.mxu0
      %v1496 = vpop.f32.mrf.mxu0
      %v1497 = vadd.f32 %v1208, %v1496
      %v1498 = vpop.f32.mrf.mxu0
      %1499 = vmatprep.mubr.bf16.mxu0 0
      %1500 = vmatmul.mubr.bf16.gmra.mxu0 %v726
      %v1501 = vpop.f32.mrf.mxu0
      %v1502 = vadd.f32 %v1213, %v1501
      %v1503 = vpop.f32.mrf.mxu0
      %v1504 = vpop.f32.mrf.mxu0
      %v1505 = vadd.f32 %v1216, %v1504
      %v1506 = vpop.f32.mrf.mxu0
      %1507 = vdwg.mxu0
      %1508 = vadd.xlane.f32.xlu0 %v1254
      %v1509 = vpop.xlane.xlu0 %1508
      %1510 = vadd.xlane.f32.xlu0 %v1257
      %v1511 = vpop.xlane.xlu0 %1510
      %1512 = vadd.xlane.f32.xlu0 %v1262
      %v1513 = vpop.xlane.xlu0 %1512
      %1514 = vadd.xlane.f32.xlu0 %v1265
      %v1515 = vpop.xlane.xlu0 %1514
      %1516 = vadd.xlane.f32.xlu0 %v1270
      %v1517 = vpop.xlane.xlu0 %1516
      %1518 = vadd.xlane.f32.xlu0 %v1273
      %v1519 = vpop.xlane.xlu0 %1518
      %1520 = vadd.xlane.f32.xlu0 %v1278
      %v1521 = vpop.xlane.xlu0 %1520
      %1522 = vadd.xlane.f32.xlu0 %v1281
      %v1523 = vpop.xlane.xlu0 %1522
      %1524 = vadd.xlane.f32.xlu0 %v1286
      %v1525 = vpop.xlane.xlu0 %1524
      %1526 = vadd.xlane.f32.xlu0 %v1289
      %v1527 = vpop.xlane.xlu0 %1526
      %1528 = vadd.xlane.f32.xlu0 %v1294
      %v1529 = vpop.xlane.xlu0 %1528
      %1530 = vadd.xlane.f32.xlu0 %v1297
      %v1531 = vpop.xlane.xlu0 %1530
      %1532 = vadd.xlane.f32.xlu0 %v1302
      %v1533 = vpop.xlane.xlu0 %1532
      %1534 = vadd.xlane.f32.xlu0 %v1305
      %v1535 = vpop.xlane.xlu0 %1534
      %1536 = vadd.xlane.f32.xlu0 %v1310
      %v1537 = vpop.xlane.xlu0 %1536
      %1538 = vadd.xlane.f32.xlu0 %v1313
      %v1539 = vpop.xlane.xlu0 %1538
      %1540 = vadd.xlane.f32.xlu0 %v1318
      %v1541 = vpop.xlane.xlu0 %1540
      %1542 = vadd.xlane.f32.xlu0 %v1321
      %v1543 = vpop.xlane.xlu0 %1542
      %1544 = vadd.xlane.f32.xlu0 %v1326
      %v1545 = vpop.xlane.xlu0 %1544
      %1546 = vadd.xlane.f32.xlu0 %v1329
      %v1547 = vpop.xlane.xlu0 %1546
      %1548 = vadd.xlane.f32.xlu0 %v1334
      %v1549 = vpop.xlane.xlu0 %1548
      %1550 = vadd.xlane.f32.xlu0 %v1337
      %v1551 = vpop.xlane.xlu0 %1550
      %1552 = vadd.xlane.f32.xlu0 %v1342
      %v1553 = vpop.xlane.xlu0 %1552
      %1554 = vadd.xlane.f32.xlu0 %v1345
      %v1555 = vpop.xlane.xlu0 %1554
      %1556 = vadd.xlane.f32.xlu0 %v1350
      %v1557 = vpop.xlane.xlu0 %1556
      %1558 = vadd.xlane.f32.xlu0 %v1353
      %v1559 = vpop.xlane.xlu0 %1558
      %1560 = vadd.xlane.f32.xlu0 %v1358
      %v1561 = vpop.xlane.xlu0 %1560
      %1562 = vadd.xlane.f32.xlu0 %v1361
      %v1563 = vpop.xlane.xlu0 %1562
      %1564 = vadd.xlane.f32.xlu0 %v1366
      %v1565 = vpop.xlane.xlu0 %1564
      %1566 = vadd.xlane.f32.xlu0 %v1369
      %v1567 = vpop.xlane.xlu0 %1566
      %1568 = vadd.xlane.f32.xlu0 %v1374
      %v1569 = vpop.xlane.xlu0 %1568
      %1570 = vadd.xlane.f32.xlu0 %v1377
      %v1571 = vpop.xlane.xlu0 %1570
      %1572 = vadd.xlane.f32.xlu0 %v1382
      %v1573 = vpop.xlane.xlu0 %1572
      %1574 = vadd.xlane.f32.xlu0 %v1385
      %v1575 = vpop.xlane.xlu0 %1574
      %1576 = vadd.xlane.f32.xlu0 %v1390
      %v1577 = vpop.xlane.xlu0 %1576
      %1578 = vadd.xlane.f32.xlu0 %v1393
      %v1579 = vpop.xlane.xlu0 %1578
      %1580 = vadd.xlane.f32.xlu0 %v1398
      %v1581 = vpop.xlane.xlu0 %1580
      %1582 = vadd.xlane.f32.xlu0 %v1401
      %v1583 = vpop.xlane.xlu0 %1582
      %1584 = vadd.xlane.f32.xlu0 %v1406
      %v1585 = vpop.xlane.xlu0 %1584
      %1586 = vadd.xlane.f32.xlu0 %v1409
      %v1587 = vpop.xlane.xlu0 %1586
      %1588 = vadd.xlane.f32.xlu0 %v1414
      %v1589 = vpop.xlane.xlu0 %1588
      %1590 = vadd.xlane.f32.xlu0 %v1417
      %v1591 = vpop.xlane.xlu0 %1590
      %1592 = vadd.xlane.f32.xlu0 %v1422
      %v1593 = vpop.xlane.xlu0 %1592
      %1594 = vadd.xlane.f32.xlu0 %v1425
      %v1595 = vpop.xlane.xlu0 %1594
      %1596 = vadd.xlane.f32.xlu0 %v1430
      %v1597 = vpop.xlane.xlu0 %1596
      %1598 = vadd.xlane.f32.xlu0 %v1433
      %v1599 = vpop.xlane.xlu0 %1598
      %1600 = vadd.xlane.f32.xlu0 %v1438
      %v1601 = vpop.xlane.xlu0 %1600
      %1602 = vadd.xlane.f32.xlu0 %v1441
      %v1603 = vpop.xlane.xlu0 %1602
      %1604 = vadd.xlane.f32.xlu0 %v1446
      %v1605 = vpop.xlane.xlu0 %1604
      %1606 = vadd.xlane.f32.xlu0 %v1449
      %v1607 = vpop.xlane.xlu0 %1606
      %1608 = vadd.xlane.f32.xlu0 %v1454
      %v1609 = vpop.xlane.xlu0 %1608
      %1610 = vadd.xlane.f32.xlu0 %v1457
      %v1611 = vpop.xlane.xlu0 %1610
      %1612 = vadd.xlane.f32.xlu0 %v1462
      %v1613 = vpop.xlane.xlu0 %1612
      %1614 = vadd.xlane.f32.xlu0 %v1465
      %v1615 = vpop.xlane.xlu0 %1614
      %1616 = vadd.xlane.f32.xlu0 %v1470
      %v1617 = vpop.xlane.xlu0 %1616
      %1618 = vadd.xlane.f32.xlu0 %v1473
      %v1619 = vpop.xlane.xlu0 %1618
      %1620 = vadd.xlane.f32.xlu0 %v1478
      %v1621 = vpop.xlane.xlu0 %1620
      %1622 = vadd.xlane.f32.xlu0 %v1481
      %v1623 = vpop.xlane.xlu0 %1622
      %1624 = vadd.xlane.f32.xlu0 %v1486
      %v1625 = vpop.xlane.xlu0 %1624
      %1626 = vadd.xlane.f32.xlu0 %v1489
      %v1627 = vpop.xlane.xlu0 %1626
      %1628 = vadd.xlane.f32.xlu0 %v1494
      %v1629 = vpop.xlane.xlu0 %1628
      %1630 = vadd.xlane.f32.xlu0 %v1497
      %v1631 = vpop.xlane.xlu0 %1630
      %1632 = vadd.xlane.f32.xlu0 %v1502
      %v1633 = vpop.xlane.xlu0 %1632
      %1634 = vadd.xlane.f32.xlu0 %v1505
      %v1635 = vpop.xlane.xlu0 %1634
      %v1636 = vrcp.pop 128.0
      %v1637 = vmul.f32 %v1509, %v1636
      %v1638 = vmul.f32 %v1511, %v1636
      %v1639 = vmul.f32 %v1513, %v1636
      %v1640 = vmul.f32 %v1515, %v1636
      %v1641 = vmul.f32 %v1517, %v1636
      %v1642 = vmul.f32 %v1519, %v1636
      %v1643 = vmul.f32 %v1521, %v1636
      %v1644 = vmul.f32 %v1523, %v1636
      %v1645 = vmul.f32 %v1525, %v1636
      %v1646 = vmul.f32 %v1527, %v1636
      %v1647 = vmul.f32 %v1529, %v1636
      %v1648 = vmul.f32 %v1531, %v1636
      %v1649 = vmul.f32 %v1533, %v1636
      %v1650 = vmul.f32 %v1535, %v1636
      %v1651 = vmul.f32 %v1537, %v1636
      %v1652 = vmul.f32 %v1539, %v1636
      %v1653 = vmul.f32 %v1541, %v1636
      %v1654 = vmul.f32 %v1543, %v1636
      %v1655 = vmul.f32 %v1545, %v1636
      %v1656 = vmul.f32 %v1547, %v1636
      %v1657 = vmul.f32 %v1549, %v1636
      %v1658 = vmul.f32 %v1551, %v1636
      %v1659 = vmul.f32 %v1553, %v1636
      %v1660 = vmul.f32 %v1555, %v1636
      %v1661 = vmul.f32 %v1557, %v1636
      %v1662 = vmul.f32 %v1559, %v1636
      %v1663 = vmul.f32 %v1561, %v1636
      %v1664 = vmul.f32 %v1563, %v1636
      %v1665 = vmul.f32 %v1565, %v1636
      %v1666 = vmul.f32 %v1567, %v1636
      %v1667 = vmul.f32 %v1569, %v1636
      %v1668 = vmul.f32 %v1571, %v1636
      %v1669 = vmul.f32 %v1573, %v1636
      %v1670 = vmul.f32 %v1575, %v1636
      %v1671 = vmul.f32 %v1577, %v1636
      %v1672 = vmul.f32 %v1579, %v1636
      %v1673 = vmul.f32 %v1581, %v1636
      %v1674 = vmul.f32 %v1583, %v1636
      %v1675 = vmul.f32 %v1585, %v1636
      %v1676 = vmul.f32 %v1587, %v1636
      %v1677 = vmul.f32 %v1589, %v1636
      %v1678 = vmul.f32 %v1591, %v1636
      %v1679 = vmul.f32 %v1593, %v1636
      %v1680 = vmul.f32 %v1595, %v1636
      %v1681 = vmul.f32 %v1597, %v1636
      %v1682 = vmul.f32 %v1599, %v1636
      %v1683 = vmul.f32 %v1601, %v1636
      %v1684 = vmul.f32 %v1603, %v1636
      %v1685 = vmul.f32 %v1605, %v1636
      %v1686 = vmul.f32 %v1607, %v1636
      %v1687 = vmul.f32 %v1609, %v1636
      %v1688 = vmul.f32 %v1611, %v1636
      %v1689 = vmul.f32 %v1613, %v1636
      %v1690 = vmul.f32 %v1615, %v1636
      %v1691 = vmul.f32 %v1617, %v1636
      %v1692 = vmul.f32 %v1619, %v1636
      %v1693 = vmul.f32 %v1621, %v1636
      %v1694 = vmul.f32 %v1623, %v1636
      %v1695 = vmul.f32 %v1625, %v1636
      %v1696 = vmul.f32 %v1627, %v1636
      %v1697 = vmul.f32 %v1629, %v1636
      %v1698 = vmul.f32 %v1631, %v1636
      %v1699 = vmul.f32 %v1633, %v1636
      %v1700 = vmul.f32 %v1635, %v1636
      %v1701 = vsub.f32 %v1254, %v1637
      %v1702 = vsub.f32 %v1257, %v1638
      %v1703 = vsub.f32 %v1262, %v1639
      %v1704 = vsub.f32 %v1265, %v1640
      %v1705 = vsub.f32 %v1270, %v1641
      %v1706 = vsub.f32 %v1273, %v1642
      %v1707 = vsub.f32 %v1278, %v1643
      %v1708 = vsub.f32 %v1281, %v1644
      %v1709 = vsub.f32 %v1286, %v1645
      %v1710 = vsub.f32 %v1289, %v1646
      %v1711 = vsub.f32 %v1294, %v1647
      %v1712 = vsub.f32 %v1297, %v1648
      %v1713 = vsub.f32 %v1302, %v1649
      %v1714 = vsub.f32 %v1305, %v1650
      %v1715 = vsub.f32 %v1310, %v1651
      %v1716 = vsub.f32 %v1313, %v1652
      %v1717 = vsub.f32 %v1318, %v1653
      %v1718 = vsub.f32 %v1321, %v1654
      %v1719 = vsub.f32 %v1326, %v1655
      %v1720 = vsub.f32 %v1329, %v1656
      %v1721 = vsub.f32 %v1334, %v1657
      %v1722 = vsub.f32 %v1337, %v1658
      %v1723 = vsub.f32 %v1342, %v1659
      %v1724 = vsub.f32 %v1345, %v1660
      %v1725 = vsub.f32 %v1350, %v1661
      %v1726 = vsub.f32 %v1353, %v1662
      %v1727 = vsub.f32 %v1358, %v1663
      %v1728 = vsub.f32 %v1361, %v1664
      %v1729 = vsub.f32 %v1366, %v1665
      %v1730 = vsub.f32 %v1369, %v1666
      %v1731 = vsub.f32 %v1374, %v1667
      %v1732 = vsub.f32 %v1377, %v1668
      %v1733 = vsub.f32 %v1382, %v1669
      %v1734 = vsub.f32 %v1385, %v1670
      %v1735 = vsub.f32 %v1390, %v1671
      %v1736 = vsub.f32 %v1393, %v1672
      %v1737 = vsub.f32 %v1398, %v1673
      %v1738 = vsub.f32 %v1401, %v1674
      %v1739 = vsub.f32 %v1406, %v1675
      %v1740 = vsub.f32 %v1409, %v1676
      %v1741 = vsub.f32 %v1414, %v1677
      %v1742 = vsub.f32 %v1417, %v1678
      %v1743 = vsub.f32 %v1422, %v1679
      %v1744 = vsub.f32 %v1425, %v1680
      %v1745 = vsub.f32 %v1430, %v1681
      %v1746 = vsub.f32 %v1433, %v1682
      %v1747 = vsub.f32 %v1438, %v1683
      %v1748 = vsub.f32 %v1441, %v1684
      %v1749 = vsub.f32 %v1446, %v1685
      %v1750 = vsub.f32 %v1449, %v1686
      %v1751 = vsub.f32 %v1454, %v1687
      %v1752 = vsub.f32 %v1457, %v1688
      %v1753 = vsub.f32 %v1462, %v1689
      %v1754 = vsub.f32 %v1465, %v1690
      %v1755 = vsub.f32 %v1470, %v1691
      %v1756 = vsub.f32 %v1473, %v1692
      %v1757 = vsub.f32 %v1478, %v1693
      %v1758 = vsub.f32 %v1481, %v1694
      %v1759 = vsub.f32 %v1486, %v1695
      %v1760 = vsub.f32 %v1489, %v1696
      %v1761 = vsub.f32 %v1494, %v1697
      %v1762 = vsub.f32 %v1497, %v1698
      %v1763 = vsub.f32 %v1502, %v1699
      %v1764 = vsub.f32 %v1505, %v1700
      %v1765 = vmul.f32 %v1701, %v1701
      %v1766 = vmul.f32 %v1702, %v1702
      %v1767 = vmul.f32 %v1703, %v1703
      %v1768 = vmul.f32 %v1704, %v1704
      %v1769 = vmul.f32 %v1705, %v1705
      %v1770 = vmul.f32 %v1706, %v1706
      %v1771 = vmul.f32 %v1707, %v1707
      %v1772 = vmul.f32 %v1708, %v1708
      %v1773 = vmul.f32 %v1709, %v1709
      %v1774 = vmul.f32 %v1710, %v1710
      %v1775 = vmul.f32 %v1711, %v1711
      %v1776 = vmul.f32 %v1712, %v1712
      %v1777 = vmul.f32 %v1713, %v1713
      %v1778 = vmul.f32 %v1714, %v1714
      %v1779 = vmul.f32 %v1715, %v1715
      %v1780 = vmul.f32 %v1716, %v1716
      %v1781 = vmul.f32 %v1717, %v1717
      %v1782 = vmul.f32 %v1718, %v1718
      %v1783 = vmul.f32 %v1719, %v1719
      %v1784 = vmul.f32 %v1720, %v1720
      %v1785 = vmul.f32 %v1721, %v1721
      %v1786 = vmul.f32 %v1722, %v1722
      %v1787 = vmul.f32 %v1723, %v1723
      %v1788 = vmul.f32 %v1724, %v1724
      %v1789 = vmul.f32 %v1725, %v1725
      %v1790 = vmul.f32 %v1726, %v1726
      %v1791 = vmul.f32 %v1727, %v1727
      %v1792 = vmul.f32 %v1728, %v1728
      %v1793 = vmul.f32 %v1729, %v1729
      %v1794 = vmul.f32 %v1730, %v1730
      %v1795 = vmul.f32 %v1731, %v1731
      %v1796 = vmul.f32 %v1732, %v1732
      %v1797 = vmul.f32 %v1733, %v1733
      %v1798 = vmul.f32 %v1734, %v1734
      %v1799 = vmul.f32 %v1735, %v1735
      %v1800 = vmul.f32 %v1736, %v1736
      %v1801 = vmul.f32 %v1737, %v1737
      %v1802 = vmul.f32 %v1738, %v1738
      %v1803 = vmul.f32 %v1739, %v1739
      %v1804 = vmul.f32 %v1740, %v1740
      %v1805 = vmul.f32 %v1741, %v1741
      %v1806 = vmul.f32 %v1742, %v1742
      %v1807 = vmul.f32 %v1743, %v1743
      %v1808 = vmul.f32 %v1744, %v1744
      %v1809 = vmul.f32 %v1745, %v1745
      %v1810 = vmul.f32 %v1746, %v1746
      %v1811 = vmul.f32 %v1747, %v1747
      %v1812 = vmul.f32 %v1748, %v1748
      %v1813 = vmul.f32 %v1749, %v1749
      %v1814 = vmul.f32 %v1750, %v1750
      %v1815 = vmul.f32 %v1751, %v1751
      %v1816 = vmul.f32 %v1752, %v1752
      %v1817 = vmul.f32 %v1753, %v1753
      %v1818 = vmul.f32 %v1754, %v1754
      %v1819 = vmul.f32 %v1755, %v1755
      %v1820 = vmul.f32 %v1756, %v1756
      %v1821 = vmul.f32 %v1757, %v1757
      %v1822 = vmul.f32 %v1758, %v1758
      %v1823 = vmul.f32 %v1759, %v1759
      %v1824 = vmul.f32 %v1760, %v1760
      %v1825 = vmul.f32 %v1761, %v1761
      %v1826 = vmul.f32 %v1762, %v1762
      %v1827 = vmul.f32 %v1763, %v1763
      %v1828 = vmul.f32 %v1764, %v1764
      %1829 = vadd.xlane.f32.xlu0 %v1765
      %v1830 = vpop.xlane.xlu0 %1829
      %1831 = vadd.xlane.f32.xlu0 %v1766
      %v1832 = vpop.xlane.xlu0 %1831
      %1833 = vadd.xlane.f32.xlu0 %v1767
      %v1834 = vpop.xlane.xlu0 %1833
      %1835 = vadd.xlane.f32.xlu0 %v1768
      %v1836 = vpop.xlane.xlu0 %1835
      %1837 = vadd.xlane.f32.xlu0 %v1769
      %v1838 = vpop.xlane.xlu0 %1837
      %1839 = vadd.xlane.f32.xlu0 %v1770
      %v1840 = vpop.xlane.xlu0 %1839
      %1841 = vadd.xlane.f32.xlu0 %v1771
      %v1842 = vpop.xlane.xlu0 %1841
      %1843 = vadd.xlane.f32.xlu0 %v1772
      %v1844 = vpop.xlane.xlu0 %1843
      %1845 = vadd.xlane.f32.xlu0 %v1773
      %v1846 = vpop.xlane.xlu0 %1845
      %1847 = vadd.xlane.f32.xlu0 %v1774
      %v1848 = vpop.xlane.xlu0 %1847
      %1849 = vadd.xlane.f32.xlu0 %v1775
      %v1850 = vpop.xlane.xlu0 %1849
      %1851 = vadd.xlane.f32.xlu0 %v1776
      %v1852 = vpop.xlane.xlu0 %1851
      %1853 = vadd.xlane.f32.xlu0 %v1777
      %v1854 = vpop.xlane.xlu0 %1853
      %1855 = vadd.xlane.f32.xlu0 %v1778
      %v1856 = vpop.xlane.xlu0 %1855
      %1857 = vadd.xlane.f32.xlu0 %v1779
      %v1858 = vpop.xlane.xlu0 %1857
      %1859 = vadd.xlane.f32.xlu0 %v1780
      %v1860 = vpop.xlane.xlu0 %1859
      %1861 = vadd.xlane.f32.xlu0 %v1781
      %v1862 = vpop.xlane.xlu0 %1861
      %1863 = vadd.xlane.f32.xlu0 %v1782
      %v1864 = vpop.xlane.xlu0 %1863
      %1865 = vadd.xlane.f32.xlu0 %v1783
      %v1866 = vpop.xlane.xlu0 %1865
      %1867 = vadd.xlane.f32.xlu0 %v1784
      %v1868 = vpop.xlane.xlu0 %1867
      %1869 = vadd.xlane.f32.xlu0 %v1785
      %v1870 = vpop.xlane.xlu0 %1869
      %1871 = vadd.xlane.f32.xlu0 %v1786
      %v1872 = vpop.xlane.xlu0 %1871
      %1873 = vadd.xlane.f32.xlu0 %v1787
      %v1874 = vpop.xlane.xlu0 %1873
      %1875 = vadd.xlane.f32.xlu0 %v1788
      %v1876 = vpop.xlane.xlu0 %1875
      %1877 = vadd.xlane.f32.xlu0 %v1789
      %v1878 = vpop.xlane.xlu0 %1877
      %1879 = vadd.xlane.f32.xlu0 %v1790
      %v1880 = vpop.xlane.xlu0 %1879
      %1881 = vadd.xlane.f32.xlu0 %v1791
      %v1882 = vpop.xlane.xlu0 %1881
      %1883 = vadd.xlane.f32.xlu0 %v1792
      %v1884 = vpop.xlane.xlu0 %1883
      %1885 = vadd.xlane.f32.xlu0 %v1793
      %v1886 = vpop.xlane.xlu0 %1885
      %1887 = vadd.xlane.f32.xlu0 %v1794
      %v1888 = vpop.xlane.xlu0 %1887
      %1889 = vadd.xlane.f32.xlu0 %v1795
      %v1890 = vpop.xlane.xlu0 %1889
      %1891 = vadd.xlane.f32.xlu0 %v1796
      %v1892 = vpop.xlane.xlu0 %1891
      %1893 = vadd.xlane.f32.xlu0 %v1797
      %v1894 = vpop.xlane.xlu0 %1893
      %1895 = vadd.xlane.f32.xlu0 %v1798
      %v1896 = vpop.xlane.xlu0 %1895
      %1897 = vadd.xlane.f32.xlu0 %v1799
      %v1898 = vpop.xlane.xlu0 %1897
      %1899 = vadd.xlane.f32.xlu0 %v1800
      %v1900 = vpop.xlane.xlu0 %1899
      %1901 = vadd.xlane.f32.xlu0 %v1801
      %v1902 = vpop.xlane.xlu0 %1901
      %1903 = vadd.xlane.f32.xlu0 %v1802
      %v1904 = vpop.xlane.xlu0 %1903
      %1905 = vadd.xlane.f32.xlu0 %v1803
      %v1906 = vpop.xlane.xlu0 %1905
      %1907 = vadd.xlane.f32.xlu0 %v1804
      %v1908 = vpop.xlane.xlu0 %1907
      %1909 = vadd.xlane.f32.xlu0 %v1805
      %v1910 = vpop.xlane.xlu0 %1909
      %1911 = vadd.xlane.f32.xlu0 %v1806
      %v1912 = vpop.xlane.xlu0 %1911
      %1913 = vadd.xlane.f32.xlu0 %v1807
      %v1914 = vpop.xlane.xlu0 %1913
      %1915 = vadd.xlane.f32.xlu0 %v1808
      %v1916 = vpop.xlane.xlu0 %1915
      %1917 = vadd.xlane.f32.xlu0 %v1809
      %v1918 = vpop.xlane.xlu0 %1917
      %1919 = vadd.xlane.f32.xlu0 %v1810
      %v1920 = vpop.xlane.xlu0 %1919
      %1921 = vadd.xlane.f32.xlu0 %v1811
      %v1922 = vpop.xlane.xlu0 %1921
      %1923 = vadd.xlane.f32.xlu0 %v1812
      %v1924 = vpop.xlane.xlu0 %1923
      %1925 = vadd.xlane.f32.xlu0 %v1813
      %v1926 = vpop.xlane.xlu0 %1925
      %1927 = vadd.xlane.f32.xlu0 %v1814
      %v1928 = vpop.xlane.xlu0 %1927
      %1929 = vadd.xlane.f32.xlu0 %v1815
      %v1930 = vpop.xlane.xlu0 %1929
      %1931 = vadd.xlane.f32.xlu0 %v1816
      %v1932 = vpop.xlane.xlu0 %1931
      %1933 = vadd.xlane.f32.xlu0 %v1817
      %v1934 = vpop.xlane.xlu0 %1933
      %1935 = vadd.xlane.f32.xlu0 %v1818
      %v1936 = vpop.xlane.xlu0 %1935
      %1937 = vadd.xlane.f32.xlu0 %v1819
      %v1938 = vpop.xlane.xlu0 %1937
      %1939 = vadd.xlane.f32.xlu0 %v1820
      %v1940 = vpop.xlane.xlu0 %1939
      %1941 = vadd.xlane.f32.xlu0 %v1821
      %v1942 = vpop.xlane.xlu0 %1941
      %1943 = vadd.xlane.f32.xlu0 %v1822
      %v1944 = vpop.xlane.xlu0 %1943
      %1945 = vadd.xlane.f32.xlu0 %v1823
      %v1946 = vpop.xlane.xlu0 %1945
      %1947 = vadd.xlane.f32.xlu0 %v1824
      %v1948 = vpop.xlane.xlu0 %1947
      %1949 = vadd.xlane.f32.xlu0 %v1825
      %v1950 = vpop.xlane.xlu0 %1949
      %1951 = vadd.xlane.f32.xlu0 %v1826
      %v1952 = vpop.xlane.xlu0 %1951
      %1953 = vadd.xlane.f32.xlu0 %v1827
      %v1954 = vpop.xlane.xlu0 %1953
      %1955 = vadd.xlane.f32.xlu0 %v1828
      %v1956 = vpop.xlane.xlu0 %1955
      %v1957 = vmul.f32 %v1830, %v1636
      %v1958 = vmul.f32 %v1832, %v1636
      %v1959 = vmul.f32 %v1834, %v1636
      %v1960 = vmul.f32 %v1836, %v1636
      %v1961 = vmul.f32 %v1838, %v1636
      %v1962 = vmul.f32 %v1840, %v1636
      %v1963 = vmul.f32 %v1842, %v1636
      %v1964 = vmul.f32 %v1844, %v1636
      %v1965 = vmul.f32 %v1846, %v1636
      %v1966 = vmul.f32 %v1848, %v1636
      %v1967 = vmul.f32 %v1850, %v1636
      %v1968 = vmul.f32 %v1852, %v1636
      %v1969 = vmul.f32 %v1854, %v1636
      %v1970 = vmul.f32 %v1856, %v1636
      %v1971 = vmul.f32 %v1858, %v1636
      %v1972 = vmul.f32 %v1860, %v1636
      %v1973 = vmul.f32 %v1862, %v1636
      %v1974 = vmul.f32 %v1864, %v1636
      %v1975 = vmul.f32 %v1866, %v1636
      %v1976 = vmul.f32 %v1868, %v1636
      %v1977 = vmul.f32 %v1870, %v1636
      %v1978 = vmul.f32 %v1872, %v1636
      %v1979 = vmul.f32 %v1874, %v1636
      %v1980 = vmul.f32 %v1876, %v1636
      %v1981 = vmul.f32 %v1878, %v1636
      %v1982 = vmul.f32 %v1880, %v1636
      %v1983 = vmul.f32 %v1882, %v1636
      %v1984 = vmul.f32 %v1884, %v1636
      %v1985 = vmul.f32 %v1886, %v1636
      %v1986 = vmul.f32 %v1888, %v1636
      %v1987 = vmul.f32 %v1890, %v1636
      %v1988 = vmul.f32 %v1892, %v1636
      %v1989 = vmul.f32 %v1894, %v1636
      %v1990 = vmul.f32 %v1896, %v1636
      %v1991 = vmul.f32 %v1898, %v1636
      %v1992 = vmul.f32 %v1900, %v1636
      %v1993 = vmul.f32 %v1902, %v1636
      %v1994 = vmul.f32 %v1904, %v1636
      %v1995 = vmul.f32 %v1906, %v1636
      %v1996 = vmul.f32 %v1908, %v1636
      %v1997 = vmul.f32 %v1910, %v1636
      %v1998 = vmul.f32 %v1912, %v1636
      %v1999 = vmul.f32 %v1914, %v1636
      %v2000 = vmul.f32 %v1916, %v1636
      %v2001 = vmul.f32 %v1918, %v1636
      %v2002 = vmul.f32 %v1920, %v1636
      %v2003 = vmul.f32 %v1922, %v1636
      %v2004 = vmul.f32 %v1924, %v1636
      %v2005 = vmul.f32 %v1926, %v1636
      %v2006 = vmul.f32 %v1928, %v1636
      %v2007 = vmul.f32 %v1930, %v1636
      %v2008 = vmul.f32 %v1932, %v1636
      %v2009 = vmul.f32 %v1934, %v1636
      %v2010 = vmul.f32 %v1936, %v1636
      %v2011 = vmul.f32 %v1938, %v1636
      %v2012 = vmul.f32 %v1940, %v1636
      %v2013 = vmul.f32 %v1942, %v1636
      %v2014 = vmul.f32 %v1944, %v1636
      %v2015 = vmul.f32 %v1946, %v1636
      %v2016 = vmul.f32 %v1948, %v1636
      %v2017 = vmul.f32 %v1950, %v1636
      %v2018 = vmul.f32 %v1952, %v1636
      %v2019 = vmul.f32 %v1954, %v1636
      %v2020 = vmul.f32 %v1956, %v1636
      %v2021 = vadd.f32 %v1957, 1e-05
      %v2022 = vadd.f32 %v1958, 1e-05
      %v2023 = vadd.f32 %v1959, 1e-05
      %v2024 = vadd.f32 %v1960, 1e-05
      %v2025 = vadd.f32 %v1961, 1e-05
      %v2026 = vadd.f32 %v1962, 1e-05
      %v2027 = vadd.f32 %v1963, 1e-05
      %v2028 = vadd.f32 %v1964, 1e-05
      %v2029 = vadd.f32 %v1965, 1e-05
      %v2030 = vadd.f32 %v1966, 1e-05
      %v2031 = vadd.f32 %v1967, 1e-05
      %v2032 = vadd.f32 %v1968, 1e-05
      %v2033 = vadd.f32 %v1969, 1e-05
      %v2034 = vadd.f32 %v1970, 1e-05
      %v2035 = vadd.f32 %v1971, 1e-05
      %v2036 = vadd.f32 %v1972, 1e-05
      %v2037 = vadd.f32 %v1973, 1e-05
      %v2038 = vadd.f32 %v1974, 1e-05
      %v2039 = vadd.f32 %v1975, 1e-05
      %v2040 = vadd.f32 %v1976, 1e-05
      %v2041 = vadd.f32 %v1977, 1e-05
      %v2042 = vadd.f32 %v1978, 1e-05
      %v2043 = vadd.f32 %v1979, 1e-05
      %v2044 = vadd.f32 %v1980, 1e-05
      %v2045 = vadd.f32 %v1981, 1e-05
      %v2046 = vadd.f32 %v1982, 1e-05
      %v2047 = vadd.f32 %v1983, 1e-05
      %v2048 = vadd.f32 %v1984, 1e-05
      %v2049 = vadd.f32 %v1985, 1e-05
      %v2050 = vadd.f32 %v1986, 1e-05
      %v2051 = vadd.f32 %v1987, 1e-05
      %v2052 = vadd.f32 %v1988, 1e-05
      %v2053 = vadd.f32 %v1989, 1e-05
      %v2054 = vadd.f32 %v1990, 1e-05
      %v2055 = vadd.f32 %v1991, 1e-05
      %v2056 = vadd.f32 %v1992, 1e-05
      %v2057 = vadd.f32 %v1993, 1e-05
      %v2058 = vadd.f32 %v1994, 1e-05
      %v2059 = vadd.f32 %v1995, 1e-05
      %v2060 = vadd.f32 %v1996, 1e-05
      %v2061 = vadd.f32 %v1997, 1e-05
      %v2062 = vadd.f32 %v1998, 1e-05
      %v2063 = vadd.f32 %v1999, 1e-05
      %v2064 = vadd.f32 %v2000, 1e-05
      %v2065 = vadd.f32 %v2001, 1e-05
      %v2066 = vadd.f32 %v2002, 1e-05
      %v2067 = vadd.f32 %v2003, 1e-05
      %v2068 = vadd.f32 %v2004, 1e-05
      %v2069 = vadd.f32 %v2005, 1e-05
      %v2070 = vadd.f32 %v2006, 1e-05
      %v2071 = vadd.f32 %v2007, 1e-05
      %v2072 = vadd.f32 %v2008, 1e-05
      %v2073 = vadd.f32 %v2009, 1e-05
      %v2074 = vadd.f32 %v2010, 1e-05
      %v2075 = vadd.f32 %v2011, 1e-05
      %v2076 = vadd.f32 %v2012, 1e-05
      %v2077 = vadd.f32 %v2013, 1e-05
      %v2078 = vadd.f32 %v2014, 1e-05
      %v2079 = vadd.f32 %v2015, 1e-05
      %v2080 = vadd.f32 %v2016, 1e-05
      %v2081 = vadd.f32 %v2017, 1e-05
      %v2082 = vadd.f32 %v2018, 1e-05
      %v2083 = vadd.f32 %v2019, 1e-05
      %v2084 = vadd.f32 %v2020, 1e-05
      %v2085 = vrsqrt.pop %v2021
      %v2086 = vrsqrt.pop %v2022
      %v2087 = vrsqrt.pop %v2023
      %v2088 = vrsqrt.pop %v2024
      %v2089 = vrsqrt.pop %v2025
      %v2090 = vrsqrt.pop %v2026
      %v2091 = vrsqrt.pop %v2027
      %v2092 = vrsqrt.pop %v2028
      %v2093 = vrsqrt.pop %v2029
      %v2094 = vrsqrt.pop %v2030
      %v2095 = vrsqrt.pop %v2031
      %v2096 = vrsqrt.pop %v2032
      %v2097 = vrsqrt.pop %v2033
      %v2098 = vrsqrt.pop %v2034
      %v2099 = vrsqrt.pop %v2035
      %v2100 = vrsqrt.pop %v2036
      %v2101 = vrsqrt.pop %v2037
      %v2102 = vrsqrt.pop %v2038
      %v2103 = vrsqrt.pop %v2039
      %v2104 = vrsqrt.pop %v2040
      %v2105 = vrsqrt.pop %v2041
      %v2106 = vrsqrt.pop %v2042
      %v2107 = vrsqrt.pop %v2043
      %v2108 = vrsqrt.pop %v2044
      %v2109 = vrsqrt.pop %v2045
      %v2110 = vrsqrt.pop %v2046
      %v2111 = vrsqrt.pop %v2047
      %v2112 = vrsqrt.pop %v2048
      %v2113 = vrsqrt.pop %v2049
      %v2114 = vrsqrt.pop %v2050
      %v2115 = vrsqrt.pop %v2051
      %v2116 = vrsqrt.pop %v2052
      %v2117 = vrsqrt.pop %v2053
      %v2118 = vrsqrt.pop %v2054
      %v2119 = vrsqrt.pop %v2055
      %v2120 = vrsqrt.pop %v2056
      %v2121 = vrsqrt.pop %v2057
      %v2122 = vrsqrt.pop %v2058
      %v2123 = vrsqrt.pop %v2059
      %v2124 = vrsqrt.pop %v2060
      %v2125 = vrsqrt.pop %v2061
      %v2126 = vrsqrt.pop %v2062
      %v2127 = vrsqrt.pop %v2063
      %v2128 = vrsqrt.pop %v2064
      %v2129 = vrsqrt.pop %v2065
      %v2130 = vrsqrt.pop %v2066
      %v2131 = vrsqrt.pop %v2067
      %v2132 = vrsqrt.pop %v2068
      %v2133 = vrsqrt.pop %v2069
      %v2134 = vrsqrt.pop %v2070
      %v2135 = vrsqrt.pop %v2071
      %v2136 = vrsqrt.pop %v2072
      %v2137 = vrsqrt.pop %v2073
      %v2138 = vrsqrt.pop %v2074
      %v2139 = vrsqrt.pop %v2075
      %v2140 = vrsqrt.pop %v2076
      %v2141 = vrsqrt.pop %v2077
      %v2142 = vrsqrt.pop %v2078
      %v2143 = vrsqrt.pop %v2079
      %v2144 = vrsqrt.pop %v2080
      %v2145 = vrsqrt.pop %v2081
      %v2146 = vrsqrt.pop %v2082
      %v2147 = vrsqrt.pop %v2083
      %v2148 = vrsqrt.pop %v2084
      %v2149 = vmul.f32 %v1701, %v2085
      %v2150 = vmul.f32 %v1702, %v2086
      %v2151 = vmul.f32 %v1703, %v2087
      %v2152 = vmul.f32 %v1704, %v2088
      %v2153 = vmul.f32 %v1705, %v2089
      %v2154 = vmul.f32 %v1706, %v2090
      %v2155 = vmul.f32 %v1707, %v2091
      %v2156 = vmul.f32 %v1708, %v2092
      %v2157 = vmul.f32 %v1709, %v2093
      %v2158 = vmul.f32 %v1710, %v2094
      %v2159 = vmul.f32 %v1711, %v2095
      %v2160 = vmul.f32 %v1712, %v2096
      %v2161 = vmul.f32 %v1713, %v2097
      %v2162 = vmul.f32 %v1714, %v2098
      %v2163 = vmul.f32 %v1715, %v2099
      %v2164 = vmul.f32 %v1716, %v2100
      %v2165 = vmul.f32 %v1717, %v2101
      %v2166 = vmul.f32 %v1718, %v2102
      %v2167 = vmul.f32 %v1719, %v2103
      %v2168 = vmul.f32 %v1720, %v2104
      %v2169 = vmul.f32 %v1721, %v2105
      %v2170 = vmul.f32 %v1722, %v2106
      %v2171 = vmul.f32 %v1723, %v2107
      %v2172 = vmul.f32 %v1724, %v2108
      %v2173 = vmul.f32 %v1725, %v2109
      %v2174 = vmul.f32 %v1726, %v2110
      %v2175 = vmul.f32 %v1727, %v2111
      %v2176 = vmul.f32 %v1728, %v2112
      %v2177 = vmul.f32 %v1729, %v2113
      %v2178 = vmul.f32 %v1730, %v2114
      %v2179 = vmul.f32 %v1731, %v2115
      %v2180 = vmul.f32 %v1732, %v2116
      %v2181 = vmul.f32 %v1733, %v2117
      %v2182 = vmul.f32 %v1734, %v2118
      %v2183 = vmul.f32 %v1735, %v2119
      %v2184 = vmul.f32 %v1736, %v2120
      %v2185 = vmul.f32 %v1737, %v2121
      %v2186 = vmul.f32 %v1738, %v2122
      %v2187 = vmul.f32 %v1739, %v2123
      %v2188 = vmul.f32 %v1740, %v2124
      %v2189 = vmul.f32 %v1741, %v2125
      %v2190 = vmul.f32 %v1742, %v2126
      %v2191 = vmul.f32 %v1743, %v2127
      %v2192 = vmul.f32 %v1744, %v2128
      %v2193 = vmul.f32 %v1745, %v2129
      %v2194 = vmul.f32 %v1746, %v2130
      %v2195 = vmul.f32 %v1747, %v2131
      %v2196 = vmul.f32 %v1748, %v2132
      %v2197 = vmul.f32 %v1749, %v2133
      %v2198 = vmul.f32 %v1750, %v2134
      %v2199 = vmul.f32 %v1751, %v2135
      %v2200 = vmul.f32 %v1752, %v2136
      %v2201 = vmul.f32 %v1753, %v2137
      %v2202 = vmul.f32 %v1754, %v2138
      %v2203 = vmul.f32 %v1755, %v2139
      %v2204 = vmul.f32 %v1756, %v2140
      %v2205 = vmul.f32 %v1757, %v2141
      %v2206 = vmul.f32 %v1758, %v2142
      %v2207 = vmul.f32 %v1759, %v2143
      %v2208 = vmul.f32 %v1760, %v2144
      %v2209 = vmul.f32 %v1761, %v2145
      %v2210 = vmul.f32 %v1762, %v2146
      %v2211 = vmul.f32 %v1763, %v2147
      %v2212 = vmul.f32 %v1764, %v2148
      %v2213 = vld [vmem:[%s3] sm:$0x1]
      %v2215 = vlaneseq
      %v2216 = vshrl.u32 %v2215, 7
      %v2217 = vsub.s32 0, %v2216
      %v2218 = vrot.slane %v2213, %v2217
      %v2220 = vmul.f32 %v2149, %v2218
      %v2221 = vmul.f32 %v2150, %v2218
      %v2222 = vmul.f32 %v2151, %v2218
      %v2223 = vmul.f32 %v2152, %v2218
      %v2224 = vmul.f32 %v2153, %v2218
      %v2225 = vmul.f32 %v2154, %v2218
      %v2226 = vmul.f32 %v2155, %v2218
      %v2227 = vmul.f32 %v2156, %v2218
      %v2228 = vmul.f32 %v2157, %v2218
      %v2229 = vmul.f32 %v2158, %v2218
      %v2230 = vmul.f32 %v2159, %v2218
      %v2231 = vmul.f32 %v2160, %v2218
      %v2232 = vmul.f32 %v2161, %v2218
      %v2233 = vmul.f32 %v2162, %v2218
      %v2234 = vmul.f32 %v2163, %v2218
      %v2235 = vmul.f32 %v2164, %v2218
      %v2236 = vmul.f32 %v2165, %v2218
      %v2237 = vmul.f32 %v2166, %v2218
      %v2238 = vmul.f32 %v2167, %v2218
      %v2239 = vmul.f32 %v2168, %v2218
      %v2240 = vmul.f32 %v2169, %v2218
      %v2241 = vmul.f32 %v2170, %v2218
      %v2242 = vmul.f32 %v2171, %v2218
      %v2243 = vmul.f32 %v2172, %v2218
      %v2244 = vmul.f32 %v2173, %v2218
      %v2245 = vmul.f32 %v2174, %v2218
      %v2246 = vmul.f32 %v2175, %v2218
      %v2247 = vmul.f32 %v2176, %v2218
      %v2248 = vmul.f32 %v2177, %v2218
      %v2249 = vmul.f32 %v2178, %v2218
      %v2250 = vmul.f32 %v2179, %v2218
      %v2251 = vmul.f32 %v2180, %v2218
      %v2252 = vmul.f32 %v2181, %v2218
      %v2253 = vmul.f32 %v2182, %v2218
      %v2254 = vmul.f32 %v2183, %v2218
      %v2255 = vmul.f32 %v2184, %v2218
      %v2256 = vmul.f32 %v2185, %v2218
      %v2257 = vmul.f32 %v2186, %v2218
      %v2258 = vmul.f32 %v2187, %v2218
      %v2259 = vmul.f32 %v2188, %v2218
      %v2260 = vmul.f32 %v2189, %v2218
      %v2261 = vmul.f32 %v2190, %v2218
      %v2262 = vmul.f32 %v2191, %v2218
      %v2263 = vmul.f32 %v2192, %v2218
      %v2264 = vmul.f32 %v2193, %v2218
      %v2265 = vmul.f32 %v2194, %v2218
      %v2266 = vmul.f32 %v2195, %v2218
      %v2267 = vmul.f32 %v2196, %v2218
      %v2268 = vmul.f32 %v2197, %v2218
      %v2269 = vmul.f32 %v2198, %v2218
      %v2270 = vmul.f32 %v2199, %v2218
      %v2271 = vmul.f32 %v2200, %v2218
      %v2272 = vmul.f32 %v2201, %v2218
      %v2273 = vmul.f32 %v2202, %v2218
      %v2274 = vmul.f32 %v2203, %v2218
      %v2275 = vmul.f32 %v2204, %v2218
      %v2276 = vmul.f32 %v2205, %v2218
      %v2277 = vmul.f32 %v2206, %v2218
      %v2278 = vmul.f32 %v2207, %v2218
      %v2279 = vmul.f32 %v2208, %v2218
      %v2280 = vmul.f32 %v2209, %v2218
      %v2281 = vmul.f32 %v2210, %v2218
      %v2282 = vmul.f32 %v2211, %v2218
      %v2283 = vmul.f32 %v2212, %v2218
      %v2284 = vld [vmem:[%s4] sm:$0x1]
      %v2286 = vlaneseq
      %v2287 = vshrl.u32 %v2286, 7
      %v2288 = vsub.s32 0, %v2287
      %v2289 = vrot.slane %v2284, %v2288
      %v2291 = vadd.f32 %v2220, %v2289
      %v2292 = vadd.f32 %v2221, %v2289
      %v2293 = vadd.f32 %v2222, %v2289
      %v2294 = vadd.f32 %v2223, %v2289
      %v2295 = vadd.f32 %v2224, %v2289
      %v2296 = vadd.f32 %v2225, %v2289
      %v2297 = vadd.f32 %v2226, %v2289
      %v2298 = vadd.f32 %v2227, %v2289
      %v2299 = vadd.f32 %v2228, %v2289
      %v2300 = vadd.f32 %v2229, %v2289
      %v2301 = vadd.f32 %v2230, %v2289
      %v2302 = vadd.f32 %v2231, %v2289
      %v2303 = vadd.f32 %v2232, %v2289
      %v2304 = vadd.f32 %v2233, %v2289
      %v2305 = vadd.f32 %v2234, %v2289
      %v2306 = vadd.f32 %v2235, %v2289
      %v2307 = vadd.f32 %v2236, %v2289
      %v2308 = vadd.f32 %v2237, %v2289
      %v2309 = vadd.f32 %v2238, %v2289
      %v2310 = vadd.f32 %v2239, %v2289
      %v2311 = vadd.f32 %v2240, %v2289
      %v2312 = vadd.f32 %v2241, %v2289
      %v2313 = vadd.f32 %v2242, %v2289
      %v2314 = vadd.f32 %v2243, %v2289
      %v2315 = vadd.f32 %v2244, %v2289
      %v2316 = vadd.f32 %v2245, %v2289
      %v2317 = vadd.f32 %v2246, %v2289
      %v2318 = vadd.f32 %v2247, %v2289
      %v2319 = vadd.f32 %v2248, %v2289
      %v2320 = vadd.f32 %v2249, %v2289
      %v2321 = vadd.f32 %v2250, %v2289
      %v2322 = vadd.f32 %v2251, %v2289
      %v2323 = vadd.f32 %v2252, %v2289
      %v2324 = vadd.f32 %v2253, %v2289
      %v2325 = vadd.f32 %v2254, %v2289
      %v2326 = vadd.f32 %v2255, %v2289
      %v2327 = vadd.f32 %v2256, %v2289
      %v2328 = vadd.f32 %v2257, %v2289
      %v2329 = vadd.f32 %v2258, %v2289
      %v2330 = vadd.f32 %v2259, %v2289
      %v2331 = vadd.f32 %v2260, %v2289
      %v2332 = vadd.f32 %v2261, %v2289
      %v2333 = vadd.f32 %v2262, %v2289
      %v2334 = vadd.f32 %v2263, %v2289
      %v2335 = vadd.f32 %v2264, %v2289
      %v2336 = vadd.f32 %v2265, %v2289
      %v2337 = vadd.f32 %v2266, %v2289
      %v2338 = vadd.f32 %v2267, %v2289
      %v2339 = vadd.f32 %v2268, %v2289
      %v2340 = vadd.f32 %v2269, %v2289
      %v2341 = vadd.f32 %v2270, %v2289
      %v2342 = vadd.f32 %v2271, %v2289
      %v2343 = vadd.f32 %v2272, %v2289
      %v2344 = vadd.f32 %v2273, %v2289
      %v2345 = vadd.f32 %v2274, %v2289
      %v2346 = vadd.f32 %v2275, %v2289
      %v2347 = vadd.f32 %v2276, %v2289
      %v2348 = vadd.f32 %v2277, %v2289
      %v2349 = vadd.f32 %v2278, %v2289
      %v2350 = vadd.f32 %v2279, %v2289
      %v2351 = vadd.f32 %v2280, %v2289
      %v2352 = vadd.f32 %v2281, %v2289
      %v2353 = vadd.f32 %v2282, %v2289
      %v2354 = vadd.f32 %v2283, %v2289
      %2355 = vst [vmem:[%s262] sm:$0xff] %v2291
      %2356 = vst [vmem:[%s262 + $0x8] sm:$0xff] %v2292
      %2357 = vst [vmem:[%s262 + $0x10] sm:$0xff] %v2293
      %2358 = vst [vmem:[%s262 + $0x18] sm:$0xff] %v2294
      %2359 = vst [vmem:[%s262 + $0x20] sm:$0xff] %v2295
      %2360 = vst [vmem:[%s262 + $0x28] sm:$0xff] %v2296
      %2361 = vst [vmem:[%s262 + $0x30] sm:$0xff] %v2297
      %2362 = vst [vmem:[%s262 + $0x38] sm:$0xff] %v2298
      %2363 = vst [vmem:[%s262 + $0x40] sm:$0xff] %v2299
      %2364 = vst [vmem:[%s262 + $0x48] sm:$0xff] %v2300
      %2365 = vst [vmem:[%s262 + $0x50] sm:$0xff] %v2301
      %2366 = vst [vmem:[%s262 + $0x58] sm:$0xff] %v2302
      %2367 = vst [vmem:[%s262 + $0x60] sm:$0xff] %v2303
      %2368 = vst [vmem:[%s262 + $0x68] sm:$0xff] %v2304
      %2369 = vst [vmem:[%s262 + $0x70] sm:$0xff] %v2305
      %2370 = vst [vmem:[%s262 + $0x78] sm:$0xff] %v2306
      %2371 = vst [vmem:[%s262 + $0x80] sm:$0xff] %v2307
      %2372 = vst [vmem:[%s262 + $0x88] sm:$0xff] %v2308
      %2373 = vst [vmem:[%s262 + $0x90] sm:$0xff] %v2309
      %2374 = vst [vmem:[%s262 + $0x98] sm:$0xff] %v2310
      %2375 = vst [vmem:[%s262 + $0xa0] sm:$0xff] %v2311
      %2376 = vst [vmem:[%s262 + $0xa8] sm:$0xff] %v2312
      %2377 = vst [vmem:[%s262 + $0xb0] sm:$0xff] %v2313
      %2378 = vst [vmem:[%s262 + $0xb8] sm:$0xff] %v2314
      %2379 = vst [vmem:[%s262 + $0xc0] sm:$0xff] %v2315
      %2380 = vst [vmem:[%s262 + $0xc8] sm:$0xff] %v2316
      %2381 = vst [vmem:[%s262 + $0xd0] sm:$0xff] %v2317
      %2382 = vst [vmem:[%s262 + $0xd8] sm:$0xff] %v2318
      %2383 = vst [vmem:[%s262 + $0xe0] sm:$0xff] %v2319
      %2384 = vst [vmem:[%s262 + $0xe8] sm:$0xff] %v2320
      %2385 = vst [vmem:[%s262 + $0xf0] sm:$0xff] %v2321
      %2386 = vst [vmem:[%s262 + $0xf8] sm:$0xff] %v2322
      %2387 = vst [vmem:[%s262 + $0x100] sm:$0xff] %v2323
      %2388 = vst [vmem:[%s262 + $0x108] sm:$0xff] %v2324
      %2389 = vst [vmem:[%s262 + $0x110] sm:$0xff] %v2325
      %2390 = vst [vmem:[%s262 + $0x118] sm:$0xff] %v2326
      %2391 = vst [vmem:[%s262 + $0x120] sm:$0xff] %v2327
      %2392 = vst [vmem:[%s262 + $0x128] sm:$0xff] %v2328
      %2393 = vst [vmem:[%s262 + $0x130] sm:$0xff] %v2329
      %2394 = vst [vmem:[%s262 + $0x138] sm:$0xff] %v2330
      %2395 = vst [vmem:[%s262 + $0x140] sm:$0xff] %v2331
      %2396 = vst [vmem:[%s262 + $0x148] sm:$0xff] %v2332
      %2397 = vst [vmem:[%s262 + $0x150] sm:$0xff] %v2333
      %2398 = vst [vmem:[%s262 + $0x158] sm:$0xff] %v2334
      %2399 = vst [vmem:[%s262 + $0x160] sm:$0xff] %v2335
      %2400 = vst [vmem:[%s262 + $0x168] sm:$0xff] %v2336
      %2401 = vst [vmem:[%s262 + $0x170] sm:$0xff] %v2337
      %2402 = vst [vmem:[%s262 + $0x178] sm:$0xff] %v2338
      %2403 = vst [vmem:[%s262 + $0x180] sm:$0xff] %v2339
      %2404 = vst [vmem:[%s262 + $0x188] sm:$0xff] %v2340
      %2405 = vst [vmem:[%s262 + $0x190] sm:$0xff] %v2341
      %2406 = vst [vmem:[%s262 + $0x198] sm:$0xff] %v2342
      %2407 = vst [vmem:[%s262 + $0x1a0] sm:$0xff] %v2343
      %2408 = vst [vmem:[%s262 + $0x1a8] sm:$0xff] %v2344
      %2409 = vst [vmem:[%s262 + $0x1b0] sm:$0xff] %v2345
      %2410 = vst [vmem:[%s262 + $0x1b8] sm:$0xff] %v2346
      %2411 = vst [vmem:[%s262 + $0x1c0] sm:$0xff] %v2347
      %2412 = vst [vmem:[%s262 + $0x1c8] sm:$0xff] %v2348
      %2413 = vst [vmem:[%s262 + $0x1d0] sm:$0xff] %v2349
      %2414 = vst [vmem:[%s262 + $0x1d8] sm:$0xff] %v2350
      %2415 = vst [vmem:[%s262 + $0x1e0] sm:$0xff] %v2351
      %2416 = vst [vmem:[%s262 + $0x1e8] sm:$0xff] %v2352
      %2417 = vst [vmem:[%s262 + $0x1f0] sm:$0xff] %v2353
      %2418 = vst [vmem:[%s262 + $0x1f8] sm:$0xff] %v2354
      %s2419 = smul.u32 8, %s21
      %p2420 = scmp.lt.s32.totalorder %s20, 1
      %s2421 = scalar_select %p2420, %s20, 1
      %p2422 = scmp.lt.s32.totalorder %s2419, 7
      %s2423 = scalar_select %p2422, %s2419, 7
      %s2424 = smul.addr %s2421, 64
      %s2425 = sadd.s32 %s2423, %s2424
      %s2426 = smul.addr %s2425, 8
      %s2427 = scalar_lea.vmem %s5, %s2426
      // Predicated region
      $region41: #{tim_block_forward.3} parent=39 // pred_check
        %p2428 = pneg %p160
      $region42: #{tim_block_forward.3} parent=39 // pred_check_branch
        %2430 = sbr.rel (%p2428) target = $region44
      $region43: #{tim_block_forward.3} parent=39 // pred_region
        %s2431 = smul.u32 8, %s21
      $region44: #{tim_block_forward.3} parent=39 // pred_fallthru
        _
    $region40: #{tim_block_forward.3} parent=5 // pred_fallthru
      _
    %p2432 = scmp.le.s32.totalorder 2, %s11
    // Predicated region
    $region45: #{tim_block_forward.3} parent=5 // pred_check
      %p2433 = pneg %p2432
    $region46: #{tim_block_forward.3} parent=5 // pred_check_branch
      %2435 = sbr.rel (%p2433) target = $region48
    $region47: #{tim_block_forward.3} parent=5 // pred_region
      %s2436 = ssub.s32 %s11, 2
      // Predicated region
      $region49: #{tim_block_forward.3} parent=47 // pred_check
        %p2437 = pneg %p166
      $region50: #{tim_block_forward.3} parent=47 // pred_check_branch
        %2439 = sbr.rel (%p2437) target = $region52
      $region51: #{tim_block_forward.3} parent=47 // pred_region
        %s2440 = smul.u32 8, %s23
        %p2441 = scmp.lt.s32.totalorder %s22, 1
        %s2442 = scalar_select %p2441, %s22, 1
        %p2443 = scmp.lt.s32.totalorder %s2440, 7
        %s2444 = scalar_select %p2443, %s2440, 7
        %s2445 = smul.addr %s2442, 64
        %s2446 = sadd.s32 %s2444, %s2445
        %s2447 = smul.addr %s2446, 8
        %s2448 = scalar_lea.vmem %s5, %s2447
      $region52: #{tim_block_forward.3} parent=47 // pred_fallthru
        _
    $region48: #{tim_block_forward.3} parent=5 // pred_fallthru
      _
  $region6: #{tim_block_forward.3} parent=0 // loop_footer
    %s15 = sadd.s32 1, %s11
  $region7: #{tim_block_forward.3} parent=0 // loop_footer_branch
    %10 = sbr.rel target = $region3
  $region8: #{tim_block_forward.3} parent=0 // loop_exit
    _

// kernel: tim_block_forward.2
$region0: #{tim_block_forward.2}
  #allocation0 [shape = 'u32[]', space=smem, size = 0x4, offset = 0x4, fixed_abs, tag = 'smem constant byte address 0x4 - core index']
  #allocation1 [shape = 'u32[144,128]{1,0:T(1,128)}', space=vmem, size = 0x12000, scoped, tag = 'internal scratch']
  %s0 = inlined_call_operand.vmem [shape: bf16[16,10,10,128], index: 0, kind: input, shape index: {}]
  %s1 = inlined_call_operand.vmem [shape: bf16[1152,128], index: 1, kind: input, shape index: {}]
  %s2 = inlined_call_operand.vmem [shape: f32[1,128], index: 2, kind: input, shape index: {}]
  %s3 = inlined_call_operand.vmem [shape: f32[1,64,128], index: 3, kind: input, shape index: {}]
  %s4 = inlined_call_operand.vmem [shape: f32[1,64,128], index: 4, kind: input, shape index: {}]
  %s5 = inlined_call_operand.vmem [shape: bf16[16,64,128], index: 5, kind: output, shape index: {}]
  %s6 = sld [smem:[#allocation0]]
  $region30: #{tim_block_forward.2} parent=0
    _
  %s8 = ssub.s32 1, %s6
  %s9 = scalar_select 0, %s8, %s6
  // Predicated region
  $region2: #{tim_block_forward.2} parent=0 // pred_check
    _
  $region3: #{tim_block_forward.2} parent=0 // pred_check_branch
    %11 = sbr.rel (0) target = $region5
  $region4: #{tim_block_forward.2} parent=0 // pred_region
    _
  $region5: #{tim_block_forward.2} parent=0 // pred_fallthru
    _
  // Predicated region
  $region6: #{tim_block_forward.2} parent=0 // pred_check
    _
  $region7: #{tim_block_forward.2} parent=0 // pred_check_branch
    %13 = sbr.rel (0) target = $region9
  $region8: #{tim_block_forward.2} parent=0 // pred_region
    _
  $region9: #{tim_block_forward.2} parent=0 // pred_fallthru
    _
  // Predicated region
  $region10: #{tim_block_forward.2} parent=0 // pred_check
    _
  $region11: #{tim_block_forward.2} parent=0 // pred_check_branch
    %15 = sbr.rel (0) target = $region13
  $region12: #{tim_block_forward.2} parent=0 // pred_region
    _
  $region13: #{tim_block_forward.2} parent=0 // pred_fallthru
    _
  // Predicated region
  $region14: #{tim_block_forward.2} parent=0 // pred_check
    _
  $region15: #{tim_block_forward.2} parent=0 // pred_check_branch
    %17 = sbr.rel (0) target = $region17
  $region16: #{tim_block_forward.2} parent=0 // pred_region
    _
  $region17: #{tim_block_forward.2} parent=0 // pred_fallthru
    _
  // Predicated region
  $region18: #{tim_block_forward.2} parent=0 // pred_check
    _
  $region19: #{tim_block_forward.2} parent=0 // pred_check_branch
    %19 = sbr.rel (0) target = $region21
  $region20: #{tim_block_forward.2} parent=0 // pred_region
    _
  $region21: #{tim_block_forward.2} parent=0 // pred_fallthru
    _
  %v21 = vld [vmem:[%s0] sm:$0xf]
  %v22 = vld [vmem:[%s0 + $0x4] sm:$0x1]
  %v23 = vld [vmem:[%s0 + $0x8] sm:$0xf]
  %v24 = vld [vmem:[%s0 + $0xc] sm:$0x1]
  %v25 = vld [vmem:[%s0 + $0x10] sm:$0xf]
  %v26 = vld [vmem:[%s0 + $0x14] sm:$0x1]
  %v27 = vld [vmem:[%s0 + $0x18] sm:$0xf]
  %v28 = vld [vmem:[%s0 + $0x1c] sm:$0x1]
  %v29 = vld [vmem:[%s0 + $0x20] sm:$0xf]
  %v30 = vld [vmem:[%s0 + $0x24] sm:$0x1]
  %v31 = vld [vmem:[%s0 + $0x28] sm:$0xf]
  %v32 = vld [vmem:[%s0 + $0x2c] sm:$0x1]
  %v33 = vld [vmem:[%s0 + $0x30] sm:$0xf]
  %v34 = vld [vmem:[%s0 + $0x34] sm:$0x1]
  %v35 = vld [vmem:[%s0 + $0x38] sm:$0xf]
  %v36 = vld [vmem:[%s0 + $0x3c] sm:$0x1]
  %v37 = vld [vmem:[%s0 + $0x40] sm:$0xf]
  %v38 = vld [vmem:[%s0 + $0x44] sm:$0x1]
  %v39 = vld [vmem:[%s0 + $0x48] sm:$0xf]
  %v40 = vld [vmem:[%s0 + $0x4c] sm:$0x1]
  %v41 = vld [vmem:[%s0 + $0x50] sm:$0xf]
  %v42 = vld [vmem:[%s0 + $0x54] sm:$0x1]
  %v43 = vld [vmem:[%s0 + $0x58] sm:$0xf]
  %v44 = vld [vmem:[%s0 + $0x5c] sm:$0x1]
  %v45 = vld [vmem:[%s0 + $0x60] sm:$0xf]
  %v46 = vld [vmem:[%s0 + $0x64] sm:$0x1]
  %v47 = vld [vmem:[%s0 + $0x68] sm:$0xf]
  %v48 = vld [vmem:[%s0 + $0x6c] sm:$0x1]
  %v49 = vld [vmem:[%s0 + $0x70] sm:$0xf]
  %v50 = vld [vmem:[%s0 + $0x74] sm:$0x1]
  %v51 = vld [vmem:[%s0 + $0x78] sm:$0xf]
  %v52 = vld [vmem:[%s0 + $0x7c] sm:$0x1]
  %v53 = vld [vmem:[%s0 + $0x80] sm:$0xf]
  %v54 = vld [vmem:[%s0 + $0x84] sm:$0x1]
  %v55 = vld [vmem:[%s0 + $0x88] sm:$0xf]
  %v56 = vld [vmem:[%s0 + $0x8c] sm:$0x1]
  %v57 = vld [vmem:[%s0 + $0x90] sm:$0xf]
  %v58 = vld [vmem:[%s0 + $0x94] sm:$0x1]
  %v59 = vld [vmem:[%s0 + $0x98] sm:$0xf]
  %v60 = vld [vmem:[%s0 + $0x9c] sm:$0x1]
  %v61 = vld [vmem:[%s0 + $0xa0] sm:$0xf]
  %v62 = vld [vmem:[%s0 + $0xa4] sm:$0x1]
  %v63 = vld [vmem:[%s0 + $0xa8] sm:$0xf]
  %v64 = vld [vmem:[%s0 + $0xac] sm:$0x1]
  %v65 = vld [vmem:[%s0 + $0xb0] sm:$0xf]
  %v66 = vld [vmem:[%s0 + $0xb4] sm:$0x1]
  %v67 = vld [vmem:[%s0 + $0xb8] sm:$0xf]
  %v68 = vld [vmem:[%s0 + $0xbc] sm:$0x1]
  %v69 = vld [vmem:[%s0 + $0xc0] sm:$0xf]
  %v70 = vld [vmem:[%s0 + $0xc4] sm:$0x1]
  %v71 = vld [vmem:[%s0 + $0xc8] sm:$0xf]
  %v72 = vld [vmem:[%s0 + $0xcc] sm:$0x1]
  %v73 = vld [vmem:[%s0 + $0xd0] sm:$0xf]
  %v74 = vld [vmem:[%s0 + $0xd4] sm:$0x1]
  %v75 = vld [vmem:[%s0 + $0xd8] sm:$0xf]
  %v76 = vld [vmem:[%s0 + $0xdc] sm:$0x1]
  %v77 = vld [vmem:[%s0 + $0xe0] sm:$0xf]
  %v78 = vld [vmem:[%s0 + $0xe4] sm:$0x1]
  %v79 = vld [vmem:[%s0 + $0xe8] sm:$0xf]
  %v80 = vld [vmem:[%s0 + $0xec] sm:$0x1]
  %v81 = vld [vmem:[%s0 + $0xf0] sm:$0xf]
  %v82 = vld [vmem:[%s0 + $0xf4] sm:$0x1]
  %v83 = vld [vmem:[%s0 + $0xf8] sm:$0xf]
  %v84 = vld [vmem:[%s0 + $0xfc] sm:$0x1]
  %v85 = vld [vmem:[%s0 + $0x100] sm:$0xf]
  %v86 = vld [vmem:[%s0 + $0x104] sm:$0x1]
  %v87 = vld [vmem:[%s0 + $0x108] sm:$0xf]
  %v88 = vld [vmem:[%s0 + $0x10c] sm:$0x1]
  %v89 = vld [vmem:[%s0 + $0x110] sm:$0xf]
  %v90 = vld [vmem:[%s0 + $0x114] sm:$0x1]
  %v91 = vld [vmem:[%s0 + $0x118] sm:$0xf]
  %v92 = vld [vmem:[%s0 + $0x11c] sm:$0x1]
  %v93 = vld [vmem:[%s0 + $0x120] sm:$0xf]
  %v94 = vld [vmem:[%s0 + $0x124] sm:$0x1]
  %v95 = vld [vmem:[%s0 + $0x128] sm:$0xf]
  %v96 = vld [vmem:[%s0 + $0x12c] sm:$0x1]
  %v97 = vld [vmem:[%s0 + $0x130] sm:$0xf]
  %v98 = vld [vmem:[%s0 + $0x134] sm:$0x1]
  %v99 = vld [vmem:[%s0 + $0x138] sm:$0xf]
  %v100 = vld [vmem:[%s0 + $0x13c] sm:$0x1]
  %v101 = vld [vmem:[%s0 + $0x140] sm:$0xf]
  %v102 = vld [vmem:[%s0 + $0x144] sm:$0x1]
  %v103 = vld [vmem:[%s0 + $0x148] sm:$0xf]
  %v104 = vld [vmem:[%s0 + $0x14c] sm:$0x1]
  %v105 = vld [vmem:[%s0 + $0x150] sm:$0xf]
  %v106 = vld [vmem:[%s0 + $0x154] sm:$0x1]
  %v107 = vld [vmem:[%s0 + $0x158] sm:$0xf]
  %v108 = vld [vmem:[%s0 + $0x15c] sm:$0x1]
  %v109 = vld [vmem:[%s0 + $0x160] sm:$0xf]
  %v110 = vld [vmem:[%s0 + $0x164] sm:$0x1]
  %v111 = vld [vmem:[%s0 + $0x168] sm:$0xf]
  %v112 = vld [vmem:[%s0 + $0x16c] sm:$0x1]
  %v113 = vld [vmem:[%s0 + $0x170] sm:$0xf]
  %v114 = vld [vmem:[%s0 + $0x174] sm:$0x1]
  %v115 = vld [vmem:[%s0 + $0x178] sm:$0xf]
  %v116 = vld [vmem:[%s0 + $0x17c] sm:$0x1]
  %v117 = vld [vmem:[%s0 + $0x180] sm:$0xf]
  %v118 = vld [vmem:[%s0 + $0x184] sm:$0x1]
  %v119 = vld [vmem:[%s0 + $0x188] sm:$0xf]
  %v120 = vld [vmem:[%s0 + $0x18c] sm:$0x1]
  %v121 = vld [vmem:[%s0 + $0x190] sm:$0xf]
  %v122 = vld [vmem:[%s0 + $0x194] sm:$0x1]
  %v123 = vld [vmem:[%s0 + $0x198] sm:$0xf]
  %v124 = vld [vmem:[%s0 + $0x19c] sm:$0x1]
  %v125 = vld [vmem:[%s0 + $0x1a0] sm:$0xf]
  %v126 = vld [vmem:[%s0 + $0x1a4] sm:$0x1]
  %v127 = vld [vmem:[%s0 + $0x1a8] sm:$0xf]
  %v128 = vld [vmem:[%s0 + $0x1ac] sm:$0x1]
  %v129 = vld [vmem:[%s0 + $0x1b0] sm:$0xf]
  %v130 = vld [vmem:[%s0 + $0x1b4] sm:$0x1]
  %v131 = vld [vmem:[%s0 + $0x1b8] sm:$0xf]
  %v132 = vld [vmem:[%s0 + $0x1bc] sm:$0x1]
  %v133 = vld [vmem:[%s0 + $0x1c0] sm:$0xf]
  %v134 = vld [vmem:[%s0 + $0x1c4] sm:$0x1]
  %v135 = vld [vmem:[%s0 + $0x1c8] sm:$0xf]
  %v136 = vld [vmem:[%s0 + $0x1cc] sm:$0x1]
  %v137 = vld [vmem:[%s0 + $0x1d0] sm:$0xf]
  %v138 = vld [vmem:[%s0 + $0x1d4] sm:$0x1]
  %v139 = vld [vmem:[%s0 + $0x1d8] sm:$0xf]
  %v140 = vld [vmem:[%s0 + $0x1dc] sm:$0x1]
  %v141 = vld [vmem:[%s0 + $0x1e0] sm:$0xf]
  %v142 = vld [vmem:[%s0 + $0x1e4] sm:$0x1]
  %v143 = vld [vmem:[%s0 + $0x1e8] sm:$0xf]
  %v144 = vld [vmem:[%s0 + $0x1ec] sm:$0x1]
  %v145 = vld [vmem:[%s0 + $0x1f0] sm:$0xf]
  %v146 = vld [vmem:[%s0 + $0x1f4] sm:$0x1]
  %v147 = vld [vmem:[%s0 + $0x1f8] sm:$0xf]
  %v148 = vld [vmem:[%s0 + $0x1fc] sm:$0x1]
  %v149 = vld [vmem:[%s0 + $0x200] sm:$0xf]
  %v150 = vld [vmem:[%s0 + $0x204] sm:$0x1]
  %v151 = vld [vmem:[%s0 + $0x208] sm:$0xf]
  %v152 = vld [vmem:[%s0 + $0x20c] sm:$0x1]
  %v153 = vld [vmem:[%s0 + $0x210] sm:$0xf]
  %v154 = vld [vmem:[%s0 + $0x214] sm:$0x1]
  %v155 = vld [vmem:[%s0 + $0x218] sm:$0xf]
  %v156 = vld [vmem:[%s0 + $0x21c] sm:$0x1]
  %v157 = vld [vmem:[%s0 + $0x220] sm:$0xf]
  %v158 = vld [vmem:[%s0 + $0x224] sm:$0x1]
  %v159 = vld [vmem:[%s0 + $0x228] sm:$0xf]
  %v160 = vld [vmem:[%s0 + $0x22c] sm:$0x1]
  %v161 = vld [vmem:[%s0 + $0x230] sm:$0xf]
  %v162 = vld [vmem:[%s0 + $0x234] sm:$0x1]
  %v163 = vld [vmem:[%s0 + $0x238] sm:$0xf]
  %v164 = vld [vmem:[%s0 + $0x23c] sm:$0x1]
  %v165 = vld [vmem:[%s0 + $0x240] sm:$0xf]
  %v166 = vld [vmem:[%s0 + $0x244] sm:$0x1]
  %v167 = vld [vmem:[%s0 + $0x248] sm:$0xf]
  %v168 = vld [vmem:[%s0 + $0x24c] sm:$0x1]
  %v169 = vld [vmem:[%s0 + $0x250] sm:$0xf]
  %v170 = vld [vmem:[%s0 + $0x254] sm:$0x1]
  %v171 = vld [vmem:[%s0 + $0x258] sm:$0xf]
  %v172 = vld [vmem:[%s0 + $0x25c] sm:$0x1]
  %v173 = vld [vmem:[%s0 + $0x260] sm:$0xf]
  %v174 = vld [vmem:[%s0 + $0x264] sm:$0x1]
  %v175 = vld [vmem:[%s0 + $0x268] sm:$0xf]
  %v176 = vld [vmem:[%s0 + $0x26c] sm:$0x1]
  %v177 = vld [vmem:[%s0 + $0x270] sm:$0xf]
  %v178 = vld [vmem:[%s0 + $0x274] sm:$0x1]
  %v179 = vld [vmem:[%s0 + $0x278] sm:$0xf]
  %v180 = vld [vmem:[%s0 + $0x27c] sm:$0x1]
  %v181 = vld [vmem:[%s0 + $0x280] sm:$0xf]
  %v182 = vld [vmem:[%s0 + $0x284] sm:$0x1]
  %v183 = vld [vmem:[%s0 + $0x288] sm:$0xf]
  %v184 = vld [vmem:[%s0 + $0x28c] sm:$0x1]
  %v185 = vld [vmem:[%s0 + $0x290] sm:$0xf]
  %v186 = vld [vmem:[%s0 + $0x294] sm:$0x1]
  %v187 = vld [vmem:[%s0 + $0x298] sm:$0xf]
  %v188 = vld [vmem:[%s0 + $0x29c] sm:$0x1]
  %v189 = vld [vmem:[%s0 + $0x2a0] sm:$0xf]
  %v190 = vld [vmem:[%s0 + $0x2a4] sm:$0x1]
  %v191 = vld [vmem:[%s0 + $0x2a8] sm:$0xf]
  %v192 = vld [vmem:[%s0 + $0x2ac] sm:$0x1]
  %v193 = vld [vmem:[%s0 + $0x2b0] sm:$0xf]
  %v194 = vld [vmem:[%s0 + $0x2b4] sm:$0x1]
  %v195 = vld [vmem:[%s0 + $0x2b8] sm:$0xf]
  %v196 = vld [vmem:[%s0 + $0x2bc] sm:$0x1]
  %v197 = vld [vmem:[%s0 + $0x2c0] sm:$0xf]
  %v198 = vld [vmem:[%s0 + $0x2c4] sm:$0x1]
  %v199 = vld [vmem:[%s0 + $0x2c8] sm:$0xf]
  %v200 = vld [vmem:[%s0 + $0x2cc] sm:$0x1]
  %v201 = vld [vmem:[%s0 + $0x2d0] sm:$0xf]
  %v202 = vld [vmem:[%s0 + $0x2d4] sm:$0x1]
  %v203 = vld [vmem:[%s0 + $0x2d8] sm:$0xf]
  %v204 = vld [vmem:[%s0 + $0x2dc] sm:$0x1]
  %v205 = vld [vmem:[%s0 + $0x2e0] sm:$0xf]
  %v206 = vld [vmem:[%s0 + $0x2e4] sm:$0x1]
  %v207 = vld [vmem:[%s0 + $0x2e8] sm:$0xf]
  %v208 = vld [vmem:[%s0 + $0x2ec] sm:$0x1]
  %v209 = vld [vmem:[%s0 + $0x2f0] sm:$0xf]
  %v210 = vld [vmem:[%s0 + $0x2f4] sm:$0x1]
  %v211 = vld [vmem:[%s0 + $0x2f8] sm:$0xf]
  %v212 = vld [vmem:[%s0 + $0x2fc] sm:$0x1]
  %v213 = vld [vmem:[%s0 + $0x300] sm:$0xf]
  %v214 = vld [vmem:[%s0 + $0x304] sm:$0x1]
  %v215 = vld [vmem:[%s0 + $0x308] sm:$0xf]
  %v216 = vld [vmem:[%s0 + $0x30c] sm:$0x1]
  %v217 = vld [vmem:[%s0 + $0x310] sm:$0xf]
  %v218 = vld [vmem:[%s0 + $0x314] sm:$0x1]
  %v219 = vld [vmem:[%s0 + $0x318] sm:$0xf]
  %v220 = vld [vmem:[%s0 + $0x31c] sm:$0x1]
  %v221 = vld [vmem:[%s0 + $0x320] sm:$0xf]
  %v222 = vld [vmem:[%s0 + $0x324] sm:$0x1]
  %v223 = vld [vmem:[%s0 + $0x328] sm:$0xf]
  %v224 = vld [vmem:[%s0 + $0x32c] sm:$0x1]
  %v225 = vld [vmem:[%s0 + $0x330] sm:$0xf]
  %v226 = vld [vmem:[%s0 + $0x334] sm:$0x1]
  %v227 = vld [vmem:[%s0 + $0x338] sm:$0xf]
  %v228 = vld [vmem:[%s0 + $0x33c] sm:$0x1]
  %v229 = vld [vmem:[%s0 + $0x340] sm:$0xf]
  %v230 = vld [vmem:[%s0 + $0x344] sm:$0x1]
  %v231 = vld [vmem:[%s0 + $0x348] sm:$0xf]
  %v232 = vld [vmem:[%s0 + $0x34c] sm:$0x1]
  %v233 = vld [vmem:[%s0 + $0x350] sm:$0xf]
  %v234 = vld [vmem:[%s0 + $0x354] sm:$0x1]
  %v235 = vld [vmem:[%s0 + $0x358] sm:$0xf]
  %v236 = vld [vmem:[%s0 + $0x35c] sm:$0x1]
  %v237 = vld [vmem:[%s0 + $0x360] sm:$0xf]
  %v238 = vld [vmem:[%s0 + $0x364] sm:$0x1]
  %v239 = vld [vmem:[%s0 + $0x368] sm:$0xf]
  %v240 = vld [vmem:[%s0 + $0x36c] sm:$0x1]
  %v241 = vld [vmem:[%s0 + $0x370] sm:$0xf]
  %v242 = vld [vmem:[%s0 + $0x374] sm:$0x1]
  %v243 = vld [vmem:[%s0 + $0x378] sm:$0xf]
  %v244 = vld [vmem:[%s0 + $0x37c] sm:$0x1]
  %v245 = vld [vmem:[%s0 + $0x380] sm:$0xf]
  %v246 = vld [vmem:[%s0 + $0x384] sm:$0x1]
  %v247 = vld [vmem:[%s0 + $0x388] sm:$0xf]
  %v248 = vld [vmem:[%s0 + $0x38c] sm:$0x1]
  %v249 = vld [vmem:[%s0 + $0x390] sm:$0xf]
  %v250 = vld [vmem:[%s0 + $0x394] sm:$0x1]
  %v251 = vld [vmem:[%s0 + $0x398] sm:$0xf]
  %v252 = vld [vmem:[%s0 + $0x39c] sm:$0x1]
  %v253 = vld [vmem:[%s0 + $0x3a0] sm:$0xf]
  %v254 = vld [vmem:[%s0 + $0x3a4] sm:$0x1]
  %v255 = vld [vmem:[%s0 + $0x3a8] sm:$0xf]
  %v256 = vld [vmem:[%s0 + $0x3ac] sm:$0x1]
  %v257 = vld [vmem:[%s0 + $0x3b0] sm:$0xf]
  %v258 = vld [vmem:[%s0 + $0x3b4] sm:$0x1]
  %v259 = vld [vmem:[%s0 + $0x3b8] sm:$0xf]
  %v260 = vld [vmem:[%s0 + $0x3bc] sm:$0x1]
  %v261 = vld [vmem:[%s0 + $0x3c0] sm:$0xf]
  %v262 = vld [vmem:[%s0 + $0x3c4] sm:$0x1]
  %v263 = vld [vmem:[%s0 + $0x3c8] sm:$0xf]
  %v264 = vld [vmem:[%s0 + $0x3cc] sm:$0x1]
  %v265 = vld [vmem:[%s0 + $0x3d0] sm:$0xf]
  %v266 = vld [vmem:[%s0 + $0x3d4] sm:$0x1]
  %v267 = vld [vmem:[%s0 + $0x3d8] sm:$0xf]
  %v268 = vld [vmem:[%s0 + $0x3dc] sm:$0x1]
  %v269 = vld [vmem:[%s0 + $0x3e0] sm:$0xf]
  %v270 = vld [vmem:[%s0 + $0x3e4] sm:$0x1]
  %v271 = vld [vmem:[%s0 + $0x3e8] sm:$0xf]
  %v272 = vld [vmem:[%s0 + $0x3ec] sm:$0x1]
  %v273 = vld [vmem:[%s0 + $0x3f0] sm:$0xf]
  %v274 = vld [vmem:[%s0 + $0x3f4] sm:$0x1]
  %v275 = vld [vmem:[%s0 + $0x3f8] sm:$0xf]
  %v276 = vld [vmem:[%s0 + $0x3fc] sm:$0x1]
  %v277 = vld [vmem:[%s0 + $0x400] sm:$0xf]
  %v278 = vld [vmem:[%s0 + $0x404] sm:$0x1]
  %v279 = vld [vmem:[%s0 + $0x408] sm:$0xf]
  %v280 = vld [vmem:[%s0 + $0x40c] sm:$0x1]
  %v281 = vld [vmem:[%s0 + $0x410] sm:$0xf]
  %v282 = vld [vmem:[%s0 + $0x414] sm:$0x1]
  %v283 = vld [vmem:[%s0 + $0x418] sm:$0xf]
  %v284 = vld [vmem:[%s0 + $0x41c] sm:$0x1]
  %v285 = vld [vmem:[%s0 + $0x420] sm:$0xf]
  %v286 = vld [vmem:[%s0 + $0x424] sm:$0x1]
  %v287 = vld [vmem:[%s0 + $0x428] sm:$0xf]
  %v288 = vld [vmem:[%s0 + $0x42c] sm:$0x1]
  %v289 = vld [vmem:[%s0 + $0x430] sm:$0xf]
  %v290 = vld [vmem:[%s0 + $0x434] sm:$0x1]
  %v291 = vld [vmem:[%s0 + $0x438] sm:$0xf]
  %v292 = vld [vmem:[%s0 + $0x43c] sm:$0x1]
  %v293 = vld [vmem:[%s0 + $0x440] sm:$0xf]
  %v294 = vld [vmem:[%s0 + $0x444] sm:$0x1]
  %v295 = vld [vmem:[%s0 + $0x448] sm:$0xf]
  %v296 = vld [vmem:[%s0 + $0x44c] sm:$0x1]
  %v297 = vld [vmem:[%s0 + $0x450] sm:$0xf]
  %v298 = vld [vmem:[%s0 + $0x454] sm:$0x1]
  %v299 = vld [vmem:[%s0 + $0x458] sm:$0xf]
  %v300 = vld [vmem:[%s0 + $0x45c] sm:$0x1]
  %v301 = vld [vmem:[%s0 + $0x460] sm:$0xf]
  %v302 = vld [vmem:[%s0 + $0x464] sm:$0x1]
  %v303 = vld [vmem:[%s0 + $0x468] sm:$0xf]
  %v304 = vld [vmem:[%s0 + $0x46c] sm:$0x1]
  %v305 = vld [vmem:[%s0 + $0x470] sm:$0xf]
  %v306 = vld [vmem:[%s0 + $0x474] sm:$0x1]
  %v307 = vld [vmem:[%s0 + $0x478] sm:$0xf]
  %v308 = vld [vmem:[%s0 + $0x47c] sm:$0x1]
  %v309 = vld [vmem:[%s0 + $0x480] sm:$0xf]
  %v310 = vld [vmem:[%s0 + $0x484] sm:$0x1]
  %v311 = vld [vmem:[%s0 + $0x488] sm:$0xf]
  %v312 = vld [vmem:[%s0 + $0x48c] sm:$0x1]
  %v313 = vld [vmem:[%s0 + $0x490] sm:$0xf]
  %v314 = vld [vmem:[%s0 + $0x494] sm:$0x1]
  %v315 = vld [vmem:[%s0 + $0x498] sm:$0xf]
  %v316 = vld [vmem:[%s0 + $0x49c] sm:$0x1]
  %v317 = vld [vmem:[%s0 + $0x4a0] sm:$0xf]
  %v318 = vld [vmem:[%s0 + $0x4a4] sm:$0x1]
  %v319 = vld [vmem:[%s0 + $0x4a8] sm:$0xf]
  %v320 = vld [vmem:[%s0 + $0x4ac] sm:$0x1]
  %v321 = vld [vmem:[%s0 + $0x4b0] sm:$0xf]
  %v322 = vld [vmem:[%s0 + $0x4b4] sm:$0x1]
  %v323 = vld [vmem:[%s0 + $0x4b8] sm:$0xf]
  %v324 = vld [vmem:[%s0 + $0x4bc] sm:$0x1]
  %v325 = vld [vmem:[%s0 + $0x4c0] sm:$0xf]
  %v326 = vld [vmem:[%s0 + $0x4c4] sm:$0x1]
  %v327 = vld [vmem:[%s0 + $0x4c8] sm:$0xf]
  %v328 = vld [vmem:[%s0 + $0x4cc] sm:$0x1]
  %v329 = vld [vmem:[%s0 + $0x4d0] sm:$0xf]
  %v330 = vld [vmem:[%s0 + $0x4d4] sm:$0x1]
  %v331 = vld [vmem:[%s0 + $0x4d8] sm:$0xf]
  %v332 = vld [vmem:[%s0 + $0x4dc] sm:$0x1]
  %v333 = vld [vmem:[%s0 + $0x4e0] sm:$0xf]
  %v334 = vld [vmem:[%s0 + $0x4e4] sm:$0x1]
  %v335 = vld [vmem:[%s0 + $0x4e8] sm:$0xf]
  %v336 = vld [vmem:[%s0 + $0x4ec] sm:$0x1]
  %v337 = vld [vmem:[%s0 + $0x4f0] sm:$0xf]
  %v338 = vld [vmem:[%s0 + $0x4f4] sm:$0x1]
  %v339 = vld [vmem:[%s0 + $0x4f8] sm:$0xf]
  %v340 = vld [vmem:[%s0 + $0x4fc] sm:$0x1]
  %v597 = vunpack.c.l.b16 %v21
  %v598 = vunpack.c.l.b16 %v22
  %v599 = vunpack.c.l.b16 %v23
  %v600 = vunpack.c.l.b16 %v24
  %v601 = vunpack.c.l.b16 %v25
  %v602 = vunpack.c.l.b16 %v26
  %v603 = vunpack.c.l.b16 %v27
  %v604 = vunpack.c.l.b16 %v28
  %v605 = vunpack.c.l.b16 %v29
  %v606 = vunpack.c.l.b16 %v30
  %v607 = vunpack.c.l.b16 %v31
  %v608 = vunpack.c.l.b16 %v32
  %v609 = vunpack.c.l.b16 %v33
  %v610 = vunpack.c.l.b16 %v34
  %v611 = vunpack.c.l.b16 %v35
  %v612 = vunpack.c.l.b16 %v36
  %v613 = vunpack.c.l.b16 %v41
  %v614 = vunpack.c.l.b16 %v42
  %v615 = vunpack.c.l.b16 %v43
  %v616 = vunpack.c.l.b16 %v44
  %v617 = vunpack.c.l.b16 %v45
  %v618 = vunpack.c.l.b16 %v46
  %v619 = vunpack.c.l.b16 %v47
  %v620 = vunpack.c.l.b16 %v48
  %v621 = vunpack.c.l.b16 %v49
  %v622 = vunpack.c.l.b16 %v50
  %v623 = vunpack.c.l.b16 %v51
  %v624 = vunpack.c.l.b16 %v52
  %v625 = vunpack.c.l.b16 %v53
  %v626 = vunpack.c.l.b16 %v54
  %v627 = vunpack.c.l.b16 %v55
  %v628 = vunpack.c.l.b16 %v56
  %v629 = vunpack.c.l.b16 %v61
  %v630 = vunpack.c.l.b16 %v62
  %v631 = vunpack.c.l.b16 %v63
  %v632 = vunpack.c.l.b16 %v64
  %v633 = vunpack.c.l.b16 %v65
  %v634 = vunpack.c.l.b16 %v66
  %v635 = vunpack.c.l.b16 %v67
  %v636 = vunpack.c.l.b16 %v68
  %v637 = vunpack.c.l.b16 %v69
  %v638 = vunpack.c.l.b16 %v70
  %v639 = vunpack.c.l.b16 %v71
  %v640 = vunpack.c.l.b16 %v72
  %v641 = vunpack.c.l.b16 %v73
  %v642 = vunpack.c.l.b16 %v74
  %v643 = vunpack.c.l.b16 %v75
  %v644 = vunpack.c.l.b16 %v76
  %v645 = vunpack.c.l.b16 %v81
  %v646 = vunpack.c.l.b16 %v82
  %v647 = vunpack.c.l.b16 %v83
  %v648 = vunpack.c.l.b16 %v84
  %v649 = vunpack.c.l.b16 %v85
  %v650 = vunpack.c.l.b16 %v86
  %v651 = vunpack.c.l.b16 %v87
  %v652 = vunpack.c.l.b16 %v88
  %v653 = vunpack.c.l.b16 %v89
  %v654 = vunpack.c.l.b16 %v90
  %v655 = vunpack.c.l.b16 %v91
  %v656 = vunpack.c.l.b16 %v92
  %v657 = vunpack.c.l.b16 %v93
  %v658 = vunpack.c.l.b16 %v94
  %v659 = vunpack.c.l.b16 %v95
  %v660 = vunpack.c.l.b16 %v96
  %v661 = vunpack.c.l.b16 %v101
  %v662 = vunpack.c.l.b16 %v102
  %v663 = vunpack.c.l.b16 %v103
  %v664 = vunpack.c.l.b16 %v104
  %v665 = vunpack.c.l.b16 %v105
  %v666 = vunpack.c.l.b16 %v106
  %v667 = vunpack.c.l.b16 %v107
  %v668 = vunpack.c.l.b16 %v108
  %v669 = vunpack.c.l.b16 %v109
  %v670 = vunpack.c.l.b16 %v110
  %v671 = vunpack.c.l.b16 %v111
  %v672 = vunpack.c.l.b16 %v112
  %v673 = vunpack.c.l.b16 %v113
  %v674 = vunpack.c.l.b16 %v114
  %v675 = vunpack.c.l.b16 %v115
  %v676 = vunpack.c.l.b16 %v116
  %v677 = vunpack.c.l.b16 %v121
  %v678 = vunpack.c.l.b16 %v122
  %v679 = vunpack.c.l.b16 %v123
  %v680 = vunpack.c.l.b16 %v124
  %v681 = vunpack.c.l.b16 %v125
  %v682 = vunpack.c.l.b16 %v126
  %v683 = vunpack.c.l.b16 %v127
  %v684 = vunpack.c.l.b16 %v128
  %v685 = vunpack.c.l.b16 %v129
  %v686 = vunpack.c.l.b16 %v130
  %v687 = vunpack.c.l.b16 %v131
  %v688 = vunpack.c.l.b16 %v132
  %v689 = vunpack.c.l.b16 %v133
  %v690 = vunpack.c.l.b16 %v134
  %v691 = vunpack.c.l.b16 %v135
  %v692 = vunpack.c.l.b16 %v136
  %v693 = vunpack.c.l.b16 %v141
  %v694 = vunpack.c.l.b16 %v142
  %v695 = vunpack.c.l.b16 %v143
  %v696 = vunpack.c.l.b16 %v144
  %v697 = vunpack.c.l.b16 %v145
  %v698 = vunpack.c.l.b16 %v146
  %v699 = vunpack.c.l.b16 %v147
  %v700 = vunpack.c.l.b16 %v148
  %v701 = vunpack.c.l.b16 %v149
  %v702 = vunpack.c.l.b16 %v150
  %v703 = vunpack.c.l.b16 %v151
  %v704 = vunpack.c.l.b16 %v152
  %v705 = vunpack.c.l.b16 %v153
  %v706 = vunpack.c.l.b16 %v154
  %v707 = vunpack.c.l.b16 %v155
  %v708 = vunpack.c.l.b16 %v156
  %v709 = vunpack.c.l.b16 %v161
  %v710 = vunpack.c.l.b16 %v162
  %v711 = vunpack.c.l.b16 %v163
  %v712 = vunpack.c.l.b16 %v164
  %v713 = vunpack.c.l.b16 %v165
  %v714 = vunpack.c.l.b16 %v166
  %v715 = vunpack.c.l.b16 %v167
  %v716 = vunpack.c.l.b16 %v168
  %v717 = vunpack.c.l.b16 %v169
  %v718 = vunpack.c.l.b16 %v170
  %v719 = vunpack.c.l.b16 %v171
  %v720 = vunpack.c.l.b16 %v172
  %v721 = vunpack.c.l.b16 %v173
  %v722 = vunpack.c.l.b16 %v174
  %v723 = vunpack.c.l.b16 %v175
  %v724 = vunpack.c.l.b16 %v176
  %v725 = vunpack.c.l.b16 %v181
  %v726 = vunpack.c.l.b16 %v182
  %v727 = vunpack.c.l.b16 %v183
  %v728 = vunpack.c.l.b16 %v184
  %v729 = vunpack.c.l.b16 %v185
  %v730 = vunpack.c.l.b16 %v186
  %v731 = vunpack.c.l.b16 %v187
  %v732 = vunpack.c.l.b16 %v188
  %v733 = vunpack.c.l.b16 %v189
  %v734 = vunpack.c.l.b16 %v190
  %v735 = vunpack.c.l.b16 %v191
  %v736 = vunpack.c.l.b16 %v192
  %v737 = vunpack.c.l.b16 %v193
  %v738 = vunpack.c.l.b16 %v194
  %v739 = vunpack.c.l.b16 %v195
  %v740 = vunpack.c.l.b16 %v196
  %v741 = vunpack.c.l.b16 %v201
  %v742 = vunpack.c.l.b16 %v202
  %v743 = vunpack.c.l.b16 %v203
  %v744 = vunpack.c.l.b16 %v204
  %v745 = vunpack.c.l.b16 %v205
  %v746 = vunpack.c.l.b16 %v206
  %v747 = vunpack.c.l.b16 %v207
  %v748 = vunpack.c.l.b16 %v208
  %v749 = vunpack.c.l.b16 %v209
  %v750 = vunpack.c.l.b16 %v210
  %v751 = vunpack.c.l.b16 %v211
  %v752 = vunpack.c.l.b16 %v212
  %v753 = vunpack.c.l.b16 %v213
  %v754 = vunpack.c.l.b16 %v214
  %v755 = vunpack.c.l.b16 %v215
  %v756 = vunpack.c.l.b16 %v216
  %v757 = vunpack.c.l.b16 %v221
  %v758 = vunpack.c.l.b16 %v222
  %v759 = vunpack.c.l.b16 %v223
  %v760 = vunpack.c.l.b16 %v224
  %v761 = vunpack.c.l.b16 %v225
  %v762 = vunpack.c.l.b16 %v226
  %v763 = vunpack.c.l.b16 %v227
  %v764 = vunpack.c.l.b16 %v228
  %v765 = vunpack.c.l.b16 %v229
  %v766 = vunpack.c.l.b16 %v230
  %v767 = vunpack.c.l.b16 %v231
  %v768 = vunpack.c.l.b16 %v232
  %v769 = vunpack.c.l.b16 %v233
  %v770 = vunpack.c.l.b16 %v234
  %v771 = vunpack.c.l.b16 %v235
  %v772 = vunpack.c.l.b16 %v236
  %v773 = vunpack.c.l.b16 %v241
  %v774 = vunpack.c.l.b16 %v242
  %v775 = vunpack.c.l.b16 %v243
  %v776 = vunpack.c.l.b16 %v244
  %v777 = vunpack.c.l.b16 %v245
  %v778 = vunpack.c.l.b16 %v246
  %v779 = vunpack.c.l.b16 %v247
  %v780 = vunpack.c.l.b16 %v248
  %v781 = vunpack.c.l.b16 %v249
  %v782 = vunpack.c.l.b16 %v250
  %v783 = vunpack.c.l.b16 %v251
  %v784 = vunpack.c.l.b16 %v252
  %v785 = vunpack.c.l.b16 %v253
  %v786 = vunpack.c.l.b16 %v254
  %v787 = vunpack.c.l.b16 %v255
  %v788 = vunpack.c.l.b16 %v256
  %v789 = vunpack.c.l.b16 %v261
  %v790 = vunpack.c.l.b16 %v262
  %v791 = vunpack.c.l.b16 %v263
  %v792 = vunpack.c.l.b16 %v264
  %v793 = vunpack.c.l.b16 %v265
  %v794 = vunpack.c.l.b16 %v266
  %v795 = vunpack.c.l.b16 %v267
  %v796 = vunpack.c.l.b16 %v268
  %v797 = vunpack.c.l.b16 %v269
  %v798 = vunpack.c.l.b16 %v270
  %v799 = vunpack.c.l.b16 %v271
  %v800 = vunpack.c.l.b16 %v272
  %v801 = vunpack.c.l.b16 %v273
  %v802 = vunpack.c.l.b16 %v274
  %v803 = vunpack.c.l.b16 %v275
  %v804 = vunpack.c.l.b16 %v276
  %v805 = vunpack.c.l.b16 %v281
  %v806 = vunpack.c.l.b16 %v282
  %v807 = vunpack.c.l.b16 %v283
  %v808 = vunpack.c.l.b16 %v284
  %v809 = vunpack.c.l.b16 %v285
  %v810 = vunpack.c.l.b16 %v286
  %v811 = vunpack.c.l.b16 %v287
  %v812 = vunpack.c.l.b16 %v288
  %v813 = vunpack.c.l.b16 %v289
  %v814 = vunpack.c.l.b16 %v290
  %v815 = vunpack.c.l.b16 %v291
  %v816 = vunpack.c.l.b16 %v292
  %v817 = vunpack.c.l.b16 %v293
  %v818 = vunpack.c.l.b16 %v294
  %v819 = vunpack.c.l.b16 %v295
  %v820 = vunpack.c.l.b16 %v296
  %v821 = vunpack.c.l.b16 %v301
  %v822 = vunpack.c.l.b16 %v302
  %v823 = vunpack.c.l.b16 %v303
  %v824 = vunpack.c.l.b16 %v304
  %v825 = vunpack.c.l.b16 %v305
  %v826 = vunpack.c.l.b16 %v306
  %v827 = vunpack.c.l.b16 %v307
  %v828 = vunpack.c.l.b16 %v308
  %v829 = vunpack.c.l.b16 %v309
  %v830 = vunpack.c.l.b16 %v310
  %v831 = vunpack.c.l.b16 %v311
  %v832 = vunpack.c.l.b16 %v312
  %v833 = vunpack.c.l.b16 %v313
  %v834 = vunpack.c.l.b16 %v314
  %v835 = vunpack.c.l.b16 %v315
  %v836 = vunpack.c.l.b16 %v316
  %v837 = vunpack.c.l.b16 %v321
  %v838 = vunpack.c.l.b16 %v322
  %v839 = vunpack.c.l.b16 %v323
  %v840 = vunpack.c.l.b16 %v324
  %v841 = vunpack.c.l.b16 %v325
  %v842 = vunpack.c.l.b16 %v326
  %v843 = vunpack.c.l.b16 %v327
  %v844 = vunpack.c.l.b16 %v328
  %v845 = vunpack.c.l.b16 %v329
  %v846 = vunpack.c.l.b16 %v330
  %v847 = vunpack.c.l.b16 %v331
  %v848 = vunpack.c.l.b16 %v332
  %v849 = vunpack.c.l.b16 %v333
  %v850 = vunpack.c.l.b16 %v334
  %v851 = vunpack.c.l.b16 %v335
  %v852 = vunpack.c.l.b16 %v336
  %v853 = vpack.c.b16 %v598, %v597
  %v854 = vpack.c.b16 %v600, %v599
  %v855 = vpack.c.b16 %v602, %v601
  %v856 = vpack.c.b16 %v604, %v603
  %v857 = vpack.c.b16 %v606, %v605
  %v858 = vpack.c.b16 %v608, %v607
  %v859 = vpack.c.b16 %v610, %v609
  %v860 = vpack.c.b16 %v612, %v611
  %v861 = vpack.c.b16 %v614, %v613
  %v862 = vpack.c.b16 %v616, %v615
  %v863 = vpack.c.b16 %v618, %v617
  %v864 = vpack.c.b16 %v620, %v619
  %v865 = vpack.c.b16 %v622, %v621
  %v866 = vpack.c.b16 %v624, %v623
  %v867 = vpack.c.b16 %v626, %v625
  %v868 = vpack.c.b16 %v628, %v627
  %v869 = vpack.c.b16 %v630, %v629
  %v870 = vpack.c.b16 %v632, %v631
  %v871 = vpack.c.b16 %v634, %v633
  %v872 = vpack.c.b16 %v636, %v635
  %v873 = vpack.c.b16 %v638, %v637
  %v874 = vpack.c.b16 %v640, %v639
  %v875 = vpack.c.b16 %v642, %v641
  %v876 = vpack.c.b16 %v644, %v643
  %v877 = vpack.c.b16 %v646, %v645
  %v878 = vpack.c.b16 %v648, %v647
  %v879 = vpack.c.b16 %v650, %v649
  %v880 = vpack.c.b16 %v652, %v651
  %v881 = vpack.c.b16 %v654, %v653
  %v882 = vpack.c.b16 %v656, %v655
  %v883 = vpack.c.b16 %v658, %v657
  %v884 = vpack.c.b16 %v660, %v659
  %v885 = vpack.c.b16 %v662, %v661
  %v886 = vpack.c.b16 %v664, %v663
  %v887 = vpack.c.b16 %v666, %v665
  %v888 = vpack.c.b16 %v668, %v667
  %v889 = vpack.c.b16 %v670, %v669
  %v890 = vpack.c.b16 %v672, %v671
  %v891 = vpack.c.b16 %v674, %v673
  %v892 = vpack.c.b16 %v676, %v675
  %v893 = vpack.c.b16 %v678, %v677
  %v894 = vpack.c.b16 %v680, %v679
  %v895 = vpack.c.b16 %v682, %v681
  %v896 = vpack.c.b16 %v684, %v683
  %v897 = vpack.c.b16 %v686, %v685
  %v898 = vpack.c.b16 %v688, %v687
  %v899 = vpack.c.b16 %v690, %v689
  %v900 = vpack.c.b16 %v692, %v691
  %v901 = vpack.c.b16 %v694, %v693
  %v902 = vpack.c.b16 %v696, %v695
  %v903 = vpack.c.b16 %v698, %v697
  %v904 = vpack.c.b16 %v700, %v699
  %v905 = vpack.c.b16 %v702, %v701
  %v906 = vpack.c.b16 %v704, %v703
  %v907 = vpack.c.b16 %v706, %v705
  %v908 = vpack.c.b16 %v708, %v707
  %v909 = vpack.c.b16 %v710, %v709
  %v910 = vpack.c.b16 %v712, %v711
  %v911 = vpack.c.b16 %v714, %v713
  %v912 = vpack.c.b16 %v716, %v715
  %v913 = vpack.c.b16 %v718, %v717
  %v914 = vpack.c.b16 %v720, %v719
  %v915 = vpack.c.b16 %v722, %v721
  %v916 = vpack.c.b16 %v724, %v723
  %v917 = vpack.c.b16 %v726, %v725
  %v918 = vpack.c.b16 %v728, %v727
  %v919 = vpack.c.b16 %v730, %v729
  %v920 = vpack.c.b16 %v732, %v731
  %v921 = vpack.c.b16 %v734, %v733
  %v922 = vpack.c.b16 %v736, %v735
  %v923 = vpack.c.b16 %v738, %v737
  %v924 = vpack.c.b16 %v740, %v739
  %v925 = vpack.c.b16 %v742, %v741
  %v926 = vpack.c.b16 %v744, %v743
  %v927 = vpack.c.b16 %v746, %v745
  %v928 = vpack.c.b16 %v748, %v747
  %v929 = vpack.c.b16 %v750, %v749
  %v930 = vpack.c.b16 %v752, %v751
  %v931 = vpack.c.b16 %v754, %v753
  %v932 = vpack.c.b16 %v756, %v755
  %v933 = vpack.c.b16 %v758, %v757
  %v934 = vpack.c.b16 %v760, %v759
  %v935 = vpack.c.b16 %v762, %v761
  %v936 = vpack.c.b16 %v764, %v763
  %v937 = vpack.c.b16 %v766, %v765
  %v938 = vpack.c.b16 %v768, %v767
  %v939 = vpack.c.b16 %v770, %v769
  %v940 = vpack.c.b16 %v772, %v771
  %v941 = vpack.c.b16 %v774, %v773
  %v942 = vpack.c.b16 %v776, %v775
  %v943 = vpack.c.b16 %v778, %v777
  %v944 = vpack.c.b16 %v780, %v779
  %v945 = vpack.c.b16 %v782, %v781
  %v946 = vpack.c.b16 %v784, %v783
  %v947 = vpack.c.b16 %v786, %v785
  %v948 = vpack.c.b16 %v788, %v787
  %v949 = vpack.c.b16 %v790, %v789
  %v950 = vpack.c.b16 %v792, %v791
  %v951 = vpack.c.b16 %v794, %v793
  %v952 = vpack.c.b16 %v796, %v795
  %v953 = vpack.c.b16 %v798, %v797
  %v954 = vpack.c.b16 %v800, %v799
  %v955 = vpack.c.b16 %v802, %v801
  %v956 = vpack.c.b16 %v804, %v803
  %v957 = vpack.c.b16 %v806, %v805
  %v958 = vpack.c.b16 %v808, %v807
  %v959 = vpack.c.b16 %v810, %v809
  %v960 = vpack.c.b16 %v812, %v811
  %v961 = vpack.c.b16 %v814, %v813
  %v962 = vpack.c.b16 %v816, %v815
  %v963 = vpack.c.b16 %v818, %v817
  %v964 = vpack.c.b16 %v820, %v819
  %v965 = vpack.c.b16 %v822, %v821
  %v966 = vpack.c.b16 %v824, %v823
  %v967 = vpack.c.b16 %v826, %v825
  %v968 = vpack.c.b16 %v828, %v827
  %v969 = vpack.c.b16 %v830, %v829
  %v970 = vpack.c.b16 %v832, %v831
  %v971 = vpack.c.b16 %v834, %v833
  %v972 = vpack.c.b16 %v836, %v835
  %v973 = vpack.c.b16 %v838, %v837
  %v974 = vpack.c.b16 %v840, %v839
  %v975 = vpack.c.b16 %v842, %v841
  %v976 = vpack.c.b16 %v844, %v843
  %v977 = vpack.c.b16 %v846, %v845
  %v978 = vpack.c.b16 %v848, %v847
  %v979 = vpack.c.b16 %v850, %v849
  %v980 = vpack.c.b16 %v852, %v851
  %v982 = vshrl.u32 %v853, 16
  %v984 = vshll.u32 %v853, 16
  %v986 = vrot.slane %v984, 1
  %v987 = vor.u32 %v982, %v986
  %v989 = vshrl.u32 %v854, 16
  %v991 = vshll.u32 %v854, 16
  %v993 = vrot.slane %v991, 1
  %v994 = vor.u32 %v989, %v993
  %v996 = vshrl.u32 %v855, 16
  %v998 = vshll.u32 %v855, 16
  %v1000 = vrot.slane %v998, 1
  %v1001 = vor.u32 %v996, %v1000
  %v1003 = vshrl.u32 %v856, 16
  %v1005 = vshll.u32 %v856, 16
  %v1007 = vrot.slane %v1005, 1
  %v1008 = vor.u32 %v1003, %v1007
  %v1010 = vshrl.u32 %v857, 16
  %v1012 = vshll.u32 %v857, 16
  %v1014 = vrot.slane %v1012, 1
  %v1015 = vor.u32 %v1010, %v1014
  %v1017 = vshrl.u32 %v858, 16
  %v1019 = vshll.u32 %v858, 16
  %v1021 = vrot.slane %v1019, 1
  %v1022 = vor.u32 %v1017, %v1021
  %v1024 = vshrl.u32 %v859, 16
  %v1026 = vshll.u32 %v859, 16
  %v1028 = vrot.slane %v1026, 1
  %v1029 = vor.u32 %v1024, %v1028
  %v1031 = vshrl.u32 %v860, 16
  %v1033 = vshll.u32 %v860, 16
  %v1035 = vrot.slane %v1033, 1
  %v1036 = vor.u32 %v1031, %v1035
  %v1038 = vshrl.u32 %v861, 16
  %v1040 = vshll.u32 %v861, 16
  %v1042 = vrot.slane %v1040, 1
  %v1043 = vor.u32 %v1038, %v1042
  %v1045 = vshrl.u32 %v862, 16
  %v1047 = vshll.u32 %v862, 16
  %v1049 = vrot.slane %v1047, 1
  %v1050 = vor.u32 %v1045, %v1049
  %v1052 = vshrl.u32 %v863, 16
  %v1054 = vshll.u32 %v863, 16
  %v1056 = vrot.slane %v1054, 1
  %v1057 = vor.u32 %v1052, %v1056
  %v1059 = vshrl.u32 %v864, 16
  %v1061 = vshll.u32 %v864, 16
  %v1063 = vrot.slane %v1061, 1
  %v1064 = vor.u32 %v1059, %v1063
  %v1066 = vshrl.u32 %v865, 16
  %v1068 = vshll.u32 %v865, 16
  %v1070 = vrot.slane %v1068, 1
  %v1071 = vor.u32 %v1066, %v1070
  %v1073 = vshrl.u32 %v866, 16
  %v1075 = vshll.u32 %v866, 16
  %v1077 = vrot.slane %v1075, 1
  %v1078 = vor.u32 %v1073, %v1077
  %v1080 = vshrl.u32 %v867, 16
  %v1082 = vshll.u32 %v867, 16
  %v1084 = vrot.slane %v1082, 1
  %v1085 = vor.u32 %v1080, %v1084
  %v1087 = vshrl.u32 %v868, 16
  %v1089 = vshll.u32 %v868, 16
  %v1091 = vrot.slane %v1089, 1
  %v1092 = vor.u32 %v1087, %v1091
  %v1094 = vshrl.u32 %v869, 16
  %v1096 = vshll.u32 %v869, 16
  %v1098 = vrot.slane %v1096, 1
  %v1099 = vor.u32 %v1094, %v1098
  %v1101 = vshrl.u32 %v870, 16
  %v1103 = vshll.u32 %v870, 16
  %v1105 = vrot.slane %v1103, 1
  %v1106 = vor.u32 %v1101, %v1105
  %v1108 = vshrl.u32 %v871, 16
  %v1110 = vshll.u32 %v871, 16
  %v1112 = vrot.slane %v1110, 1
  %v1113 = vor.u32 %v1108, %v1112
  %v1115 = vshrl.u32 %v872, 16
  %v1117 = vshll.u32 %v872, 16
  %v1119 = vrot.slane %v1117, 1
  %v1120 = vor.u32 %v1115, %v1119
  %v1122 = vshrl.u32 %v873, 16
  %v1124 = vshll.u32 %v873, 16
  %v1126 = vrot.slane %v1124, 1
  %v1127 = vor.u32 %v1122, %v1126
  %v1129 = vshrl.u32 %v874, 16
  %v1131 = vshll.u32 %v874, 16
  %v1133 = vrot.slane %v1131, 1
  %v1134 = vor.u32 %v1129, %v1133
  %v1136 = vshrl.u32 %v875, 16
  %v1138 = vshll.u32 %v875, 16
  %v1140 = vrot.slane %v1138, 1
  %v1141 = vor.u32 %v1136, %v1140
  %v1143 = vshrl.u32 %v876, 16
  %v1145 = vshll.u32 %v876, 16
  %v1147 = vrot.slane %v1145, 1
  %v1148 = vor.u32 %v1143, %v1147
  %v1150 = vshrl.u32 %v877, 16
  %v1152 = vshll.u32 %v877, 16
  %v1154 = vrot.slane %v1152, 1
  %v1155 = vor.u32 %v1150, %v1154
  %v1157 = vshrl.u32 %v878, 16
  %v1159 = vshll.u32 %v878, 16
  %v1161 = vrot.slane %v1159, 1
  %v1162 = vor.u32 %v1157, %v1161
  %v1164 = vshrl.u32 %v879, 16
  %v1166 = vshll.u32 %v879, 16
  %v1168 = vrot.slane %v1166, 1
  %v1169 = vor.u32 %v1164, %v1168
  %v1171 = vshrl.u32 %v880, 16
  %v1173 = vshll.u32 %v880, 16
  %v1175 = vrot.slane %v1173, 1
  %v1176 = vor.u32 %v1171, %v1175
  %v1178 = vshrl.u32 %v881, 16
  %v1180 = vshll.u32 %v881, 16
  %v1182 = vrot.slane %v1180, 1
  %v1183 = vor.u32 %v1178, %v1182
  %v1185 = vshrl.u32 %v882, 16
  %v1187 = vshll.u32 %v882, 16
  %v1189 = vrot.slane %v1187, 1
  %v1190 = vor.u32 %v1185, %v1189
  %v1192 = vshrl.u32 %v883, 16
  %v1194 = vshll.u32 %v883, 16
  %v1196 = vrot.slane %v1194, 1
  %v1197 = vor.u32 %v1192, %v1196
  %v1199 = vshrl.u32 %v884, 16
  %v1201 = vshll.u32 %v884, 16
  %v1203 = vrot.slane %v1201, 1
  %v1204 = vor.u32 %v1199, %v1203
  %v1206 = vshrl.u32 %v885, 16
  %v1208 = vshll.u32 %v885, 16
  %v1210 = vrot.slane %v1208, 1
  %v1211 = vor.u32 %v1206, %v1210
  %v1213 = vshrl.u32 %v886, 16
  %v1215 = vshll.u32 %v886, 16
  %v1217 = vrot.slane %v1215, 1
  %v1218 = vor.u32 %v1213, %v1217
  %v1220 = vshrl.u32 %v887, 16
  %v1222 = vshll.u32 %v887, 16
  %v1224 = vrot.slane %v1222, 1
  %v1225 = vor.u32 %v1220, %v1224
  %v1227 = vshrl.u32 %v888, 16
  %v1229 = vshll.u32 %v888, 16
  %v1231 = vrot.slane %v1229, 1
  %v1232 = vor.u32 %v1227, %v1231
  %v1234 = vshrl.u32 %v889, 16
  %v1236 = vshll.u32 %v889, 16
  %v1238 = vrot.slane %v1236, 1
  %v1239 = vor.u32 %v1234, %v1238
  %v1241 = vshrl.u32 %v890, 16
  %v1243 = vshll.u32 %v890, 16
  %v1245 = vrot.slane %v1243, 1
  %v1246 = vor.u32 %v1241, %v1245
  %v1248 = vshrl.u32 %v891, 16
  %v1250 = vshll.u32 %v891, 16
  %v1252 = vrot.slane %v1250, 1
  %v1253 = vor.u32 %v1248, %v1252
  %v1255 = vshrl.u32 %v892, 16
  %v1257 = vshll.u32 %v892, 16
  %v1259 = vrot.slane %v1257, 1
  %v1260 = vor.u32 %v1255, %v1259
  %v1262 = vshrl.u32 %v893, 16
  %v1264 = vshll.u32 %v893, 16
  %v1266 = vrot.slane %v1264, 1
  %v1267 = vor.u32 %v1262, %v1266
  %v1269 = vshrl.u32 %v894, 16
  %v1271 = vshll.u32 %v894, 16
  %v1273 = vrot.slane %v1271, 1
  %v1274 = vor.u32 %v1269, %v1273
  %v1276 = vshrl.u32 %v895, 16
  %v1278 = vshll.u32 %v895, 16
  %v1280 = vrot.slane %v1278, 1
  %v1281 = vor.u32 %v1276, %v1280
  %v1283 = vshrl.u32 %v896, 16
  %v1285 = vshll.u32 %v896, 16
  %v1287 = vrot.slane %v1285, 1
  %v1288 = vor.u32 %v1283, %v1287
  %v1290 = vshrl.u32 %v897, 16
  %v1292 = vshll.u32 %v897, 16
  %v1294 = vrot.slane %v1292, 1
  %v1295 = vor.u32 %v1290, %v1294
  %v1297 = vshrl.u32 %v898, 16
  %v1299 = vshll.u32 %v898, 16
  %v1301 = vrot.slane %v1299, 1
  %v1302 = vor.u32 %v1297, %v1301
  %v1304 = vshrl.u32 %v899, 16
  %v1306 = vshll.u32 %v899, 16
  %v1308 = vrot.slane %v1306, 1
  %v1309 = vor.u32 %v1304, %v1308
  %v1311 = vshrl.u32 %v900, 16
  %v1313 = vshll.u32 %v900, 16
  %v1315 = vrot.slane %v1313, 1
  %v1316 = vor.u32 %v1311, %v1315
  %v1318 = vshrl.u32 %v901, 16
  %v1320 = vshll.u32 %v901, 16
  %v1322 = vrot.slane %v1320, 1
  %v1323 = vor.u32 %v1318, %v1322
  %v1325 = vshrl.u32 %v902, 16
  %v1327 = vshll.u32 %v902, 16
  %v1329 = vrot.slane %v1327, 1
  %v1330 = vor.u32 %v1325, %v1329
  %v1332 = vshrl.u32 %v903, 16
  %v1334 = vshll.u32 %v903, 16
  %v1336 = vrot.slane %v1334, 1
  %v1337 = vor.u32 %v1332, %v1336
  %v1339 = vshrl.u32 %v904, 16
  %v1341 = vshll.u32 %v904, 16
  %v1343 = vrot.slane %v1341, 1
  %v1344 = vor.u32 %v1339, %v1343
  %v1346 = vshrl.u32 %v905, 16
  %v1348 = vshll.u32 %v905, 16
  %v1350 = vrot.slane %v1348, 1
  %v1351 = vor.u32 %v1346, %v1350
  %v1353 = vshrl.u32 %v906, 16
  %v1355 = vshll.u32 %v906, 16
  %v1357 = vrot.slane %v1355, 1
  %v1358 = vor.u32 %v1353, %v1357
  %v1360 = vshrl.u32 %v907, 16
  %v1362 = vshll.u32 %v907, 16
  %v1364 = vrot.slane %v1362, 1
  %v1365 = vor.u32 %v1360, %v1364
  %v1367 = vshrl.u32 %v908, 16
  %v1369 = vshll.u32 %v908, 16
  %v1371 = vrot.slane %v1369, 1
  %v1372 = vor.u32 %v1367, %v1371
  %v1374 = vshrl.u32 %v909, 16
  %v1376 = vshll.u32 %v909, 16
  %v1378 = vrot.slane %v1376, 1
  %v1379 = vor.u32 %v1374, %v1378
  %v1381 = vshrl.u32 %v910, 16
  %v1383 = vshll.u32 %v910, 16
  %v1385 = vrot.slane %v1383, 1
  %v1386 = vor.u32 %v1381, %v1385
  %v1388 = vshrl.u32 %v911, 16
  %v1390 = vshll.u32 %v911, 16
  %v1392 = vrot.slane %v1390, 1
  %v1393 = vor.u32 %v1388, %v1392
  %v1395 = vshrl.u32 %v912, 16
  %v1397 = vshll.u32 %v912, 16
  %v1399 = vrot.slane %v1397, 1
  %v1400 = vor.u32 %v1395, %v1399
  %v1402 = vshrl.u32 %v913, 16
  %v1404 = vshll.u32 %v913, 16
  %v1406 = vrot.slane %v1404, 1
  %v1407 = vor.u32 %v1402, %v1406
  %v1409 = vshrl.u32 %v914, 16
  %v1411 = vshll.u32 %v914, 16
  %v1413 = vrot.slane %v1411, 1
  %v1414 = vor.u32 %v1409, %v1413
  %v1416 = vshrl.u32 %v915, 16
  %v1418 = vshll.u32 %v915, 16
  %v1420 = vrot.slane %v1418, 1
  %v1421 = vor.u32 %v1416, %v1420
  %v1423 = vshrl.u32 %v916, 16
  %v1425 = vshll.u32 %v916, 16
  %v1427 = vrot.slane %v1425, 1
  %v1428 = vor.u32 %v1423, %v1427
  %v1430 = vshrl.u32 %v917, 16
  %v1432 = vshll.u32 %v917, 16
  %v1434 = vrot.slane %v1432, 1
  %v1435 = vor.u32 %v1430, %v1434
  %v1437 = vshrl.u32 %v918, 16
  %v1439 = vshll.u32 %v918, 16
  %v1441 = vrot.slane %v1439, 1
  %v1442 = vor.u32 %v1437, %v1441
  %v1444 = vshrl.u32 %v919, 16
  %v1446 = vshll.u32 %v919, 16
  %v1448 = vrot.slane %v1446, 1
  %v1449 = vor.u32 %v1444, %v1448
  %v1451 = vshrl.u32 %v920, 16
  %v1453 = vshll.u32 %v920, 16
  %v1455 = vrot.slane %v1453, 1
  %v1456 = vor.u32 %v1451, %v1455
  %v1458 = vshrl.u32 %v921, 16
  %v1460 = vshll.u32 %v921, 16
  %v1462 = vrot.slane %v1460, 1
  %v1463 = vor.u32 %v1458, %v1462
  %v1465 = vshrl.u32 %v922, 16
  %v1467 = vshll.u32 %v922, 16
  %v1469 = vrot.slane %v1467, 1
  %v1470 = vor.u32 %v1465, %v1469
  %v1472 = vshrl.u32 %v923, 16
  %v1474 = vshll.u32 %v923, 16
  %v1476 = vrot.slane %v1474, 1
  %v1477 = vor.u32 %v1472, %v1476
  %v1479 = vshrl.u32 %v924, 16
  %v1481 = vshll.u32 %v924, 16
  %v1483 = vrot.slane %v1481, 1
  %v1484 = vor.u32 %v1479, %v1483
  %v1486 = vshrl.u32 %v925, 16
  %v1488 = vshll.u32 %v925, 16
  %v1490 = vrot.slane %v1488, 1
  %v1491 = vor.u32 %v1486, %v1490
  %v1493 = vshrl.u32 %v926, 16
  %v1495 = vshll.u32 %v926, 16
  %v1497 = vrot.slane %v1495, 1
  %v1498 = vor.u32 %v1493, %v1497
  %v1500 = vshrl.u32 %v927, 16
  %v1502 = vshll.u32 %v927, 16
  %v1504 = vrot.slane %v1502, 1
  %v1505 = vor.u32 %v1500, %v1504
  %v1507 = vshrl.u32 %v928, 16
  %v1509 = vshll.u32 %v928, 16
  %v1511 = vrot.slane %v1509, 1
  %v1512 = vor.u32 %v1507, %v1511
  %v1514 = vshrl.u32 %v929, 16
  %v1516 = vshll.u32 %v929, 16
  %v1518 = vrot.slane %v1516, 1
  %v1519 = vor.u32 %v1514, %v1518
  %v1521 = vshrl.u32 %v930, 16
  %v1523 = vshll.u32 %v930, 16
  %v1525 = vrot.slane %v1523, 1
  %v1526 = vor.u32 %v1521, %v1525
  %v1528 = vshrl.u32 %v931, 16
  %v1530 = vshll.u32 %v931, 16
  %v1532 = vrot.slane %v1530, 1
  %v1533 = vor.u32 %v1528, %v1532
  %v1535 = vshrl.u32 %v932, 16
  %v1537 = vshll.u32 %v932, 16
  %v1539 = vrot.slane %v1537, 1
  %v1540 = vor.u32 %v1535, %v1539
  %v1542 = vshrl.u32 %v933, 16
  %v1544 = vshll.u32 %v933, 16
  %v1546 = vrot.slane %v1544, 1
  %v1547 = vor.u32 %v1542, %v1546
  %v1549 = vshrl.u32 %v934, 16
  %v1551 = vshll.u32 %v934, 16
  %v1553 = vrot.slane %v1551, 1
  %v1554 = vor.u32 %v1549, %v1553
  %v1556 = vshrl.u32 %v935, 16
  %v1558 = vshll.u32 %v935, 16
  %v1560 = vrot.slane %v1558, 1
  %v1561 = vor.u32 %v1556, %v1560
  %v1563 = vshrl.u32 %v936, 16
  %v1565 = vshll.u32 %v936, 16
  %v1567 = vrot.slane %v1565, 1
  %v1568 = vor.u32 %v1563, %v1567
  %v1570 = vshrl.u32 %v937, 16
  %v1572 = vshll.u32 %v937, 16
  %v1574 = vrot.slane %v1572, 1
  %v1575 = vor.u32 %v1570, %v1574
  %v1577 = vshrl.u32 %v938, 16
  %v1579 = vshll.u32 %v938, 16
  %v1581 = vrot.slane %v1579, 1
  %v1582 = vor.u32 %v1577, %v1581
  %v1584 = vshrl.u32 %v939, 16
  %v1586 = vshll.u32 %v939, 16
  %v1588 = vrot.slane %v1586, 1
  %v1589 = vor.u32 %v1584, %v1588
  %v1591 = vshrl.u32 %v940, 16
  %v1593 = vshll.u32 %v940, 16
  %v1595 = vrot.slane %v1593, 1
  %v1596 = vor.u32 %v1591, %v1595
  %v1598 = vshrl.u32 %v941, 16
  %v1600 = vshll.u32 %v941, 16
  %v1602 = vrot.slane %v1600, 1
  %v1603 = vor.u32 %v1598, %v1602
  %v1605 = vshrl.u32 %v942, 16
  %v1607 = vshll.u32 %v942, 16
  %v1609 = vrot.slane %v1607, 1
  %v1610 = vor.u32 %v1605, %v1609
  %v1612 = vshrl.u32 %v943, 16
  %v1614 = vshll.u32 %v943, 16
  %v1616 = vrot.slane %v1614, 1
  %v1617 = vor.u32 %v1612, %v1616
  %v1619 = vshrl.u32 %v944, 16
  %v1621 = vshll.u32 %v944, 16
  %v1623 = vrot.slane %v1621, 1
  %v1624 = vor.u32 %v1619, %v1623
  %v1626 = vshrl.u32 %v945, 16
  %v1628 = vshll.u32 %v945, 16
  %v1630 = vrot.slane %v1628, 1
  %v1631 = vor.u32 %v1626, %v1630
  %v1633 = vshrl.u32 %v946, 16
  %v1635 = vshll.u32 %v946, 16
  %v1637 = vrot.slane %v1635, 1
  %v1638 = vor.u32 %v1633, %v1637
  %v1640 = vshrl.u32 %v947, 16
  %v1642 = vshll.u32 %v947, 16
  %v1644 = vrot.slane %v1642, 1
  %v1645 = vor.u32 %v1640, %v1644
  %v1647 = vshrl.u32 %v948, 16
  %v1649 = vshll.u32 %v948, 16
  %v1651 = vrot.slane %v1649, 1
  %v1652 = vor.u32 %v1647, %v1651
  %v1654 = vshrl.u32 %v949, 16
  %v1656 = vshll.u32 %v949, 16
  %v1658 = vrot.slane %v1656, 1
  %v1659 = vor.u32 %v1654, %v1658
  %v1661 = vshrl.u32 %v950, 16
  %v1663 = vshll.u32 %v950, 16
  %v1665 = vrot.slane %v1663, 1
  %v1666 = vor.u32 %v1661, %v1665
  %v1668 = vshrl.u32 %v951, 16
  %v1670 = vshll.u32 %v951, 16
  %v1672 = vrot.slane %v1670, 1
  %v1673 = vor.u32 %v1668, %v1672
  %v1675 = vshrl.u32 %v952, 16
  %v1677 = vshll.u32 %v952, 16
  %v1679 = vrot.slane %v1677, 1
  %v1680 = vor.u32 %v1675, %v1679
  %v1682 = vshrl.u32 %v953, 16
  %v1684 = vshll.u32 %v953, 16
  %v1686 = vrot.slane %v1684, 1
  %v1687 = vor.u32 %v1682, %v1686
  %v1689 = vshrl.u32 %v954, 16
  %v1691 = vshll.u32 %v954, 16
  %v1693 = vrot.slane %v1691, 1
  %v1694 = vor.u32 %v1689, %v1693
  %v1696 = vshrl.u32 %v955, 16
  %v1698 = vshll.u32 %v955, 16
  %v1700 = vrot.slane %v1698, 1
  %v1701 = vor.u32 %v1696, %v1700
  %v1703 = vshrl.u32 %v956, 16
  %v1705 = vshll.u32 %v956, 16
  %v1707 = vrot.slane %v1705, 1
  %v1708 = vor.u32 %v1703, %v1707
  %v1710 = vshrl.u32 %v957, 16
  %v1712 = vshll.u32 %v957, 16
  %v1714 = vrot.slane %v1712, 1
  %v1715 = vor.u32 %v1710, %v1714
  %v1717 = vshrl.u32 %v958, 16
  %v1719 = vshll.u32 %v958, 16
  %v1721 = vrot.slane %v1719, 1
  %v1722 = vor.u32 %v1717, %v1721
  %v1724 = vshrl.u32 %v959, 16
  %v1726 = vshll.u32 %v959, 16
  %v1728 = vrot.slane %v1726, 1
  %v1729 = vor.u32 %v1724, %v1728
  %v1731 = vshrl.u32 %v960, 16
  %v1733 = vshll.u32 %v960, 16
  %v1735 = vrot.slane %v1733, 1
  %v1736 = vor.u32 %v1731, %v1735
  %v1738 = vshrl.u32 %v961, 16
  %v1740 = vshll.u32 %v961, 16
  %v1742 = vrot.slane %v1740, 1
  %v1743 = vor.u32 %v1738, %v1742
  %v1745 = vshrl.u32 %v962, 16
  %v1747 = vshll.u32 %v962, 16
  %v1749 = vrot.slane %v1747, 1
  %v1750 = vor.u32 %v1745, %v1749
  %v1752 = vshrl.u32 %v963, 16
  %v1754 = vshll.u32 %v963, 16
  %v1756 = vrot.slane %v1754, 1
  %v1757 = vor.u32 %v1752, %v1756
  %v1759 = vshrl.u32 %v964, 16
  %v1761 = vshll.u32 %v964, 16
  %v1763 = vrot.slane %v1761, 1
  %v1764 = vor.u32 %v1759, %v1763
  %v1766 = vshrl.u32 %v965, 16
  %v1768 = vshll.u32 %v965, 16
  %v1770 = vrot.slane %v1768, 1
  %v1771 = vor.u32 %v1766, %v1770
  %v1773 = vshrl.u32 %v966, 16
  %v1775 = vshll.u32 %v966, 16
  %v1777 = vrot.slane %v1775, 1
  %v1778 = vor.u32 %v1773, %v1777
  %v1780 = vshrl.u32 %v967, 16
  %v1782 = vshll.u32 %v967, 16
  %v1784 = vrot.slane %v1782, 1
  %v1785 = vor.u32 %v1780, %v1784
  %v1787 = vshrl.u32 %v968, 16
  %v1789 = vshll.u32 %v968, 16
  %v1791 = vrot.slane %v1789, 1
  %v1792 = vor.u32 %v1787, %v1791
  %v1794 = vshrl.u32 %v969, 16
  %v1796 = vshll.u32 %v969, 16
  %v1798 = vrot.slane %v1796, 1
  %v1799 = vor.u32 %v1794, %v1798
  %v1801 = vshrl.u32 %v970, 16
  %v1803 = vshll.u32 %v970, 16
  %v1805 = vrot.slane %v1803, 1
  %v1806 = vor.u32 %v1801, %v1805
  %v1808 = vshrl.u32 %v971, 16
  %v1810 = vshll.u32 %v971, 16
  %v1812 = vrot.slane %v1810, 1
  %v1813 = vor.u32 %v1808, %v1812
  %v1815 = vshrl.u32 %v972, 16
  %v1817 = vshll.u32 %v972, 16
  %v1819 = vrot.slane %v1817, 1
  %v1820 = vor.u32 %v1815, %v1819
  %v1822 = vshrl.u32 %v973, 16
  %v1824 = vshll.u32 %v973, 16
  %v1826 = vrot.slane %v1824, 1
  %v1827 = vor.u32 %v1822, %v1826
  %v1829 = vshrl.u32 %v974, 16
  %v1831 = vshll.u32 %v974, 16
  %v1833 = vrot.slane %v1831, 1
  %v1834 = vor.u32 %v1829, %v1833
  %v1836 = vshrl.u32 %v975, 16
  %v1838 = vshll.u32 %v975, 16
  %v1840 = vrot.slane %v1838, 1
  %v1841 = vor.u32 %v1836, %v1840
  %v1843 = vshrl.u32 %v976, 16
  %v1845 = vshll.u32 %v976, 16
  %v1847 = vrot.slane %v1845, 1
  %v1848 = vor.u32 %v1843, %v1847
  %v1850 = vshrl.u32 %v977, 16
  %v1852 = vshll.u32 %v977, 16
  %v1854 = vrot.slane %v1852, 1
  %v1855 = vor.u32 %v1850, %v1854
  %v1857 = vshrl.u32 %v978, 16
  %v1859 = vshll.u32 %v978, 16
  %v1861 = vrot.slane %v1859, 1
  %v1862 = vor.u32 %v1857, %v1861
  %v1864 = vshrl.u32 %v979, 16
  %v1866 = vshll.u32 %v979, 16
  %v1868 = vrot.slane %v1866, 1
  %v1869 = vor.u32 %v1864, %v1868
  %v1871 = vshrl.u32 %v980, 16
  %v1873 = vshll.u32 %v980, 16
  %v1875 = vrot.slane %v1873, 1
  %v1876 = vor.u32 %v1871, %v1875
  %v1877 = vrot.slane %v853, 1
  %v1878 = vrot.slane %v854, 1
  %v1879 = vrot.slane %v855, 1
  %v1880 = vrot.slane %v856, 1
  %v1881 = vrot.slane %v857, 1
  %v1882 = vrot.slane %v858, 1
  %v1883 = vrot.slane %v859, 1
  %v1884 = vrot.slane %v860, 1
  %v1885 = vrot.slane %v861, 1
  %v1886 = vrot.slane %v862, 1
  %v1887 = vrot.slane %v863, 1
  %v1888 = vrot.slane %v864, 1
  %v1889 = vrot.slane %v865, 1
  %v1890 = vrot.slane %v866, 1
  %v1891 = vrot.slane %v867, 1
  %v1892 = vrot.slane %v868, 1
  %v1893 = vrot.slane %v869, 1
  %v1894 = vrot.slane %v870, 1
  %v1895 = vrot.slane %v871, 1
  %v1896 = vrot.slane %v872, 1
  %v1897 = vrot.slane %v873, 1
  %v1898 = vrot.slane %v874, 1
  %v1899 = vrot.slane %v875, 1
  %v1900 = vrot.slane %v876, 1
  %v1901 = vrot.slane %v877, 1
  %v1902 = vrot.slane %v878, 1
  %v1903 = vrot.slane %v879, 1
  %v1904 = vrot.slane %v880, 1
  %v1905 = vrot.slane %v881, 1
  %v1906 = vrot.slane %v882, 1
  %v1907 = vrot.slane %v883, 1
  %v1908 = vrot.slane %v884, 1
  %v1909 = vrot.slane %v885, 1
  %v1910 = vrot.slane %v886, 1
  %v1911 = vrot.slane %v887, 1
  %v1912 = vrot.slane %v888, 1
  %v1913 = vrot.slane %v889, 1
  %v1914 = vrot.slane %v890, 1
  %v1915 = vrot.slane %v891, 1
  %v1916 = vrot.slane %v892, 1
  %v1917 = vrot.slane %v893, 1
  %v1918 = vrot.slane %v894, 1
  %v1919 = vrot.slane %v895, 1
  %v1920 = vrot.slane %v896, 1
  %v1921 = vrot.slane %v897, 1
  %v1922 = vrot.slane %v898, 1
  %v1923 = vrot.slane %v899, 1
  %v1924 = vrot.slane %v900, 1
  %v1925 = vrot.slane %v901, 1
  %v1926 = vrot.slane %v902, 1
  %v1927 = vrot.slane %v903, 1
  %v1928 = vrot.slane %v904, 1
  %v1929 = vrot.slane %v905, 1
  %v1930 = vrot.slane %v906, 1
  %v1931 = vrot.slane %v907, 1
  %v1932 = vrot.slane %v908, 1
  %v1933 = vrot.slane %v909, 1
  %v1934 = vrot.slane %v910, 1
  %v1935 = vrot.slane %v911, 1
  %v1936 = vrot.slane %v912, 1
  %v1937 = vrot.slane %v913, 1
  %v1938 = vrot.slane %v914, 1
  %v1939 = vrot.slane %v915, 1
  %v1940 = vrot.slane %v916, 1
  %v1941 = vrot.slane %v917, 1
  %v1942 = vrot.slane %v918, 1
  %v1943 = vrot.slane %v919, 1
  %v1944 = vrot.slane %v920, 1
  %v1945 = vrot.slane %v921, 1
  %v1946 = vrot.slane %v922, 1
  %v1947 = vrot.slane %v923, 1
  %v1948 = vrot.slane %v924, 1
  %v1949 = vrot.slane %v925, 1
  %v1950 = vrot.slane %v926, 1
  %v1951 = vrot.slane %v927, 1
  %v1952 = vrot.slane %v928, 1
  %v1953 = vrot.slane %v929, 1
  %v1954 = vrot.slane %v930, 1
  %v1955 = vrot.slane %v931, 1
  %v1956 = vrot.slane %v932, 1
  %v1957 = vrot.slane %v933, 1
  %v1958 = vrot.slane %v934, 1
  %v1959 = vrot.slane %v935, 1
  %v1960 = vrot.slane %v936, 1
  %v1961 = vrot.slane %v937, 1
  %v1962 = vrot.slane %v938, 1
  %v1963 = vrot.slane %v939, 1
  %v1964 = vrot.slane %v940, 1
  %v1965 = vrot.slane %v941, 1
  %v1966 = vrot.slane %v942, 1
  %v1967 = vrot.slane %v943, 1
  %v1968 = vrot.slane %v944, 1
  %v1969 = vrot.slane %v945, 1
  %v1970 = vrot.slane %v946, 1
  %v1971 = vrot.slane %v947, 1
  %v1972 = vrot.slane %v948, 1
  %v1973 = vrot.slane %v949, 1
  %v1974 = vrot.slane %v950, 1
  %v1975 = vrot.slane %v951, 1
  %v1976 = vrot.slane %v952, 1
  %v1977 = vrot.slane %v953, 1
  %v1978 = vrot.slane %v954, 1
  %v1979 = vrot.slane %v955, 1
  %v1980 = vrot.slane %v956, 1
  %v1981 = vrot.slane %v957, 1
  %v1982 = vrot.slane %v958, 1
  %v1983 = vrot.slane %v959, 1
  %v1984 = vrot.slane %v960, 1
  %v1985 = vrot.slane %v961, 1
  %v1986 = vrot.slane %v962, 1
  %v1987 = vrot.slane %v963, 1
  %v1988 = vrot.slane %v964, 1
  %v1989 = vrot.slane %v965, 1
  %v1990 = vrot.slane %v966, 1
  %v1991 = vrot.slane %v967, 1
  %v1992 = vrot.slane %v968, 1
  %v1993 = vrot.slane %v969, 1
  %v1994 = vrot.slane %v970, 1
  %v1995 = vrot.slane %v971, 1
  %v1996 = vrot.slane %v972, 1
  %v1997 = vrot.slane %v973, 1
  %v1998 = vrot.slane %v974, 1
  %v1999 = vrot.slane %v975, 1
  %v2000 = vrot.slane %v976, 1
  %v2001 = vrot.slane %v977, 1
  %v2002 = vrot.slane %v978, 1
  %v2003 = vrot.slane %v979, 1
  %v2004 = vrot.slane %v980, 1
  %v2037 = vunpack.c.l.b16 %v37
  %v2038 = vunpack.c.l.b16 %v38
  %v2039 = vunpack.c.l.b16 %v57
  %v2040 = vunpack.c.l.b16 %v58
  %v2041 = vunpack.c.l.b16 %v77
  %v2042 = vunpack.c.l.b16 %v78
  %v2043 = vunpack.c.l.b16 %v97
  %v2044 = vunpack.c.l.b16 %v98
  %v2045 = vunpack.c.l.b16 %v117
  %v2046 = vunpack.c.l.b16 %v118
  %v2047 = vunpack.c.l.b16 %v137
  %v2048 = vunpack.c.l.b16 %v138
  %v2049 = vunpack.c.l.b16 %v157
  %v2050 = vunpack.c.l.b16 %v158
  %v2051 = vunpack.c.l.b16 %v177
  %v2052 = vunpack.c.l.b16 %v178
  %v2053 = vunpack.c.l.b16 %v197
  %v2054 = vunpack.c.l.b16 %v198
  %v2055 = vunpack.c.l.b16 %v217
  %v2056 = vunpack.c.l.b16 %v218
  %v2057 = vunpack.c.l.b16 %v237
  %v2058 = vunpack.c.l.b16 %v238
  %v2059 = vunpack.c.l.b16 %v257
  %v2060 = vunpack.c.l.b16 %v258
  %v2061 = vunpack.c.l.b16 %v277
  %v2062 = vunpack.c.l.b16 %v278
  %v2063 = vunpack.c.l.b16 %v297
  %v2064 = vunpack.c.l.b16 %v298
  %v2065 = vunpack.c.l.b16 %v317
  %v2066 = vunpack.c.l.b16 %v318
  %v2067 = vunpack.c.l.b16 %v337
  %v2068 = vunpack.c.l.b16 %v338
  %v2069 = vpack.c.b16 %v2038, %v2037
  %v2070 = vpack.c.b16 %v2040, %v2039
  %v2071 = vpack.c.b16 %v2042, %v2041
  %v2072 = vpack.c.b16 %v2044, %v2043
  %v2073 = vpack.c.b16 %v2046, %v2045
  %v2074 = vpack.c.b16 %v2048, %v2047
  %v2075 = vpack.c.b16 %v2050, %v2049
  %v2076 = vpack.c.b16 %v2052, %v2051
  %v2077 = vpack.c.b16 %v2054, %v2053
  %v2078 = vpack.c.b16 %v2056, %v2055
  %v2079 = vpack.c.b16 %v2058, %v2057
  %v2080 = vpack.c.b16 %v2060, %v2059
  %v2081 = vpack.c.b16 %v2062, %v2061
  %v2082 = vpack.c.b16 %v2064, %v2063
  %v2083 = vpack.c.b16 %v2066, %v2065
  %v2084 = vpack.c.b16 %v2068, %v2067
  %v2086 = vshrl.u32 %v2069, 16
  %v2088 = vshll.u32 %v2069, 16
  %v2090 = vrot.slane %v2088, 1
  %v2091 = vor.u32 %v2086, %v2090
  %v2093 = vshrl.u32 %v2070, 16
  %v2095 = vshll.u32 %v2070, 16
  %v2097 = vrot.slane %v2095, 1
  %v2098 = vor.u32 %v2093, %v2097
  %v2100 = vshrl.u32 %v2071, 16
  %v2102 = vshll.u32 %v2071, 16
  %v2104 = vrot.slane %v2102, 1
  %v2105 = vor.u32 %v2100, %v2104
  %v2107 = vshrl.u32 %v2072, 16
  %v2109 = vshll.u32 %v2072, 16
  %v2111 = vrot.slane %v2109, 1
  %v2112 = vor.u32 %v2107, %v2111
  %v2114 = vshrl.u32 %v2073, 16
  %v2116 = vshll.u32 %v2073, 16
  %v2118 = vrot.slane %v2116, 1
  %v2119 = vor.u32 %v2114, %v2118
  %v2121 = vshrl.u32 %v2074, 16
  %v2123 = vshll.u32 %v2074, 16
  %v2125 = vrot.slane %v2123, 1
  %v2126 = vor.u32 %v2121, %v2125
  %v2128 = vshrl.u32 %v2075, 16
  %v2130 = vshll.u32 %v2075, 16
  %v2132 = vrot.slane %v2130, 1
  %v2133 = vor.u32 %v2128, %v2132
  %v2135 = vshrl.u32 %v2076, 16
  %v2137 = vshll.u32 %v2076, 16
  %v2139 = vrot.slane %v2137, 1
  %v2140 = vor.u32 %v2135, %v2139
  %v2142 = vshrl.u32 %v2077, 16
  %v2144 = vshll.u32 %v2077, 16
  %v2146 = vrot.slane %v2144, 1
  %v2147 = vor.u32 %v2142, %v2146
  %v2149 = vshrl.u32 %v2078, 16
  %v2151 = vshll.u32 %v2078, 16
  %v2153 = vrot.slane %v2151, 1
  %v2154 = vor.u32 %v2149, %v2153
  %v2156 = vshrl.u32 %v2079, 16
  %v2158 = vshll.u32 %v2079, 16
  %v2160 = vrot.slane %v2158, 1
  %v2161 = vor.u32 %v2156, %v2160
  %v2163 = vshrl.u32 %v2080, 16
  %v2165 = vshll.u32 %v2080, 16
  %v2167 = vrot.slane %v2165, 1
  %v2168 = vor.u32 %v2163, %v2167
  %v2170 = vshrl.u32 %v2081, 16
  %v2172 = vshll.u32 %v2081, 16
  %v2174 = vrot.slane %v2172, 1
  %v2175 = vor.u32 %v2170, %v2174
  %v2177 = vshrl.u32 %v2082, 16
  %v2179 = vshll.u32 %v2082, 16
  %v2181 = vrot.slane %v2179, 1
  %v2182 = vor.u32 %v2177, %v2181
  %v2184 = vshrl.u32 %v2083, 16
  %v2186 = vshll.u32 %v2083, 16
  %v2188 = vrot.slane %v2186, 1
  %v2189 = vor.u32 %v2184, %v2188
  %v2191 = vshrl.u32 %v2084, 16
  %v2193 = vshll.u32 %v2084, 16
  %v2195 = vrot.slane %v2193, 1
  %v2196 = vor.u32 %v2191, %v2195
  %v2197 = vrot.slane %v2069, 1
  %v2198 = vrot.slane %v2070, 1
  %v2199 = vrot.slane %v2071, 1
  %v2200 = vrot.slane %v2072, 1
  %v2201 = vrot.slane %v2073, 1
  %v2202 = vrot.slane %v2074, 1
  %v2203 = vrot.slane %v2075, 1
  %v2204 = vrot.slane %v2076, 1
  %v2205 = vrot.slane %v2077, 1
  %v2206 = vrot.slane %v2078, 1
  %v2207 = vrot.slane %v2079, 1
  %v2208 = vrot.slane %v2080, 1
  %v2209 = vrot.slane %v2081, 1
  %v2210 = vrot.slane %v2082, 1
  %v2211 = vrot.slane %v2083, 1
  %v2212 = vrot.slane %v2084, 1
  %v2245 = vunpack.c.l.b16 %v39
  %v2246 = vunpack.c.l.b16 %v40
  %v2247 = vunpack.c.l.b16 %v59
  %v2248 = vunpack.c.l.b16 %v60
  %v2249 = vunpack.c.l.b16 %v79
  %v2250 = vunpack.c.l.b16 %v80
  %v2251 = vunpack.c.l.b16 %v99
  %v2252 = vunpack.c.l.b16 %v100
  %v2253 = vunpack.c.l.b16 %v119
  %v2254 = vunpack.c.l.b16 %v120
  %v2255 = vunpack.c.l.b16 %v139
  %v2256 = vunpack.c.l.b16 %v140
  %v2257 = vunpack.c.l.b16 %v159
  %v2258 = vunpack.c.l.b16 %v160
  %v2259 = vunpack.c.l.b16 %v179
  %v2260 = vunpack.c.l.b16 %v180
  %v2261 = vunpack.c.l.b16 %v199
  %v2262 = vunpack.c.l.b16 %v200
  %v2263 = vunpack.c.l.b16 %v219
  %v2264 = vunpack.c.l.b16 %v220
  %v2265 = vunpack.c.l.b16 %v239
  %v2266 = vunpack.c.l.b16 %v240
  %v2267 = vunpack.c.l.b16 %v259
  %v2268 = vunpack.c.l.b16 %v260
  %v2269 = vunpack.c.l.b16 %v279
  %v2270 = vunpack.c.l.b16 %v280
  %v2271 = vunpack.c.l.b16 %v299
  %v2272 = vunpack.c.l.b16 %v300
  %v2273 = vunpack.c.l.b16 %v319
  %v2274 = vunpack.c.l.b16 %v320
  %v2275 = vunpack.c.l.b16 %v339
  %v2276 = vunpack.c.l.b16 %v340
  %v2277 = vpack.c.b16 %v2246, %v2245
  %v2278 = vpack.c.b16 %v2248, %v2247
  %v2279 = vpack.c.b16 %v2250, %v2249
  %v2280 = vpack.c.b16 %v2252, %v2251
  %v2281 = vpack.c.b16 %v2254, %v2253
  %v2282 = vpack.c.b16 %v2256, %v2255
  %v2283 = vpack.c.b16 %v2258, %v2257
  %v2284 = vpack.c.b16 %v2260, %v2259
  %v2285 = vpack.c.b16 %v2262, %v2261
  %v2286 = vpack.c.b16 %v2264, %v2263
  %v2287 = vpack.c.b16 %v2266, %v2265
  %v2288 = vpack.c.b16 %v2268, %v2267
  %v2289 = vpack.c.b16 %v2270, %v2269
  %v2290 = vpack.c.b16 %v2272, %v2271
  %v2291 = vpack.c.b16 %v2274, %v2273
  %v2292 = vpack.c.b16 %v2276, %v2275
  %v2294 = vshrl.u32 %v2277, 16
  %v2296 = vshll.u32 %v2277, 16
  %v2298 = vrot.slane %v2296, 1
  %v2299 = vor.u32 %v2294, %v2298
  %v2301 = vshrl.u32 %v2278, 16
  %v2303 = vshll.u32 %v2278, 16
  %v2305 = vrot.slane %v2303, 1
  %v2306 = vor.u32 %v2301, %v2305
  %v2308 = vshrl.u32 %v2279, 16
  %v2310 = vshll.u32 %v2279, 16
  %v2312 = vrot.slane %v2310, 1
  %v2313 = vor.u32 %v2308, %v2312
  %v2315 = vshrl.u32 %v2280, 16
  %v2317 = vshll.u32 %v2280, 16
  %v2319 = vrot.slane %v2317, 1
  %v2320 = vor.u32 %v2315, %v2319
  %v2322 = vshrl.u32 %v2281, 16
  %v2324 = vshll.u32 %v2281, 16
  %v2326 = vrot.slane %v2324, 1
  %v2327 = vor.u32 %v2322, %v2326
  %v2329 = vshrl.u32 %v2282, 16
  %v2331 = vshll.u32 %v2282, 16
  %v2333 = vrot.slane %v2331, 1
  %v2334 = vor.u32 %v2329, %v2333
  %v2336 = vshrl.u32 %v2283, 16
  %v2338 = vshll.u32 %v2283, 16
  %v2340 = vrot.slane %v2338, 1
  %v2341 = vor.u32 %v2336, %v2340
  %v2343 = vshrl.u32 %v2284, 16
  %v2345 = vshll.u32 %v2284, 16
  %v2347 = vrot.slane %v2345, 1
  %v2348 = vor.u32 %v2343, %v2347
  %v2350 = vshrl.u32 %v2285, 16
  %v2352 = vshll.u32 %v2285, 16
  %v2354 = vrot.slane %v2352, 1
  %v2355 = vor.u32 %v2350, %v2354
  %v2357 = vshrl.u32 %v2286, 16
  %v2359 = vshll.u32 %v2286, 16
  %v2361 = vrot.slane %v2359, 1
  %v2362 = vor.u32 %v2357, %v2361
  %v2364 = vshrl.u32 %v2287, 16
  %v2366 = vshll.u32 %v2287, 16
  %v2368 = vrot.slane %v2366, 1
  %v2369 = vor.u32 %v2364, %v2368
  %v2371 = vshrl.u32 %v2288, 16
  %v2373 = vshll.u32 %v2288, 16
  %v2375 = vrot.slane %v2373, 1
  %v2376 = vor.u32 %v2371, %v2375
  %v2378 = vshrl.u32 %v2289, 16
  %v2380 = vshll.u32 %v2289, 16
  %v2382 = vrot.slane %v2380, 1
  %v2383 = vor.u32 %v2378, %v2382
  %v2385 = vshrl.u32 %v2290, 16
  %v2387 = vshll.u32 %v2290, 16
  %v2389 = vrot.slane %v2387, 1
  %v2390 = vor.u32 %v2385, %v2389
  %v2392 = vshrl.u32 %v2291, 16
  %v2394 = vshll.u32 %v2291, 16
  %v2396 = vrot.slane %v2394, 1
  %v2397 = vor.u32 %v2392, %v2396
  %v2399 = vshrl.u32 %v2292, 16
  %v2401 = vshll.u32 %v2292, 16
  %v2403 = vrot.slane %v2401, 1
  %v2404 = vor.u32 %v2399, %v2403
  %v2405 = vrot.slane %v2277, 1
  %v2406 = vrot.slane %v2278, 1
  %v2407 = vrot.slane %v2279, 1
  %v2408 = vrot.slane %v2280, 1
  %v2409 = vrot.slane %v2281, 1
  %v2410 = vrot.slane %v2282, 1
  %v2411 = vrot.slane %v2283, 1
  %v2412 = vrot.slane %v2284, 1
  %v2413 = vrot.slane %v2285, 1
  %v2414 = vrot.slane %v2286, 1
  %v2415 = vrot.slane %v2287, 1
  %v2416 = vrot.slane %v2288, 1
  %v2417 = vrot.slane %v2289, 1
  %v2418 = vrot.slane %v2290, 1
  %v2419 = vrot.slane %v2291, 1
  %v2420 = vrot.slane %v2292, 1
  %v2421 = vunpack.c.l.b16 %v987
  %v2422 = vunpack.c.l.b16 %v1877
  %v2423 = vunpack.c.l.b16 %v994
  %v2424 = vunpack.c.l.b16 %v1878
  %v2425 = vunpack.c.l.b16 %v1001
  %v2426 = vunpack.c.l.b16 %v1879
  %v2427 = vunpack.c.l.b16 %v1008
  %v2428 = vunpack.c.l.b16 %v1880
  %v2429 = vunpack.c.l.b16 %v1015
  %v2430 = vunpack.c.l.b16 %v1881
  %v2431 = vunpack.c.l.b16 %v1022
  %v2432 = vunpack.c.l.b16 %v1882
  %v2433 = vunpack.c.l.b16 %v1029
  %v2434 = vunpack.c.l.b16 %v1883
  %v2435 = vunpack.c.l.b16 %v1036
  %v2436 = vunpack.c.l.b16 %v1884
  %v2437 = vunpack.c.l.b16 %v2091
  %v2438 = vunpack.c.l.b16 %v2197
  %v2439 = vunpack.c.l.b16 %v2299
  %v2440 = vunpack.c.l.b16 %v2405
  %v2441 = vunpack.c.l.b16 %v1043
  %v2442 = vunpack.c.l.b16 %v1885
  %v2443 = vunpack.c.l.b16 %v1050
  %v2444 = vunpack.c.l.b16 %v1886
  %v2445 = vunpack.c.l.b16 %v1057
  %v2446 = vunpack.c.l.b16 %v1887
  %v2447 = vunpack.c.l.b16 %v1064
  %v2448 = vunpack.c.l.b16 %v1888
  %v2449 = vunpack.c.l.b16 %v1071
  %v2450 = vunpack.c.l.b16 %v1889
  %v2451 = vunpack.c.l.b16 %v1078
  %v2452 = vunpack.c.l.b16 %v1890
  %v2453 = vunpack.c.l.b16 %v1085
  %v2454 = vunpack.c.l.b16 %v1891
  %v2455 = vunpack.c.l.b16 %v1092
  %v2456 = vunpack.c.l.b16 %v1892
  %v2457 = vunpack.c.l.b16 %v2098
  %v2458 = vunpack.c.l.b16 %v2198
  %v2459 = vunpack.c.l.b16 %v2306
  %v2460 = vunpack.c.l.b16 %v2406
  %v2461 = vunpack.c.l.b16 %v1099
  %v2462 = vunpack.c.l.b16 %v1893
  %v2463 = vunpack.c.l.b16 %v1106
  %v2464 = vunpack.c.l.b16 %v1894
  %v2465 = vunpack.c.l.b16 %v1113
  %v2466 = vunpack.c.l.b16 %v1895
  %v2467 = vunpack.c.l.b16 %v1120
  %v2468 = vunpack.c.l.b16 %v1896
  %v2469 = vunpack.c.l.b16 %v1127
  %v2470 = vunpack.c.l.b16 %v1897
  %v2471 = vunpack.c.l.b16 %v1134
  %v2472 = vunpack.c.l.b16 %v1898
  %v2473 = vunpack.c.l.b16 %v1141
  %v2474 = vunpack.c.l.b16 %v1899
  %v2475 = vunpack.c.l.b16 %v1148
  %v2476 = vunpack.c.l.b16 %v1900
  %v2477 = vunpack.c.l.b16 %v2105
  %v2478 = vunpack.c.l.b16 %v2199
  %v2479 = vunpack.c.l.b16 %v2313
  %v2480 = vunpack.c.l.b16 %v2407
  %v2481 = vunpack.c.l.b16 %v1155
  %v2482 = vunpack.c.l.b16 %v1901
  %v2483 = vunpack.c.l.b16 %v1162
  %v2484 = vunpack.c.l.b16 %v1902
  %v2485 = vunpack.c.l.b16 %v1169
  %v2486 = vunpack.c.l.b16 %v1903
  %v2487 = vunpack.c.l.b16 %v1176
  %v2488 = vunpack.c.l.b16 %v1904
  %v2489 = vunpack.c.l.b16 %v1183
  %v2490 = vunpack.c.l.b16 %v1905
  %v2491 = vunpack.c.l.b16 %v1190
  %v2492 = vunpack.c.l.b16 %v1906
  %v2493 = vunpack.c.l.b16 %v1197
  %v2494 = vunpack.c.l.b16 %v1907
  %v2495 = vunpack.c.l.b16 %v1204
  %v2496 = vunpack.c.l.b16 %v1908
  %v2497 = vunpack.c.l.b16 %v2112
  %v2498 = vunpack.c.l.b16 %v2200
  %v2499 = vunpack.c.l.b16 %v2320
  %v2500 = vunpack.c.l.b16 %v2408
  %v2501 = vunpack.c.l.b16 %v1211
  %v2502 = vunpack.c.l.b16 %v1909
  %v2503 = vunpack.c.l.b16 %v1218
  %v2504 = vunpack.c.l.b16 %v1910
  %v2505 = vunpack.c.l.b16 %v1225
  %v2506 = vunpack.c.l.b16 %v1911
  %v2507 = vunpack.c.l.b16 %v1232
  %v2508 = vunpack.c.l.b16 %v1912
  %v2509 = vunpack.c.l.b16 %v1239
  %v2510 = vunpack.c.l.b16 %v1913
  %v2511 = vunpack.c.l.b16 %v1246
  %v2512 = vunpack.c.l.b16 %v1914
  %v2513 = vunpack.c.l.b16 %v1253
  %v2514 = vunpack.c.l.b16 %v1915
  %v2515 = vunpack.c.l.b16 %v1260
  %v2516 = vunpack.c.l.b16 %v1916
  %v2517 = vunpack.c.l.b16 %v2119
  %v2518 = vunpack.c.l.b16 %v2201
  %v2519 = vunpack.c.l.b16 %v2327
  %v2520 = vunpack.c.l.b16 %v2409
  %v2521 = vunpack.c.l.b16 %v1267
  %v2522 = vunpack.c.l.b16 %v1917
  %v2523 = vunpack.c.l.b16 %v1274
  %v2524 = vunpack.c.l.b16 %v1918
  %v2525 = vunpack.c.l.b16 %v1281
  %v2526 = vunpack.c.l.b16 %v1919
  %v2527 = vunpack.c.l.b16 %v1288
  %v2528 = vunpack.c.l.b16 %v1920
  %v2529 = vunpack.c.l.b16 %v1295
  %v2530 = vunpack.c.l.b16 %v1921
  %v2531 = vunpack.c.l.b16 %v1302
  %v2532 = vunpack.c.l.b16 %v1922
  %v2533 = vunpack.c.l.b16 %v1309
  %v2534 = vunpack.c.l.b16 %v1923
  %v2535 = vunpack.c.l.b16 %v1316
  %v2536 = vunpack.c.l.b16 %v1924
  %v2537 = vunpack.c.l.b16 %v2126
  %v2538 = vunpack.c.l.b16 %v2202
  %v2539 = vunpack.c.l.b16 %v2334
  %v2540 = vunpack.c.l.b16 %v2410
  %v2541 = vunpack.c.l.b16 %v1323
  %v2542 = vunpack.c.l.b16 %v1925
  %v2543 = vunpack.c.l.b16 %v1330
  %v2544 = vunpack.c.l.b16 %v1926
  %v2545 = vunpack.c.l.b16 %v1337
  %v2546 = vunpack.c.l.b16 %v1927
  %v2547 = vunpack.c.l.b16 %v1344
  %v2548 = vunpack.c.l.b16 %v1928
  %v2549 = vunpack.c.l.b16 %v1351
  %v2550 = vunpack.c.l.b16 %v1929
  %v2551 = vunpack.c.l.b16 %v1358
  %v2552 = vunpack.c.l.b16 %v1930
  %v2553 = vunpack.c.l.b16 %v1365
  %v2554 = vunpack.c.l.b16 %v1931
  %v2555 = vunpack.c.l.b16 %v1372
  %v2556 = vunpack.c.l.b16 %v1932
  %v2557 = vunpack.c.l.b16 %v2133
  %v2558 = vunpack.c.l.b16 %v2203
  %v2559 = vunpack.c.l.b16 %v2341
  %v2560 = vunpack.c.l.b16 %v2411
  %v2561 = vunpack.c.l.b16 %v1379
  %v2562 = vunpack.c.l.b16 %v1933
  %v2563 = vunpack.c.l.b16 %v1386
  %v2564 = vunpack.c.l.b16 %v1934
  %v2565 = vunpack.c.l.b16 %v1393
  %v2566 = vunpack.c.l.b16 %v1935
  %v2567 = vunpack.c.l.b16 %v1400
  %v2568 = vunpack.c.l.b16 %v1936
  %v2569 = vunpack.c.l.b16 %v1407
  %v2570 = vunpack.c.l.b16 %v1937
  %v2571 = vunpack.c.l.b16 %v1414
  %v2572 = vunpack.c.l.b16 %v1938
  %v2573 = vunpack.c.l.b16 %v1421
  %v2574 = vunpack.c.l.b16 %v1939
  %v2575 = vunpack.c.l.b16 %v1428
  %v2576 = vunpack.c.l.b16 %v1940
  %v2577 = vunpack.c.l.b16 %v2140
  %v2578 = vunpack.c.l.b16 %v2204
  %v2579 = vunpack.c.l.b16 %v2348
  %v2580 = vunpack.c.l.b16 %v2412
  %v2581 = vunpack.c.l.b16 %v1435
  %v2582 = vunpack.c.l.b16 %v1941
  %v2583 = vunpack.c.l.b16 %v1442
  %v2584 = vunpack.c.l.b16 %v1942
  %v2585 = vunpack.c.l.b16 %v1449
  %v2586 = vunpack.c.l.b16 %v1943
  %v2587 = vunpack.c.l.b16 %v1456
  %v2588 = vunpack.c.l.b16 %v1944
  %v2589 = vunpack.c.l.b16 %v1463
  %v2590 = vunpack.c.l.b16 %v1945
  %v2591 = vunpack.c.l.b16 %v1470
  %v2592 = vunpack.c.l.b16 %v1946
  %v2593 = vunpack.c.l.b16 %v1477
  %v2594 = vunpack.c.l.b16 %v1947
  %v2595 = vunpack.c.l.b16 %v1484
  %v2596 = vunpack.c.l.b16 %v1948
  %v2597 = vunpack.c.l.b16 %v2147
  %v2598 = vunpack.c.l.b16 %v2205
  %v2599 = vunpack.c.l.b16 %v2355
  %v2600 = vunpack.c.l.b16 %v2413
  %v2601 = vunpack.c.l.b16 %v1491
  %v2602 = vunpack.c.l.b16 %v1949
  %v2603 = vunpack.c.l.b16 %v1498
  %v2604 = vunpack.c.l.b16 %v1950
  %v2605 = vunpack.c.l.b16 %v1505
  %v2606 = vunpack.c.l.b16 %v1951
  %v2607 = vunpack.c.l.b16 %v1512
  %v2608 = vunpack.c.l.b16 %v1952
  %v2609 = vunpack.c.l.b16 %v1519
  %v2610 = vunpack.c.l.b16 %v1953
  %v2611 = vunpack.c.l.b16 %v1526
  %v2612 = vunpack.c.l.b16 %v1954
  %v2613 = vunpack.c.l.b16 %v1533
  %v2614 = vunpack.c.l.b16 %v1955
  %v2615 = vunpack.c.l.b16 %v1540
  %v2616 = vunpack.c.l.b16 %v1956
  %v2617 = vunpack.c.l.b16 %v2154
  %v2618 = vunpack.c.l.b16 %v2206
  %v2619 = vunpack.c.l.b16 %v2362
  %v2620 = vunpack.c.l.b16 %v2414
  %v2621 = vunpack.c.l.b16 %v1547
  %v2622 = vunpack.c.l.b16 %v1957
  %v2623 = vunpack.c.l.b16 %v1554
  %v2624 = vunpack.c.l.b16 %v1958
  %v2625 = vunpack.c.l.b16 %v1561
  %v2626 = vunpack.c.l.b16 %v1959
  %v2627 = vunpack.c.l.b16 %v1568
  %v2628 = vunpack.c.l.b16 %v1960
  %v2629 = vunpack.c.l.b16 %v1575
  %v2630 = vunpack.c.l.b16 %v1961
  %v2631 = vunpack.c.l.b16 %v1582
  %v2632 = vunpack.c.l.b16 %v1962
  %v2633 = vunpack.c.l.b16 %v1589
  %v2634 = vunpack.c.l.b16 %v1963
  %v2635 = vunpack.c.l.b16 %v1596
  %v2636 = vunpack.c.l.b16 %v1964
  %v2637 = vunpack.c.l.b16 %v2161
  %v2638 = vunpack.c.l.b16 %v2207
  %v2639 = vunpack.c.l.b16 %v2369
  %v2640 = vunpack.c.l.b16 %v2415
  %v2641 = vunpack.c.l.b16 %v1603
  %v2642 = vunpack.c.l.b16 %v1965
  %v2643 = vunpack.c.l.b16 %v1610
  %v2644 = vunpack.c.l.b16 %v1966
  %v2645 = vunpack.c.l.b16 %v1617
  %v2646 = vunpack.c.l.b16 %v1967
  %v2647 = vunpack.c.l.b16 %v1624
  %v2648 = vunpack.c.l.b16 %v1968
  %v2649 = vunpack.c.l.b16 %v1631
  %v2650 = vunpack.c.l.b16 %v1969
  %v2651 = vunpack.c.l.b16 %v1638
  %v2652 = vunpack.c.l.b16 %v1970
  %v2653 = vunpack.c.l.b16 %v1645
  %v2654 = vunpack.c.l.b16 %v1971
  %v2655 = vunpack.c.l.b16 %v1652
  %v2656 = vunpack.c.l.b16 %v1972
  %v2657 = vunpack.c.l.b16 %v2168
  %v2658 = vunpack.c.l.b16 %v2208
  %v2659 = vunpack.c.l.b16 %v2376
  %v2660 = vunpack.c.l.b16 %v2416
  %v2661 = vunpack.c.l.b16 %v1659
  %v2662 = vunpack.c.l.b16 %v1973
  %v2663 = vunpack.c.l.b16 %v1666
  %v2664 = vunpack.c.l.b16 %v1974
  %v2665 = vunpack.c.l.b16 %v1673
  %v2666 = vunpack.c.l.b16 %v1975
  %v2667 = vunpack.c.l.b16 %v1680
  %v2668 = vunpack.c.l.b16 %v1976
  %v2669 = vunpack.c.l.b16 %v1687
  %v2670 = vunpack.c.l.b16 %v1977
  %v2671 = vunpack.c.l.b16 %v1694
  %v2672 = vunpack.c.l.b16 %v1978
  %v2673 = vunpack.c.l.b16 %v1701
  %v2674 = vunpack.c.l.b16 %v1979
  %v2675 = vunpack.c.l.b16 %v1708
  %v2676 = vunpack.c.l.b16 %v1980
  %v2677 = vunpack.c.l.b16 %v2175
  %v2678 = vunpack.c.l.b16 %v2209
  %v2679 = vunpack.c.l.b16 %v2383
  %v2680 = vunpack.c.l.b16 %v2417
  %v2681 = vunpack.c.l.b16 %v1715
  %v2682 = vunpack.c.l.b16 %v1981
  %v2683 = vunpack.c.l.b16 %v1722
  %v2684 = vunpack.c.l.b16 %v1982
  %v2685 = vunpack.c.l.b16 %v1729
  %v2686 = vunpack.c.l.b16 %v1983
  %v2687 = vunpack.c.l.b16 %v1736
  %v2688 = vunpack.c.l.b16 %v1984
  %v2689 = vunpack.c.l.b16 %v1743
  %v2690 = vunpack.c.l.b16 %v1985
  %v2691 = vunpack.c.l.b16 %v1750
  %v2692 = vunpack.c.l.b16 %v1986
  %v2693 = vunpack.c.l.b16 %v1757
  %v2694 = vunpack.c.l.b16 %v1987
  %v2695 = vunpack.c.l.b16 %v1764
  %v2696 = vunpack.c.l.b16 %v1988
  %v2697 = vunpack.c.l.b16 %v2182
  %v2698 = vunpack.c.l.b16 %v2210
  %v2699 = vunpack.c.l.b16 %v2390
  %v2700 = vunpack.c.l.b16 %v2418
  %v2701 = vunpack.c.l.b16 %v1771
  %v2702 = vunpack.c.l.b16 %v1989
  %v2703 = vunpack.c.l.b16 %v1778
  %v2704 = vunpack.c.l.b16 %v1990
  %v2705 = vunpack.c.l.b16 %v1785
  %v2706 = vunpack.c.l.b16 %v1991
  %v2707 = vunpack.c.l.b16 %v1792
  %v2708 = vunpack.c.l.b16 %v1992
  %v2709 = vunpack.c.l.b16 %v1799
  %v2710 = vunpack.c.l.b16 %v1993
  %v2711 = vunpack.c.l.b16 %v1806
  %v2712 = vunpack.c.l.b16 %v1994
  %v2713 = vunpack.c.l.b16 %v1813
  %v2714 = vunpack.c.l.b16 %v1995
  %v2715 = vunpack.c.l.b16 %v1820
  %v2716 = vunpack.c.l.b16 %v1996
  %v2717 = vunpack.c.l.b16 %v2189
  %v2718 = vunpack.c.l.b16 %v2211
  %v2719 = vunpack.c.l.b16 %v2397
  %v2720 = vunpack.c.l.b16 %v2419
  %v2721 = vunpack.c.l.b16 %v1827
  %v2722 = vunpack.c.l.b16 %v1997
  %v2723 = vunpack.c.l.b16 %v1834
  %v2724 = vunpack.c.l.b16 %v1998
  %v2725 = vunpack.c.l.b16 %v1841
  %v2726 = vunpack.c.l.b16 %v1999
  %v2727 = vunpack.c.l.b16 %v1848
  %v2728 = vunpack.c.l.b16 %v2000
  %v2729 = vunpack.c.l.b16 %v1855
  %v2730 = vunpack.c.l.b16 %v2001
  %v2731 = vunpack.c.l.b16 %v1862
  %v2732 = vunpack.c.l.b16 %v2002
  %v2733 = vunpack.c.l.b16 %v1869
  %v2734 = vunpack.c.l.b16 %v2003
  %v2735 = vunpack.c.l.b16 %v1876
  %v2736 = vunpack.c.l.b16 %v2004
  %v2737 = vunpack.c.l.b16 %v2196
  %v2738 = vunpack.c.l.b16 %v2212
  %v2739 = vunpack.c.l.b16 %v2404
  %v2740 = vunpack.c.l.b16 %v2420
  %v2741 = vld [vmem:[%s1] sm:$0xf]
  %v2742 = vld [vmem:[%s1 + $0x4] sm:$0xf]
  %v2743 = vld [vmem:[%s1 + $0x8] sm:$0xf]
  %v2744 = vld [vmem:[%s1 + $0xc] sm:$0xf]
  %v2745 = vld [vmem:[%s1 + $0x10] sm:$0xf]
  %v2746 = vld [vmem:[%s1 + $0x14] sm:$0xf]
  %v2747 = vld [vmem:[%s1 + $0x18] sm:$0xf]
  %v2748 = vld [vmem:[%s1 + $0x1c] sm:$0xf]
  %v2749 = vld [vmem:[%s1 + $0x20] sm:$0xf]
  %v2750 = vld [vmem:[%s1 + $0x24] sm:$0xf]
  %v2751 = vld [vmem:[%s1 + $0x28] sm:$0xf]
  %v2752 = vld [vmem:[%s1 + $0x2c] sm:$0xf]
  %v2753 = vld [vmem:[%s1 + $0x30] sm:$0xf]
  %v2754 = vld [vmem:[%s1 + $0x34] sm:$0xf]
  %v2755 = vld [vmem:[%s1 + $0x38] sm:$0xf]
  %v2756 = vld [vmem:[%s1 + $0x3c] sm:$0xf]
  %v2757 = vld [vmem:[%s1 + $0x40] sm:$0xf]
  %v2758 = vld [vmem:[%s1 + $0x44] sm:$0xf]
  %v2759 = vld [vmem:[%s1 + $0x48] sm:$0xf]
  %v2760 = vld [vmem:[%s1 + $0x4c] sm:$0xf]
  %v2761 = vld [vmem:[%s1 + $0x50] sm:$0xf]
  %v2762 = vld [vmem:[%s1 + $0x54] sm:$0xf]
  %v2763 = vld [vmem:[%s1 + $0x58] sm:$0xf]
  %v2764 = vld [vmem:[%s1 + $0x5c] sm:$0xf]
  %v2765 = vld [vmem:[%s1 + $0x60] sm:$0xf]
  %v2766 = vld [vmem:[%s1 + $0x64] sm:$0xf]
  %v2767 = vld [vmem:[%s1 + $0x68] sm:$0xf]
  %v2768 = vld [vmem:[%s1 + $0x6c] sm:$0xf]
  %v2769 = vld [vmem:[%s1 + $0x70] sm:$0xf]
  %v2770 = vld [vmem:[%s1 + $0x74] sm:$0xf]
  %v2771 = vld [vmem:[%s1 + $0x78] sm:$0xf]
  %v2772 = vld [vmem:[%s1 + $0x7c] sm:$0xf]
  %v2773 = vld [vmem:[%s1 + $0x80] sm:$0xf]
  %v2774 = vld [vmem:[%s1 + $0x84] sm:$0xf]
  %v2775 = vld [vmem:[%s1 + $0x88] sm:$0xf]
  %v2776 = vld [vmem:[%s1 + $0x8c] sm:$0xf]
  %v2777 = vld [vmem:[%s1 + $0x90] sm:$0xf]
  %v2778 = vld [vmem:[%s1 + $0x94] sm:$0xf]
  %v2779 = vld [vmem:[%s1 + $0x98] sm:$0xf]
  %v2780 = vld [vmem:[%s1 + $0x9c] sm:$0xf]
  %v2781 = vld [vmem:[%s1 + $0xa0] sm:$0xf]
  %v2782 = vld [vmem:[%s1 + $0xa4] sm:$0xf]
  %v2783 = vld [vmem:[%s1 + $0xa8] sm:$0xf]
  %v2784 = vld [vmem:[%s1 + $0xac] sm:$0xf]
  %v2785 = vld [vmem:[%s1 + $0xb0] sm:$0xf]
  %v2786 = vld [vmem:[%s1 + $0xb4] sm:$0xf]
  %v2787 = vld [vmem:[%s1 + $0xb8] sm:$0xf]
  %v2788 = vld [vmem:[%s1 + $0xbc] sm:$0xf]
  %v2789 = vld [vmem:[%s1 + $0xc0] sm:$0xf]
  %v2790 = vld [vmem:[%s1 + $0xc4] sm:$0xf]
  %v2791 = vld [vmem:[%s1 + $0xc8] sm:$0xf]
  %v2792 = vld [vmem:[%s1 + $0xcc] sm:$0xf]
  %v2793 = vld [vmem:[%s1 + $0xd0] sm:$0xf]
  %v2794 = vld [vmem:[%s1 + $0xd4] sm:$0xf]
  %v2795 = vld [vmem:[%s1 + $0xd8] sm:$0xf]
  %v2796 = vld [vmem:[%s1 + $0xdc] sm:$0xf]
  %v2797 = vld [vmem:[%s1 + $0xe0] sm:$0xf]
  %v2798 = vld [vmem:[%s1 + $0xe4] sm:$0xf]
  %v2799 = vld [vmem:[%s1 + $0xe8] sm:$0xf]
  %v2800 = vld [vmem:[%s1 + $0xec] sm:$0xf]
  %v2801 = vld [vmem:[%s1 + $0xf0] sm:$0xf]
  %v2802 = vld [vmem:[%s1 + $0xf4] sm:$0xf]
  %v2803 = vld [vmem:[%s1 + $0xf8] sm:$0xf]
  %v2804 = vld [vmem:[%s1 + $0xfc] sm:$0xf]
  %v2805 = vld [vmem:[%s1 + $0x100] sm:$0xf]
  %v2806 = vld [vmem:[%s1 + $0x104] sm:$0xf]
  %v2807 = vld [vmem:[%s1 + $0x108] sm:$0xf]
  %v2808 = vld [vmem:[%s1 + $0x10c] sm:$0xf]
  %v2809 = vld [vmem:[%s1 + $0x110] sm:$0xf]
  %v2810 = vld [vmem:[%s1 + $0x114] sm:$0xf]
  %v2811 = vld [vmem:[%s1 + $0x118] sm:$0xf]
  %v2812 = vld [vmem:[%s1 + $0x11c] sm:$0xf]
  %v2813 = vld [vmem:[%s1 + $0x120] sm:$0xf]
  %v2814 = vld [vmem:[%s1 + $0x124] sm:$0xf]
  %v2815 = vld [vmem:[%s1 + $0x128] sm:$0xf]
  %v2816 = vld [vmem:[%s1 + $0x12c] sm:$0xf]
  %v2817 = vld [vmem:[%s1 + $0x130] sm:$0xf]
  %v2818 = vld [vmem:[%s1 + $0x134] sm:$0xf]
  %v2819 = vld [vmem:[%s1 + $0x138] sm:$0xf]
  %v2820 = vld [vmem:[%s1 + $0x13c] sm:$0xf]
  %v2821 = vld [vmem:[%s1 + $0x140] sm:$0xf]
  %v2822 = vld [vmem:[%s1 + $0x144] sm:$0xf]
  %v2823 = vld [vmem:[%s1 + $0x148] sm:$0xf]
  %v2824 = vld [vmem:[%s1 + $0x14c] sm:$0xf]
  %v2825 = vld [vmem:[%s1 + $0x150] sm:$0xf]
  %v2826 = vld [vmem:[%s1 + $0x154] sm:$0xf]
  %v2827 = vld [vmem:[%s1 + $0x158] sm:$0xf]
  %v2828 = vld [vmem:[%s1 + $0x15c] sm:$0xf]
  %v2829 = vld [vmem:[%s1 + $0x160] sm:$0xf]
  %v2830 = vld [vmem:[%s1 + $0x164] sm:$0xf]
  %v2831 = vld [vmem:[%s1 + $0x168] sm:$0xf]
  %v2832 = vld [vmem:[%s1 + $0x16c] sm:$0xf]
  %v2833 = vld [vmem:[%s1 + $0x170] sm:$0xf]
  %v2834 = vld [vmem:[%s1 + $0x174] sm:$0xf]
  %v2835 = vld [vmem:[%s1 + $0x178] sm:$0xf]
  %v2836 = vld [vmem:[%s1 + $0x17c] sm:$0xf]
  %v2837 = vld [vmem:[%s1 + $0x180] sm:$0xf]
  %v2838 = vld [vmem:[%s1 + $0x184] sm:$0xf]
  %v2839 = vld [vmem:[%s1 + $0x188] sm:$0xf]
  %v2840 = vld [vmem:[%s1 + $0x18c] sm:$0xf]
  %v2841 = vld [vmem:[%s1 + $0x190] sm:$0xf]
  %v2842 = vld [vmem:[%s1 + $0x194] sm:$0xf]
  %v2843 = vld [vmem:[%s1 + $0x198] sm:$0xf]
  %v2844 = vld [vmem:[%s1 + $0x19c] sm:$0xf]
  %v2845 = vld [vmem:[%s1 + $0x1a0] sm:$0xf]
  %v2846 = vld [vmem:[%s1 + $0x1a4] sm:$0xf]
  %v2847 = vld [vmem:[%s1 + $0x1a8] sm:$0xf]
  %v2848 = vld [vmem:[%s1 + $0x1ac] sm:$0xf]
  %v2849 = vld [vmem:[%s1 + $0x1b0] sm:$0xf]
  %v2850 = vld [vmem:[%s1 + $0x1b4] sm:$0xf]
  %v2851 = vld [vmem:[%s1 + $0x1b8] sm:$0xf]
  %v2852 = vld [vmem:[%s1 + $0x1bc] sm:$0xf]
  %v2853 = vld [vmem:[%s1 + $0x1c0] sm:$0xf]
  %v2854 = vld [vmem:[%s1 + $0x1c4] sm:$0xf]
  %v2855 = vld [vmem:[%s1 + $0x1c8] sm:$0xf]
  %v2856 = vld [vmem:[%s1 + $0x1cc] sm:$0xf]
  %v2857 = vld [vmem:[%s1 + $0x1d0] sm:$0xf]
  %v2858 = vld [vmem:[%s1 + $0x1d4] sm:$0xf]
  %v2859 = vld [vmem:[%s1 + $0x1d8] sm:$0xf]
  %v2860 = vld [vmem:[%s1 + $0x1dc] sm:$0xf]
  %v2861 = vld [vmem:[%s1 + $0x1e0] sm:$0xf]
  %v2862 = vld [vmem:[%s1 + $0x1e4] sm:$0xf]
  %v2863 = vld [vmem:[%s1 + $0x1e8] sm:$0xf]
  %v2864 = vld [vmem:[%s1 + $0x1ec] sm:$0xf]
  %v2865 = vld [vmem:[%s1 + $0x1f0] sm:$0xf]
  %v2866 = vld [vmem:[%s1 + $0x1f4] sm:$0xf]
  %v2867 = vld [vmem:[%s1 + $0x1f8] sm:$0xf]
  %v2868 = vld [vmem:[%s1 + $0x1fc] sm:$0xf]
  %v2869 = vld [vmem:[%s1 + $0x200] sm:$0xf]
  %v2870 = vld [vmem:[%s1 + $0x204] sm:$0xf]
  %v2871 = vld [vmem:[%s1 + $0x208] sm:$0xf]
  %v2872 = vld [vmem:[%s1 + $0x20c] sm:$0xf]
  %v2873 = vld [vmem:[%s1 + $0x210] sm:$0xf]
  %v2874 = vld [vmem:[%s1 + $0x214] sm:$0xf]
  %v2875 = vld [vmem:[%s1 + $0x218] sm:$0xf]
  %v2876 = vld [vmem:[%s1 + $0x21c] sm:$0xf]
  %v2877 = vld [vmem:[%s1 + $0x220] sm:$0xf]
  %v2878 = vld [vmem:[%s1 + $0x224] sm:$0xf]
  %v2879 = vld [vmem:[%s1 + $0x228] sm:$0xf]
  %v2880 = vld [vmem:[%s1 + $0x22c] sm:$0xf]
  %v2881 = vld [vmem:[%s1 + $0x230] sm:$0xf]
  %v2882 = vld [vmem:[%s1 + $0x234] sm:$0xf]
  %v2883 = vld [vmem:[%s1 + $0x238] sm:$0xf]
  %v2884 = vld [vmem:[%s1 + $0x23c] sm:$0xf]
  %v2885 = vld [vmem:[%s2] sm:$0x1]
  %v2887 = vlaneseq
  %v2888 = vshrl.u32 %v2887, 7
  %v2889 = vsub.s32 0, %v2888
  %v2890 = vrot.slane %v2885, %v2889
  %v2892 = vpack.c.b16 %v599, %v597
  %v2893 = vpack.c.b16 %v2423, %v2421
  %v2894 = vpack.c.b16 %v2424, %v2422
  %v2895 = vpack.c.b16 %v601, %v599
  %v2896 = vpack.c.b16 %v2425, %v2423
  %v2897 = vpack.c.b16 %v2426, %v2424
  %v2898 = vpack.c.b16 %v603, %v601
  %v2899 = vpack.c.b16 %v2427, %v2425
  %v2900 = vpack.c.b16 %v2428, %v2426
  %v2901 = vpack.c.b16 %v605, %v603
  %v2902 = vpack.c.b16 %v2429, %v2427
  %v2903 = vpack.c.b16 %v2430, %v2428
  %v2904 = vpack.c.b16 %v607, %v605
  %v2905 = vpack.c.b16 %v2431, %v2429
  %v2906 = vpack.c.b16 %v2432, %v2430
  %v2907 = vpack.c.b16 %v609, %v607
  %v2908 = vpack.c.b16 %v2433, %v2431
  %v2909 = vpack.c.b16 %v2434, %v2432
  %v2910 = vpack.c.b16 %v611, %v609
  %v2911 = vpack.c.b16 %v2435, %v2433
  %v2912 = vpack.c.b16 %v2436, %v2434
  %v2913 = vpack.c.b16 %v2037, %v611
  %v2914 = vpack.c.b16 %v2437, %v2435
  %v2915 = vpack.c.b16 %v2438, %v2436
  %v2916 = vpack.c.b16 %v2245, %v2037
  %v2917 = vpack.c.b16 %v2439, %v2437
  %v2918 = vpack.c.b16 %v2440, %v2438
  %v2919 = vpack.c.b16 %v615, %v613
  %v2920 = vpack.c.b16 %v2443, %v2441
  %v2921 = vpack.c.b16 %v2444, %v2442
  %v2922 = vpack.c.b16 %v617, %v615
  %v2923 = vpack.c.b16 %v2445, %v2443
  %v2924 = vpack.c.b16 %v2446, %v2444
  %v2925 = vpack.c.b16 %v619, %v617
  %v2926 = vpack.c.b16 %v2447, %v2445
  %v2927 = vpack.c.b16 %v2448, %v2446
  %v2928 = vpack.c.b16 %v621, %v619
  %v2929 = vpack.c.b16 %v2449, %v2447
  %v2930 = vpack.c.b16 %v2450, %v2448
  %v2931 = vpack.c.b16 %v623, %v621
  %v2932 = vpack.c.b16 %v2451, %v2449
  %v2933 = vpack.c.b16 %v2452, %v2450
  %v2934 = vpack.c.b16 %v625, %v623
  %v2935 = vpack.c.b16 %v2453, %v2451
  %v2936 = vpack.c.b16 %v2454, %v2452
  %v2937 = vpack.c.b16 %v627, %v625
  %v2938 = vpack.c.b16 %v2455, %v2453
  %v2939 = vpack.c.b16 %v2456, %v2454
  %v2940 = vpack.c.b16 %v2039, %v627
  %v2941 = vpack.c.b16 %v2457, %v2455
  %v2942 = vpack.c.b16 %v2458, %v2456
  %v2943 = vpack.c.b16 %v2247, %v2039
  %v2944 = vpack.c.b16 %v2459, %v2457
  %v2945 = vpack.c.b16 %v2460, %v2458
  %v2946 = vpack.c.b16 %v631, %v629
  %v2947 = vpack.c.b16 %v2463, %v2461
  %v2948 = vpack.c.b16 %v2464, %v2462
  %v2949 = vpack.c.b16 %v633, %v631
  %v2950 = vpack.c.b16 %v2465, %v2463
  %v2951 = vpack.c.b16 %v2466, %v2464
  %v2952 = vpack.c.b16 %v635, %v633
  %v2953 = vpack.c.b16 %v2467, %v2465
  %v2954 = vpack.c.b16 %v2468, %v2466
  %v2955 = vpack.c.b16 %v637, %v635
  %v2956 = vpack.c.b16 %v2469, %v2467
  %v2957 = vpack.c.b16 %v2470, %v2468
  %v2958 = vpack.c.b16 %v639, %v637
  %v2959 = vpack.c.b16 %v2471, %v2469
  %v2960 = vpack.c.b16 %v2472, %v2470
  %v2961 = vpack.c.b16 %v641, %v639
  %v2962 = vpack.c.b16 %v2473, %v2471
  %v2963 = vpack.c.b16 %v2474, %v2472
  %v2964 = vpack.c.b16 %v643, %v641
  %v2965 = vpack.c.b16 %v2475, %v2473
  %v2966 = vpack.c.b16 %v2476, %v2474
  %v2967 = vpack.c.b16 %v2041, %v643
  %v2968 = vpack.c.b16 %v2477, %v2475
  %v2969 = vpack.c.b16 %v2478, %v2476
  %v2970 = vpack.c.b16 %v2249, %v2041
  %v2971 = vpack.c.b16 %v2479, %v2477
  %v2972 = vpack.c.b16 %v2480, %v2478
  %v2973 = vpack.c.b16 %v647, %v645
  %v2974 = vpack.c.b16 %v2483, %v2481
  %v2975 = vpack.c.b16 %v2484, %v2482
  %v2976 = vpack.c.b16 %v649, %v647
  %v2977 = vpack.c.b16 %v2485, %v2483
  %v2978 = vpack.c.b16 %v2486, %v2484
  %v2979 = vpack.c.b16 %v651, %v649
  %v2980 = vpack.c.b16 %v2487, %v2485
  %v2981 = vpack.c.b16 %v2488, %v2486
  %v2982 = vpack.c.b16 %v653, %v651
  %v2983 = vpack.c.b16 %v2489, %v2487
  %v2984 = vpack.c.b16 %v2490, %v2488
  %v2985 = vpack.c.b16 %v655, %v653
  %v2986 = vpack.c.b16 %v2491, %v2489
  %v2987 = vpack.c.b16 %v2492, %v2490
  %v2988 = vpack.c.b16 %v657, %v655
  %v2989 = vpack.c.b16 %v2493, %v2491
  %v2990 = vpack.c.b16 %v2494, %v2492
  %v2991 = vpack.c.b16 %v659, %v657
  %v2992 = vpack.c.b16 %v2495, %v2493
  %v2993 = vpack.c.b16 %v2496, %v2494
  %v2994 = vpack.c.b16 %v2043, %v659
  %v2995 = vpack.c.b16 %v2497, %v2495
  %v2996 = vpack.c.b16 %v2498, %v2496
  %v2997 = vpack.c.b16 %v2251, %v2043
  %v2998 = vpack.c.b16 %v2499, %v2497
  %v2999 = vpack.c.b16 %v2500, %v2498
  %v3000 = vpack.c.b16 %v663, %v661
  %v3001 = vpack.c.b16 %v2503, %v2501
  %v3002 = vpack.c.b16 %v2504, %v2502
  %v3003 = vpack.c.b16 %v665, %v663
  %v3004 = vpack.c.b16 %v2505, %v2503
  %v3005 = vpack.c.b16 %v2506, %v2504
  %v3006 = vpack.c.b16 %v667, %v665
  %v3007 = vpack.c.b16 %v2507, %v2505
  %v3008 = vpack.c.b16 %v2508, %v2506
  %v3009 = vpack.c.b16 %v669, %v667
  %v3010 = vpack.c.b16 %v2509, %v2507
  %v3011 = vpack.c.b16 %v2510, %v2508
  %v3012 = vpack.c.b16 %v671, %v669
  %v3013 = vpack.c.b16 %v2511, %v2509
  %v3014 = vpack.c.b16 %v2512, %v2510
  %v3015 = vpack.c.b16 %v673, %v671
  %v3016 = vpack.c.b16 %v2513, %v2511
  %v3017 = vpack.c.b16 %v2514, %v2512
  %v3018 = vpack.c.b16 %v675, %v673
  %v3019 = vpack.c.b16 %v2515, %v2513
  %v3020 = vpack.c.b16 %v2516, %v2514
  %v3021 = vpack.c.b16 %v2045, %v675
  %v3022 = vpack.c.b16 %v2517, %v2515
  %v3023 = vpack.c.b16 %v2518, %v2516
  %v3024 = vpack.c.b16 %v2253, %v2045
  %v3025 = vpack.c.b16 %v2519, %v2517
  %v3026 = vpack.c.b16 %v2520, %v2518
  %v3027 = vpack.c.b16 %v679, %v677
  %v3028 = vpack.c.b16 %v2523, %v2521
  %v3029 = vpack.c.b16 %v2524, %v2522
  %v3030 = vpack.c.b16 %v681, %v679
  %v3031 = vpack.c.b16 %v2525, %v2523
  %v3032 = vpack.c.b16 %v2526, %v2524
  %v3033 = vpack.c.b16 %v683, %v681
  %v3034 = vpack.c.b16 %v2527, %v2525
  %v3035 = vpack.c.b16 %v2528, %v2526
  %v3036 = vpack.c.b16 %v685, %v683
  %v3037 = vpack.c.b16 %v2529, %v2527
  %v3038 = vpack.c.b16 %v2530, %v2528
  %v3039 = vpack.c.b16 %v687, %v685
  %v3040 = vpack.c.b16 %v2531, %v2529
  %v3041 = vpack.c.b16 %v2532, %v2530
  %v3042 = vpack.c.b16 %v689, %v687
  %v3043 = vpack.c.b16 %v2533, %v2531
  %v3044 = vpack.c.b16 %v2534, %v2532
  %v3045 = vpack.c.b16 %v691, %v689
  %v3046 = vpack.c.b16 %v2535, %v2533
  %v3047 = vpack.c.b16 %v2536, %v2534
  %v3048 = vpack.c.b16 %v2047, %v691
  %v3049 = vpack.c.b16 %v2537, %v2535
  %v3050 = vpack.c.b16 %v2538, %v2536
  %v3051 = vpack.c.b16 %v2255, %v2047
  %v3052 = vpack.c.b16 %v2539, %v2537
  %v3053 = vpack.c.b16 %v2540, %v2538
  %v3054 = vpack.c.b16 %v695, %v693
  %v3055 = vpack.c.b16 %v2543, %v2541
  %v3056 = vpack.c.b16 %v2544, %v2542
  %v3057 = vpack.c.b16 %v697, %v695
  %v3058 = vpack.c.b16 %v2545, %v2543
  %v3059 = vpack.c.b16 %v2546, %v2544
  %v3060 = vpack.c.b16 %v699, %v697
  %v3061 = vpack.c.b16 %v2547, %v2545
  %v3062 = vpack.c.b16 %v2548, %v2546
  %v3063 = vpack.c.b16 %v701, %v699
  %v3064 = vpack.c.b16 %v2549, %v2547
  %v3065 = vpack.c.b16 %v2550, %v2548
  %v3066 = vpack.c.b16 %v703, %v701
  %v3067 = vpack.c.b16 %v2551, %v2549
  %v3068 = vpack.c.b16 %v2552, %v2550
  %v3069 = vpack.c.b16 %v705, %v703
  %v3070 = vpack.c.b16 %v2553, %v2551
  %v3071 = vpack.c.b16 %v2554, %v2552
  %v3072 = vpack.c.b16 %v707, %v705
  %v3073 = vpack.c.b16 %v2555, %v2553
  %v3074 = vpack.c.b16 %v2556, %v2554
  %v3075 = vpack.c.b16 %v2049, %v707
  %v3076 = vpack.c.b16 %v2557, %v2555
  %v3077 = vpack.c.b16 %v2558, %v2556
  %v3078 = vpack.c.b16 %v2257, %v2049
  %v3079 = vpack.c.b16 %v2559, %v2557
  %v3080 = vpack.c.b16 %v2560, %v2558
  %v3081 = vpack.c.b16 %v711, %v709
  %v3082 = vpack.c.b16 %v2563, %v2561
  %v3083 = vpack.c.b16 %v2564, %v2562
  %v3084 = vpack.c.b16 %v713, %v711
  %v3085 = vpack.c.b16 %v2565, %v2563
  %v3086 = vpack.c.b16 %v2566, %v2564
  %v3087 = vpack.c.b16 %v715, %v713
  %v3088 = vpack.c.b16 %v2567, %v2565
  %v3089 = vpack.c.b16 %v2568, %v2566
  %v3090 = vpack.c.b16 %v717, %v715
  %v3091 = vpack.c.b16 %v2569, %v2567
  %v3092 = vpack.c.b16 %v2570, %v2568
  %v3093 = vpack.c.b16 %v719, %v717
  %v3094 = vpack.c.b16 %v2571, %v2569
  %v3095 = vpack.c.b16 %v2572, %v2570
  %v3096 = vpack.c.b16 %v721, %v719
  %v3097 = vpack.c.b16 %v2573, %v2571
  %v3098 = vpack.c.b16 %v2574, %v2572
  %v3099 = vpack.c.b16 %v723, %v721
  %v3100 = vpack.c.b16 %v2575, %v2573
  %v3101 = vpack.c.b16 %v2576, %v2574
  %v3102 = vpack.c.b16 %v2051, %v723
  %v3103 = vpack.c.b16 %v2577, %v2575
  %v3104 = vpack.c.b16 %v2578, %v2576
  %v3105 = vpack.c.b16 %v2259, %v2051
  %v3106 = vpack.c.b16 %v2579, %v2577
  %v3107 = vpack.c.b16 %v2580, %v2578
  %v3108 = vpack.c.b16 %v727, %v725
  %v3109 = vpack.c.b16 %v2583, %v2581
  %v3110 = vpack.c.b16 %v2584, %v2582
  %v3111 = vpack.c.b16 %v729, %v727
  %v3112 = vpack.c.b16 %v2585, %v2583
  %v3113 = vpack.c.b16 %v2586, %v2584
  %v3114 = vpack.c.b16 %v731, %v729
  %v3115 = vpack.c.b16 %v2587, %v2585
  %v3116 = vpack.c.b16 %v2588, %v2586
  %v3117 = vpack.c.b16 %v733, %v731
  %v3118 = vpack.c.b16 %v2589, %v2587
  %v3119 = vpack.c.b16 %v2590, %v2588
  %v3120 = vpack.c.b16 %v735, %v733
  %v3121 = vpack.c.b16 %v2591, %v2589
  %v3122 = vpack.c.b16 %v2592, %v2590
  %v3123 = vpack.c.b16 %v737, %v735
  %v3124 = vpack.c.b16 %v2593, %v2591
  %v3125 = vpack.c.b16 %v2594, %v2592
  %v3126 = vpack.c.b16 %v739, %v737
  %v3127 = vpack.c.b16 %v2595, %v2593
  %v3128 = vpack.c.b16 %v2596, %v2594
  %v3129 = vpack.c.b16 %v2053, %v739
  %v3130 = vpack.c.b16 %v2597, %v2595
  %v3131 = vpack.c.b16 %v2598, %v2596
  %v3132 = vpack.c.b16 %v2261, %v2053
  %v3133 = vpack.c.b16 %v2599, %v2597
  %v3134 = vpack.c.b16 %v2600, %v2598
  %v3135 = vpack.c.b16 %v743, %v741
  %v3136 = vpack.c.b16 %v2603, %v2601
  %v3137 = vpack.c.b16 %v2604, %v2602
  %v3138 = vpack.c.b16 %v745, %v743
  %v3139 = vpack.c.b16 %v2605, %v2603
  %v3140 = vpack.c.b16 %v2606, %v2604
  %v3141 = vpack.c.b16 %v747, %v745
  %v3142 = vpack.c.b16 %v2607, %v2605
  %v3143 = vpack.c.b16 %v2608, %v2606
  %v3144 = vpack.c.b16 %v749, %v747
  %v3145 = vpack.c.b16 %v2609, %v2607
  %v3146 = vpack.c.b16 %v2610, %v2608
  %v3147 = vpack.c.b16 %v751, %v749
  %v3148 = vpack.c.b16 %v2611, %v2609
  %v3149 = vpack.c.b16 %v2612, %v2610
  %v3150 = vpack.c.b16 %v753, %v751
  %v3151 = vpack.c.b16 %v2613, %v2611
  %v3152 = vpack.c.b16 %v2614, %v2612
  %v3153 = vpack.c.b16 %v755, %v753
  %v3154 = vpack.c.b16 %v2615, %v2613
  %v3155 = vpack.c.b16 %v2616, %v2614
  %v3156 = vpack.c.b16 %v2055, %v755
  %v3157 = vpack.c.b16 %v2617, %v2615
  %v3158 = vpack.c.b16 %v2618, %v2616
  %v3159 = vpack.c.b16 %v2263, %v2055
  %v3160 = vpack.c.b16 %v2619, %v2617
  %v3161 = vpack.c.b16 %v2620, %v2618
  %v3162 = vpack.c.b16 %v759, %v757
  %v3163 = vpack.c.b16 %v2623, %v2621
  %v3164 = vpack.c.b16 %v2624, %v2622
  %v3165 = vpack.c.b16 %v761, %v759
  %v3166 = vpack.c.b16 %v2625, %v2623
  %v3167 = vpack.c.b16 %v2626, %v2624
  %v3168 = vpack.c.b16 %v763, %v761
  %v3169 = vpack.c.b16 %v2627, %v2625
  %v3170 = vpack.c.b16 %v2628, %v2626
  %v3171 = vpack.c.b16 %v765, %v763
  %v3172 = vpack.c.b16 %v2629, %v2627
  %v3173 = vpack.c.b16 %v2630, %v2628
  %v3174 = vpack.c.b16 %v767, %v765
  %v3175 = vpack.c.b16 %v2631, %v2629
  %v3176 = vpack.c.b16 %v2632, %v2630
  %v3177 = vpack.c.b16 %v769, %v767
  %v3178 = vpack.c.b16 %v2633, %v2631
  %v3179 = vpack.c.b16 %v2634, %v2632
  %v3180 = vpack.c.b16 %v771, %v769
  %v3181 = vpack.c.b16 %v2635, %v2633
  %v3182 = vpack.c.b16 %v2636, %v2634
  %v3183 = vpack.c.b16 %v2057, %v771
  %v3184 = vpack.c.b16 %v2637, %v2635
  %v3185 = vpack.c.b16 %v2638, %v2636
  %v3186 = vpack.c.b16 %v2265, %v2057
  %v3187 = vpack.c.b16 %v2639, %v2637
  %v3188 = vpack.c.b16 %v2640, %v2638
  %v3189 = vpack.c.b16 %v775, %v773
  %v3190 = vpack.c.b16 %v2643, %v2641
  %v3191 = vpack.c.b16 %v2644, %v2642
  %v3192 = vpack.c.b16 %v777, %v775
  %v3193 = vpack.c.b16 %v2645, %v2643
  %v3194 = vpack.c.b16 %v2646, %v2644
  %v3195 = vpack.c.b16 %v779, %v777
  %v3196 = vpack.c.b16 %v2647, %v2645
  %v3197 = vpack.c.b16 %v2648, %v2646
  %v3198 = vpack.c.b16 %v781, %v779
  %v3199 = vpack.c.b16 %v2649, %v2647
  %v3200 = vpack.c.b16 %v2650, %v2648
  %v3201 = vpack.c.b16 %v783, %v781
  %v3202 = vpack.c.b16 %v2651, %v2649
  %v3203 = vpack.c.b16 %v2652, %v2650
  %v3204 = vpack.c.b16 %v785, %v783
  %v3205 = vpack.c.b16 %v2653, %v2651
  %v3206 = vpack.c.b16 %v2654, %v2652
  %v3207 = vpack.c.b16 %v787, %v785
  %v3208 = vpack.c.b16 %v2655, %v2653
  %v3209 = vpack.c.b16 %v2656, %v2654
  %v3210 = vpack.c.b16 %v2059, %v787
  %v3211 = vpack.c.b16 %v2657, %v2655
  %v3212 = vpack.c.b16 %v2658, %v2656
  %v3213 = vpack.c.b16 %v2267, %v2059
  %v3214 = vpack.c.b16 %v2659, %v2657
  %v3215 = vpack.c.b16 %v2660, %v2658
  %v3216 = vpack.c.b16 %v791, %v789
  %v3217 = vpack.c.b16 %v2663, %v2661
  %v3218 = vpack.c.b16 %v2664, %v2662
  %v3219 = vpack.c.b16 %v793, %v791
  %v3220 = vpack.c.b16 %v2665, %v2663
  %v3221 = vpack.c.b16 %v2666, %v2664
  %v3222 = vpack.c.b16 %v795, %v793
  %v3223 = vpack.c.b16 %v2667, %v2665
  %v3224 = vpack.c.b16 %v2668, %v2666
  %v3225 = vpack.c.b16 %v797, %v795
  %v3226 = vpack.c.b16 %v2669, %v2667
  %v3227 = vpack.c.b16 %v2670, %v2668
  %v3228 = vpack.c.b16 %v799, %v797
  %v3229 = vpack.c.b16 %v2671, %v2669
  %v3230 = vpack.c.b16 %v2672, %v2670
  %v3231 = vpack.c.b16 %v801, %v799
  %v3232 = vpack.c.b16 %v2673, %v2671
  %v3233 = vpack.c.b16 %v2674, %v2672
  %v3234 = vpack.c.b16 %v803, %v801
  %v3235 = vpack.c.b16 %v2675, %v2673
  %v3236 = vpack.c.b16 %v2676, %v2674
  %v3237 = vpack.c.b16 %v2061, %v803
  %v3238 = vpack.c.b16 %v2677, %v2675
  %v3239 = vpack.c.b16 %v2678, %v2676
  %v3240 = vpack.c.b16 %v2269, %v2061
  %v3241 = vpack.c.b16 %v2679, %v2677
  %v3242 = vpack.c.b16 %v2680, %v2678
  %v3243 = vpack.c.b16 %v807, %v805
  %v3244 = vpack.c.b16 %v2683, %v2681
  %v3245 = vpack.c.b16 %v2684, %v2682
  %v3246 = vpack.c.b16 %v809, %v807
  %v3247 = vpack.c.b16 %v2685, %v2683
  %v3248 = vpack.c.b16 %v2686, %v2684
  %v3249 = vpack.c.b16 %v811, %v809
  %v3250 = vpack.c.b16 %v2687, %v2685
  %v3251 = vpack.c.b16 %v2688, %v2686
  %v3252 = vpack.c.b16 %v813, %v811
  %v3253 = vpack.c.b16 %v2689, %v2687
  %v3254 = vpack.c.b16 %v2690, %v2688
  %v3255 = vpack.c.b16 %v815, %v813
  %v3256 = vpack.c.b16 %v2691, %v2689
  %v3257 = vpack.c.b16 %v2692, %v2690
  %v3258 = vpack.c.b16 %v817, %v815
  %v3259 = vpack.c.b16 %v2693, %v2691
  %v3260 = vpack.c.b16 %v2694, %v2692
  %v3261 = vpack.c.b16 %v819, %v817
  %v3262 = vpack.c.b16 %v2695, %v2693
  %v3263 = vpack.c.b16 %v2696, %v2694
  %v3264 = vpack.c.b16 %v2063, %v819
  %v3265 = vpack.c.b16 %v2697, %v2695
  %v3266 = vpack.c.b16 %v2698, %v2696
  %v3267 = vpack.c.b16 %v2271, %v2063
  %v3268 = vpack.c.b16 %v2699, %v2697
  %v3269 = vpack.c.b16 %v2700, %v2698
  %v3270 = vpack.c.b16 %v823, %v821
  %v3271 = vpack.c.b16 %v2703, %v2701
  %v3272 = vpack.c.b16 %v2704, %v2702
  %v3273 = vpack.c.b16 %v825, %v823
  %v3274 = vpack.c.b16 %v2705, %v2703
  %v3275 = vpack.c.b16 %v2706, %v2704
  %v3276 = vpack.c.b16 %v827, %v825
  %v3277 = vpack.c.b16 %v2707, %v2705
  %v3278 = vpack.c.b16 %v2708, %v2706
  %v3279 = vpack.c.b16 %v829, %v827
  %v3280 = vpack.c.b16 %v2709, %v2707
  %v3281 = vpack.c.b16 %v2710, %v2708
  %v3282 = vpack.c.b16 %v831, %v829
  %v3283 = vpack.c.b16 %v2711, %v2709
  %v3284 = vpack.c.b16 %v2712, %v2710
  %v3285 = vpack.c.b16 %v833, %v831
  %v3286 = vpack.c.b16 %v2713, %v2711
  %v3287 = vpack.c.b16 %v2714, %v2712
  %v3288 = vpack.c.b16 %v835, %v833
  %v3289 = vpack.c.b16 %v2715, %v2713
  %v3290 = vpack.c.b16 %v2716, %v2714
  %v3291 = vpack.c.b16 %v2065, %v835
  %v3292 = vpack.c.b16 %v2717, %v2715
  %v3293 = vpack.c.b16 %v2718, %v2716
  %v3294 = vpack.c.b16 %v2273, %v2065
  %v3295 = vpack.c.b16 %v2719, %v2717
  %v3296 = vpack.c.b16 %v2720, %v2718
  %v3297 = vpack.c.b16 %v839, %v837
  %v3298 = vpack.c.b16 %v2723, %v2721
  %v3299 = vpack.c.b16 %v2724, %v2722
  %v3300 = vpack.c.b16 %v841, %v839
  %v3301 = vpack.c.b16 %v2725, %v2723
  %v3302 = vpack.c.b16 %v2726, %v2724
  %v3303 = vpack.c.b16 %v843, %v841
  %v3304 = vpack.c.b16 %v2727, %v2725
  %v3305 = vpack.c.b16 %v2728, %v2726
  %v3306 = vpack.c.b16 %v845, %v843
  %v3307 = vpack.c.b16 %v2729, %v2727
  %v3308 = vpack.c.b16 %v2730, %v2728
  %v3309 = vpack.c.b16 %v847, %v845
  %v3310 = vpack.c.b16 %v2731, %v2729
  %v3311 = vpack.c.b16 %v2732, %v2730
  %v3312 = vpack.c.b16 %v849, %v847
  %v3313 = vpack.c.b16 %v2733, %v2731
  %v3314 = vpack.c.b16 %v2734, %v2732
  %v3315 = vpack.c.b16 %v851, %v849
  %v3316 = vpack.c.b16 %v2735, %v2733
  %v3317 = vpack.c.b16 %v2736, %v2734
  %v3318 = vpack.c.b16 %v2067, %v851
  %v3319 = vpack.c.b16 %v2737, %v2735
  %v3320 = vpack.c.b16 %v2738, %v2736
  %v3321 = vpack.c.b16 %v2275, %v2067
  %v3322 = vpack.c.b16 %v2739, %v2737
  %v3323 = vpack.c.b16 %v2740, %v2738
  %v3900 = vunpack.c.l.b16 %v2741
  %v3901 = vunpack.c.l.b16 %v2742
  %v3902 = vunpack.c.l.b16 %v2743
  %v3903 = vunpack.c.l.b16 %v2744
  %v3904 = vunpack.c.l.b16 %v2745
  %v3905 = vunpack.c.l.b16 %v2746
  %v3906 = vunpack.c.l.b16 %v2747
  %v3907 = vunpack.c.l.b16 %v2748
  %v3908 = vunpack.c.l.b16 %v2749
  %v3909 = vunpack.c.l.b16 %v2750
  %v3910 = vunpack.c.l.b16 %v2751
  %v3911 = vunpack.c.l.b16 %v2752
  %v3912 = vunpack.c.l.b16 %v2753
  %v3913 = vunpack.c.l.b16 %v2754
  %v3914 = vunpack.c.l.b16 %v2755
  %v3915 = vunpack.c.l.b16 %v2756
  %v3916 = vunpack.c.l.b16 %v2757
  %v3917 = vunpack.c.l.b16 %v2758
  %v3918 = vunpack.c.l.b16 %v2759
  %v3919 = vunpack.c.l.b16 %v2760
  %v3920 = vunpack.c.l.b16 %v2761
  %v3921 = vunpack.c.l.b16 %v2762
  %v3922 = vunpack.c.l.b16 %v2763
  %v3923 = vunpack.c.l.b16 %v2764
  %v3924 = vunpack.c.l.b16 %v2765
  %v3925 = vunpack.c.l.b16 %v2766
  %v3926 = vunpack.c.l.b16 %v2767
  %v3927 = vunpack.c.l.b16 %v2768
  %v3928 = vunpack.c.l.b16 %v2769
  %v3929 = vunpack.c.l.b16 %v2770
  %v3930 = vunpack.c.l.b16 %v2771
  %v3931 = vunpack.c.l.b16 %v2772
  %v3932 = vunpack.c.l.b16 %v2773
  %v3933 = vunpack.c.l.b16 %v2774
  %v3934 = vunpack.c.l.b16 %v2775
  %v3935 = vunpack.c.l.b16 %v2776
  %v3936 = vunpack.c.l.b16 %v2777
  %v3937 = vunpack.c.l.b16 %v2778
  %v3938 = vunpack.c.l.b16 %v2779
  %v3939 = vunpack.c.l.b16 %v2780
  %v3940 = vunpack.c.l.b16 %v2781
  %v3941 = vunpack.c.l.b16 %v2782
  %v3942 = vunpack.c.l.b16 %v2783
  %v3943 = vunpack.c.l.b16 %v2784
  %v3944 = vunpack.c.l.b16 %v2785
  %v3945 = vunpack.c.l.b16 %v2786
  %v3946 = vunpack.c.l.b16 %v2787
  %v3947 = vunpack.c.l.b16 %v2788
  %v3948 = vunpack.c.l.b16 %v2789
  %v3949 = vunpack.c.l.b16 %v2790
  %v3950 = vunpack.c.l.b16 %v2791
  %v3951 = vunpack.c.l.b16 %v2792
  %v3952 = vunpack.c.l.b16 %v2793
  %v3953 = vunpack.c.l.b16 %v2794
  %v3954 = vunpack.c.l.b16 %v2795
  %v3955 = vunpack.c.l.b16 %v2796
  %v3956 = vunpack.c.l.b16 %v2797
  %v3957 = vunpack.c.l.b16 %v2798
  %v3958 = vunpack.c.l.b16 %v2799
  %v3959 = vunpack.c.l.b16 %v2800
  %v3960 = vunpack.c.l.b16 %v2801
  %v3961 = vunpack.c.l.b16 %v2802
  %v3962 = vunpack.c.l.b16 %v2803
  %v3963 = vunpack.c.l.b16 %v2804
  %v3964 = vunpack.c.l.b16 %v2805
  %v3965 = vunpack.c.l.b16 %v2806
  %v3966 = vunpack.c.l.b16 %v2807
  %v3967 = vunpack.c.l.b16 %v2808
  %v3968 = vunpack.c.l.b16 %v2809
  %v3969 = vunpack.c.l.b16 %v2810
  %v3970 = vunpack.c.l.b16 %v2811
  %v3971 = vunpack.c.l.b16 %v2812
  %v3972 = vunpack.c.l.b16 %v2813
  %v3973 = vunpack.c.l.b16 %v2814
  %v3974 = vunpack.c.l.b16 %v2815
  %v3975 = vunpack.c.l.b16 %v2816
  %v3976 = vunpack.c.l.b16 %v2817
  %v3977 = vunpack.c.l.b16 %v2818
  %v3978 = vunpack.c.l.b16 %v2819
  %v3979 = vunpack.c.l.b16 %v2820
  %v3980 = vunpack.c.l.b16 %v2821
  %v3981 = vunpack.c.l.b16 %v2822
  %v3982 = vunpack.c.l.b16 %v2823
  %v3983 = vunpack.c.l.b16 %v2824
  %v3984 = vunpack.c.l.b16 %v2825
  %v3985 = vunpack.c.l.b16 %v2826
  %v3986 = vunpack.c.l.b16 %v2827
  %v3987 = vunpack.c.l.b16 %v2828
  %v3988 = vunpack.c.l.b16 %v2829
  %v3989 = vunpack.c.l.b16 %v2830
  %v3990 = vunpack.c.l.b16 %v2831
  %v3991 = vunpack.c.l.b16 %v2832
  %v3992 = vunpack.c.l.b16 %v2833
  %v3993 = vunpack.c.l.b16 %v2834
  %v3994 = vunpack.c.l.b16 %v2835
  %v3995 = vunpack.c.l.b16 %v2836
  %v3996 = vunpack.c.l.b16 %v2837
  %v3997 = vunpack.c.l.b16 %v2838
  %v3998 = vunpack.c.l.b16 %v2839
  %v3999 = vunpack.c.l.b16 %v2840
  %v4000 = vunpack.c.l.b16 %v2841
  %v4001 = vunpack.c.l.b16 %v2842
  %v4002 = vunpack.c.l.b16 %v2843
  %v4003 = vunpack.c.l.b16 %v2844
  %v4004 = vunpack.c.l.b16 %v2845
  %v4005 = vunpack.c.l.b16 %v2846
  %v4006 = vunpack.c.l.b16 %v2847
  %v4007 = vunpack.c.l.b16 %v2848
  %v4008 = vunpack.c.l.b16 %v2849
  %v4009 = vunpack.c.l.b16 %v2850
  %v4010 = vunpack.c.l.b16 %v2851
  %v4011 = vunpack.c.l.b16 %v2852
  %v4012 = vunpack.c.l.b16 %v2853
  %v4013 = vunpack.c.l.b16 %v2854
  %v4014 = vunpack.c.l.b16 %v2855
  %v4015 = vunpack.c.l.b16 %v2856
  %v4016 = vunpack.c.l.b16 %v2857
  %v4017 = vunpack.c.l.b16 %v2858
  %v4018 = vunpack.c.l.b16 %v2859
  %v4019 = vunpack.c.l.b16 %v2860
  %v4020 = vunpack.c.l.b16 %v2861
  %v4021 = vunpack.c.l.b16 %v2862
  %v4022 = vunpack.c.l.b16 %v2863
  %v4023 = vunpack.c.l.b16 %v2864
  %v4024 = vunpack.c.l.b16 %v2865
  %v4025 = vunpack.c.l.b16 %v2866
  %v4026 = vunpack.c.l.b16 %v2867
  %v4027 = vunpack.c.l.b16 %v2868
  %v4028 = vunpack.c.l.b16 %v2869
  %v4029 = vunpack.c.l.b16 %v2870
  %v4030 = vunpack.c.l.b16 %v2871
  %v4031 = vunpack.c.l.b16 %v2872
  %v4032 = vunpack.c.l.b16 %v2873
  %v4033 = vunpack.c.l.b16 %v2874
  %v4034 = vunpack.c.l.b16 %v2875
  %v4035 = vunpack.c.l.b16 %v2876
  %v4036 = vunpack.c.l.b16 %v2877
  %v4037 = vunpack.c.l.b16 %v2878
  %v4038 = vunpack.c.l.b16 %v2879
  %v4039 = vunpack.c.l.b16 %v2880
  %v4040 = vunpack.c.l.b16 %v2881
  %v4041 = vunpack.c.l.b16 %v2882
  %v4042 = vunpack.c.l.b16 %v2883
  %v4043 = vunpack.c.l.b16 %v2884
  %v4044 = vpack.c.b16 %v3901, %v3900
  %v4045 = vpack.c.b16 %v3903, %v3902
  %v4046 = vpack.c.b16 %v3905, %v3904
  %v4047 = vpack.c.b16 %v3907, %v3906
  %v4048 = vpack.c.b16 %v3909, %v3908
  %v4049 = vpack.c.b16 %v3911, %v3910
  %v4050 = vpack.c.b16 %v3913, %v3912
  %v4051 = vpack.c.b16 %v3915, %v3914
  %v4052 = vpack.c.b16 %v3917, %v3916
  %v4053 = vpack.c.b16 %v3919, %v3918
  %v4054 = vpack.c.b16 %v3921, %v3920
  %v4055 = vpack.c.b16 %v3923, %v3922
  %v4056 = vpack.c.b16 %v3925, %v3924
  %v4057 = vpack.c.b16 %v3927, %v3926
  %v4058 = vpack.c.b16 %v3929, %v3928
  %v4059 = vpack.c.b16 %v3931, %v3930
  %v4060 = vpack.c.b16 %v3933, %v3932
  %v4061 = vpack.c.b16 %v3935, %v3934
  %v4062 = vpack.c.b16 %v3937, %v3936
  %v4063 = vpack.c.b16 %v3939, %v3938
  %v4064 = vpack.c.b16 %v3941, %v3940
  %v4065 = vpack.c.b16 %v3943, %v3942
  %v4066 = vpack.c.b16 %v3945, %v3944
  %v4067 = vpack.c.b16 %v3947, %v3946
  %v4068 = vpack.c.b16 %v3949, %v3948
  %v4069 = vpack.c.b16 %v3951, %v3950
  %v4070 = vpack.c.b16 %v3953, %v3952
  %v4071 = vpack.c.b16 %v3955, %v3954
  %v4072 = vpack.c.b16 %v3957, %v3956
  %v4073 = vpack.c.b16 %v3959, %v3958
  %v4074 = vpack.c.b16 %v3961, %v3960
  %v4075 = vpack.c.b16 %v3963, %v3962
  %v4076 = vpack.c.b16 %v3965, %v3964
  %v4077 = vpack.c.b16 %v3967, %v3966
  %v4078 = vpack.c.b16 %v3969, %v3968
  %v4079 = vpack.c.b16 %v3971, %v3970
  %v4080 = vpack.c.b16 %v3973, %v3972
  %v4081 = vpack.c.b16 %v3975, %v3974
  %v4082 = vpack.c.b16 %v3977, %v3976
  %v4083 = vpack.c.b16 %v3979, %v3978
  %v4084 = vpack.c.b16 %v3981, %v3980
  %v4085 = vpack.c.b16 %v3983, %v3982
  %v4086 = vpack.c.b16 %v3985, %v3984
  %v4087 = vpack.c.b16 %v3987, %v3986
  %v4088 = vpack.c.b16 %v3989, %v3988
  %v4089 = vpack.c.b16 %v3991, %v3990
  %v4090 = vpack.c.b16 %v3993, %v3992
  %v4091 = vpack.c.b16 %v3995, %v3994
  %v4092 = vpack.c.b16 %v3997, %v3996
  %v4093 = vpack.c.b16 %v3999, %v3998
  %v4094 = vpack.c.b16 %v4001, %v4000
  %v4095 = vpack.c.b16 %v4003, %v4002
  %v4096 = vpack.c.b16 %v4005, %v4004
  %v4097 = vpack.c.b16 %v4007, %v4006
  %v4098 = vpack.c.b16 %v4009, %v4008
  %v4099 = vpack.c.b16 %v4011, %v4010
  %v4100 = vpack.c.b16 %v4013, %v4012
  %v4101 = vpack.c.b16 %v4015, %v4014
  %v4102 = vpack.c.b16 %v4017, %v4016
  %v4103 = vpack.c.b16 %v4019, %v4018
  %v4104 = vpack.c.b16 %v4021, %v4020
  %v4105 = vpack.c.b16 %v4023, %v4022
  %v4106 = vpack.c.b16 %v4025, %v4024
  %v4107 = vpack.c.b16 %v4027, %v4026
  %v4108 = vpack.c.b16 %v4029, %v4028
  %v4109 = vpack.c.b16 %v4031, %v4030
  %v4110 = vpack.c.b16 %v4033, %v4032
  %v4111 = vpack.c.b16 %v4035, %v4034
  %v4112 = vpack.c.b16 %v4037, %v4036
  %v4113 = vpack.c.b16 %v4039, %v4038
  %v4114 = vpack.c.b16 %v4041, %v4040
  %v4115 = vpack.c.b16 %v4043, %v4042
  %4188 = vmatprep.subr.bf16.mxu0 0
  %4189 = vmatpush1.bf16.msra.mxu0 %v4051
  %4190 = vmatprep.subr.bf16.mxu0 0
  %4191 = vmatpush1.bf16.msra.mxu0 %v4050
  %4192 = vmatprep.subr.bf16.mxu0 0
  %4193 = vmatpush1.bf16.msra.mxu0 %v4049
  %4194 = vmatprep.subr.bf16.mxu0 0
  %4195 = vmatpush1.bf16.msra.mxu0 %v4048
  %4196 = vmatprep.subr.bf16.mxu0 0
  %4197 = vmatpush1.bf16.msra.mxu0 %v4047
  %4198 = vmatprep.subr.bf16.mxu0 0
  %4199 = vmatpush1.bf16.msra.mxu0 %v4046
  %4200 = vmatprep.subr.bf16.mxu0 0
  %4201 = vmatpush1.bf16.msra.mxu0 %v4045
  %4202 = vmatprep.subr.bf16.mxu0 0
  %4203 = vmatpush1.bf16.msra.mxu0 %v4044
  %4204 = vmatprep.subr.bf16.mxu0 0
  %4205 = vmatpush2.bf16.msra.mxu0 %v4059
  %4206 = vmatprep.subr.bf16.mxu0 0
  %4207 = vmatpush2.bf16.msra.mxu0 %v4058
  %4208 = vmatprep.subr.bf16.mxu0 0
  %4209 = vmatpush2.bf16.msra.mxu0 %v4057
  %4210 = vmatprep.subr.bf16.mxu0 0
  %4211 = vmatpush2.bf16.msra.mxu0 %v4056
  %4212 = vmatprep.subr.bf16.mxu0 0
  %4213 = vmatpush2.bf16.msra.mxu0 %v4055
  %4214 = vmatprep.subr.bf16.mxu0 0
  %4215 = vmatpush2.bf16.msra.mxu0 %v4054
  %4216 = vmatprep.subr.bf16.mxu0 0
  %4217 = vmatpush2.bf16.msra.mxu0 %v4053
  %4218 = vmatprep.subr.bf16.mxu0 0
  %4219 = vmatpush2.bf16.msra.mxu0 %v4052
  %4220 = vmatprep.mubr.bf16.mxu0 %v2893
  %4221 = vmatmul.mubr.bf16.gmra.mxu0 %v2892
  %v4222 = vpop.f32.mrf.mxu0
  %v4223 = vadd.f32 %v2890, %v4222
  %v4224 = vpop.f32.mrf.mxu0
  %v4225 = vpop.f32.mrf.mxu0
  %v4226 = vadd.f32 %v2890, %v4225
  %v4227 = vpop.f32.mrf.mxu0
  %4228 = vmatprep.mubr.bf16.mxu0 %v2899
  %4229 = vmatmul.mubr.bf16.gmra.mxu0 %v2898
  %v4230 = vpop.f32.mrf.mxu0
  %v4231 = vadd.f32 %v2890, %v4230
  %v4232 = vpop.f32.mrf.mxu0
  %v4233 = vpop.f32.mrf.mxu0
  %v4234 = vadd.f32 %v2890, %v4233
  %v4235 = vpop.f32.mrf.mxu0
  %4236 = vmatprep.mubr.bf16.mxu0 %v2905
  %4237 = vmatmul.mubr.bf16.gmra.mxu0 %v2904
  %v4238 = vpop.f32.mrf.mxu0
  %v4239 = vadd.f32 %v2890, %v4238
  %v4240 = vpop.f32.mrf.mxu0
  %v4241 = vpop.f32.mrf.mxu0
  %v4242 = vadd.f32 %v2890, %v4241
  %v4243 = vpop.f32.mrf.mxu0
  %4244 = vmatprep.mubr.bf16.mxu0 %v2911
  %4245 = vmatmul.mubr.bf16.gmra.mxu0 %v2910
  %v4246 = vpop.f32.mrf.mxu0
  %v4247 = vadd.f32 %v2890, %v4246
  %v4248 = vpop.f32.mrf.mxu0
  %v4249 = vpop.f32.mrf.mxu0
  %v4250 = vadd.f32 %v2890, %v4249
  %v4251 = vpop.f32.mrf.mxu0
  %4252 = vmatprep.mubr.bf16.mxu0 %v2920
  %4253 = vmatmul.mubr.bf16.gmra.mxu0 %v2919
  %v4254 = vpop.f32.mrf.mxu0
  %v4255 = vadd.f32 %v2890, %v4254
  %v4256 = vpop.f32.mrf.mxu0
  %v4257 = vpop.f32.mrf.mxu0
  %v4258 = vadd.f32 %v2890, %v4257
  %v4259 = vpop.f32.mrf.mxu0
  %4260 = vmatprep.mubr.bf16.mxu0 %v2926
  %4261 = vmatmul.mubr.bf16.gmra.mxu0 %v2925
  %v4262 = vpop.f32.mrf.mxu0
  %v4263 = vadd.f32 %v2890, %v4262
  %v4264 = vpop.f32.mrf.mxu0
  %v4265 = vpop.f32.mrf.mxu0
  %v4266 = vadd.f32 %v2890, %v4265
  %v4267 = vpop.f32.mrf.mxu0
  %4268 = vmatprep.mubr.bf16.mxu0 %v2932
  %4269 = vmatmul.mubr.bf16.gmra.mxu0 %v2931
  %v4270 = vpop.f32.mrf.mxu0
  %v4271 = vadd.f32 %v2890, %v4270
  %v4272 = vpop.f32.mrf.mxu0
  %v4273 = vpop.f32.mrf.mxu0
  %v4274 = vadd.f32 %v2890, %v4273
  %v4275 = vpop.f32.mrf.mxu0
  %4276 = vmatprep.mubr.bf16.mxu0 %v2938
  %4277 = vmatmul.mubr.bf16.gmra.mxu0 %v2937
  %v4278 = vpop.f32.mrf.mxu0
  %v4279 = vadd.f32 %v2890, %v4278
  %v4280 = vpop.f32.mrf.mxu0
  %v4281 = vpop.f32.mrf.mxu0
  %v4282 = vadd.f32 %v2890, %v4281
  %v4283 = vpop.f32.mrf.mxu0
  %4284 = vmatprep.mubr.bf16.mxu0 %v2947
  %4285 = vmatmul.mubr.bf16.gmra.mxu0 %v2946
  %v4286 = vpop.f32.mrf.mxu0
  %v4287 = vadd.f32 %v2890, %v4286
  %v4288 = vpop.f32.mrf.mxu0
  %v4289 = vpop.f32.mrf.mxu0
  %v4290 = vadd.f32 %v2890, %v4289
  %v4291 = vpop.f32.mrf.mxu0
  %4292 = vmatprep.mubr.bf16.mxu0 %v2953
  %4293 = vmatmul.mubr.bf16.gmra.mxu0 %v2952
  %v4294 = vpop.f32.mrf.mxu0
  %v4295 = vadd.f32 %v2890, %v4294
  %v4296 = vpop.f32.mrf.mxu0
  %v4297 = vpop.f32.mrf.mxu0
  %v4298 = vadd.f32 %v2890, %v4297
  %v4299 = vpop.f32.mrf.mxu0
  %4300 = vmatprep.mubr.bf16.mxu0 %v2959
  %4301 = vmatmul.mubr.bf16.gmra.mxu0 %v2958
  %v4302 = vpop.f32.mrf.mxu0
  %v4303 = vadd.f32 %v2890, %v4302
  %v4304 = vpop.f32.mrf.mxu0
  %v4305 = vpop.f32.mrf.mxu0
  %v4306 = vadd.f32 %v2890, %v4305
  %v4307 = vpop.f32.mrf.mxu0
  %4308 = vmatprep.mubr.bf16.mxu0 %v2965
  %4309 = vmatmul.mubr.bf16.gmra.mxu0 %v2964
  %v4310 = vpop.f32.mrf.mxu0
  %v4311 = vadd.f32 %v2890, %v4310
  %v4312 = vpop.f32.mrf.mxu0
  %v4313 = vpop.f32.mrf.mxu0
  %v4314 = vadd.f32 %v2890, %v4313
  %v4315 = vpop.f32.mrf.mxu0
  %4316 = vmatprep.mubr.bf16.mxu0 %v2974
  %4317 = vmatmul.mubr.bf16.gmra.mxu0 %v2973
  %v4318 = vpop.f32.mrf.mxu0
  %v4319 = vadd.f32 %v2890, %v4318
  %v4320 = vpop.f32.mrf.mxu0
  %v4321 = vpop.f32.mrf.mxu0
  %v4322 = vadd.f32 %v2890, %v4321
  %v4323 = vpop.f32.mrf.mxu0
  %4324 = vmatprep.mubr.bf16.mxu0 %v2980
  %4325 = vmatmul.mubr.bf16.gmra.mxu0 %v2979
  %v4326 = vpop.f32.mrf.mxu0
  %v4327 = vadd.f32 %v2890, %v4326
  %v4328 = vpop.f32.mrf.mxu0
  %v4329 = vpop.f32.mrf.mxu0
  %v4330 = vadd.f32 %v2890, %v4329
  %v4331 = vpop.f32.mrf.mxu0
  %4332 = vmatprep.mubr.bf16.mxu0 %v2986
  %4333 = vmatmul.mubr.bf16.gmra.mxu0 %v2985
  %v4334 = vpop.f32.mrf.mxu0
  %v4335 = vadd.f32 %v2890, %v4334
  %v4336 = vpop.f32.mrf.mxu0
  %v4337 = vpop.f32.mrf.mxu0
  %v4338 = vadd.f32 %v2890, %v4337
  %v4339 = vpop.f32.mrf.mxu0
  %4340 = vmatprep.mubr.bf16.mxu0 %v2992
  %4341 = vmatmul.mubr.bf16.gmra.mxu0 %v2991
  %v4342 = vpop.f32.mrf.mxu0
  %v4343 = vadd.f32 %v2890, %v4342
  %v4344 = vpop.f32.mrf.mxu0
  %v4345 = vpop.f32.mrf.mxu0
  %v4346 = vadd.f32 %v2890, %v4345
  %v4347 = vpop.f32.mrf.mxu0
  %4348 = vmatprep.mubr.bf16.mxu0 %v3001
  %4349 = vmatmul.mubr.bf16.gmra.mxu0 %v3000
  %v4350 = vpop.f32.mrf.mxu0
  %v4351 = vadd.f32 %v2890, %v4350
  %v4352 = vpop.f32.mrf.mxu0
  %v4353 = vpop.f32.mrf.mxu0
  %v4354 = vadd.f32 %v2890, %v4353
  %v4355 = vpop.f32.mrf.mxu0
  %4356 = vmatprep.mubr.bf16.mxu0 %v3007
  %4357 = vmatmul.mubr.bf16.gmra.mxu0 %v3006
  %v4358 = vpop.f32.mrf.mxu0
  %v4359 = vadd.f32 %v2890, %v4358
  %v4360 = vpop.f32.mrf.mxu0
  %v4361 = vpop.f32.mrf.mxu0
  %v4362 = vadd.f32 %v2890, %v4361
  %v4363 = vpop.f32.mrf.mxu0
  %4364 = vmatprep.mubr.bf16.mxu0 %v3013
  %4365 = vmatmul.mubr.bf16.gmra.mxu0 %v3012
  %v4366 = vpop.f32.mrf.mxu0
  %v4367 = vadd.f32 %v2890, %v4366
  %v4368 = vpop.f32.mrf.mxu0
  %v4369 = vpop.f32.mrf.mxu0
  %v4370 = vadd.f32 %v2890, %v4369
  %v4371 = vpop.f32.mrf.mxu0
  %4372 = vmatprep.mubr.bf16.mxu0 %v3019
  %4373 = vmatmul.mubr.bf16.gmra.mxu0 %v3018
  %v4374 = vpop.f32.mrf.mxu0
  %v4375 = vadd.f32 %v2890, %v4374
  %v4376 = vpop.f32.mrf.mxu0
  %v4377 = vpop.f32.mrf.mxu0
  %v4378 = vadd.f32 %v2890, %v4377
  %v4379 = vpop.f32.mrf.mxu0
  %4380 = vmatprep.mubr.bf16.mxu0 %v3028
  %4381 = vmatmul.mubr.bf16.gmra.mxu0 %v3027
  %v4382 = vpop.f32.mrf.mxu0
  %v4383 = vadd.f32 %v2890, %v4382
  %v4384 = vpop.f32.mrf.mxu0
  %v4385 = vpop.f32.mrf.mxu0
  %v4386 = vadd.f32 %v2890, %v4385
  %v4387 = vpop.f32.mrf.mxu0
  %4388 = vmatprep.mubr.bf16.mxu0 %v3034
  %4389 = vmatmul.mubr.bf16.gmra.mxu0 %v3033
  %v4390 = vpop.f32.mrf.mxu0
  %v4391 = vadd.f32 %v2890, %v4390
  %v4392 = vpop.f32.mrf.mxu0
  %v4393 = vpop.f32.mrf.mxu0
  %v4394 = vadd.f32 %v2890, %v4393
  %v4395 = vpop.f32.mrf.mxu0
  %4396 = vmatprep.mubr.bf16.mxu0 %v3040
  %4397 = vmatmul.mubr.bf16.gmra.mxu0 %v3039
  %v4398 = vpop.f32.mrf.mxu0
  %v4399 = vadd.f32 %v2890, %v4398
  %v4400 = vpop.f32.mrf.mxu0
  %v4401 = vpop.f32.mrf.mxu0
  %v4402 = vadd.f32 %v2890, %v4401
  %v4403 = vpop.f32.mrf.mxu0
  %4404 = vmatprep.mubr.bf16.mxu0 %v3046
  %4405 = vmatmul.mubr.bf16.gmra.mxu0 %v3045
  %v4406 = vpop.f32.mrf.mxu0
  %v4407 = vadd.f32 %v2890, %v4406
  %v4408 = vpop.f32.mrf.mxu0
  %v4409 = vpop.f32.mrf.mxu0
  %v4410 = vadd.f32 %v2890, %v4409
  %v4411 = vpop.f32.mrf.mxu0
  %4412 = vmatprep.mubr.bf16.mxu0 %v3055
  %4413 = vmatmul.mubr.bf16.gmra.mxu0 %v3054
  %v4414 = vpop.f32.mrf.mxu0
  %v4415 = vadd.f32 %v2890, %v4414
  %v4416 = vpop.f32.mrf.mxu0
  %v4417 = vpop.f32.mrf.mxu0
  %v4418 = vadd.f32 %v2890, %v4417
  %v4419 = vpop.f32.mrf.mxu0
  %4420 = vmatprep.mubr.bf16.mxu0 %v3061
  %4421 = vmatmul.mubr.bf16.gmra.mxu0 %v3060
  %v4422 = vpop.f32.mrf.mxu0
  %v4423 = vadd.f32 %v2890, %v4422
  %v4424 = vpop.f32.mrf.mxu0
  %v4425 = vpop.f32.mrf.mxu0
  %v4426 = vadd.f32 %v2890, %v4425
  %v4427 = vpop.f32.mrf.mxu0
  %4428 = vmatprep.mubr.bf16.mxu0 %v3067
  %4429 = vmatmul.mubr.bf16.gmra.mxu0 %v3066
  %v4430 = vpop.f32.mrf.mxu0
  %v4431 = vadd.f32 %v2890, %v4430
  %v4432 = vpop.f32.mrf.mxu0
  %v4433 = vpop.f32.mrf.mxu0
  %v4434 = vadd.f32 %v2890, %v4433
  %v4435 = vpop.f32.mrf.mxu0
  %4436 = vmatprep.mubr.bf16.mxu0 %v3073
  %4437 = vmatmul.mubr.bf16.gmra.mxu0 %v3072
  %v4438 = vpop.f32.mrf.mxu0
  %v4439 = vadd.f32 %v2890, %v4438
  %v4440 = vpop.f32.mrf.mxu0
  %v4441 = vpop.f32.mrf.mxu0
  %v4442 = vadd.f32 %v2890, %v4441
  %v4443 = vpop.f32.mrf.mxu0
  %4444 = vmatprep.mubr.bf16.mxu0 %v3082
  %4445 = vmatmul.mubr.bf16.gmra.mxu0 %v3081
  %v4446 = vpop.f32.mrf.mxu0
  %v4447 = vadd.f32 %v2890, %v4446
  %v4448 = vpop.f32.mrf.mxu0
  %v4449 = vpop.f32.mrf.mxu0
  %v4450 = vadd.f32 %v2890, %v4449
  %v4451 = vpop.f32.mrf.mxu0
  %4452 = vmatprep.mubr.bf16.mxu0 %v3088
  %4453 = vmatmul.mubr.bf16.gmra.mxu0 %v3087
  %v4454 = vpop.f32.mrf.mxu0
  %v4455 = vadd.f32 %v2890, %v4454
  %v4456 = vpop.f32.mrf.mxu0
  %v4457 = vpop.f32.mrf.mxu0
  %v4458 = vadd.f32 %v2890, %v4457
  %v4459 = vpop.f32.mrf.mxu0
  %4460 = vmatprep.mubr.bf16.mxu0 %v3094
  %4461 = vmatmul.mubr.bf16.gmra.mxu0 %v3093
  %v4462 = vpop.f32.mrf.mxu0
  %v4463 = vadd.f32 %v2890, %v4462
  %v4464 = vpop.f32.mrf.mxu0
  %v4465 = vpop.f32.mrf.mxu0
  %v4466 = vadd.f32 %v2890, %v4465
  %v4467 = vpop.f32.mrf.mxu0
  %4468 = vmatprep.mubr.bf16.mxu0 %v3100
  %4469 = vmatmul.mubr.bf16.gmra.mxu0 %v3099
  %v4470 = vpop.f32.mrf.mxu0
  %v4471 = vadd.f32 %v2890, %v4470
  %v4472 = vpop.f32.mrf.mxu0
  %v4473 = vpop.f32.mrf.mxu0
  %v4474 = vadd.f32 %v2890, %v4473
  %v4475 = vpop.f32.mrf.mxu0
  %4476 = vmatprep.mubr.bf16.mxu0 %v3109
  %4477 = vmatmul.mubr.bf16.gmra.mxu0 %v3108
  %v4478 = vpop.f32.mrf.mxu0
  %v4479 = vadd.f32 %v2890, %v4478
  %v4480 = vpop.f32.mrf.mxu0
  %v4481 = vpop.f32.mrf.mxu0
  %v4482 = vadd.f32 %v2890, %v4481
  %v4483 = vpop.f32.mrf.mxu0
  %4484 = vmatprep.mubr.bf16.mxu0 %v3115
  %4485 = vmatmul.mubr.bf16.gmra.mxu0 %v3114
  %v4486 = vpop.f32.mrf.mxu0
  %v4487 = vadd.f32 %v2890, %v4486
  %v4488 = vpop.f32.mrf.mxu0
  %v4489 = vpop.f32.mrf.mxu0
  %v4490 = vadd.f32 %v2890, %v4489
  %v4491 = vpop.f32.mrf.mxu0
  %4492 = vmatprep.mubr.bf16.mxu0 %v3121
  %4493 = vmatmul.mubr.bf16.gmra.mxu0 %v3120
  %v4494 = vpop.f32.mrf.mxu0
  %v4495 = vadd.f32 %v2890, %v4494
  %v4496 = vpop.f32.mrf.mxu0
  %v4497 = vpop.f32.mrf.mxu0
  %v4498 = vadd.f32 %v2890, %v4497
  %v4499 = vpop.f32.mrf.mxu0
  %4500 = vmatprep.mubr.bf16.mxu0 %v3127
  %4501 = vmatmul.mubr.bf16.gmra.mxu0 %v3126
  %v4502 = vpop.f32.mrf.mxu0
  %v4503 = vadd.f32 %v2890, %v4502
  %v4504 = vpop.f32.mrf.mxu0
  %v4505 = vpop.f32.mrf.mxu0
  %v4506 = vadd.f32 %v2890, %v4505
  %v4507 = vpop.f32.mrf.mxu0
  %4508 = vmatprep.mubr.bf16.mxu0 %v3136
  %4509 = vmatmul.mubr.bf16.gmra.mxu0 %v3135
  %v4510 = vpop.f32.mrf.mxu0
  %v4511 = vadd.f32 %v2890, %v4510
  %v4512 = vpop.f32.mrf.mxu0
  %v4513 = vpop.f32.mrf.mxu0
  %v4514 = vadd.f32 %v2890, %v4513
  %v4515 = vpop.f32.mrf.mxu0
  %4516 = vmatprep.mubr.bf16.mxu0 %v3142
  %4517 = vmatmul.mubr.bf16.gmra.mxu0 %v3141
  %v4518 = vpop.f32.mrf.mxu0
  %v4519 = vadd.f32 %v2890, %v4518
  %v4520 = vpop.f32.mrf.mxu0
  %v4521 = vpop.f32.mrf.mxu0
  %v4522 = vadd.f32 %v2890, %v4521
  %v4523 = vpop.f32.mrf.mxu0
  %4524 = vmatprep.mubr.bf16.mxu0 %v3148
  %4525 = vmatmul.mubr.bf16.gmra.mxu0 %v3147
  %v4526 = vpop.f32.mrf.mxu0
  %v4527 = vadd.f32 %v2890, %v4526
  %v4528 = vpop.f32.mrf.mxu0
  %v4529 = vpop.f32.mrf.mxu0
  %v4530 = vadd.f32 %v2890, %v4529
  %v4531 = vpop.f32.mrf.mxu0
  %4532 = vmatprep.mubr.bf16.mxu0 %v3154
  %4533 = vmatmul.mubr.bf16.gmra.mxu0 %v3153
  %v4534 = vpop.f32.mrf.mxu0
  %v4535 = vadd.f32 %v2890, %v4534
  %v4536 = vpop.f32.mrf.mxu0
  %v4537 = vpop.f32.mrf.mxu0
  %v4538 = vadd.f32 %v2890, %v4537
  %v4539 = vpop.f32.mrf.mxu0
  %4540 = vmatprep.mubr.bf16.mxu0 %v3163
  %4541 = vmatmul.mubr.bf16.gmra.mxu0 %v3162
  %v4542 = vpop.f32.mrf.mxu0
  %v4543 = vadd.f32 %v2890, %v4542
  %v4544 = vpop.f32.mrf.mxu0
  %v4545 = vpop.f32.mrf.mxu0
  %v4546 = vadd.f32 %v2890, %v4545
  %v4547 = vpop.f32.mrf.mxu0
  %4548 = vmatprep.mubr.bf16.mxu0 %v3169
  %4549 = vmatmul.mubr.bf16.gmra.mxu0 %v3168
  %v4550 = vpop.f32.mrf.mxu0
  %v4551 = vadd.f32 %v2890, %v4550
  %v4552 = vpop.f32.mrf.mxu0
  %v4553 = vpop.f32.mrf.mxu0
  %v4554 = vadd.f32 %v2890, %v4553
  %v4555 = vpop.f32.mrf.mxu0
  %4556 = vmatprep.mubr.bf16.mxu0 %v3175
  %4557 = vmatmul.mubr.bf16.gmra.mxu0 %v3174
  %v4558 = vpop.f32.mrf.mxu0
  %v4559 = vadd.f32 %v2890, %v4558
  %v4560 = vpop.f32.mrf.mxu0
  %v4561 = vpop.f32.mrf.mxu0
  %v4562 = vadd.f32 %v2890, %v4561
  %v4563 = vpop.f32.mrf.mxu0
  %4564 = vmatprep.mubr.bf16.mxu0 %v3181
  %4565 = vmatmul.mubr.bf16.gmra.mxu0 %v3180
  %v4566 = vpop.f32.mrf.mxu0
  %v4567 = vadd.f32 %v2890, %v4566
  %v4568 = vpop.f32.mrf.mxu0
  %v4569 = vpop.f32.mrf.mxu0
  %v4570 = vadd.f32 %v2890, %v4569
  %v4571 = vpop.f32.mrf.mxu0
  %4572 = vmatprep.mubr.bf16.mxu0 %v3190
  %4573 = vmatmul.mubr.bf16.gmra.mxu0 %v3189
  %v4574 = vpop.f32.mrf.mxu0
  %v4575 = vadd.f32 %v2890, %v4574
  %v4576 = vpop.f32.mrf.mxu0
  %v4577 = vpop.f32.mrf.mxu0
  %v4578 = vadd.f32 %v2890, %v4577
  %v4579 = vpop.f32.mrf.mxu0
  %4580 = vmatprep.mubr.bf16.mxu0 %v3196
  %4581 = vmatmul.mubr.bf16.gmra.mxu0 %v3195
  %v4582 = vpop.f32.mrf.mxu0
  %v4583 = vadd.f32 %v2890, %v4582
  %v4584 = vpop.f32.mrf.mxu0
  %v4585 = vpop.f32.mrf.mxu0
  %v4586 = vadd.f32 %v2890, %v4585
  %v4587 = vpop.f32.mrf.mxu0
  %4588 = vmatprep.mubr.bf16.mxu0 %v3202
  %4589 = vmatmul.mubr.bf16.gmra.mxu0 %v3201
  %v4590 = vpop.f32.mrf.mxu0
  %v4591 = vadd.f32 %v2890, %v4590
  %v4592 = vpop.f32.mrf.mxu0
  %v4593 = vpop.f32.mrf.mxu0
  %v4594 = vadd.f32 %v2890, %v4593
  %v4595 = vpop.f32.mrf.mxu0
  %4596 = vmatprep.mubr.bf16.mxu0 %v3208
  %4597 = vmatmul.mubr.bf16.gmra.mxu0 %v3207
  %v4598 = vpop.f32.mrf.mxu0
  %v4599 = vadd.f32 %v2890, %v4598
  %v4600 = vpop.f32.mrf.mxu0
  %v4601 = vpop.f32.mrf.mxu0
  %v4602 = vadd.f32 %v2890, %v4601
  %v4603 = vpop.f32.mrf.mxu0
  %4604 = vmatprep.mubr.bf16.mxu0 %v3217
  %4605 = vmatmul.mubr.bf16.gmra.mxu0 %v3216
  %v4606 = vpop.f32.mrf.mxu0
  %v4607 = vadd.f32 %v2890, %v4606
  %v4608 = vpop.f32.mrf.mxu0
  %v4609 = vpop.f32.mrf.mxu0
  %v4610 = vadd.f32 %v2890, %v4609
  %v4611 = vpop.f32.mrf.mxu0
  %4612 = vmatprep.mubr.bf16.mxu0 %v3223
  %4613 = vmatmul.mubr.bf16.gmra.mxu0 %v3222
  %v4614 = vpop.f32.mrf.mxu0
  %v4615 = vadd.f32 %v2890, %v4614
  %v4616 = vpop.f32.mrf.mxu0
  %v4617 = vpop.f32.mrf.mxu0
  %v4618 = vadd.f32 %v2890, %v4617
  %v4619 = vpop.f32.mrf.mxu0
  %4620 = vmatprep.mubr.bf16.mxu0 %v3229
  %4621 = vmatmul.mubr.bf16.gmra.mxu0 %v3228
  %v4622 = vpop.f32.mrf.mxu0
  %v4623 = vadd.f32 %v2890, %v4622
  %v4624 = vpop.f32.mrf.mxu0
  %v4625 = vpop.f32.mrf.mxu0
  %v4626 = vadd.f32 %v2890, %v4625
  %v4627 = vpop.f32.mrf.mxu0
  %4628 = vmatprep.mubr.bf16.mxu0 %v3235
  %4629 = vmatmul.mubr.bf16.gmra.mxu0 %v3234
  %v4630 = vpop.f32.mrf.mxu0
  %v4631 = vadd.f32 %v2890, %v4630
  %v4632 = vpop.f32.mrf.mxu0
  %v4633 = vpop.f32.mrf.mxu0
  %v4634 = vadd.f32 %v2890, %v4633
  %v4635 = vpop.f32.mrf.mxu0
  %4636 = vmatprep.mubr.bf16.mxu0 %v3244
  %4637 = vmatmul.mubr.bf16.gmra.mxu0 %v3243
  %v4638 = vpop.f32.mrf.mxu0
  %v4639 = vadd.f32 %v2890, %v4638
  %v4640 = vpop.f32.mrf.mxu0
  %v4641 = vpop.f32.mrf.mxu0
  %v4642 = vadd.f32 %v2890, %v4641
  %v4643 = vpop.f32.mrf.mxu0
  %4644 = vmatprep.mubr.bf16.mxu0 %v3250
  %4645 = vmatmul.mubr.bf16.gmra.mxu0 %v3249
  %v4646 = vpop.f32.mrf.mxu0
  %v4647 = vadd.f32 %v2890, %v4646
  %v4648 = vpop.f32.mrf.mxu0
  %v4649 = vpop.f32.mrf.mxu0
  %v4650 = vadd.f32 %v2890, %v4649
  %v4651 = vpop.f32.mrf.mxu0
  %4652 = vmatprep.mubr.bf16.mxu0 %v3256
  %4653 = vmatmul.mubr.bf16.gmra.mxu0 %v3255
  %v4654 = vpop.f32.mrf.mxu0
  %v4655 = vadd.f32 %v2890, %v4654
  %v4656 = vpop.f32.mrf.mxu0
  %v4657 = vpop.f32.mrf.mxu0
  %v4658 = vadd.f32 %v2890, %v4657
  %v4659 = vpop.f32.mrf.mxu0
  %4660 = vmatprep.mubr.bf16.mxu0 %v3262
  %4661 = vmatmul.mubr.bf16.gmra.mxu0 %v3261
  %v4662 = vpop.f32.mrf.mxu0
  %v4663 = vadd.f32 %v2890, %v4662
  %v4664 = vpop.f32.mrf.mxu0
  %v4665 = vpop.f32.mrf.mxu0
  %v4666 = vadd.f32 %v2890, %v4665
  %v4667 = vpop.f32.mrf.mxu0
  %4668 = vmatprep.mubr.bf16.mxu0 %v3271
  %4669 = vmatmul.mubr.bf16.gmra.mxu0 %v3270
  %v4670 = vpop.f32.mrf.mxu0
  %v4671 = vadd.f32 %v2890, %v4670
  %v4672 = vpop.f32.mrf.mxu0
  %v4673 = vpop.f32.mrf.mxu0
  %v4674 = vadd.f32 %v2890, %v4673
  %v4675 = vpop.f32.mrf.mxu0
  %4676 = vmatprep.mubr.bf16.mxu0 %v3277
  %4677 = vmatmul.mubr.bf16.gmra.mxu0 %v3276
  %v4678 = vpop.f32.mrf.mxu0
  %v4679 = vadd.f32 %v2890, %v4678
  %v4680 = vpop.f32.mrf.mxu0
  %v4681 = vpop.f32.mrf.mxu0
  %v4682 = vadd.f32 %v2890, %v4681
  %v4683 = vpop.f32.mrf.mxu0
  %4684 = vmatprep.mubr.bf16.mxu0 %v3283
  %4685 = vmatmul.mubr.bf16.gmra.mxu0 %v3282
  %v4686 = vpop.f32.mrf.mxu0
  %v4687 = vadd.f32 %v2890, %v4686
  %v4688 = vpop.f32.mrf.mxu0
  %v4689 = vpop.f32.mrf.mxu0
  %v4690 = vadd.f32 %v2890, %v4689
  %v4691 = vpop.f32.mrf.mxu0
  %4692 = vmatprep.mubr.bf16.mxu0 %v3289
  %4693 = vmatmul.mubr.bf16.gmra.mxu0 %v3288
  %v4694 = vpop.f32.mrf.mxu0
  %v4695 = vadd.f32 %v2890, %v4694
  %v4696 = vpop.f32.mrf.mxu0
  %v4697 = vpop.f32.mrf.mxu0
  %v4698 = vadd.f32 %v2890, %v4697
  %v4699 = vpop.f32.mrf.mxu0
  %4700 = vmatprep.mubr.bf16.mxu0 %v3298
  %4701 = vmatmul.mubr.bf16.gmra.mxu0 %v3297
  %v4702 = vpop.f32.mrf.mxu0
  %v4703 = vadd.f32 %v2890, %v4702
  %v4704 = vpop.f32.mrf.mxu0
  %v4705 = vpop.f32.mrf.mxu0
  %v4706 = vadd.f32 %v2890, %v4705
  %v4707 = vpop.f32.mrf.mxu0
  %4708 = vmatprep.mubr.bf16.mxu0 %v3304
  %4709 = vmatmul.mubr.bf16.gmra.mxu0 %v3303
  %v4710 = vpop.f32.mrf.mxu0
  %v4711 = vadd.f32 %v2890, %v4710
  %v4712 = vpop.f32.mrf.mxu0
  %v4713 = vpop.f32.mrf.mxu0
  %v4714 = vadd.f32 %v2890, %v4713
  %v4715 = vpop.f32.mrf.mxu0
  %4716 = vmatprep.mubr.bf16.mxu0 %v3310
  %4717 = vmatmul.mubr.bf16.gmra.mxu0 %v3309
  %v4718 = vpop.f32.mrf.mxu0
  %v4719 = vadd.f32 %v2890, %v4718
  %v4720 = vpop.f32.mrf.mxu0
  %v4721 = vpop.f32.mrf.mxu0
  %v4722 = vadd.f32 %v2890, %v4721
  %v4723 = vpop.f32.mrf.mxu0
  %4724 = vmatprep.mubr.bf16.mxu0 %v3316
  %4725 = vmatmul.mubr.bf16.gmra.mxu0 %v3315
  %v4726 = vpop.f32.mrf.mxu0
  %v4727 = vadd.f32 %v2890, %v4726
  %v4728 = vpop.f32.mrf.mxu0
  %v4729 = vpop.f32.mrf.mxu0
  %v4730 = vadd.f32 %v2890, %v4729
  %v4731 = vpop.f32.mrf.mxu0
  %4732 = vdwg.mxu0
  %4733 = vmatprep.subr.bf16.mxu0 0
  %4734 = vmatpush1.bf16.msra.mxu0 %v4067
  %4735 = vmatprep.subr.bf16.mxu0 0
  %4736 = vmatpush1.bf16.msra.mxu0 %v4066
  %4737 = vmatprep.subr.bf16.mxu0 0
  %4738 = vmatpush1.bf16.msra.mxu0 %v4065
  %4739 = vmatprep.subr.bf16.mxu0 0
  %4740 = vmatpush1.bf16.msra.mxu0 %v4064
  %4741 = vmatprep.subr.bf16.mxu0 0
  %4742 = vmatpush1.bf16.msra.mxu0 %v4063
  %4743 = vmatprep.subr.bf16.mxu0 0
  %4744 = vmatpush1.bf16.msra.mxu0 %v4062
  %4745 = vmatprep.subr.bf16.mxu0 0
  %4746 = vmatpush1.bf16.msra.mxu0 %v4061
  %4747 = vmatprep.subr.bf16.mxu0 0
  %4748 = vmatpush1.bf16.msra.mxu0 %v4060
  %4749 = vmatprep.subr.bf16.mxu0 0
  %4750 = vmatpush2.bf16.msra.mxu0 %v4075
  %4751 = vmatprep.subr.bf16.mxu0 0
  %4752 = vmatpush2.bf16.msra.mxu0 %v4074
  %4753 = vmatprep.subr.bf16.mxu0 0
  %4754 = vmatpush2.bf16.msra.mxu0 %v4073
  %4755 = vmatprep.subr.bf16.mxu0 0
  %4756 = vmatpush2.bf16.msra.mxu0 %v4072
  %4757 = vmatprep.subr.bf16.mxu0 0
  %4758 = vmatpush2.bf16.msra.mxu0 %v4071
  %4759 = vmatprep.subr.bf16.mxu0 0
  %4760 = vmatpush2.bf16.msra.mxu0 %v4070
  %4761 = vmatprep.subr.bf16.mxu0 0
  %4762 = vmatpush2.bf16.msra.mxu0 %v4069
  %4763 = vmatprep.subr.bf16.mxu0 0
  %4764 = vmatpush2.bf16.msra.mxu0 %v4068
  %4765 = vmatprep.mubr.bf16.mxu0 %v2895
  %4766 = vmatmul.mubr.bf16.gmra.mxu0 %v2894
  %v4767 = vpop.f32.mrf.mxu0
  %v4768 = vadd.f32 %v4223, %v4767
  %v4769 = vpop.f32.mrf.mxu0
  %v4770 = vpop.f32.mrf.mxu0
  %v4771 = vadd.f32 %v4226, %v4770
  %v4772 = vpop.f32.mrf.mxu0
  %4773 = vmatprep.mubr.bf16.mxu0 %v2901
  %4774 = vmatmul.mubr.bf16.gmra.mxu0 %v2900
  %v4775 = vpop.f32.mrf.mxu0
  %v4776 = vadd.f32 %v4231, %v4775
  %v4777 = vpop.f32.mrf.mxu0
  %v4778 = vpop.f32.mrf.mxu0
  %v4779 = vadd.f32 %v4234, %v4778
  %v4780 = vpop.f32.mrf.mxu0
  %4781 = vmatprep.mubr.bf16.mxu0 %v2907
  %4782 = vmatmul.mubr.bf16.gmra.mxu0 %v2906
  %v4783 = vpop.f32.mrf.mxu0
  %v4784 = vadd.f32 %v4239, %v4783
  %v4785 = vpop.f32.mrf.mxu0
  %v4786 = vpop.f32.mrf.mxu0
  %v4787 = vadd.f32 %v4242, %v4786
  %v4788 = vpop.f32.mrf.mxu0
  %4789 = vmatprep.mubr.bf16.mxu0 %v2913
  %4790 = vmatmul.mubr.bf16.gmra.mxu0 %v2912
  %v4791 = vpop.f32.mrf.mxu0
  %v4792 = vadd.f32 %v4247, %v4791
  %v4793 = vpop.f32.mrf.mxu0
  %v4794 = vpop.f32.mrf.mxu0
  %v4795 = vadd.f32 %v4250, %v4794
  %v4796 = vpop.f32.mrf.mxu0
  %4797 = vmatprep.mubr.bf16.mxu0 %v2922
  %4798 = vmatmul.mubr.bf16.gmra.mxu0 %v2921
  %v4799 = vpop.f32.mrf.mxu0
  %v4800 = vadd.f32 %v4255, %v4799
  %v4801 = vpop.f32.mrf.mxu0
  %v4802 = vpop.f32.mrf.mxu0
  %v4803 = vadd.f32 %v4258, %v4802
  %v4804 = vpop.f32.mrf.mxu0
  %4805 = vmatprep.mubr.bf16.mxu0 %v2928
  %4806 = vmatmul.mubr.bf16.gmra.mxu0 %v2927
  %v4807 = vpop.f32.mrf.mxu0
  %v4808 = vadd.f32 %v4263, %v4807
  %v4809 = vpop.f32.mrf.mxu0
  %v4810 = vpop.f32.mrf.mxu0
  %v4811 = vadd.f32 %v4266, %v4810
  %v4812 = vpop.f32.mrf.mxu0
  %4813 = vmatprep.mubr.bf16.mxu0 %v2934
  %4814 = vmatmul.mubr.bf16.gmra.mxu0 %v2933
  %v4815 = vpop.f32.mrf.mxu0
  %v4816 = vadd.f32 %v4271, %v4815
  %v4817 = vpop.f32.mrf.mxu0
  %v4818 = vpop.f32.mrf.mxu0
  %v4819 = vadd.f32 %v4274, %v4818
  %v4820 = vpop.f32.mrf.mxu0
  %4821 = vmatprep.mubr.bf16.mxu0 %v2940
  %4822 = vmatmul.mubr.bf16.gmra.mxu0 %v2939
  %v4823 = vpop.f32.mrf.mxu0
  %v4824 = vadd.f32 %v4279, %v4823
  %v4825 = vpop.f32.mrf.mxu0
  %v4826 = vpop.f32.mrf.mxu0
  %v4827 = vadd.f32 %v4282, %v4826
  %v4828 = vpop.f32.mrf.mxu0
  %4829 = vmatprep.mubr.bf16.mxu0 %v2949
  %4830 = vmatmul.mubr.bf16.gmra.mxu0 %v2948
  %v4831 = vpop.f32.mrf.mxu0
  %v4832 = vadd.f32 %v4287, %v4831
  %v4833 = vpop.f32.mrf.mxu0
  %v4834 = vpop.f32.mrf.mxu0
  %v4835 = vadd.f32 %v4290, %v4834
  %v4836 = vpop.f32.mrf.mxu0
  %4837 = vmatprep.mubr.bf16.mxu0 %v2955
  %4838 = vmatmul.mubr.bf16.gmra.mxu0 %v2954
  %v4839 = vpop.f32.mrf.mxu0
  %v4840 = vadd.f32 %v4295, %v4839
  %v4841 = vpop.f32.mrf.mxu0
  %v4842 = vpop.f32.mrf.mxu0
  %v4843 = vadd.f32 %v4298, %v4842
  %v4844 = vpop.f32.mrf.mxu0
  %4845 = vmatprep.mubr.bf16.mxu0 %v2961
  %4846 = vmatmul.mubr.bf16.gmra.mxu0 %v2960
  %v4847 = vpop.f32.mrf.mxu0
  %v4848 = vadd.f32 %v4303, %v4847
  %v4849 = vpop.f32.mrf.mxu0
  %v4850 = vpop.f32.mrf.mxu0
  %v4851 = vadd.f32 %v4306, %v4850
  %v4852 = vpop.f32.mrf.mxu0
  %4853 = vmatprep.mubr.bf16.mxu0 %v2967
  %4854 = vmatmul.mubr.bf16.gmra.mxu0 %v2966
  %v4855 = vpop.f32.mrf.mxu0
  %v4856 = vadd.f32 %v4311, %v4855
  %v4857 = vpop.f32.mrf.mxu0
  %v4858 = vpop.f32.mrf.mxu0
  %v4859 = vadd.f32 %v4314, %v4858
  %v4860 = vpop.f32.mrf.mxu0
  %4861 = vmatprep.mubr.bf16.mxu0 %v2976
  %4862 = vmatmul.mubr.bf16.gmra.mxu0 %v2975
  %v4863 = vpop.f32.mrf.mxu0
  %v4864 = vadd.f32 %v4319, %v4863
  %v4865 = vpop.f32.mrf.mxu0
  %v4866 = vpop.f32.mrf.mxu0
  %v4867 = vadd.f32 %v4322, %v4866
  %v4868 = vpop.f32.mrf.mxu0
  %4869 = vmatprep.mubr.bf16.mxu0 %v2982
  %4870 = vmatmul.mubr.bf16.gmra.mxu0 %v2981
  %v4871 = vpop.f32.mrf.mxu0
  %v4872 = vadd.f32 %v4327, %v4871
  %v4873 = vpop.f32.mrf.mxu0
  %v4874 = vpop.f32.mrf.mxu0
  %v4875 = vadd.f32 %v4330, %v4874
  %v4876 = vpop.f32.mrf.mxu0
  %4877 = vmatprep.mubr.bf16.mxu0 %v2988
  %4878 = vmatmul.mubr.bf16.gmra.mxu0 %v2987
  %v4879 = vpop.f32.mrf.mxu0
  %v4880 = vadd.f32 %v4335, %v4879
  %v4881 = vpop.f32.mrf.mxu0
  %v4882 = vpop.f32.mrf.mxu0
  %v4883 = vadd.f32 %v4338, %v4882
  %v4884 = vpop.f32.mrf.mxu0
  %4885 = vmatprep.mubr.bf16.mxu0 %v2994
  %4886 = vmatmul.mubr.bf16.gmra.mxu0 %v2993
  %v4887 = vpop.f32.mrf.mxu0
  %v4888 = vadd.f32 %v4343, %v4887
  %v4889 = vpop.f32.mrf.mxu0
  %v4890 = vpop.f32.mrf.mxu0
  %v4891 = vadd.f32 %v4346, %v4890
  %v4892 = vpop.f32.mrf.mxu0
  %4893 = vmatprep.mubr.bf16.mxu0 %v3003
  %4894 = vmatmul.mubr.bf16.gmra.mxu0 %v3002
  %v4895 = vpop.f32.mrf.mxu0
  %v4896 = vadd.f32 %v4351, %v4895
  %v4897 = vpop.f32.mrf.mxu0
  %v4898 = vpop.f32.mrf.mxu0
  %v4899 = vadd.f32 %v4354, %v4898
  %v4900 = vpop.f32.mrf.mxu0
  %4901 = vmatprep.mubr.bf16.mxu0 %v3009
  %4902 = vmatmul.mubr.bf16.gmra.mxu0 %v3008
  %v4903 = vpop.f32.mrf.mxu0
  %v4904 = vadd.f32 %v4359, %v4903
  %v4905 = vpop.f32.mrf.mxu0
  %v4906 = vpop.f32.mrf.mxu0
  %v4907 = vadd.f32 %v4362, %v4906
  %v4908 = vpop.f32.mrf.mxu0
  %4909 = vmatprep.mubr.bf16.mxu0 %v3015
  %4910 = vmatmul.mubr.bf16.gmra.mxu0 %v3014
  %v4911 = vpop.f32.mrf.mxu0
  %v4912 = vadd.f32 %v4367, %v4911
  %v4913 = vpop.f32.mrf.mxu0
  %v4914 = vpop.f32.mrf.mxu0
  %v4915 = vadd.f32 %v4370, %v4914
  %v4916 = vpop.f32.mrf.mxu0
  %4917 = vmatprep.mubr.bf16.mxu0 %v3021
  %4918 = vmatmul.mubr.bf16.gmra.mxu0 %v3020
  %v4919 = vpop.f32.mrf.mxu0
  %v4920 = vadd.f32 %v4375, %v4919
  %v4921 = vpop.f32.mrf.mxu0
  %v4922 = vpop.f32.mrf.mxu0
  %v4923 = vadd.f32 %v4378, %v4922
  %v4924 = vpop.f32.mrf.mxu0
  %4925 = vmatprep.mubr.bf16.mxu0 %v3030
  %4926 = vmatmul.mubr.bf16.gmra.mxu0 %v3029
  %v4927 = vpop.f32.mrf.mxu0
  %v4928 = vadd.f32 %v4383, %v4927
  %v4929 = vpop.f32.mrf.mxu0
  %v4930 = vpop.f32.mrf.mxu0
  %v4931 = vadd.f32 %v4386, %v4930
  %v4932 = vpop.f32.mrf.mxu0
  %4933 = vmatprep.mubr.bf16.mxu0 %v3036
  %4934 = vmatmul.mubr.bf16.gmra.mxu0 %v3035
  %v4935 = vpop.f32.mrf.mxu0
  %v4936 = vadd.f32 %v4391, %v4935
  %v4937 = vpop.f32.mrf.mxu0
  %v4938 = vpop.f32.mrf.mxu0
  %v4939 = vadd.f32 %v4394, %v4938
  %v4940 = vpop.f32.mrf.mxu0
  %4941 = vmatprep.mubr.bf16.mxu0 %v3042
  %4942 = vmatmul.mubr.bf16.gmra.mxu0 %v3041
  %v4943 = vpop.f32.mrf.mxu0
  %v4944 = vadd.f32 %v4399, %v4943
  %v4945 = vpop.f32.mrf.mxu0
  %v4946 = vpop.f32.mrf.mxu0
  %v4947 = vadd.f32 %v4402, %v4946
  %v4948 = vpop.f32.mrf.mxu0
  %4949 = vmatprep.mubr.bf16.mxu0 %v3048
  %4950 = vmatmul.mubr.bf16.gmra.mxu0 %v3047
  %v4951 = vpop.f32.mrf.mxu0
  %v4952 = vadd.f32 %v4407, %v4951
  %v4953 = vpop.f32.mrf.mxu0
  %v4954 = vpop.f32.mrf.mxu0
  %v4955 = vadd.f32 %v4410, %v4954
  %v4956 = vpop.f32.mrf.mxu0
  %4957 = vmatprep.mubr.bf16.mxu0 %v3057
  %4958 = vmatmul.mubr.bf16.gmra.mxu0 %v3056
  %v4959 = vpop.f32.mrf.mxu0
  %v4960 = vadd.f32 %v4415, %v4959
  %v4961 = vpop.f32.mrf.mxu0
  %v4962 = vpop.f32.mrf.mxu0
  %v4963 = vadd.f32 %v4418, %v4962
  %v4964 = vpop.f32.mrf.mxu0
  %4965 = vmatprep.mubr.bf16.mxu0 %v3063
  %4966 = vmatmul.mubr.bf16.gmra.mxu0 %v3062
  %v4967 = vpop.f32.mrf.mxu0
  %v4968 = vadd.f32 %v4423, %v4967
  %v4969 = vpop.f32.mrf.mxu0
  %v4970 = vpop.f32.mrf.mxu0
  %v4971 = vadd.f32 %v4426, %v4970
  %v4972 = vpop.f32.mrf.mxu0
  %4973 = vmatprep.mubr.bf16.mxu0 %v3069
  %4974 = vmatmul.mubr.bf16.gmra.mxu0 %v3068
  %v4975 = vpop.f32.mrf.mxu0
  %v4976 = vadd.f32 %v4431, %v4975
  %v4977 = vpop.f32.mrf.mxu0
  %v4978 = vpop.f32.mrf.mxu0
  %v4979 = vadd.f32 %v4434, %v4978
  %v4980 = vpop.f32.mrf.mxu0
  %4981 = vmatprep.mubr.bf16.mxu0 %v3075
  %4982 = vmatmul.mubr.bf16.gmra.mxu0 %v3074
  %v4983 = vpop.f32.mrf.mxu0
  %v4984 = vadd.f32 %v4439, %v4983
  %v4985 = vpop.f32.mrf.mxu0
  %v4986 = vpop.f32.mrf.mxu0
  %v4987 = vadd.f32 %v4442, %v4986
  %v4988 = vpop.f32.mrf.mxu0
  %4989 = vmatprep.mubr.bf16.mxu0 %v3084
  %4990 = vmatmul.mubr.bf16.gmra.mxu0 %v3083
  %v4991 = vpop.f32.mrf.mxu0
  %v4992 = vadd.f32 %v4447, %v4991
  %v4993 = vpop.f32.mrf.mxu0
  %v4994 = vpop.f32.mrf.mxu0
  %v4995 = vadd.f32 %v4450, %v4994
  %v4996 = vpop.f32.mrf.mxu0
  %4997 = vmatprep.mubr.bf16.mxu0 %v3090
  %4998 = vmatmul.mubr.bf16.gmra.mxu0 %v3089
  %v4999 = vpop.f32.mrf.mxu0
  %v5000 = vadd.f32 %v4455, %v4999
  %v5001 = vpop.f32.mrf.mxu0
  %v5002 = vpop.f32.mrf.mxu0
  %v5003 = vadd.f32 %v4458, %v5002
  %v5004 = vpop.f32.mrf.mxu0
  %5005 = vmatprep.mubr.bf16.mxu0 %v3096
  %5006 = vmatmul.mubr.bf16.gmra.mxu0 %v3095
  %v5007 = vpop.f32.mrf.mxu0
  %v5008 = vadd.f32 %v4463, %v5007
  %v5009 = vpop.f32.mrf.mxu0
  %v5010 = vpop.f32.mrf.mxu0
  %v5011 = vadd.f32 %v4466, %v5010
  %v5012 = vpop.f32.mrf.mxu0
  %5013 = vmatprep.mubr.bf16.mxu0 %v3102
  %5014 = vmatmul.mubr.bf16.gmra.mxu0 %v3101
  %v5015 = vpop.f32.mrf.mxu0
  %v5016 = vadd.f32 %v4471, %v5015
  %v5017 = vpop.f32.mrf.mxu0
  %v5018 = vpop.f32.mrf.mxu0
  %v5019 = vadd.f32 %v4474, %v5018
  %v5020 = vpop.f32.mrf.mxu0
  %5021 = vmatprep.mubr.bf16.mxu0 %v3111
  %5022 = vmatmul.mubr.bf16.gmra.mxu0 %v3110
  %v5023 = vpop.f32.mrf.mxu0
  %v5024 = vadd.f32 %v4479, %v5023
  %v5025 = vpop.f32.mrf.mxu0
  %v5026 = vpop.f32.mrf.mxu0
  %v5027 = vadd.f32 %v4482, %v5026
  %v5028 = vpop.f32.mrf.mxu0
  %5029 = vmatprep.mubr.bf16.mxu0 %v3117
  %5030 = vmatmul.mubr.bf16.gmra.mxu0 %v3116
  %v5031 = vpop.f32.mrf.mxu0
  %v5032 = vadd.f32 %v4487, %v5031
  %v5033 = vpop.f32.mrf.mxu0
  %v5034 = vpop.f32.mrf.mxu0
  %v5035 = vadd.f32 %v4490, %v5034
  %v5036 = vpop.f32.mrf.mxu0
  %5037 = vmatprep.mubr.bf16.mxu0 %v3123
  %5038 = vmatmul.mubr.bf16.gmra.mxu0 %v3122
  %v5039 = vpop.f32.mrf.mxu0
  %v5040 = vadd.f32 %v4495, %v5039
  %v5041 = vpop.f32.mrf.mxu0
  %v5042 = vpop.f32.mrf.mxu0
  %v5043 = vadd.f32 %v4498, %v5042
  %v5044 = vpop.f32.mrf.mxu0
  %5045 = vmatprep.mubr.bf16.mxu0 %v3129
  %5046 = vmatmul.mubr.bf16.gmra.mxu0 %v3128
  %v5047 = vpop.f32.mrf.mxu0
  %v5048 = vadd.f32 %v4503, %v5047
  %v5049 = vpop.f32.mrf.mxu0
  %v5050 = vpop.f32.mrf.mxu0
  %v5051 = vadd.f32 %v4506, %v5050
  %v5052 = vpop.f32.mrf.mxu0
  %5053 = vmatprep.mubr.bf16.mxu0 %v3138
  %5054 = vmatmul.mubr.bf16.gmra.mxu0 %v3137
  %v5055 = vpop.f32.mrf.mxu0
  %v5056 = vadd.f32 %v4511, %v5055
  %v5057 = vpop.f32.mrf.mxu0
  %v5058 = vpop.f32.mrf.mxu0
  %v5059 = vadd.f32 %v4514, %v5058
  %v5060 = vpop.f32.mrf.mxu0
  %5061 = vmatprep.mubr.bf16.mxu0 %v3144
  %5062 = vmatmul.mubr.bf16.gmra.mxu0 %v3143
  %v5063 = vpop.f32.mrf.mxu0
  %v5064 = vadd.f32 %v4519, %v5063
  %v5065 = vpop.f32.mrf.mxu0
  %v5066 = vpop.f32.mrf.mxu0
  %v5067 = vadd.f32 %v4522, %v5066
  %v5068 = vpop.f32.mrf.mxu0
  %5069 = vmatprep.mubr.bf16.mxu0 %v3150
  %5070 = vmatmul.mubr.bf16.gmra.mxu0 %v3149
  %v5071 = vpop.f32.mrf.mxu0
  %v5072 = vadd.f32 %v4527, %v5071
  %v5073 = vpop.f32.mrf.mxu0
  %v5074 = vpop.f32.mrf.mxu0
  %v5075 = vadd.f32 %v4530, %v5074
  %v5076 = vpop.f32.mrf.mxu0
  %5077 = vmatprep.mubr.bf16.mxu0 %v3156
  %5078 = vmatmul.mubr.bf16.gmra.mxu0 %v3155
  %v5079 = vpop.f32.mrf.mxu0
  %v5080 = vadd.f32 %v4535, %v5079
  %v5081 = vpop.f32.mrf.mxu0
  %v5082 = vpop.f32.mrf.mxu0
  %v5083 = vadd.f32 %v4538, %v5082
  %v5084 = vpop.f32.mrf.mxu0
  %5085 = vmatprep.mubr.bf16.mxu0 %v3165
  %5086 = vmatmul.mubr.bf16.gmra.mxu0 %v3164
  %v5087 = vpop.f32.mrf.mxu0
  %v5088 = vadd.f32 %v4543, %v5087
  %v5089 = vpop.f32.mrf.mxu0
  %v5090 = vpop.f32.mrf.mxu0
  %v5091 = vadd.f32 %v4546, %v5090
  %v5092 = vpop.f32.mrf.mxu0
  %5093 = vmatprep.mubr.bf16.mxu0 %v3171
  %5094 = vmatmul.mubr.bf16.gmra.mxu0 %v3170
  %v5095 = vpop.f32.mrf.mxu0
  %v5096 = vadd.f32 %v4551, %v5095
  %v5097 = vpop.f32.mrf.mxu0
  %v5098 = vpop.f32.mrf.mxu0
  %v5099 = vadd.f32 %v4554, %v5098
  %v5100 = vpop.f32.mrf.mxu0
  %5101 = vmatprep.mubr.bf16.mxu0 %v3177
  %5102 = vmatmul.mubr.bf16.gmra.mxu0 %v3176
  %v5103 = vpop.f32.mrf.mxu0
  %v5104 = vadd.f32 %v4559, %v5103
  %v5105 = vpop.f32.mrf.mxu0
  %v5106 = vpop.f32.mrf.mxu0
  %v5107 = vadd.f32 %v4562, %v5106
  %v5108 = vpop.f32.mrf.mxu0
  %5109 = vmatprep.mubr.bf16.mxu0 %v3183
  %5110 = vmatmul.mubr.bf16.gmra.mxu0 %v3182
  %v5111 = vpop.f32.mrf.mxu0
  %v5112 = vadd.f32 %v4567, %v5111
  %v5113 = vpop.f32.mrf.mxu0
  %v5114 = vpop.f32.mrf.mxu0
  %v5115 = vadd.f32 %v4570, %v5114
  %v5116 = vpop.f32.mrf.mxu0
  %5117 = vmatprep.mubr.bf16.mxu0 %v3192
  %5118 = vmatmul.mubr.bf16.gmra.mxu0 %v3191
  %v5119 = vpop.f32.mrf.mxu0
  %v5120 = vadd.f32 %v4575, %v5119
  %v5121 = vpop.f32.mrf.mxu0
  %v5122 = vpop.f32.mrf.mxu0
  %v5123 = vadd.f32 %v4578, %v5122
  %v5124 = vpop.f32.mrf.mxu0
  %5125 = vmatprep.mubr.bf16.mxu0 %v3198
  %5126 = vmatmul.mubr.bf16.gmra.mxu0 %v3197
  %v5127 = vpop.f32.mrf.mxu0
  %v5128 = vadd.f32 %v4583, %v5127
  %v5129 = vpop.f32.mrf.mxu0
  %v5130 = vpop.f32.mrf.mxu0
  %v5131 = vadd.f32 %v4586, %v5130
  %v5132 = vpop.f32.mrf.mxu0
  %5133 = vmatprep.mubr.bf16.mxu0 %v3204
  %5134 = vmatmul.mubr.bf16.gmra.mxu0 %v3203
  %v5135 = vpop.f32.mrf.mxu0
  %v5136 = vadd.f32 %v4591, %v5135
  %v5137 = vpop.f32.mrf.mxu0
  %v5138 = vpop.f32.mrf.mxu0
  %v5139 = vadd.f32 %v4594, %v5138
  %v5140 = vpop.f32.mrf.mxu0
  %5141 = vmatprep.mubr.bf16.mxu0 %v3210
  %5142 = vmatmul.mubr.bf16.gmra.mxu0 %v3209
  %v5143 = vpop.f32.mrf.mxu0
  %v5144 = vadd.f32 %v4599, %v5143
  %v5145 = vpop.f32.mrf.mxu0
  %v5146 = vpop.f32.mrf.mxu0
  %v5147 = vadd.f32 %v4602, %v5146
  %v5148 = vpop.f32.mrf.mxu0
  %5149 = vmatprep.mubr.bf16.mxu0 %v3219
  %5150 = vmatmul.mubr.bf16.gmra.mxu0 %v3218
  %v5151 = vpop.f32.mrf.mxu0
  %v5152 = vadd.f32 %v4607, %v5151
  %v5153 = vpop.f32.mrf.mxu0
  %v5154 = vpop.f32.mrf.mxu0
  %v5155 = vadd.f32 %v4610, %v5154
  %v5156 = vpop.f32.mrf.mxu0
  %5157 = vmatprep.mubr.bf16.mxu0 %v3225
  %5158 = vmatmul.mubr.bf16.gmra.mxu0 %v3224
  %v5159 = vpop.f32.mrf.mxu0
  %v5160 = vadd.f32 %v4615, %v5159
  %v5161 = vpop.f32.mrf.mxu0
  %v5162 = vpop.f32.mrf.mxu0
  %v5163 = vadd.f32 %v4618, %v5162
  %v5164 = vpop.f32.mrf.mxu0
  %5165 = vmatprep.mubr.bf16.mxu0 %v3231
  %5166 = vmatmul.mubr.bf16.gmra.mxu0 %v3230
  %v5167 = vpop.f32.mrf.mxu0
  %v5168 = vadd.f32 %v4623, %v5167
  %v5169 = vpop.f32.mrf.mxu0
  %v5170 = vpop.f32.mrf.mxu0
  %v5171 = vadd.f32 %v4626, %v5170
  %v5172 = vpop.f32.mrf.mxu0
  %5173 = vmatprep.mubr.bf16.mxu0 %v3237
  %5174 = vmatmul.mubr.bf16.gmra.mxu0 %v3236
  %v5175 = vpop.f32.mrf.mxu0
  %v5176 = vadd.f32 %v4631, %v5175
  %v5177 = vpop.f32.mrf.mxu0
  %v5178 = vpop.f32.mrf.mxu0
  %v5179 = vadd.f32 %v4634, %v5178
  %v5180 = vpop.f32.mrf.mxu0
  %5181 = vmatprep.mubr.bf16.mxu0 %v3246
  %5182 = vmatmul.mubr.bf16.gmra.mxu0 %v3245
  %v5183 = vpop.f32.mrf.mxu0
  %v5184 = vadd.f32 %v4639, %v5183
  %v5185 = vpop.f32.mrf.mxu0
  %v5186 = vpop.f32.mrf.mxu0
  %v5187 = vadd.f32 %v4642, %v5186
  %v5188 = vpop.f32.mrf.mxu0
  %5189 = vmatprep.mubr.bf16.mxu0 %v3252
  %5190 = vmatmul.mubr.bf16.gmra.mxu0 %v3251
  %v5191 = vpop.f32.mrf.mxu0
  %v5192 = vadd.f32 %v4647, %v5191
  %v5193 = vpop.f32.mrf.mxu0
  %v5194 = vpop.f32.mrf.mxu0
  %v5195 = vadd.f32 %v4650, %v5194
  %v5196 = vpop.f32.mrf.mxu0
  %5197 = vmatprep.mubr.bf16.mxu0 %v3258
  %5198 = vmatmul.mubr.bf16.gmra.mxu0 %v3257
  %v5199 = vpop.f32.mrf.mxu0
  %v5200 = vadd.f32 %v4655, %v5199
  %v5201 = vpop.f32.mrf.mxu0
  %v5202 = vpop.f32.mrf.mxu0
  %v5203 = vadd.f32 %v4658, %v5202
  %v5204 = vpop.f32.mrf.mxu0
  %5205 = vmatprep.mubr.bf16.mxu0 %v3264
  %5206 = vmatmul.mubr.bf16.gmra.mxu0 %v3263
  %v5207 = vpop.f32.mrf.mxu0
  %v5208 = vadd.f32 %v4663, %v5207
  %v5209 = vpop.f32.mrf.mxu0
  %v5210 = vpop.f32.mrf.mxu0
  %v5211 = vadd.f32 %v4666, %v5210
  %v5212 = vpop.f32.mrf.mxu0
  %5213 = vmatprep.mubr.bf16.mxu0 %v3273
  %5214 = vmatmul.mubr.bf16.gmra.mxu0 %v3272
  %v5215 = vpop.f32.mrf.mxu0
  %v5216 = vadd.f32 %v4671, %v5215
  %v5217 = vpop.f32.mrf.mxu0
  %v5218 = vpop.f32.mrf.mxu0
  %v5219 = vadd.f32 %v4674, %v5218
  %v5220 = vpop.f32.mrf.mxu0
  %5221 = vmatprep.mubr.bf16.mxu0 %v3279
  %5222 = vmatmul.mubr.bf16.gmra.mxu0 %v3278
  %v5223 = vpop.f32.mrf.mxu0
  %v5224 = vadd.f32 %v4679, %v5223
  %v5225 = vpop.f32.mrf.mxu0
  %v5226 = vpop.f32.mrf.mxu0
  %v5227 = vadd.f32 %v4682, %v5226
  %v5228 = vpop.f32.mrf.mxu0
  %5229 = vmatprep.mubr.bf16.mxu0 %v3285
  %5230 = vmatmul.mubr.bf16.gmra.mxu0 %v3284
  %v5231 = vpop.f32.mrf.mxu0
  %v5232 = vadd.f32 %v4687, %v5231
  %v5233 = vpop.f32.mrf.mxu0
  %v5234 = vpop.f32.mrf.mxu0
  %v5235 = vadd.f32 %v4690, %v5234
  %v5236 = vpop.f32.mrf.mxu0
  %5237 = vmatprep.mubr.bf16.mxu0 %v3291
  %5238 = vmatmul.mubr.bf16.gmra.mxu0 %v3290
  %v5239 = vpop.f32.mrf.mxu0
  %v5240 = vadd.f32 %v4695, %v5239
  %v5241 = vpop.f32.mrf.mxu0
  %v5242 = vpop.f32.mrf.mxu0
  %v5243 = vadd.f32 %v4698, %v5242
  %v5244 = vpop.f32.mrf.mxu0
  %5245 = vmatprep.mubr.bf16.mxu0 %v3300
  %5246 = vmatmul.mubr.bf16.gmra.mxu0 %v3299
  %v5247 = vpop.f32.mrf.mxu0
  %v5248 = vadd.f32 %v4703, %v5247
  %v5249 = vpop.f32.mrf.mxu0
  %v5250 = vpop.f32.mrf.mxu0
  %v5251 = vadd.f32 %v4706, %v5250
  %v5252 = vpop.f32.mrf.mxu0
  %5253 = vmatprep.mubr.bf16.mxu0 %v3306
  %5254 = vmatmul.mubr.bf16.gmra.mxu0 %v3305
  %v5255 = vpop.f32.mrf.mxu0
  %v5256 = vadd.f32 %v4711, %v5255
  %v5257 = vpop.f32.mrf.mxu0
  %v5258 = vpop.f32.mrf.mxu0
  %v5259 = vadd.f32 %v4714, %v5258
  %v5260 = vpop.f32.mrf.mxu0
  %5261 = vmatprep.mubr.bf16.mxu0 %v3312
  %5262 = vmatmul.mubr.bf16.gmra.mxu0 %v3311
  %v5263 = vpop.f32.mrf.mxu0
  %v5264 = vadd.f32 %v4719, %v5263
  %v5265 = vpop.f32.mrf.mxu0
  %v5266 = vpop.f32.mrf.mxu0
  %v5267 = vadd.f32 %v4722, %v5266
  %v5268 = vpop.f32.mrf.mxu0
  %5269 = vmatprep.mubr.bf16.mxu0 %v3318
  %5270 = vmatmul.mubr.bf16.gmra.mxu0 %v3317
  %v5271 = vpop.f32.mrf.mxu0
  %v5272 = vadd.f32 %v4727, %v5271
  %v5273 = vpop.f32.mrf.mxu0
  %v5274 = vpop.f32.mrf.mxu0
  %v5275 = vadd.f32 %v4730, %v5274
  %v5276 = vpop.f32.mrf.mxu0
  %5277 = vdwg.mxu0
  %5278 = vmatprep.subr.bf16.mxu0 0
  %5279 = vmatpush1.bf16.msra.mxu0 %v4083
  %5280 = vmatprep.subr.bf16.mxu0 0
  %5281 = vmatpush1.bf16.msra.mxu0 %v4082
  %5282 = vmatprep.subr.bf16.mxu0 0
  %5283 = vmatpush1.bf16.msra.mxu0 %v4081
  %5284 = vmatprep.subr.bf16.mxu0 0
  %5285 = vmatpush1.bf16.msra.mxu0 %v4080
  %5286 = vmatprep.subr.bf16.mxu0 0
  %5287 = vmatpush1.bf16.msra.mxu0 %v4079
  %5288 = vmatprep.subr.bf16.mxu0 0
  %5289 = vmatpush1.bf16.msra.mxu0 %v4078
  %5290 = vmatprep.subr.bf16.mxu0 0
  %5291 = vmatpush1.bf16.msra.mxu0 %v4077
  %5292 = vmatprep.subr.bf16.mxu0 0
  %5293 = vmatpush1.bf16.msra.mxu0 %v4076
  %5294 = vmatprep.subr.bf16.mxu0 0
  %5295 = vmatpush2.bf16.msra.mxu0 %v4091
  %5296 = vmatprep.subr.bf16.mxu0 0
  %5297 = vmatpush2.bf16.msra.mxu0 %v4090
  %5298 = vmatprep.subr.bf16.mxu0 0
  %5299 = vmatpush2.bf16.msra.mxu0 %v4089
  %5300 = vmatprep.subr.bf16.mxu0 0
  %5301 = vmatpush2.bf16.msra.mxu0 %v4088
  %5302 = vmatprep.subr.bf16.mxu0 0
  %5303 = vmatpush2.bf16.msra.mxu0 %v4087
  %5304 = vmatprep.subr.bf16.mxu0 0
  %5305 = vmatpush2.bf16.msra.mxu0 %v4086
  %5306 = vmatprep.subr.bf16.mxu0 0
  %5307 = vmatpush2.bf16.msra.mxu0 %v4085
  %5308 = vmatprep.subr.bf16.mxu0 0
  %5309 = vmatpush2.bf16.msra.mxu0 %v4084
  %5310 = vmatprep.mubr.bf16.mxu0 %v2897
  %5311 = vmatmul.mubr.bf16.gmra.mxu0 %v2896
  %v5312 = vpop.f32.mrf.mxu0
  %v5313 = vadd.f32 %v4768, %v5312
  %v5314 = vpop.f32.mrf.mxu0
  %v5315 = vpop.f32.mrf.mxu0
  %v5316 = vadd.f32 %v4771, %v5315
  %v5317 = vpop.f32.mrf.mxu0
  %5318 = vmatprep.mubr.bf16.mxu0 %v2903
  %5319 = vmatmul.mubr.bf16.gmra.mxu0 %v2902
  %v5320 = vpop.f32.mrf.mxu0
  %v5321 = vadd.f32 %v4776, %v5320
  %v5322 = vpop.f32.mrf.mxu0
  %v5323 = vpop.f32.mrf.mxu0
  %v5324 = vadd.f32 %v4779, %v5323
  %v5325 = vpop.f32.mrf.mxu0
  %5326 = vmatprep.mubr.bf16.mxu0 %v2909
  %5327 = vmatmul.mubr.bf16.gmra.mxu0 %v2908
  %v5328 = vpop.f32.mrf.mxu0
  %v5329 = vadd.f32 %v4784, %v5328
  %v5330 = vpop.f32.mrf.mxu0
  %v5331 = vpop.f32.mrf.mxu0
  %v5332 = vadd.f32 %v4787, %v5331
  %v5333 = vpop.f32.mrf.mxu0
  %5334 = vmatprep.mubr.bf16.mxu0 %v2915
  %5335 = vmatmul.mubr.bf16.gmra.mxu0 %v2914
  %v5336 = vpop.f32.mrf.mxu0
  %v5337 = vadd.f32 %v4792, %v5336
  %v5338 = vpop.f32.mrf.mxu0
  %v5339 = vpop.f32.mrf.mxu0
  %v5340 = vadd.f32 %v4795, %v5339
  %v5341 = vpop.f32.mrf.mxu0
  %5342 = vmatprep.mubr.bf16.mxu0 %v2924
  %5343 = vmatmul.mubr.bf16.gmra.mxu0 %v2923
  %v5344 = vpop.f32.mrf.mxu0
  %v5345 = vadd.f32 %v4800, %v5344
  %v5346 = vpop.f32.mrf.mxu0
  %v5347 = vpop.f32.mrf.mxu0
  %v5348 = vadd.f32 %v4803, %v5347
  %v5349 = vpop.f32.mrf.mxu0
  %5350 = vmatprep.mubr.bf16.mxu0 %v2930
  %5351 = vmatmul.mubr.bf16.gmra.mxu0 %v2929
  %v5352 = vpop.f32.mrf.mxu0
  %v5353 = vadd.f32 %v4808, %v5352
  %v5354 = vpop.f32.mrf.mxu0
  %v5355 = vpop.f32.mrf.mxu0
  %v5356 = vadd.f32 %v4811, %v5355
  %v5357 = vpop.f32.mrf.mxu0
  %5358 = vmatprep.mubr.bf16.mxu0 %v2936
  %5359 = vmatmul.mubr.bf16.gmra.mxu0 %v2935
  %v5360 = vpop.f32.mrf.mxu0
  %v5361 = vadd.f32 %v4816, %v5360
  %v5362 = vpop.f32.mrf.mxu0
  %v5363 = vpop.f32.mrf.mxu0
  %v5364 = vadd.f32 %v4819, %v5363
  %v5365 = vpop.f32.mrf.mxu0
  %5366 = vmatprep.mubr.bf16.mxu0 %v2942
  %5367 = vmatmul.mubr.bf16.gmra.mxu0 %v2941
  %v5368 = vpop.f32.mrf.mxu0
  %v5369 = vadd.f32 %v4824, %v5368
  %v5370 = vpop.f32.mrf.mxu0
  %v5371 = vpop.f32.mrf.mxu0
  %v5372 = vadd.f32 %v4827, %v5371
  %v5373 = vpop.f32.mrf.mxu0
  %5374 = vmatprep.mubr.bf16.mxu0 %v2951
  %5375 = vmatmul.mubr.bf16.gmra.mxu0 %v2950
  %v5376 = vpop.f32.mrf.mxu0
  %v5377 = vadd.f32 %v4832, %v5376
  %v5378 = vpop.f32.mrf.mxu0
  %v5379 = vpop.f32.mrf.mxu0
  %v5380 = vadd.f32 %v4835, %v5379
  %v5381 = vpop.f32.mrf.mxu0
  %5382 = vmatprep.mubr.bf16.mxu0 %v2957
  %5383 = vmatmul.mubr.bf16.gmra.mxu0 %v2956
  %v5384 = vpop.f32.mrf.mxu0
  %v5385 = vadd.f32 %v4840, %v5384
  %v5386 = vpop.f32.mrf.mxu0
  %v5387 = vpop.f32.mrf.mxu0
  %v5388 = vadd.f32 %v4843, %v5387
  %v5389 = vpop.f32.mrf.mxu0
  %5390 = vmatprep.mubr.bf16.mxu0 %v2963
  %5391 = vmatmul.mubr.bf16.gmra.mxu0 %v2962
  %v5392 = vpop.f32.mrf.mxu0
  %v5393 = vadd.f32 %v4848, %v5392
  %v5394 = vpop.f32.mrf.mxu0
  %v5395 = vpop.f32.mrf.mxu0
  %v5396 = vadd.f32 %v4851, %v5395
  %v5397 = vpop.f32.mrf.mxu0
  %5398 = vmatprep.mubr.bf16.mxu0 %v2969
  %5399 = vmatmul.mubr.bf16.gmra.mxu0 %v2968
  %v5400 = vpop.f32.mrf.mxu0
  %v5401 = vadd.f32 %v4856, %v5400
  %v5402 = vpop.f32.mrf.mxu0
  %v5403 = vpop.f32.mrf.mxu0
  %v5404 = vadd.f32 %v4859, %v5403
  %v5405 = vpop.f32.mrf.mxu0
  %5406 = vmatprep.mubr.bf16.mxu0 %v2978
  %5407 = vmatmul.mubr.bf16.gmra.mxu0 %v2977
  %v5408 = vpop.f32.mrf.mxu0
  %v5409 = vadd.f32 %v4864, %v5408
  %v5410 = vpop.f32.mrf.mxu0
  %v5411 = vpop.f32.mrf.mxu0
  %v5412 = vadd.f32 %v4867, %v5411
  %v5413 = vpop.f32.mrf.mxu0
  %5414 = vmatprep.mubr.bf16.mxu0 %v2984
  %5415 = vmatmul.mubr.bf16.gmra.mxu0 %v2983
  %v5416 = vpop.f32.mrf.mxu0
  %v5417 = vadd.f32 %v4872, %v5416
  %v5418 = vpop.f32.mrf.mxu0
  %v5419 = vpop.f32.mrf.mxu0
  %v5420 = vadd.f32 %v4875, %v5419
  %v5421 = vpop.f32.mrf.mxu0
  %5422 = vmatprep.mubr.bf16.mxu0 %v2990
  %5423 = vmatmul.mubr.bf16.gmra.mxu0 %v2989
  %v5424 = vpop.f32.mrf.mxu0
  %v5425 = vadd.f32 %v4880, %v5424
  %v5426 = vpop.f32.mrf.mxu0
  %v5427 = vpop.f32.mrf.mxu0
  %v5428 = vadd.f32 %v4883, %v5427
  %v5429 = vpop.f32.mrf.mxu0
  %5430 = vmatprep.mubr.bf16.mxu0 %v2996
  %5431 = vmatmul.mubr.bf16.gmra.mxu0 %v2995
  %v5432 = vpop.f32.mrf.mxu0
  %v5433 = vadd.f32 %v4888, %v5432
  %v5434 = vpop.f32.mrf.mxu0
  %v5435 = vpop.f32.mrf.mxu0
  %v5436 = vadd.f32 %v4891, %v5435
  %v5437 = vpop.f32.mrf.mxu0
  %5438 = vmatprep.mubr.bf16.mxu0 %v3005
  %5439 = vmatmul.mubr.bf16.gmra.mxu0 %v3004
  %v5440 = vpop.f32.mrf.mxu0
  %v5441 = vadd.f32 %v4896, %v5440
  %v5442 = vpop.f32.mrf.mxu0
  %v5443 = vpop.f32.mrf.mxu0
  %v5444 = vadd.f32 %v4899, %v5443
  %v5445 = vpop.f32.mrf.mxu0
  %5446 = vmatprep.mubr.bf16.mxu0 %v3011
  %5447 = vmatmul.mubr.bf16.gmra.mxu0 %v3010
  %v5448 = vpop.f32.mrf.mxu0
  %v5449 = vadd.f32 %v4904, %v5448
  %v5450 = vpop.f32.mrf.mxu0
  %v5451 = vpop.f32.mrf.mxu0
  %v5452 = vadd.f32 %v4907, %v5451
  %v5453 = vpop.f32.mrf.mxu0
  %5454 = vmatprep.mubr.bf16.mxu0 %v3017
  %5455 = vmatmul.mubr.bf16.gmra.mxu0 %v3016
  %v5456 = vpop.f32.mrf.mxu0
  %v5457 = vadd.f32 %v4912, %v5456
  %v5458 = vpop.f32.mrf.mxu0
  %v5459 = vpop.f32.mrf.mxu0
  %v5460 = vadd.f32 %v4915, %v5459
  %v5461 = vpop.f32.mrf.mxu0
  %5462 = vmatprep.mubr.bf16.mxu0 %v3023
  %5463 = vmatmul.mubr.bf16.gmra.mxu0 %v3022
  %v5464 = vpop.f32.mrf.mxu0
  %v5465 = vadd.f32 %v4920, %v5464
  %v5466 = vpop.f32.mrf.mxu0
  %v5467 = vpop.f32.mrf.mxu0
  %v5468 = vadd.f32 %v4923, %v5467
  %v5469 = vpop.f32.mrf.mxu0
  %5470 = vmatprep.mubr.bf16.mxu0 %v3032
  %5471 = vmatmul.mubr.bf16.gmra.mxu0 %v3031
  %v5472 = vpop.f32.mrf.mxu0
  %v5473 = vadd.f32 %v4928, %v5472
  %v5474 = vpop.f32.mrf.mxu0
  %v5475 = vpop.f32.mrf.mxu0
  %v5476 = vadd.f32 %v4931, %v5475
  %v5477 = vpop.f32.mrf.mxu0
  %5478 = vmatprep.mubr.bf16.mxu0 %v3038
  %5479 = vmatmul.mubr.bf16.gmra.mxu0 %v3037
  %v5480 = vpop.f32.mrf.mxu0
  %v5481 = vadd.f32 %v4936, %v5480
  %v5482 = vpop.f32.mrf.mxu0
  %v5483 = vpop.f32.mrf.mxu0
  %v5484 = vadd.f32 %v4939, %v5483
  %v5485 = vpop.f32.mrf.mxu0
  %5486 = vmatprep.mubr.bf16.mxu0 %v3044
  %5487 = vmatmul.mubr.bf16.gmra.mxu0 %v3043
  %v5488 = vpop.f32.mrf.mxu0
  %v5489 = vadd.f32 %v4944, %v5488
  %v5490 = vpop.f32.mrf.mxu0
  %v5491 = vpop.f32.mrf.mxu0
  %v5492 = vadd.f32 %v4947, %v5491
  %v5493 = vpop.f32.mrf.mxu0
  %5494 = vmatprep.mubr.bf16.mxu0 %v3050
  %5495 = vmatmul.mubr.bf16.gmra.mxu0 %v3049
  %v5496 = vpop.f32.mrf.mxu0
  %v5497 = vadd.f32 %v4952, %v5496
  %v5498 = vpop.f32.mrf.mxu0
  %v5499 = vpop.f32.mrf.mxu0
  %v5500 = vadd.f32 %v4955, %v5499
  %v5501 = vpop.f32.mrf.mxu0
  %5502 = vmatprep.mubr.bf16.mxu0 %v3059
  %5503 = vmatmul.mubr.bf16.gmra.mxu0 %v3058
  %v5504 = vpop.f32.mrf.mxu0
  %v5505 = vadd.f32 %v4960, %v5504
  %v5506 = vpop.f32.mrf.mxu0
  %v5507 = vpop.f32.mrf.mxu0
  %v5508 = vadd.f32 %v4963, %v5507
  %v5509 = vpop.f32.mrf.mxu0
  %5510 = vmatprep.mubr.bf16.mxu0 %v3065
  %5511 = vmatmul.mubr.bf16.gmra.mxu0 %v3064
  %v5512 = vpop.f32.mrf.mxu0
  %v5513 = vadd.f32 %v4968, %v5512
  %v5514 = vpop.f32.mrf.mxu0
  %v5515 = vpop.f32.mrf.mxu0
  %v5516 = vadd.f32 %v4971, %v5515
  %v5517 = vpop.f32.mrf.mxu0
  %5518 = vmatprep.mubr.bf16.mxu0 %v3071
  %5519 = vmatmul.mubr.bf16.gmra.mxu0 %v3070
  %v5520 = vpop.f32.mrf.mxu0
  %v5521 = vadd.f32 %v4976, %v5520
  %v5522 = vpop.f32.mrf.mxu0
  %v5523 = vpop.f32.mrf.mxu0
  %v5524 = vadd.f32 %v4979, %v5523
  %v5525 = vpop.f32.mrf.mxu0
  %5526 = vmatprep.mubr.bf16.mxu0 %v3077
  %5527 = vmatmul.mubr.bf16.gmra.mxu0 %v3076
  %v5528 = vpop.f32.mrf.mxu0
  %v5529 = vadd.f32 %v4984, %v5528
  %v5530 = vpop.f32.mrf.mxu0
  %v5531 = vpop.f32.mrf.mxu0
  %v5532 = vadd.f32 %v4987, %v5531
  %v5533 = vpop.f32.mrf.mxu0
  %5534 = vmatprep.mubr.bf16.mxu0 %v3086
  %5535 = vmatmul.mubr.bf16.gmra.mxu0 %v3085
  %v5536 = vpop.f32.mrf.mxu0
  %v5537 = vadd.f32 %v4992, %v5536
  %v5538 = vpop.f32.mrf.mxu0
  %v5539 = vpop.f32.mrf.mxu0
  %v5540 = vadd.f32 %v4995, %v5539
  %v5541 = vpop.f32.mrf.mxu0
  %5542 = vmatprep.mubr.bf16.mxu0 %v3092
  %5543 = vmatmul.mubr.bf16.gmra.mxu0 %v3091
  %v5544 = vpop.f32.mrf.mxu0
  %v5545 = vadd.f32 %v5000, %v5544
  %v5546 = vpop.f32.mrf.mxu0
  %v5547 = vpop.f32.mrf.mxu0
  %v5548 = vadd.f32 %v5003, %v5547
  %v5549 = vpop.f32.mrf.mxu0
  %5550 = vmatprep.mubr.bf16.mxu0 %v3098
  %5551 = vmatmul.mubr.bf16.gmra.mxu0 %v3097
  %v5552 = vpop.f32.mrf.mxu0
  %v5553 = vadd.f32 %v5008, %v5552
  %v5554 = vpop.f32.mrf.mxu0
  %v5555 = vpop.f32.mrf.mxu0
  %v5556 = vadd.f32 %v5011, %v5555
  %v5557 = vpop.f32.mrf.mxu0
  %5558 = vmatprep.mubr.bf16.mxu0 %v3104
  %5559 = vmatmul.mubr.bf16.gmra.mxu0 %v3103
  %v5560 = vpop.f32.mrf.mxu0
  %v5561 = vadd.f32 %v5016, %v5560
  %v5562 = vpop.f32.mrf.mxu0
  %v5563 = vpop.f32.mrf.mxu0
  %v5564 = vadd.f32 %v5019, %v5563
  %v5565 = vpop.f32.mrf.mxu0
  %5566 = vmatprep.mubr.bf16.mxu0 %v3113
  %5567 = vmatmul.mubr.bf16.gmra.mxu0 %v3112
  %v5568 = vpop.f32.mrf.mxu0
  %v5569 = vadd.f32 %v5024, %v5568
  %v5570 = vpop.f32.mrf.mxu0
  %v5571 = vpop.f32.mrf.mxu0
  %v5572 = vadd.f32 %v5027, %v5571
  %v5573 = vpop.f32.mrf.mxu0
  %5574 = vmatprep.mubr.bf16.mxu0 %v3119
  %5575 = vmatmul.mubr.bf16.gmra.mxu0 %v3118
  %v5576 = vpop.f32.mrf.mxu0
  %v5577 = vadd.f32 %v5032, %v5576
  %v5578 = vpop.f32.mrf.mxu0
  %v5579 = vpop.f32.mrf.mxu0
  %v5580 = vadd.f32 %v5035, %v5579
  %v5581 = vpop.f32.mrf.mxu0
  %5582 = vmatprep.mubr.bf16.mxu0 %v3125
  %5583 = vmatmul.mubr.bf16.gmra.mxu0 %v3124
  %v5584 = vpop.f32.mrf.mxu0
  %v5585 = vadd.f32 %v5040, %v5584
  %v5586 = vpop.f32.mrf.mxu0
  %v5587 = vpop.f32.mrf.mxu0
  %v5588 = vadd.f32 %v5043, %v5587
  %v5589 = vpop.f32.mrf.mxu0
  %5590 = vmatprep.mubr.bf16.mxu0 %v3131
  %5591 = vmatmul.mubr.bf16.gmra.mxu0 %v3130
  %v5592 = vpop.f32.mrf.mxu0
  %v5593 = vadd.f32 %v5048, %v5592
  %v5594 = vpop.f32.mrf.mxu0
  %v5595 = vpop.f32.mrf.mxu0
  %v5596 = vadd.f32 %v5051, %v5595
  %v5597 = vpop.f32.mrf.mxu0
  %5598 = vmatprep.mubr.bf16.mxu0 %v3140
  %5599 = vmatmul.mubr.bf16.gmra.mxu0 %v3139
  %v5600 = vpop.f32.mrf.mxu0
  %v5601 = vadd.f32 %v5056, %v5600
  %v5602 = vpop.f32.mrf.mxu0
  %v5603 = vpop.f32.mrf.mxu0
  %v5604 = vadd.f32 %v5059, %v5603
  %v5605 = vpop.f32.mrf.mxu0
  %5606 = vmatprep.mubr.bf16.mxu0 %v3146
  %5607 = vmatmul.mubr.bf16.gmra.mxu0 %v3145
  %v5608 = vpop.f32.mrf.mxu0
  %v5609 = vadd.f32 %v5064, %v5608
  %v5610 = vpop.f32.mrf.mxu0
  %v5611 = vpop.f32.mrf.mxu0
  %v5612 = vadd.f32 %v5067, %v5611
  %v5613 = vpop.f32.mrf.mxu0
  %5614 = vmatprep.mubr.bf16.mxu0 %v3152
  %5615 = vmatmul.mubr.bf16.gmra.mxu0 %v3151
  %v5616 = vpop.f32.mrf.mxu0
  %v5617 = vadd.f32 %v5072, %v5616
  %v5618 = vpop.f32.mrf.mxu0
  %v5619 = vpop.f32.mrf.mxu0
  %v5620 = vadd.f32 %v5075, %v5619
  %v5621 = vpop.f32.mrf.mxu0
  %5622 = vmatprep.mubr.bf16.mxu0 %v3158
  %5623 = vmatmul.mubr.bf16.gmra.mxu0 %v3157
  %v5624 = vpop.f32.mrf.mxu0
  %v5625 = vadd.f32 %v5080, %v5624
  %v5626 = vpop.f32.mrf.mxu0
  %v5627 = vpop.f32.mrf.mxu0
  %v5628 = vadd.f32 %v5083, %v5627
  %v5629 = vpop.f32.mrf.mxu0
  %5630 = vmatprep.mubr.bf16.mxu0 %v3167
  %5631 = vmatmul.mubr.bf16.gmra.mxu0 %v3166
  %v5632 = vpop.f32.mrf.mxu0
  %v5633 = vadd.f32 %v5088, %v5632
  %v5634 = vpop.f32.mrf.mxu0
  %v5635 = vpop.f32.mrf.mxu0
  %v5636 = vadd.f32 %v5091, %v5635
  %v5637 = vpop.f32.mrf.mxu0
  %5638 = vmatprep.mubr.bf16.mxu0 %v3173
  %5639 = vmatmul.mubr.bf16.gmra.mxu0 %v3172
  %v5640 = vpop.f32.mrf.mxu0
  %v5641 = vadd.f32 %v5096, %v5640
  %v5642 = vpop.f32.mrf.mxu0
  %v5643 = vpop.f32.mrf.mxu0
  %v5644 = vadd.f32 %v5099, %v5643
  %v5645 = vpop.f32.mrf.mxu0
  %5646 = vmatprep.mubr.bf16.mxu0 %v3179
  %5647 = vmatmul.mubr.bf16.gmra.mxu0 %v3178
  %v5648 = vpop.f32.mrf.mxu0
  %v5649 = vadd.f32 %v5104, %v5648
  %v5650 = vpop.f32.mrf.mxu0
  %v5651 = vpop.f32.mrf.mxu0
  %v5652 = vadd.f32 %v5107, %v5651
  %v5653 = vpop.f32.mrf.mxu0
  %5654 = vmatprep.mubr.bf16.mxu0 %v3185
  %5655 = vmatmul.mubr.bf16.gmra.mxu0 %v3184
  %v5656 = vpop.f32.mrf.mxu0
  %v5657 = vadd.f32 %v5112, %v5656
  %v5658 = vpop.f32.mrf.mxu0
  %v5659 = vpop.f32.mrf.mxu0
  %v5660 = vadd.f32 %v5115, %v5659
  %v5661 = vpop.f32.mrf.mxu0
  %5662 = vmatprep.mubr.bf16.mxu0 %v3194
  %5663 = vmatmul.mubr.bf16.gmra.mxu0 %v3193
  %v5664 = vpop.f32.mrf.mxu0
  %v5665 = vadd.f32 %v5120, %v5664
  %v5666 = vpop.f32.mrf.mxu0
  %v5667 = vpop.f32.mrf.mxu0
  %v5668 = vadd.f32 %v5123, %v5667
  %v5669 = vpop.f32.mrf.mxu0
  %5670 = vmatprep.mubr.bf16.mxu0 %v3200
  %5671 = vmatmul.mubr.bf16.gmra.mxu0 %v3199
  %v5672 = vpop.f32.mrf.mxu0
  %v5673 = vadd.f32 %v5128, %v5672
  %v5674 = vpop.f32.mrf.mxu0
  %v5675 = vpop.f32.mrf.mxu0
  %v5676 = vadd.f32 %v5131, %v5675
  %v5677 = vpop.f32.mrf.mxu0
  %5678 = vmatprep.mubr.bf16.mxu0 %v3206
  %5679 = vmatmul.mubr.bf16.gmra.mxu0 %v3205
  %v5680 = vpop.f32.mrf.mxu0
  %v5681 = vadd.f32 %v5136, %v5680
  %v5682 = vpop.f32.mrf.mxu0
  %v5683 = vpop.f32.mrf.mxu0
  %v5684 = vadd.f32 %v5139, %v5683
  %v5685 = vpop.f32.mrf.mxu0
  %5686 = vmatprep.mubr.bf16.mxu0 %v3212
  %5687 = vmatmul.mubr.bf16.gmra.mxu0 %v3211
  %v5688 = vpop.f32.mrf.mxu0
  %v5689 = vadd.f32 %v5144, %v5688
  %v5690 = vpop.f32.mrf.mxu0
  %v5691 = vpop.f32.mrf.mxu0
  %v5692 = vadd.f32 %v5147, %v5691
  %v5693 = vpop.f32.mrf.mxu0
  %5694 = vmatprep.mubr.bf16.mxu0 %v3221
  %5695 = vmatmul.mubr.bf16.gmra.mxu0 %v3220
  %v5696 = vpop.f32.mrf.mxu0
  %v5697 = vadd.f32 %v5152, %v5696
  %v5698 = vpop.f32.mrf.mxu0
  %v5699 = vpop.f32.mrf.mxu0
  %v5700 = vadd.f32 %v5155, %v5699
  %v5701 = vpop.f32.mrf.mxu0
  %5702 = vmatprep.mubr.bf16.mxu0 %v3227
  %5703 = vmatmul.mubr.bf16.gmra.mxu0 %v3226
  %v5704 = vpop.f32.mrf.mxu0
  %v5705 = vadd.f32 %v5160, %v5704
  %v5706 = vpop.f32.mrf.mxu0
  %v5707 = vpop.f32.mrf.mxu0
  %v5708 = vadd.f32 %v5163, %v5707
  %v5709 = vpop.f32.mrf.mxu0
  %5710 = vmatprep.mubr.bf16.mxu0 %v3233
  %5711 = vmatmul.mubr.bf16.gmra.mxu0 %v3232
  %v5712 = vpop.f32.mrf.mxu0
  %v5713 = vadd.f32 %v5168, %v5712
  %v5714 = vpop.f32.mrf.mxu0
  %v5715 = vpop.f32.mrf.mxu0
  %v5716 = vadd.f32 %v5171, %v5715
  %v5717 = vpop.f32.mrf.mxu0
  %5718 = vmatprep.mubr.bf16.mxu0 %v3239
  %5719 = vmatmul.mubr.bf16.gmra.mxu0 %v3238
  %v5720 = vpop.f32.mrf.mxu0
  %v5721 = vadd.f32 %v5176, %v5720
  %v5722 = vpop.f32.mrf.mxu0
  %v5723 = vpop.f32.mrf.mxu0
  %v5724 = vadd.f32 %v5179, %v5723
  %v5725 = vpop.f32.mrf.mxu0
  %5726 = vmatprep.mubr.bf16.mxu0 %v3248
  %5727 = vmatmul.mubr.bf16.gmra.mxu0 %v3247
  %v5728 = vpop.f32.mrf.mxu0
  %v5729 = vadd.f32 %v5184, %v5728
  %v5730 = vpop.f32.mrf.mxu0
  %v5731 = vpop.f32.mrf.mxu0
  %v5732 = vadd.f32 %v5187, %v5731
  %v5733 = vpop.f32.mrf.mxu0
  %5734 = vmatprep.mubr.bf16.mxu0 %v3254
  %5735 = vmatmul.mubr.bf16.gmra.mxu0 %v3253
  %v5736 = vpop.f32.mrf.mxu0
  %v5737 = vadd.f32 %v5192, %v5736
  %v5738 = vpop.f32.mrf.mxu0
  %v5739 = vpop.f32.mrf.mxu0
  %v5740 = vadd.f32 %v5195, %v5739
  %v5741 = vpop.f32.mrf.mxu0
  %5742 = vmatprep.mubr.bf16.mxu0 %v3260
  %5743 = vmatmul.mubr.bf16.gmra.mxu0 %v3259
  %v5744 = vpop.f32.mrf.mxu0
  %v5745 = vadd.f32 %v5200, %v5744
  %v5746 = vpop.f32.mrf.mxu0
  %v5747 = vpop.f32.mrf.mxu0
  %v5748 = vadd.f32 %v5203, %v5747
  %v5749 = vpop.f32.mrf.mxu0
  %5750 = vmatprep.mubr.bf16.mxu0 %v3266
  %5751 = vmatmul.mubr.bf16.gmra.mxu0 %v3265
  %v5752 = vpop.f32.mrf.mxu0
  %v5753 = vadd.f32 %v5208, %v5752
  %v5754 = vpop.f32.mrf.mxu0
  %v5755 = vpop.f32.mrf.mxu0
  %v5756 = vadd.f32 %v5211, %v5755
  %v5757 = vpop.f32.mrf.mxu0
  %5758 = vmatprep.mubr.bf16.mxu0 %v3275
  %5759 = vmatmul.mubr.bf16.gmra.mxu0 %v3274
  %v5760 = vpop.f32.mrf.mxu0
  %v5761 = vadd.f32 %v5216, %v5760
  %v5762 = vpop.f32.mrf.mxu0
  %v5763 = vpop.f32.mrf.mxu0
  %v5764 = vadd.f32 %v5219, %v5763
  %v5765 = vpop.f32.mrf.mxu0
  %5766 = vmatprep.mubr.bf16.mxu0 %v3281
  %5767 = vmatmul.mubr.bf16.gmra.mxu0 %v3280
  %v5768 = vpop.f32.mrf.mxu0
  %v5769 = vadd.f32 %v5224, %v5768
  %v5770 = vpop.f32.mrf.mxu0
  %v5771 = vpop.f32.mrf.mxu0
  %v5772 = vadd.f32 %v5227, %v5771
  %v5773 = vpop.f32.mrf.mxu0
  %5774 = vmatprep.mubr.bf16.mxu0 %v3287
  %5775 = vmatmul.mubr.bf16.gmra.mxu0 %v3286
  %v5776 = vpop.f32.mrf.mxu0
  %v5777 = vadd.f32 %v5232, %v5776
  %v5778 = vpop.f32.mrf.mxu0
  %v5779 = vpop.f32.mrf.mxu0
  %v5780 = vadd.f32 %v5235, %v5779
  %v5781 = vpop.f32.mrf.mxu0
  %5782 = vmatprep.mubr.bf16.mxu0 %v3293
  %5783 = vmatmul.mubr.bf16.gmra.mxu0 %v3292
  %v5784 = vpop.f32.mrf.mxu0
  %v5785 = vadd.f32 %v5240, %v5784
  %v5786 = vpop.f32.mrf.mxu0
  %v5787 = vpop.f32.mrf.mxu0
  %v5788 = vadd.f32 %v5243, %v5787
  %v5789 = vpop.f32.mrf.mxu0
  %5790 = vmatprep.mubr.bf16.mxu0 %v3302
  %5791 = vmatmul.mubr.bf16.gmra.mxu0 %v3301
  %v5792 = vpop.f32.mrf.mxu0
  %v5793 = vadd.f32 %v5248, %v5792
  %v5794 = vpop.f32.mrf.mxu0
  %v5795 = vpop.f32.mrf.mxu0
  %v5796 = vadd.f32 %v5251, %v5795
  %v5797 = vpop.f32.mrf.mxu0
  %5798 = vmatprep.mubr.bf16.mxu0 %v3308
  %5799 = vmatmul.mubr.bf16.gmra.mxu0 %v3307
  %v5800 = vpop.f32.mrf.mxu0
  %v5801 = vadd.f32 %v5256, %v5800
  %v5802 = vpop.f32.mrf.mxu0
  %v5803 = vpop.f32.mrf.mxu0
  %v5804 = vadd.f32 %v5259, %v5803
  %v5805 = vpop.f32.mrf.mxu0
  %5806 = vmatprep.mubr.bf16.mxu0 %v3314
  %5807 = vmatmul.mubr.bf16.gmra.mxu0 %v3313
  %v5808 = vpop.f32.mrf.mxu0
  %v5809 = vadd.f32 %v5264, %v5808
  %v5810 = vpop.f32.mrf.mxu0
  %v5811 = vpop.f32.mrf.mxu0
  %v5812 = vadd.f32 %v5267, %v5811
  %v5813 = vpop.f32.mrf.mxu0
  %5814 = vmatprep.mubr.bf16.mxu0 %v3320
  %5815 = vmatmul.mubr.bf16.gmra.mxu0 %v3319
  %v5816 = vpop.f32.mrf.mxu0
  %v5817 = vadd.f32 %v5272, %v5816
  %v5818 = vpop.f32.mrf.mxu0
  %v5819 = vpop.f32.mrf.mxu0
  %v5820 = vadd.f32 %v5275, %v5819
  %v5821 = vpop.f32.mrf.mxu0
  %5822 = vdwg.mxu0
  %5823 = vmatprep.subr.bf16.mxu0 0
  %5824 = vmatpush1.bf16.msra.mxu0 %v4099
  %5825 = vmatprep.subr.bf16.mxu0 0
  %5826 = vmatpush1.bf16.msra.mxu0 %v4098
  %5827 = vmatprep.subr.bf16.mxu0 0
  %5828 = vmatpush1.bf16.msra.mxu0 %v4097
  %5829 = vmatprep.subr.bf16.mxu0 0
  %5830 = vmatpush1.bf16.msra.mxu0 %v4096
  %5831 = vmatprep.subr.bf16.mxu0 0
  %5832 = vmatpush1.bf16.msra.mxu0 %v4095
  %5833 = vmatprep.subr.bf16.mxu0 0
  %5834 = vmatpush1.bf16.msra.mxu0 %v4094
  %5835 = vmatprep.subr.bf16.mxu0 0
  %5836 = vmatpush1.bf16.msra.mxu0 %v4093
  %5837 = vmatprep.subr.bf16.mxu0 0
  %5838 = vmatpush1.bf16.msra.mxu0 %v4092
  %5839 = vmatprep.subr.bf16.mxu0 0
  %5840 = vmatpush2.bf16.msra.mxu0 %v4107
  %5841 = vmatprep.subr.bf16.mxu0 0
  %5842 = vmatpush2.bf16.msra.mxu0 %v4106
  %5843 = vmatprep.subr.bf16.mxu0 0
  %5844 = vmatpush2.bf16.msra.mxu0 %v4105
  %5845 = vmatprep.subr.bf16.mxu0 0
  %5846 = vmatpush2.bf16.msra.mxu0 %v4104
  %5847 = vmatprep.subr.bf16.mxu0 0
  %5848 = vmatpush2.bf16.msra.mxu0 %v4103
  %5849 = vmatprep.subr.bf16.mxu0 0
  %5850 = vmatpush2.bf16.msra.mxu0 %v4102
  %5851 = vmatprep.subr.bf16.mxu0 0
  %5852 = vmatpush2.bf16.msra.mxu0 %v4101
  %5853 = vmatprep.subr.bf16.mxu0 0
  %5854 = vmatpush2.bf16.msra.mxu0 %v4100
  %5855 = vmatprep.mubr.bf16.mxu0 %v2899
  %5856 = vmatmul.mubr.bf16.gmra.mxu0 %v2898
  %v5857 = vpop.f32.mrf.mxu0
  %v5858 = vadd.f32 %v5313, %v5857
  %v5859 = vpop.f32.mrf.mxu0
  %v5860 = vpop.f32.mrf.mxu0
  %v5861 = vadd.f32 %v5316, %v5860
  %v5862 = vpop.f32.mrf.mxu0
  %5863 = vmatprep.mubr.bf16.mxu0 %v2905
  %5864 = vmatmul.mubr.bf16.gmra.mxu0 %v2904
  %v5865 = vpop.f32.mrf.mxu0
  %v5866 = vadd.f32 %v5321, %v5865
  %v5867 = vpop.f32.mrf.mxu0
  %v5868 = vpop.f32.mrf.mxu0
  %v5869 = vadd.f32 %v5324, %v5868
  %v5870 = vpop.f32.mrf.mxu0
  %5871 = vmatprep.mubr.bf16.mxu0 %v2911
  %5872 = vmatmul.mubr.bf16.gmra.mxu0 %v2910
  %v5873 = vpop.f32.mrf.mxu0
  %v5874 = vadd.f32 %v5329, %v5873
  %v5875 = vpop.f32.mrf.mxu0
  %v5876 = vpop.f32.mrf.mxu0
  %v5877 = vadd.f32 %v5332, %v5876
  %v5878 = vpop.f32.mrf.mxu0
  %5879 = vmatprep.mubr.bf16.mxu0 %v2917
  %5880 = vmatmul.mubr.bf16.gmra.mxu0 %v2916
  %v5881 = vpop.f32.mrf.mxu0
  %v5882 = vadd.f32 %v5337, %v5881
  %v5883 = vpop.f32.mrf.mxu0
  %v5884 = vpop.f32.mrf.mxu0
  %v5885 = vadd.f32 %v5340, %v5884
  %v5886 = vpop.f32.mrf.mxu0
  %5887 = vmatprep.mubr.bf16.mxu0 %v2926
  %5888 = vmatmul.mubr.bf16.gmra.mxu0 %v2925
  %v5889 = vpop.f32.mrf.mxu0
  %v5890 = vadd.f32 %v5345, %v5889
  %v5891 = vpop.f32.mrf.mxu0
  %v5892 = vpop.f32.mrf.mxu0
  %v5893 = vadd.f32 %v5348, %v5892
  %v5894 = vpop.f32.mrf.mxu0
  %5895 = vmatprep.mubr.bf16.mxu0 %v2932
  %5896 = vmatmul.mubr.bf16.gmra.mxu0 %v2931
  %v5897 = vpop.f32.mrf.mxu0
  %v5898 = vadd.f32 %v5353, %v5897
  %v5899 = vpop.f32.mrf.mxu0
  %v5900 = vpop.f32.mrf.mxu0
  %v5901 = vadd.f32 %v5356, %v5900
  %v5902 = vpop.f32.mrf.mxu0
  %5903 = vmatprep.mubr.bf16.mxu0 %v2938
  %5904 = vmatmul.mubr.bf16.gmra.mxu0 %v2937
  %v5905 = vpop.f32.mrf.mxu0
  %v5906 = vadd.f32 %v5361, %v5905
  %v5907 = vpop.f32.mrf.mxu0
  %v5908 = vpop.f32.mrf.mxu0
  %v5909 = vadd.f32 %v5364, %v5908
  %v5910 = vpop.f32.mrf.mxu0
  %5911 = vmatprep.mubr.bf16.mxu0 %v2944
  %5912 = vmatmul.mubr.bf16.gmra.mxu0 %v2943
  %v5913 = vpop.f32.mrf.mxu0
  %v5914 = vadd.f32 %v5369, %v5913
  %v5915 = vpop.f32.mrf.mxu0
  %v5916 = vpop.f32.mrf.mxu0
  %v5917 = vadd.f32 %v5372, %v5916
  %v5918 = vpop.f32.mrf.mxu0
  %5919 = vmatprep.mubr.bf16.mxu0 %v2953
  %5920 = vmatmul.mubr.bf16.gmra.mxu0 %v2952
  %v5921 = vpop.f32.mrf.mxu0
  %v5922 = vadd.f32 %v5377, %v5921
  %v5923 = vpop.f32.mrf.mxu0
  %v5924 = vpop.f32.mrf.mxu0
  %v5925 = vadd.f32 %v5380, %v5924
  %v5926 = vpop.f32.mrf.mxu0
  %5927 = vmatprep.mubr.bf16.mxu0 %v2959
  %5928 = vmatmul.mubr.bf16.gmra.mxu0 %v2958
  %v5929 = vpop.f32.mrf.mxu0
  %v5930 = vadd.f32 %v5385, %v5929
  %v5931 = vpop.f32.mrf.mxu0
  %v5932 = vpop.f32.mrf.mxu0
  %v5933 = vadd.f32 %v5388, %v5932
  %v5934 = vpop.f32.mrf.mxu0
  %5935 = vmatprep.mubr.bf16.mxu0 %v2965
  %5936 = vmatmul.mubr.bf16.gmra.mxu0 %v2964
  %v5937 = vpop.f32.mrf.mxu0
  %v5938 = vadd.f32 %v5393, %v5937
  %v5939 = vpop.f32.mrf.mxu0
  %v5940 = vpop.f32.mrf.mxu0
  %v5941 = vadd.f32 %v5396, %v5940
  %v5942 = vpop.f32.mrf.mxu0
  %5943 = vmatprep.mubr.bf16.mxu0 %v2971
  %5944 = vmatmul.mubr.bf16.gmra.mxu0 %v2970
  %v5945 = vpop.f32.mrf.mxu0
  %v5946 = vadd.f32 %v5401, %v5945
  %v5947 = vpop.f32.mrf.mxu0
  %v5948 = vpop.f32.mrf.mxu0
  %v5949 = vadd.f32 %v5404, %v5948
  %v5950 = vpop.f32.mrf.mxu0
  %5951 = vmatprep.mubr.bf16.mxu0 %v2980
  %5952 = vmatmul.mubr.bf16.gmra.mxu0 %v2979
  %v5953 = vpop.f32.mrf.mxu0
  %v5954 = vadd.f32 %v5409, %v5953
  %v5955 = vpop.f32.mrf.mxu0
  %v5956 = vpop.f32.mrf.mxu0
  %v5957 = vadd.f32 %v5412, %v5956
  %v5958 = vpop.f32.mrf.mxu0
  %5959 = vmatprep.mubr.bf16.mxu0 %v2986
  %5960 = vmatmul.mubr.bf16.gmra.mxu0 %v2985
  %v5961 = vpop.f32.mrf.mxu0
  %v5962 = vadd.f32 %v5417, %v5961
  %v5963 = vpop.f32.mrf.mxu0
  %v5964 = vpop.f32.mrf.mxu0
  %v5965 = vadd.f32 %v5420, %v5964
  %v5966 = vpop.f32.mrf.mxu0
  %5967 = vmatprep.mubr.bf16.mxu0 %v2992
  %5968 = vmatmul.mubr.bf16.gmra.mxu0 %v2991
  %v5969 = vpop.f32.mrf.mxu0
  %v5970 = vadd.f32 %v5425, %v5969
  %v5971 = vpop.f32.mrf.mxu0
  %v5972 = vpop.f32.mrf.mxu0
  %v5973 = vadd.f32 %v5428, %v5972
  %v5974 = vpop.f32.mrf.mxu0
  %5975 = vmatprep.mubr.bf16.mxu0 %v2998
  %5976 = vmatmul.mubr.bf16.gmra.mxu0 %v2997
  %v5977 = vpop.f32.mrf.mxu0
  %v5978 = vadd.f32 %v5433, %v5977
  %v5979 = vpop.f32.mrf.mxu0
  %v5980 = vpop.f32.mrf.mxu0
  %v5981 = vadd.f32 %v5436, %v5980
  %v5982 = vpop.f32.mrf.mxu0
  %5983 = vmatprep.mubr.bf16.mxu0 %v3007
  %5984 = vmatmul.mubr.bf16.gmra.mxu0 %v3006
  %v5985 = vpop.f32.mrf.mxu0
  %v5986 = vadd.f32 %v5441, %v5985
  %v5987 = vpop.f32.mrf.mxu0
  %v5988 = vpop.f32.mrf.mxu0
  %v5989 = vadd.f32 %v5444, %v5988
  %v5990 = vpop.f32.mrf.mxu0
  %5991 = vmatprep.mubr.bf16.mxu0 %v3013
  %5992 = vmatmul.mubr.bf16.gmra.mxu0 %v3012
  %v5993 = vpop.f32.mrf.mxu0
  %v5994 = vadd.f32 %v5449, %v5993
  %v5995 = vpop.f32.mrf.mxu0
  %v5996 = vpop.f32.mrf.mxu0
  %v5997 = vadd.f32 %v5452, %v5996
  %v5998 = vpop.f32.mrf.mxu0
  %5999 = vmatprep.mubr.bf16.mxu0 %v3019
  %6000 = vmatmul.mubr.bf16.gmra.mxu0 %v3018
  %v6001 = vpop.f32.mrf.mxu0
  %v6002 = vadd.f32 %v5457, %v6001
  %v6003 = vpop.f32.mrf.mxu0
  %v6004 = vpop.f32.mrf.mxu0
  %v6005 = vadd.f32 %v5460, %v6004
  %v6006 = vpop.f32.mrf.mxu0
  %6007 = vmatprep.mubr.bf16.mxu0 %v3025
  %6008 = vmatmul.mubr.bf16.gmra.mxu0 %v3024
  %v6009 = vpop.f32.mrf.mxu0
  %v6010 = vadd.f32 %v5465, %v6009
  %v6011 = vpop.f32.mrf.mxu0
  %v6012 = vpop.f32.mrf.mxu0
  %v6013 = vadd.f32 %v5468, %v6012
  %v6014 = vpop.f32.mrf.mxu0
  %6015 = vmatprep.mubr.bf16.mxu0 %v3034
  %6016 = vmatmul.mubr.bf16.gmra.mxu0 %v3033
  %v6017 = vpop.f32.mrf.mxu0
  %v6018 = vadd.f32 %v5473, %v6017
  %v6019 = vpop.f32.mrf.mxu0
  %v6020 = vpop.f32.mrf.mxu0
  %v6021 = vadd.f32 %v5476, %v6020
  %v6022 = vpop.f32.mrf.mxu0
  %6023 = vmatprep.mubr.bf16.mxu0 %v3040
  %6024 = vmatmul.mubr.bf16.gmra.mxu0 %v3039
  %v6025 = vpop.f32.mrf.mxu0
  %v6026 = vadd.f32 %v5481, %v6025
  %v6027 = vpop.f32.mrf.mxu0
  %v6028 = vpop.f32.mrf.mxu0
  %v6029 = vadd.f32 %v5484, %v6028
  %v6030 = vpop.f32.mrf.mxu0
  %6031 = vmatprep.mubr.bf16.mxu0 %v3046
  %6032 = vmatmul.mubr.bf16.gmra.mxu0 %v3045
  %v6033 = vpop.f32.mrf.mxu0
  %v6034 = vadd.f32 %v5489, %v6033
  %v6035 = vpop.f32.mrf.mxu0
  %v6036 = vpop.f32.mrf.mxu0
  %v6037 = vadd.f32 %v5492, %v6036
  %v6038 = vpop.f32.mrf.mxu0
  %6039 = vmatprep.mubr.bf16.mxu0 %v3052
  %6040 = vmatmul.mubr.bf16.gmra.mxu0 %v3051
  %v6041 = vpop.f32.mrf.mxu0
  %v6042 = vadd.f32 %v5497, %v6041
  %v6043 = vpop.f32.mrf.mxu0
  %v6044 = vpop.f32.mrf.mxu0
  %v6045 = vadd.f32 %v5500, %v6044
  %v6046 = vpop.f32.mrf.mxu0
  %6047 = vmatprep.mubr.bf16.mxu0 %v3061
  %6048 = vmatmul.mubr.bf16.gmra.mxu0 %v3060
  %v6049 = vpop.f32.mrf.mxu0
  %v6050 = vadd.f32 %v5505, %v6049
  %v6051 = vpop.f32.mrf.mxu0
  %v6052 = vpop.f32.mrf.mxu0
  %v6053 = vadd.f32 %v5508, %v6052
  %v6054 = vpop.f32.mrf.mxu0
  %6055 = vmatprep.mubr.bf16.mxu0 %v3067
  %6056 = vmatmul.mubr.bf16.gmra.mxu0 %v3066
  %v6057 = vpop.f32.mrf.mxu0
  %v6058 = vadd.f32 %v5513, %v6057
  %v6059 = vpop.f32.mrf.mxu0
  %v6060 = vpop.f32.mrf.mxu0
  %v6061 = vadd.f32 %v5516, %v6060
  %v6062 = vpop.f32.mrf.mxu0
  %6063 = vmatprep.mubr.bf16.mxu0 %v3073
  %6064 = vmatmul.mubr.bf16.gmra.mxu0 %v3072
  %v6065 = vpop.f32.mrf.mxu0
  %v6066 = vadd.f32 %v5521, %v6065
  %v6067 = vpop.f32.mrf.mxu0
  %v6068 = vpop.f32.mrf.mxu0
  %v6069 = vadd.f32 %v5524, %v6068
  %v6070 = vpop.f32.mrf.mxu0
  %6071 = vmatprep.mubr.bf16.mxu0 %v3079
  %6072 = vmatmul.mubr.bf16.gmra.mxu0 %v3078
  %v6073 = vpop.f32.mrf.mxu0
  %v6074 = vadd.f32 %v5529, %v6073
  %v6075 = vpop.f32.mrf.mxu0
  %v6076 = vpop.f32.mrf.mxu0
  %v6077 = vadd.f32 %v5532, %v6076
  %v6078 = vpop.f32.mrf.mxu0
  %6079 = vmatprep.mubr.bf16.mxu0 %v3088
  %6080 = vmatmul.mubr.bf16.gmra.mxu0 %v3087
  %v6081 = vpop.f32.mrf.mxu0
  %v6082 = vadd.f32 %v5537, %v6081
  %v6083 = vpop.f32.mrf.mxu0
  %v6084 = vpop.f32.mrf.mxu0
  %v6085 = vadd.f32 %v5540, %v6084
  %v6086 = vpop.f32.mrf.mxu0
  %6087 = vmatprep.mubr.bf16.mxu0 %v3094
  %6088 = vmatmul.mubr.bf16.gmra.mxu0 %v3093
  %v6089 = vpop.f32.mrf.mxu0
  %v6090 = vadd.f32 %v5545, %v6089
  %v6091 = vpop.f32.mrf.mxu0
  %v6092 = vpop.f32.mrf.mxu0
  %v6093 = vadd.f32 %v5548, %v6092
  %v6094 = vpop.f32.mrf.mxu0
  %6095 = vmatprep.mubr.bf16.mxu0 %v3100
  %6096 = vmatmul.mubr.bf16.gmra.mxu0 %v3099
  %v6097 = vpop.f32.mrf.mxu0
  %v6098 = vadd.f32 %v5553, %v6097
  %v6099 = vpop.f32.mrf.mxu0
  %v6100 = vpop.f32.mrf.mxu0
  %v6101 = vadd.f32 %v5556, %v6100
  %v6102 = vpop.f32.mrf.mxu0
  %6103 = vmatprep.mubr.bf16.mxu0 %v3106
  %6104 = vmatmul.mubr.bf16.gmra.mxu0 %v3105
  %v6105 = vpop.f32.mrf.mxu0
  %v6106 = vadd.f32 %v5561, %v6105
  %v6107 = vpop.f32.mrf.mxu0
  %v6108 = vpop.f32.mrf.mxu0
  %v6109 = vadd.f32 %v5564, %v6108
  %v6110 = vpop.f32.mrf.mxu0
  %6111 = vmatprep.mubr.bf16.mxu0 %v3115
  %6112 = vmatmul.mubr.bf16.gmra.mxu0 %v3114
  %v6113 = vpop.f32.mrf.mxu0
  %v6114 = vadd.f32 %v5569, %v6113
  %v6115 = vpop.f32.mrf.mxu0
  %v6116 = vpop.f32.mrf.mxu0
  %v6117 = vadd.f32 %v5572, %v6116
  %v6118 = vpop.f32.mrf.mxu0
  %6119 = vmatprep.mubr.bf16.mxu0 %v3121
  %6120 = vmatmul.mubr.bf16.gmra.mxu0 %v3120
  %v6121 = vpop.f32.mrf.mxu0
  %v6122 = vadd.f32 %v5577, %v6121
  %v6123 = vpop.f32.mrf.mxu0
  %v6124 = vpop.f32.mrf.mxu0
  %v6125 = vadd.f32 %v5580, %v6124
  %v6126 = vpop.f32.mrf.mxu0
  %6127 = vmatprep.mubr.bf16.mxu0 %v3127
  %6128 = vmatmul.mubr.bf16.gmra.mxu0 %v3126
  %v6129 = vpop.f32.mrf.mxu0
  %v6130 = vadd.f32 %v5585, %v6129
  %v6131 = vpop.f32.mrf.mxu0
  %v6132 = vpop.f32.mrf.mxu0
  %v6133 = vadd.f32 %v5588, %v6132
  %v6134 = vpop.f32.mrf.mxu0
  %6135 = vmatprep.mubr.bf16.mxu0 %v3133
  %6136 = vmatmul.mubr.bf16.gmra.mxu0 %v3132
  %v6137 = vpop.f32.mrf.mxu0
  %v6138 = vadd.f32 %v5593, %v6137
  %v6139 = vpop.f32.mrf.mxu0
  %v6140 = vpop.f32.mrf.mxu0
  %v6141 = vadd.f32 %v5596, %v6140
  %v6142 = vpop.f32.mrf.mxu0
  %6143 = vmatprep.mubr.bf16.mxu0 %v3142
  %6144 = vmatmul.mubr.bf16.gmra.mxu0 %v3141
  %v6145 = vpop.f32.mrf.mxu0
  %v6146 = vadd.f32 %v5601, %v6145
  %v6147 = vpop.f32.mrf.mxu0
  %v6148 = vpop.f32.mrf.mxu0
  %v6149 = vadd.f32 %v5604, %v6148
  %v6150 = vpop.f32.mrf.mxu0
  %6151 = vmatprep.mubr.bf16.mxu0 %v3148
  %6152 = vmatmul.mubr.bf16.gmra.mxu0 %v3147
  %v6153 = vpop.f32.mrf.mxu0
  %v6154 = vadd.f32 %v5609, %v6153
  %v6155 = vpop.f32.mrf.mxu0
  %v6156 = vpop.f32.mrf.mxu0
  %v6157 = vadd.f32 %v5612, %v6156
  %v6158 = vpop.f32.mrf.mxu0
  %6159 = vmatprep.mubr.bf16.mxu0 %v3154
  %6160 = vmatmul.mubr.bf16.gmra.mxu0 %v3153
  %v6161 = vpop.f32.mrf.mxu0
  %v6162 = vadd.f32 %v5617, %v6161
  %v6163 = vpop.f32.mrf.mxu0
  %v6164 = vpop.f32.mrf.mxu0
  %v6165 = vadd.f32 %v5620, %v6164
  %v6166 = vpop.f32.mrf.mxu0
  %6167 = vmatprep.mubr.bf16.mxu0 %v3160
  %6168 = vmatmul.mubr.bf16.gmra.mxu0 %v3159
  %v6169 = vpop.f32.mrf.mxu0
  %v6170 = vadd.f32 %v5625, %v6169
  %v6171 = vpop.f32.mrf.mxu0
  %v6172 = vpop.f32.mrf.mxu0
  %v6173 = vadd.f32 %v5628, %v6172
  %v6174 = vpop.f32.mrf.mxu0
  %6175 = vmatprep.mubr.bf16.mxu0 %v3169
  %6176 = vmatmul.mubr.bf16.gmra.mxu0 %v3168
  %v6177 = vpop.f32.mrf.mxu0
  %v6178 = vadd.f32 %v5633, %v6177
  %v6179 = vpop.f32.mrf.mxu0
  %v6180 = vpop.f32.mrf.mxu0
  %v6181 = vadd.f32 %v5636, %v6180
  %v6182 = vpop.f32.mrf.mxu0
  %6183 = vmatprep.mubr.bf16.mxu0 %v3175
  %6184 = vmatmul.mubr.bf16.gmra.mxu0 %v3174
  %v6185 = vpop.f32.mrf.mxu0
  %v6186 = vadd.f32 %v5641, %v6185
  %v6187 = vpop.f32.mrf.mxu0
  %v6188 = vpop.f32.mrf.mxu0
  %v6189 = vadd.f32 %v5644, %v6188
  %v6190 = vpop.f32.mrf.mxu0
  %6191 = vmatprep.mubr.bf16.mxu0 %v3181
  %6192 = vmatmul.mubr.bf16.gmra.mxu0 %v3180
  %v6193 = vpop.f32.mrf.mxu0
  %v6194 = vadd.f32 %v5649, %v6193
  %v6195 = vpop.f32.mrf.mxu0
  %v6196 = vpop.f32.mrf.mxu0
  %v6197 = vadd.f32 %v5652, %v6196
  %v6198 = vpop.f32.mrf.mxu0
  %6199 = vmatprep.mubr.bf16.mxu0 %v3187
  %6200 = vmatmul.mubr.bf16.gmra.mxu0 %v3186
  %v6201 = vpop.f32.mrf.mxu0
  %v6202 = vadd.f32 %v5657, %v6201
  %v6203 = vpop.f32.mrf.mxu0
  %v6204 = vpop.f32.mrf.mxu0
  %v6205 = vadd.f32 %v5660, %v6204
  %v6206 = vpop.f32.mrf.mxu0
  %6207 = vmatprep.mubr.bf16.mxu0 %v3196
  %6208 = vmatmul.mubr.bf16.gmra.mxu0 %v3195
  %v6209 = vpop.f32.mrf.mxu0
  %v6210 = vadd.f32 %v5665, %v6209
  %v6211 = vpop.f32.mrf.mxu0
  %v6212 = vpop.f32.mrf.mxu0
  %v6213 = vadd.f32 %v5668, %v6212
  %v6214 = vpop.f32.mrf.mxu0
  %6215 = vmatprep.mubr.bf16.mxu0 %v3202
  %6216 = vmatmul.mubr.bf16.gmra.mxu0 %v3201
  %v6217 = vpop.f32.mrf.mxu0
  %v6218 = vadd.f32 %v5673, %v6217
  %v6219 = vpop.f32.mrf.mxu0
  %v6220 = vpop.f32.mrf.mxu0
  %v6221 = vadd.f32 %v5676, %v6220
  %v6222 = vpop.f32.mrf.mxu0
  %6223 = vmatprep.mubr.bf16.mxu0 %v3208
  %6224 = vmatmul.mubr.bf16.gmra.mxu0 %v3207
  %v6225 = vpop.f32.mrf.mxu0
  %v6226 = vadd.f32 %v5681, %v6225
  %v6227 = vpop.f32.mrf.mxu0
  %v6228 = vpop.f32.mrf.mxu0
  %v6229 = vadd.f32 %v5684, %v6228
  %v6230 = vpop.f32.mrf.mxu0
  %6231 = vmatprep.mubr.bf16.mxu0 %v3214
  %6232 = vmatmul.mubr.bf16.gmra.mxu0 %v3213
  %v6233 = vpop.f32.mrf.mxu0
  %v6234 = vadd.f32 %v5689, %v6233
  %v6235 = vpop.f32.mrf.mxu0
  %v6236 = vpop.f32.mrf.mxu0
  %v6237 = vadd.f32 %v5692, %v6236
  %v6238 = vpop.f32.mrf.mxu0
  %6239 = vmatprep.mubr.bf16.mxu0 %v3223
  %6240 = vmatmul.mubr.bf16.gmra.mxu0 %v3222
  %v6241 = vpop.f32.mrf.mxu0
  %v6242 = vadd.f32 %v5697, %v6241
  %v6243 = vpop.f32.mrf.mxu0
  %v6244 = vpop.f32.mrf.mxu0
  %v6245 = vadd.f32 %v5700, %v6244
  %v6246 = vpop.f32.mrf.mxu0
  %6247 = vmatprep.mubr.bf16.mxu0 %v3229
  %6248 = vmatmul.mubr.bf16.gmra.mxu0 %v3228
  %v6249 = vpop.f32.mrf.mxu0
  %v6250 = vadd.f32 %v5705, %v6249
  %v6251 = vpop.f32.mrf.mxu0
  %v6252 = vpop.f32.mrf.mxu0
  %v6253 = vadd.f32 %v5708, %v6252
  %v6254 = vpop.f32.mrf.mxu0
  %6255 = vmatprep.mubr.bf16.mxu0 %v3235
  %6256 = vmatmul.mubr.bf16.gmra.mxu0 %v3234
  %v6257 = vpop.f32.mrf.mxu0
  %v6258 = vadd.f32 %v5713, %v6257
  %v6259 = vpop.f32.mrf.mxu0
  %v6260 = vpop.f32.mrf.mxu0
  %v6261 = vadd.f32 %v5716, %v6260
  %v6262 = vpop.f32.mrf.mxu0
  %6263 = vmatprep.mubr.bf16.mxu0 %v3241
  %6264 = vmatmul.mubr.bf16.gmra.mxu0 %v3240
  %v6265 = vpop.f32.mrf.mxu0
  %v6266 = vadd.f32 %v5721, %v6265
  %v6267 = vpop.f32.mrf.mxu0
  %v6268 = vpop.f32.mrf.mxu0
  %v6269 = vadd.f32 %v5724, %v6268
  %v6270 = vpop.f32.mrf.mxu0
  %6271 = vmatprep.mubr.bf16.mxu0 %v3250
  %6272 = vmatmul.mubr.bf16.gmra.mxu0 %v3249
  %v6273 = vpop.f32.mrf.mxu0
  %v6274 = vadd.f32 %v5729, %v6273
  %v6275 = vpop.f32.mrf.mxu0
  %v6276 = vpop.f32.mrf.mxu0
  %v6277 = vadd.f32 %v5732, %v6276
  %v6278 = vpop.f32.mrf.mxu0
  %6279 = vmatprep.mubr.bf16.mxu0 %v3256
  %6280 = vmatmul.mubr.bf16.gmra.mxu0 %v3255
  %v6281 = vpop.f32.mrf.mxu0
  %v6282 = vadd.f32 %v5737, %v6281
  %v6283 = vpop.f32.mrf.mxu0
  %v6284 = vpop.f32.mrf.mxu0
  %v6285 = vadd.f32 %v5740, %v6284
  %v6286 = vpop.f32.mrf.mxu0
  %6287 = vmatprep.mubr.bf16.mxu0 %v3262
  %6288 = vmatmul.mubr.bf16.gmra.mxu0 %v3261
  %v6289 = vpop.f32.mrf.mxu0
  %v6290 = vadd.f32 %v5745, %v6289
  %v6291 = vpop.f32.mrf.mxu0
  %v6292 = vpop.f32.mrf.mxu0
  %v6293 = vadd.f32 %v5748, %v6292
  %v6294 = vpop.f32.mrf.mxu0
  %6295 = vmatprep.mubr.bf16.mxu0 %v3268
  %6296 = vmatmul.mubr.bf16.gmra.mxu0 %v3267
  %v6297 = vpop.f32.mrf.mxu0
  %v6298 = vadd.f32 %v5753, %v6297
  %v6299 = vpop.f32.mrf.mxu0
  %v6300 = vpop.f32.mrf.mxu0
  %v6301 = vadd.f32 %v5756, %v6300
  %v6302 = vpop.f32.mrf.mxu0
  %6303 = vmatprep.mubr.bf16.mxu0 %v3277
  %6304 = vmatmul.mubr.bf16.gmra.mxu0 %v3276
  %v6305 = vpop.f32.mrf.mxu0
  %v6306 = vadd.f32 %v5761, %v6305
  %v6307 = vpop.f32.mrf.mxu0
  %v6308 = vpop.f32.mrf.mxu0
  %v6309 = vadd.f32 %v5764, %v6308
  %v6310 = vpop.f32.mrf.mxu0
  %6311 = vmatprep.mubr.bf16.mxu0 %v3283
  %6312 = vmatmul.mubr.bf16.gmra.mxu0 %v3282
  %v6313 = vpop.f32.mrf.mxu0
  %v6314 = vadd.f32 %v5769, %v6313
  %v6315 = vpop.f32.mrf.mxu0
  %v6316 = vpop.f32.mrf.mxu0
  %v6317 = vadd.f32 %v5772, %v6316
  %v6318 = vpop.f32.mrf.mxu0
  %6319 = vmatprep.mubr.bf16.mxu0 %v3289
  %6320 = vmatmul.mubr.bf16.gmra.mxu0 %v3288
  %v6321 = vpop.f32.mrf.mxu0
  %v6322 = vadd.f32 %v5777, %v6321
  %v6323 = vpop.f32.mrf.mxu0
  %v6324 = vpop.f32.mrf.mxu0
  %v6325 = vadd.f32 %v5780, %v6324
  %v6326 = vpop.f32.mrf.mxu0
  %6327 = vmatprep.mubr.bf16.mxu0 %v3295
  %6328 = vmatmul.mubr.bf16.gmra.mxu0 %v3294
  %v6329 = vpop.f32.mrf.mxu0
  %v6330 = vadd.f32 %v5785, %v6329
  %v6331 = vpop.f32.mrf.mxu0
  %v6332 = vpop.f32.mrf.mxu0
  %v6333 = vadd.f32 %v5788, %v6332
  %v6334 = vpop.f32.mrf.mxu0
  %6335 = vmatprep.mubr.bf16.mxu0 %v3304
  %6336 = vmatmul.mubr.bf16.gmra.mxu0 %v3303
  %v6337 = vpop.f32.mrf.mxu0
  %v6338 = vadd.f32 %v5793, %v6337
  %v6339 = vpop.f32.mrf.mxu0
  %v6340 = vpop.f32.mrf.mxu0
  %v6341 = vadd.f32 %v5796, %v6340
  %v6342 = vpop.f32.mrf.mxu0
  %6343 = vmatprep.mubr.bf16.mxu0 %v3310
  %6344 = vmatmul.mubr.bf16.gmra.mxu0 %v3309
  %v6345 = vpop.f32.mrf.mxu0
  %v6346 = vadd.f32 %v5801, %v6345
  %v6347 = vpop.f32.mrf.mxu0
  %v6348 = vpop.f32.mrf.mxu0
  %v6349 = vadd.f32 %v5804, %v6348
  %v6350 = vpop.f32.mrf.mxu0
  %6351 = vmatprep.mubr.bf16.mxu0 %v3316
  %6352 = vmatmul.mubr.bf16.gmra.mxu0 %v3315
  %v6353 = vpop.f32.mrf.mxu0
  %v6354 = vadd.f32 %v5809, %v6353
  %v6355 = vpop.f32.mrf.mxu0
  %v6356 = vpop.f32.mrf.mxu0
  %v6357 = vadd.f32 %v5812, %v6356
  %v6358 = vpop.f32.mrf.mxu0
  %6359 = vmatprep.mubr.bf16.mxu0 %v3322
  %6360 = vmatmul.mubr.bf16.gmra.mxu0 %v3321
  %v6361 = vpop.f32.mrf.mxu0
  %v6362 = vadd.f32 %v5817, %v6361
  %v6363 = vpop.f32.mrf.mxu0
  %v6364 = vpop.f32.mrf.mxu0
  %v6365 = vadd.f32 %v5820, %v6364
  %v6366 = vpop.f32.mrf.mxu0
  %6367 = vdwg.mxu0
  %6368 = vmatprep.subr.bf16.mxu0 0
  %6369 = vmatpush1.bf16.msra.mxu0 %v4115
  %6370 = vmatprep.subr.bf16.mxu0 0
  %6371 = vmatpush1.bf16.msra.mxu0 %v4114
  %6372 = vmatprep.subr.bf16.mxu0 0
  %6373 = vmatpush1.bf16.msra.mxu0 %v4113
  %6374 = vmatprep.subr.bf16.mxu0 0
  %6375 = vmatpush1.bf16.msra.mxu0 %v4112
  %6376 = vmatprep.subr.bf16.mxu0 0
  %6377 = vmatpush1.bf16.msra.mxu0 %v4111
  %6378 = vmatprep.subr.bf16.mxu0 0
  %6379 = vmatpush1.bf16.msra.mxu0 %v4110
  %6380 = vmatprep.subr.bf16.mxu0 0
  %6381 = vmatpush1.bf16.msra.mxu0 %v4109
  %6382 = vmatprep.subr.bf16.mxu0 0
  %6383 = vmatpush1.bf16.msra.mxu0 %v4108
  %6384 = vmatprep.subr.bf16.mxu0 0
  %6385 = vmatpush2.bf16.msra.mxu0 0
  %6386 = vmatprep.subr.bf16.mxu0 0
  %6387 = vmatpush2.bf16.msra.mxu0 0
  %6388 = vmatprep.subr.bf16.mxu0 0
  %6389 = vmatpush2.bf16.msra.mxu0 0
  %6390 = vmatprep.subr.bf16.mxu0 0
  %6391 = vmatpush2.bf16.msra.mxu0 0
  %6392 = vmatprep.subr.bf16.mxu0 0
  %6393 = vmatpush2.bf16.msra.mxu0 0
  %6394 = vmatprep.subr.bf16.mxu0 0
  %6395 = vmatpush2.bf16.msra.mxu0 0
  %6396 = vmatprep.subr.bf16.mxu0 0
  %6397 = vmatpush2.bf16.msra.mxu0 0
  %6398 = vmatprep.subr.bf16.mxu0 0
  %6399 = vmatpush2.bf16.msra.mxu0 0
  %6400 = vmatprep.mubr.bf16.mxu0 0
  %6401 = vmatmul.mubr.bf16.gmra.mxu0 %v2900
  %v6402 = vpop.f32.mrf.mxu0
  %v6403 = vadd.f32 %v5858, %v6402
  %v6404 = vpop.f32.mrf.mxu0
  %v6405 = vpop.f32.mrf.mxu0
  %v6406 = vadd.f32 %v5861, %v6405
  %v6407 = vpop.f32.mrf.mxu0
  %6408 = vmatprep.mubr.bf16.mxu0 0
  %6409 = vmatmul.mubr.bf16.gmra.mxu0 %v2906
  %v6410 = vpop.f32.mrf.mxu0
  %v6411 = vadd.f32 %v5866, %v6410
  %v6412 = vpop.f32.mrf.mxu0
  %v6413 = vpop.f32.mrf.mxu0
  %v6414 = vadd.f32 %v5869, %v6413
  %v6415 = vpop.f32.mrf.mxu0
  %6416 = vmatprep.mubr.bf16.mxu0 0
  %6417 = vmatmul.mubr.bf16.gmra.mxu0 %v2912
  %v6418 = vpop.f32.mrf.mxu0
  %v6419 = vadd.f32 %v5874, %v6418
  %v6420 = vpop.f32.mrf.mxu0
  %v6421 = vpop.f32.mrf.mxu0
  %v6422 = vadd.f32 %v5877, %v6421
  %v6423 = vpop.f32.mrf.mxu0
  %6424 = vmatprep.mubr.bf16.mxu0 0
  %6425 = vmatmul.mubr.bf16.gmra.mxu0 %v2918
  %v6426 = vpop.f32.mrf.mxu0
  %v6427 = vadd.f32 %v5882, %v6426
  %v6428 = vpop.f32.mrf.mxu0
  %v6429 = vpop.f32.mrf.mxu0
  %v6430 = vadd.f32 %v5885, %v6429
  %v6431 = vpop.f32.mrf.mxu0
  %6432 = vmatprep.mubr.bf16.mxu0 0
  %6433 = vmatmul.mubr.bf16.gmra.mxu0 %v2927
  %v6434 = vpop.f32.mrf.mxu0
  %v6435 = vadd.f32 %v5890, %v6434
  %v6436 = vpop.f32.mrf.mxu0
  %v6437 = vpop.f32.mrf.mxu0
  %v6438 = vadd.f32 %v5893, %v6437
  %v6439 = vpop.f32.mrf.mxu0
  %6440 = vmatprep.mubr.bf16.mxu0 0
  %6441 = vmatmul.mubr.bf16.gmra.mxu0 %v2933
  %v6442 = vpop.f32.mrf.mxu0
  %v6443 = vadd.f32 %v5898, %v6442
  %v6444 = vpop.f32.mrf.mxu0
  %v6445 = vpop.f32.mrf.mxu0
  %v6446 = vadd.f32 %v5901, %v6445
  %v6447 = vpop.f32.mrf.mxu0
  %6448 = vmatprep.mubr.bf16.mxu0 0
  %6449 = vmatmul.mubr.bf16.gmra.mxu0 %v2939
  %v6450 = vpop.f32.mrf.mxu0
  %v6451 = vadd.f32 %v5906, %v6450
  %v6452 = vpop.f32.mrf.mxu0
  %v6453 = vpop.f32.mrf.mxu0
  %v6454 = vadd.f32 %v5909, %v6453
  %v6455 = vpop.f32.mrf.mxu0
  %6456 = vmatprep.mubr.bf16.mxu0 0
  %6457 = vmatmul.mubr.bf16.gmra.mxu0 %v2945
  %v6458 = vpop.f32.mrf.mxu0
  %v6459 = vadd.f32 %v5914, %v6458
  %v6460 = vpop.f32.mrf.mxu0
  %v6461 = vpop.f32.mrf.mxu0
  %v6462 = vadd.f32 %v5917, %v6461
  %v6463 = vpop.f32.mrf.mxu0
  %6464 = vmatprep.mubr.bf16.mxu0 0
  %6465 = vmatmul.mubr.bf16.gmra.mxu0 %v2954
  %v6466 = vpop.f32.mrf.mxu0
  %v6467 = vadd.f32 %v5922, %v6466
  %v6468 = vpop.f32.mrf.mxu0
  %v6469 = vpop.f32.mrf.mxu0
  %v6470 = vadd.f32 %v5925, %v6469
  %v6471 = vpop.f32.mrf.mxu0
  %6472 = vmatprep.mubr.bf16.mxu0 0
  %6473 = vmatmul.mubr.bf16.gmra.mxu0 %v2960
  %v6474 = vpop.f32.mrf.mxu0
  %v6475 = vadd.f32 %v5930, %v6474
  %v6476 = vpop.f32.mrf.mxu0
  %v6477 = vpop.f32.mrf.mxu0
  %v6478 = vadd.f32 %v5933, %v6477
  %v6479 = vpop.f32.mrf.mxu0
  %6480 = vmatprep.mubr.bf16.mxu0 0
  %6481 = vmatmul.mubr.bf16.gmra.mxu0 %v2966
  %v6482 = vpop.f32.mrf.mxu0
  %v6483 = vadd.f32 %v5938, %v6482
  %v6484 = vpop.f32.mrf.mxu0
  %v6485 = vpop.f32.mrf.mxu0
  %v6486 = vadd.f32 %v5941, %v6485
  %v6487 = vpop.f32.mrf.mxu0
  %6488 = vmatprep.mubr.bf16.mxu0 0
  %6489 = vmatmul.mubr.bf16.gmra.mxu0 %v2972
  %v6490 = vpop.f32.mrf.mxu0
  %v6491 = vadd.f32 %v5946, %v6490
  %v6492 = vpop.f32.mrf.mxu0
  %v6493 = vpop.f32.mrf.mxu0
  %v6494 = vadd.f32 %v5949, %v6493
  %v6495 = vpop.f32.mrf.mxu0
  %6496 = vmatprep.mubr.bf16.mxu0 0
  %6497 = vmatmul.mubr.bf16.gmra.mxu0 %v2981
  %v6498 = vpop.f32.mrf.mxu0
  %v6499 = vadd.f32 %v5954, %v6498
  %v6500 = vpop.f32.mrf.mxu0
  %v6501 = vpop.f32.mrf.mxu0
  %v6502 = vadd.f32 %v5957, %v6501
  %v6503 = vpop.f32.mrf.mxu0
  %6504 = vmatprep.mubr.bf16.mxu0 0
  %6505 = vmatmul.mubr.bf16.gmra.mxu0 %v2987
  %v6506 = vpop.f32.mrf.mxu0
  %v6507 = vadd.f32 %v5962, %v6506
  %v6508 = vpop.f32.mrf.mxu0
  %v6509 = vpop.f32.mrf.mxu0
  %v6510 = vadd.f32 %v5965, %v6509
  %v6511 = vpop.f32.mrf.mxu0
  %6512 = vmatprep.mubr.bf16.mxu0 0
  %6513 = vmatmul.mubr.bf16.gmra.mxu0 %v2993
  %v6514 = vpop.f32.mrf.mxu0
  %v6515 = vadd.f32 %v5970, %v6514
  %v6516 = vpop.f32.mrf.mxu0
  %v6517 = vpop.f32.mrf.mxu0
  %v6518 = vadd.f32 %v5973, %v6517
  %v6519 = vpop.f32.mrf.mxu0
  %6520 = vmatprep.mubr.bf16.mxu0 0
  %6521 = vmatmul.mubr.bf16.gmra.mxu0 %v2999
  %v6522 = vpop.f32.mrf.mxu0
  %v6523 = vadd.f32 %v5978, %v6522
  %v6524 = vpop.f32.mrf.mxu0
  %v6525 = vpop.f32.mrf.mxu0
  %v6526 = vadd.f32 %v5981, %v6525
  %v6527 = vpop.f32.mrf.mxu0
  %6528 = vmatprep.mubr.bf16.mxu0 0
  %6529 = vmatmul.mubr.bf16.gmra.mxu0 %v3008
  %v6530 = vpop.f32.mrf.mxu0
  %v6531 = vadd.f32 %v5986, %v6530
  %v6532 = vpop.f32.mrf.mxu0
  %v6533 = vpop.f32.mrf.mxu0
  %v6534 = vadd.f32 %v5989, %v6533
  %v6535 = vpop.f32.mrf.mxu0
  %6536 = vmatprep.mubr.bf16.mxu0 0
  %6537 = vmatmul.mubr.bf16.gmra.mxu0 %v3014
  %v6538 = vpop.f32.mrf.mxu0
  %v6539 = vadd.f32 %v5994, %v6538
  %v6540 = vpop.f32.mrf.mxu0
  %v6541 = vpop.f32.mrf.mxu0
  %v6542 = vadd.f32 %v5997, %v6541
  %v6543 = vpop.f32.mrf.mxu0
  %6544 = vmatprep.mubr.bf16.mxu0 0
  %6545 = vmatmul.mubr.bf16.gmra.mxu0 %v3020
  %v6546 = vpop.f32.mrf.mxu0
  %v6547 = vadd.f32 %v6002, %v6546
  %v6548 = vpop.f32.mrf.mxu0
  %v6549 = vpop.f32.mrf.mxu0
  %v6550 = vadd.f32 %v6005, %v6549
  %v6551 = vpop.f32.mrf.mxu0
  %6552 = vmatprep.mubr.bf16.mxu0 0
  %6553 = vmatmul.mubr.bf16.gmra.mxu0 %v3026
  %v6554 = vpop.f32.mrf.mxu0
  %v6555 = vadd.f32 %v6010, %v6554
  %v6556 = vpop.f32.mrf.mxu0
  %v6557 = vpop.f32.mrf.mxu0
  %v6558 = vadd.f32 %v6013, %v6557
  %v6559 = vpop.f32.mrf.mxu0
  %6560 = vmatprep.mubr.bf16.mxu0 0
  %6561 = vmatmul.mubr.bf16.gmra.mxu0 %v3035
  %v6562 = vpop.f32.mrf.mxu0
  %v6563 = vadd.f32 %v6018, %v6562
  %v6564 = vpop.f32.mrf.mxu0
  %v6565 = vpop.f32.mrf.mxu0
  %v6566 = vadd.f32 %v6021, %v6565
  %v6567 = vpop.f32.mrf.mxu0
  %6568 = vmatprep.mubr.bf16.mxu0 0
  %6569 = vmatmul.mubr.bf16.gmra.mxu0 %v3041
  %v6570 = vpop.f32.mrf.mxu0
  %v6571 = vadd.f32 %v6026, %v6570
  %v6572 = vpop.f32.mrf.mxu0
  %v6573 = vpop.f32.mrf.mxu0
  %v6574 = vadd.f32 %v6029, %v6573
  %v6575 = vpop.f32.mrf.mxu0
  %6576 = vmatprep.mubr.bf16.mxu0 0
  %6577 = vmatmul.mubr.bf16.gmra.mxu0 %v3047
  %v6578 = vpop.f32.mrf.mxu0
  %v6579 = vadd.f32 %v6034, %v6578
  %v6580 = vpop.f32.mrf.mxu0
  %v6581 = vpop.f32.mrf.mxu0
  %v6582 = vadd.f32 %v6037, %v6581
  %v6583 = vpop.f32.mrf.mxu0
  %6584 = vmatprep.mubr.bf16.mxu0 0
  %6585 = vmatmul.mubr.bf16.gmra.mxu0 %v3053
  %v6586 = vpop.f32.mrf.mxu0
  %v6587 = vadd.f32 %v6042, %v6586
  %v6588 = vpop.f32.mrf.mxu0
  %v6589 = vpop.f32.mrf.mxu0
  %v6590 = vadd.f32 %v6045, %v6589
  %v6591 = vpop.f32.mrf.mxu0
  %6592 = vmatprep.mubr.bf16.mxu0 0
  %6593 = vmatmul.mubr.bf16.gmra.mxu0 %v3062
  %v6594 = vpop.f32.mrf.mxu0
  %v6595 = vadd.f32 %v6050, %v6594
  %v6596 = vpop.f32.mrf.mxu0
  %v6597 = vpop.f32.mrf.mxu0
  %v6598 = vadd.f32 %v6053, %v6597
  %v6599 = vpop.f32.mrf.mxu0
  %6600 = vmatprep.mubr.bf16.mxu0 0
  %6601 = vmatmul.mubr.bf16.gmra.mxu0 %v3068
  %v6602 = vpop.f32.mrf.mxu0
  %v6603 = vadd.f32 %v6058, %v6602
  %v6604 = vpop.f32.mrf.mxu0
  %v6605 = vpop.f32.mrf.mxu0
  %v6606 = vadd.f32 %v6061, %v6605
  %v6607 = vpop.f32.mrf.mxu0
  %6608 = vmatprep.mubr.bf16.mxu0 0
  %6609 = vmatmul.mubr.bf16.gmra.mxu0 %v3074
  %v6610 = vpop.f32.mrf.mxu0
  %v6611 = vadd.f32 %v6066, %v6610
  %v6612 = vpop.f32.mrf.mxu0
  %v6613 = vpop.f32.mrf.mxu0
  %v6614 = vadd.f32 %v6069, %v6613
  %v6615 = vpop.f32.mrf.mxu0
  %6616 = vmatprep.mubr.bf16.mxu0 0
  %6617 = vmatmul.mubr.bf16.gmra.mxu0 %v3080
  %v6618 = vpop.f32.mrf.mxu0
  %v6619 = vadd.f32 %v6074, %v6618
  %v6620 = vpop.f32.mrf.mxu0
  %v6621 = vpop.f32.mrf.mxu0
  %v6622 = vadd.f32 %v6077, %v6621
  %v6623 = vpop.f32.mrf.mxu0
  %6624 = vmatprep.mubr.bf16.mxu0 0
  %6625 = vmatmul.mubr.bf16.gmra.mxu0 %v3089
  %v6626 = vpop.f32.mrf.mxu0
  %v6627 = vadd.f32 %v6082, %v6626
  %v6628 = vpop.f32.mrf.mxu0
  %v6629 = vpop.f32.mrf.mxu0
  %v6630 = vadd.f32 %v6085, %v6629
  %v6631 = vpop.f32.mrf.mxu0
  %6632 = vmatprep.mubr.bf16.mxu0 0
  %6633 = vmatmul.mubr.bf16.gmra.mxu0 %v3095
  %v6634 = vpop.f32.mrf.mxu0
  %v6635 = vadd.f32 %v6090, %v6634
  %v6636 = vpop.f32.mrf.mxu0
  %v6637 = vpop.f32.mrf.mxu0
  %v6638 = vadd.f32 %v6093, %v6637
  %v6639 = vpop.f32.mrf.mxu0
  %6640 = vmatprep.mubr.bf16.mxu0 0
  %6641 = vmatmul.mubr.bf16.gmra.mxu0 %v3101
  %v6642 = vpop.f32.mrf.mxu0
  %v6643 = vadd.f32 %v6098, %v6642
  %v6644 = vpop.f32.mrf.mxu0
  %v6645 = vpop.f32.mrf.mxu0
  %v6646 = vadd.f32 %v6101, %v6645
  %v6647 = vpop.f32.mrf.mxu0
  %6648 = vmatprep.mubr.bf16.mxu0 0
  %6649 = vmatmul.mubr.bf16.gmra.mxu0 %v3107
  %v6650 = vpop.f32.mrf.mxu0
  %v6651 = vadd.f32 %v6106, %v6650
  %v6652 = vpop.f32.mrf.mxu0
  %v6653 = vpop.f32.mrf.mxu0
  %v6654 = vadd.f32 %v6109, %v6653
  %v6655 = vpop.f32.mrf.mxu0
  %6656 = vmatprep.mubr.bf16.mxu0 0
  %6657 = vmatmul.mubr.bf16.gmra.mxu0 %v3116
  %v6658 = vpop.f32.mrf.mxu0
  %v6659 = vadd.f32 %v6114, %v6658
  %v6660 = vpop.f32.mrf.mxu0
  %v6661 = vpop.f32.mrf.mxu0
  %v6662 = vadd.f32 %v6117, %v6661
  %v6663 = vpop.f32.mrf.mxu0
  %6664 = vmatprep.mubr.bf16.mxu0 0
  %6665 = vmatmul.mubr.bf16.gmra.mxu0 %v3122
  %v6666 = vpop.f32.mrf.mxu0
  %v6667 = vadd.f32 %v6122, %v6666
  %v6668 = vpop.f32.mrf.mxu0
  %v6669 = vpop.f32.mrf.mxu0
  %v6670 = vadd.f32 %v6125, %v6669
  %v6671 = vpop.f32.mrf.mxu0
  %6672 = vmatprep.mubr.bf16.mxu0 0
  %6673 = vmatmul.mubr.bf16.gmra.mxu0 %v3128
  %v6674 = vpop.f32.mrf.mxu0
  %v6675 = vadd.f32 %v6130, %v6674
  %v6676 = vpop.f32.mrf.mxu0
  %v6677 = vpop.f32.mrf.mxu0
  %v6678 = vadd.f32 %v6133, %v6677
  %v6679 = vpop.f32.mrf.mxu0
  %6680 = vmatprep.mubr.bf16.mxu0 0
  %6681 = vmatmul.mubr.bf16.gmra.mxu0 %v3134
  %v6682 = vpop.f32.mrf.mxu0
  %v6683 = vadd.f32 %v6138, %v6682
  %v6684 = vpop.f32.mrf.mxu0
  %v6685 = vpop.f32.mrf.mxu0
  %v6686 = vadd.f32 %v6141, %v6685
  %v6687 = vpop.f32.mrf.mxu0
  %6688 = vmatprep.mubr.bf16.mxu0 0
  %6689 = vmatmul.mubr.bf16.gmra.mxu0 %v3143
  %v6690 = vpop.f32.mrf.mxu0
  %v6691 = vadd.f32 %v6146, %v6690
  %v6692 = vpop.f32.mrf.mxu0
  %v6693 = vpop.f32.mrf.mxu0
  %v6694 = vadd.f32 %v6149, %v6693
  %v6695 = vpop.f32.mrf.mxu0
  %6696 = vmatprep.mubr.bf16.mxu0 0
  %6697 = vmatmul.mubr.bf16.gmra.mxu0 %v3149
  %v6698 = vpop.f32.mrf.mxu0
  %v6699 = vadd.f32 %v6154, %v6698
  %v6700 = vpop.f32.mrf.mxu0
  %v6701 = vpop.f32.mrf.mxu0
  %v6702 = vadd.f32 %v6157, %v6701
  %v6703 = vpop.f32.mrf.mxu0
  %6704 = vmatprep.mubr.bf16.mxu0 0
  %6705 = vmatmul.mubr.bf16.gmra.mxu0 %v3155
  %v6706 = vpop.f32.mrf.mxu0
  %v6707 = vadd.f32 %v6162, %v6706
  %v6708 = vpop.f32.mrf.mxu0
  %v6709 = vpop.f32.mrf.mxu0
  %v6710 = vadd.f32 %v6165, %v6709
  %v6711 = vpop.f32.mrf.mxu0
  %6712 = vmatprep.mubr.bf16.mxu0 0
  %6713 = vmatmul.mubr.bf16.gmra.mxu0 %v3161
  %v6714 = vpop.f32.mrf.mxu0
  %v6715 = vadd.f32 %v6170, %v6714
  %v6716 = vpop.f32.mrf.mxu0
  %v6717 = vpop.f32.mrf.mxu0
  %v6718 = vadd.f32 %v6173, %v6717
  %v6719 = vpop.f32.mrf.mxu0
  %6720 = vmatprep.mubr.bf16.mxu0 0
  %6721 = vmatmul.mubr.bf16.gmra.mxu0 %v3170
  %v6722 = vpop.f32.mrf.mxu0
  %v6723 = vadd.f32 %v6178, %v6722
  %v6724 = vpop.f32.mrf.mxu0
  %v6725 = vpop.f32.mrf.mxu0
  %v6726 = vadd.f32 %v6181, %v6725
  %v6727 = vpop.f32.mrf.mxu0
  %6728 = vmatprep.mubr.bf16.mxu0 0
  %6729 = vmatmul.mubr.bf16.gmra.mxu0 %v3176
  %v6730 = vpop.f32.mrf.mxu0
  %v6731 = vadd.f32 %v6186, %v6730
  %v6732 = vpop.f32.mrf.mxu0
  %v6733 = vpop.f32.mrf.mxu0
  %v6734 = vadd.f32 %v6189, %v6733
  %v6735 = vpop.f32.mrf.mxu0
  %6736 = vmatprep.mubr.bf16.mxu0 0
  %6737 = vmatmul.mubr.bf16.gmra.mxu0 %v3182
  %v6738 = vpop.f32.mrf.mxu0
  %v6739 = vadd.f32 %v6194, %v6738
  %v6740 = vpop.f32.mrf.mxu0
  %v6741 = vpop.f32.mrf.mxu0
  %v6742 = vadd.f32 %v6197, %v6741
  %v6743 = vpop.f32.mrf.mxu0
  %6744 = vmatprep.mubr.bf16.mxu0 0
  %6745 = vmatmul.mubr.bf16.gmra.mxu0 %v3188
  %v6746 = vpop.f32.mrf.mxu0
  %v6747 = vadd.f32 %v6202, %v6746
  %v6748 = vpop.f32.mrf.mxu0
  %v6749 = vpop.f32.mrf.mxu0
  %v6750 = vadd.f32 %v6205, %v6749
  %v6751 = vpop.f32.mrf.mxu0
  %6752 = vmatprep.mubr.bf16.mxu0 0
  %6753 = vmatmul.mubr.bf16.gmra.mxu0 %v3197
  %v6754 = vpop.f32.mrf.mxu0
  %v6755 = vadd.f32 %v6210, %v6754
  %v6756 = vpop.f32.mrf.mxu0
  %v6757 = vpop.f32.mrf.mxu0
  %v6758 = vadd.f32 %v6213, %v6757
  %v6759 = vpop.f32.mrf.mxu0
  %6760 = vmatprep.mubr.bf16.mxu0 0
  %6761 = vmatmul.mubr.bf16.gmra.mxu0 %v3203
  %v6762 = vpop.f32.mrf.mxu0
  %v6763 = vadd.f32 %v6218, %v6762
  %v6764 = vpop.f32.mrf.mxu0
  %v6765 = vpop.f32.mrf.mxu0
  %v6766 = vadd.f32 %v6221, %v6765
  %v6767 = vpop.f32.mrf.mxu0
  %6768 = vmatprep.mubr.bf16.mxu0 0
  %6769 = vmatmul.mubr.bf16.gmra.mxu0 %v3209
  %v6770 = vpop.f32.mrf.mxu0
  %v6771 = vadd.f32 %v6226, %v6770
  %v6772 = vpop.f32.mrf.mxu0
  %v6773 = vpop.f32.mrf.mxu0
  %v6774 = vadd.f32 %v6229, %v6773
  %v6775 = vpop.f32.mrf.mxu0
  %6776 = vmatprep.mubr.bf16.mxu0 0
  %6777 = vmatmul.mubr.bf16.gmra.mxu0 %v3215
  %v6778 = vpop.f32.mrf.mxu0
  %v6779 = vadd.f32 %v6234, %v6778
  %v6780 = vpop.f32.mrf.mxu0
  %v6781 = vpop.f32.mrf.mxu0
  %v6782 = vadd.f32 %v6237, %v6781
  %v6783 = vpop.f32.mrf.mxu0
  %6784 = vmatprep.mubr.bf16.mxu0 0
  %6785 = vmatmul.mubr.bf16.gmra.mxu0 %v3224
  %v6786 = vpop.f32.mrf.mxu0
  %v6787 = vadd.f32 %v6242, %v6786
  %v6788 = vpop.f32.mrf.mxu0
  %v6789 = vpop.f32.mrf.mxu0
  %v6790 = vadd.f32 %v6245, %v6789
  %v6791 = vpop.f32.mrf.mxu0
  %6792 = vmatprep.mubr.bf16.mxu0 0
  %6793 = vmatmul.mubr.bf16.gmra.mxu0 %v3230
  %v6794 = vpop.f32.mrf.mxu0
  %v6795 = vadd.f32 %v6250, %v6794
  %v6796 = vpop.f32.mrf.mxu0
  %v6797 = vpop.f32.mrf.mxu0
  %v6798 = vadd.f32 %v6253, %v6797
  %v6799 = vpop.f32.mrf.mxu0
  %6800 = vmatprep.mubr.bf16.mxu0 0
  %6801 = vmatmul.mubr.bf16.gmra.mxu0 %v3236
  %v6802 = vpop.f32.mrf.mxu0
  %v6803 = vadd.f32 %v6258, %v6802
  %v6804 = vpop.f32.mrf.mxu0
  %v6805 = vpop.f32.mrf.mxu0
  %v6806 = vadd.f32 %v6261, %v6805
  %v6807 = vpop.f32.mrf.mxu0
  %6808 = vmatprep.mubr.bf16.mxu0 0
  %6809 = vmatmul.mubr.bf16.gmra.mxu0 %v3242
  %v6810 = vpop.f32.mrf.mxu0
  %v6811 = vadd.f32 %v6266, %v6810
  %v6812 = vpop.f32.mrf.mxu0
  %v6813 = vpop.f32.mrf.mxu0
  %v6814 = vadd.f32 %v6269, %v6813
  %v6815 = vpop.f32.mrf.mxu0
  %6816 = vmatprep.mubr.bf16.mxu0 0
  %6817 = vmatmul.mubr.bf16.gmra.mxu0 %v3251
  %v6818 = vpop.f32.mrf.mxu0
  %v6819 = vadd.f32 %v6274, %v6818
  %v6820 = vpop.f32.mrf.mxu0
  %v6821 = vpop.f32.mrf.mxu0
  %v6822 = vadd.f32 %v6277, %v6821
  %v6823 = vpop.f32.mrf.mxu0
  %6824 = vmatprep.mubr.bf16.mxu0 0
  %6825 = vmatmul.mubr.bf16.gmra.mxu0 %v3257
  %v6826 = vpop.f32.mrf.mxu0
  %v6827 = vadd.f32 %v6282, %v6826
  %v6828 = vpop.f32.mrf.mxu0
  %v6829 = vpop.f32.mrf.mxu0
  %v6830 = vadd.f32 %v6285, %v6829
  %v6831 = vpop.f32.mrf.mxu0
  %6832 = vmatprep.mubr.bf16.mxu0 0
  %6833 = vmatmul.mubr.bf16.gmra.mxu0 %v3263
  %v6834 = vpop.f32.mrf.mxu0
  %v6835 = vadd.f32 %v6290, %v6834
  %v6836 = vpop.f32.mrf.mxu0
  %v6837 = vpop.f32.mrf.mxu0
  %v6838 = vadd.f32 %v6293, %v6837
  %v6839 = vpop.f32.mrf.mxu0
  %6840 = vmatprep.mubr.bf16.mxu0 0
  %6841 = vmatmul.mubr.bf16.gmra.mxu0 %v3269
  %v6842 = vpop.f32.mrf.mxu0
  %v6843 = vadd.f32 %v6298, %v6842
  %v6844 = vpop.f32.mrf.mxu0
  %v6845 = vpop.f32.mrf.mxu0
  %v6846 = vadd.f32 %v6301, %v6845
  %v6847 = vpop.f32.mrf.mxu0
  %6848 = vmatprep.mubr.bf16.mxu0 0
  %6849 = vmatmul.mubr.bf16.gmra.mxu0 %v3278
  %v6850 = vpop.f32.mrf.mxu0
  %v6851 = vadd.f32 %v6306, %v6850
  %v6852 = vpop.f32.mrf.mxu0
  %v6853 = vpop.f32.mrf.mxu0
  %v6854 = vadd.f32 %v6309, %v6853
  %v6855 = vpop.f32.mrf.mxu0
  %6856 = vmatprep.mubr.bf16.mxu0 0
  %6857 = vmatmul.mubr.bf16.gmra.mxu0 %v3284
  %v6858 = vpop.f32.mrf.mxu0
  %v6859 = vadd.f32 %v6314, %v6858
  %v6860 = vpop.f32.mrf.mxu0
  %v6861 = vpop.f32.mrf.mxu0
  %v6862 = vadd.f32 %v6317, %v6861
  %v6863 = vpop.f32.mrf.mxu0
  %6864 = vmatprep.mubr.bf16.mxu0 0
  %6865 = vmatmul.mubr.bf16.gmra.mxu0 %v3290
  %v6866 = vpop.f32.mrf.mxu0
  %v6867 = vadd.f32 %v6322, %v6866
  %v6868 = vpop.f32.mrf.mxu0
  %v6869 = vpop.f32.mrf.mxu0
  %v6870 = vadd.f32 %v6325, %v6869
  %v6871 = vpop.f32.mrf.mxu0
  %6872 = vmatprep.mubr.bf16.mxu0 0
  %6873 = vmatmul.mubr.bf16.gmra.mxu0 %v3296
  %v6874 = vpop.f32.mrf.mxu0
  %v6875 = vadd.f32 %v6330, %v6874
  %v6876 = vpop.f32.mrf.mxu0
  %v6877 = vpop.f32.mrf.mxu0
  %v6878 = vadd.f32 %v6333, %v6877
  %v6879 = vpop.f32.mrf.mxu0
  %6880 = vmatprep.mubr.bf16.mxu0 0
  %6881 = vmatmul.mubr.bf16.gmra.mxu0 %v3305
  %v6882 = vpop.f32.mrf.mxu0
  %v6883 = vadd.f32 %v6338, %v6882
  %v6884 = vpop.f32.mrf.mxu0
  %v6885 = vpop.f32.mrf.mxu0
  %v6886 = vadd.f32 %v6341, %v6885
  %v6887 = vpop.f32.mrf.mxu0
  %6888 = vmatprep.mubr.bf16.mxu0 0
  %6889 = vmatmul.mubr.bf16.gmra.mxu0 %v3311
  %v6890 = vpop.f32.mrf.mxu0
  %v6891 = vadd.f32 %v6346, %v6890
  %v6892 = vpop.f32.mrf.mxu0
  %v6893 = vpop.f32.mrf.mxu0
  %v6894 = vadd.f32 %v6349, %v6893
  %v6895 = vpop.f32.mrf.mxu0
  %6896 = vmatprep.mubr.bf16.mxu0 0
  %6897 = vmatmul.mubr.bf16.gmra.mxu0 %v3317
  %v6898 = vpop.f32.mrf.mxu0
  %v6899 = vadd.f32 %v6354, %v6898
  %v6900 = vpop.f32.mrf.mxu0
  %v6901 = vpop.f32.mrf.mxu0
  %v6902 = vadd.f32 %v6357, %v6901
  %v6903 = vpop.f32.mrf.mxu0
  %6904 = vmatprep.mubr.bf16.mxu0 0
  %6905 = vmatmul.mubr.bf16.gmra.mxu0 %v3323
  %v6906 = vpop.f32.mrf.mxu0
  %v6907 = vadd.f32 %v6362, %v6906
  %v6908 = vpop.f32.mrf.mxu0
  %v6909 = vpop.f32.mrf.mxu0
  %v6910 = vadd.f32 %v6365, %v6909
  %v6911 = vpop.f32.mrf.mxu0
  %6912 = vdwg.mxu0
  %6913 = vadd.xlane.f32.xlu0 %v6403
  %v6914 = vpop.xlane.xlu0 %6913
  %6915 = vadd.xlane.f32.xlu0 %v6406
  %v6916 = vpop.xlane.xlu0 %6915
  %6917 = vadd.xlane.f32.xlu0 %v6411
  %v6918 = vpop.xlane.xlu0 %6917
  %6919 = vadd.xlane.f32.xlu0 %v6414
  %v6920 = vpop.xlane.xlu0 %6919
  %6921 = vadd.xlane.f32.xlu0 %v6419
  %v6922 = vpop.xlane.xlu0 %6921
  %6923 = vadd.xlane.f32.xlu0 %v6422
  %v6924 = vpop.xlane.xlu0 %6923
  %6925 = vadd.xlane.f32.xlu0 %v6427
  %v6926 = vpop.xlane.xlu0 %6925
  %6927 = vadd.xlane.f32.xlu0 %v6430
  %v6928 = vpop.xlane.xlu0 %6927
  %6929 = vadd.xlane.f32.xlu0 %v6435
  %v6930 = vpop.xlane.xlu0 %6929
  %6931 = vadd.xlane.f32.xlu0 %v6438
  %v6932 = vpop.xlane.xlu0 %6931
  %6933 = vadd.xlane.f32.xlu0 %v6443
  %v6934 = vpop.xlane.xlu0 %6933
  %6935 = vadd.xlane.f32.xlu0 %v6446
  %v6936 = vpop.xlane.xlu0 %6935
  %6937 = vadd.xlane.f32.xlu0 %v6451
  %v6938 = vpop.xlane.xlu0 %6937
  %6939 = vadd.xlane.f32.xlu0 %v6454
  %v6940 = vpop.xlane.xlu0 %6939
  %6941 = vadd.xlane.f32.xlu0 %v6459
  %v6942 = vpop.xlane.xlu0 %6941
  %6943 = vadd.xlane.f32.xlu0 %v6462
  %v6944 = vpop.xlane.xlu0 %6943
  %6945 = vadd.xlane.f32.xlu0 %v6467
  %v6946 = vpop.xlane.xlu0 %6945
  %6947 = vadd.xlane.f32.xlu0 %v6470
  %v6948 = vpop.xlane.xlu0 %6947
  %6949 = vadd.xlane.f32.xlu0 %v6475
  %v6950 = vpop.xlane.xlu0 %6949
  %6951 = vadd.xlane.f32.xlu0 %v6478
  %v6952 = vpop.xlane.xlu0 %6951
  %6953 = vadd.xlane.f32.xlu0 %v6483
  %v6954 = vpop.xlane.xlu0 %6953
  %6955 = vadd.xlane.f32.xlu0 %v6486
  %v6956 = vpop.xlane.xlu0 %6955
  %6957 = vadd.xlane.f32.xlu0 %v6491
  %v6958 = vpop.xlane.xlu0 %6957
  %6959 = vadd.xlane.f32.xlu0 %v6494
  %v6960 = vpop.xlane.xlu0 %6959
  %6961 = vadd.xlane.f32.xlu0 %v6499
  %v6962 = vpop.xlane.xlu0 %6961
  %6963 = vadd.xlane.f32.xlu0 %v6502
  %v6964 = vpop.xlane.xlu0 %6963
  %6965 = vadd.xlane.f32.xlu0 %v6507
  %v6966 = vpop.xlane.xlu0 %6965
  %6967 = vadd.xlane.f32.xlu0 %v6510
  %v6968 = vpop.xlane.xlu0 %6967
  %6969 = vadd.xlane.f32.xlu0 %v6515
  %v6970 = vpop.xlane.xlu0 %6969
  %6971 = vadd.xlane.f32.xlu0 %v6518
  %v6972 = vpop.xlane.xlu0 %6971
  %6973 = vadd.xlane.f32.xlu0 %v6523
  %v6974 = vpop.xlane.xlu0 %6973
  %6975 = vadd.xlane.f32.xlu0 %v6526
  %v6976 = vpop.xlane.xlu0 %6975
  %6977 = vadd.xlane.f32.xlu0 %v6531
  %v6978 = vpop.xlane.xlu0 %6977
  %6979 = vadd.xlane.f32.xlu0 %v6534
  %v6980 = vpop.xlane.xlu0 %6979
  %6981 = vadd.xlane.f32.xlu0 %v6539
  %v6982 = vpop.xlane.xlu0 %6981
  %6983 = vadd.xlane.f32.xlu0 %v6542
  %v6984 = vpop.xlane.xlu0 %6983
  %6985 = vadd.xlane.f32.xlu0 %v6547
  %v6986 = vpop.xlane.xlu0 %6985
  %6987 = vadd.xlane.f32.xlu0 %v6550
  %v6988 = vpop.xlane.xlu0 %6987
  %6989 = vadd.xlane.f32.xlu0 %v6555
  %v6990 = vpop.xlane.xlu0 %6989
  %6991 = vadd.xlane.f32.xlu0 %v6558
  %v6992 = vpop.xlane.xlu0 %6991
  %6993 = vadd.xlane.f32.xlu0 %v6563
  %v6994 = vpop.xlane.xlu0 %6993
  %6995 = vadd.xlane.f32.xlu0 %v6566
  %v6996 = vpop.xlane.xlu0 %6995
  %6997 = vadd.xlane.f32.xlu0 %v6571
  %v6998 = vpop.xlane.xlu0 %6997
  %6999 = vadd.xlane.f32.xlu0 %v6574
  %v7000 = vpop.xlane.xlu0 %6999
  %7001 = vadd.xlane.f32.xlu0 %v6579
  %v7002 = vpop.xlane.xlu0 %7001
  %7003 = vadd.xlane.f32.xlu0 %v6582
  %v7004 = vpop.xlane.xlu0 %7003
  %7005 = vadd.xlane.f32.xlu0 %v6587
  %v7006 = vpop.xlane.xlu0 %7005
  %7007 = vadd.xlane.f32.xlu0 %v6590
  %v7008 = vpop.xlane.xlu0 %7007
  %7009 = vadd.xlane.f32.xlu0 %v6595
  %v7010 = vpop.xlane.xlu0 %7009
  %7011 = vadd.xlane.f32.xlu0 %v6598
  %v7012 = vpop.xlane.xlu0 %7011
  %7013 = vadd.xlane.f32.xlu0 %v6603
  %v7014 = vpop.xlane.xlu0 %7013
  %7015 = vadd.xlane.f32.xlu0 %v6606
  %v7016 = vpop.xlane.xlu0 %7015
  %7017 = vadd.xlane.f32.xlu0 %v6611
  %v7018 = vpop.xlane.xlu0 %7017
  %7019 = vadd.xlane.f32.xlu0 %v6614
  %v7020 = vpop.xlane.xlu0 %7019
  %7021 = vadd.xlane.f32.xlu0 %v6619
  %v7022 = vpop.xlane.xlu0 %7021
  %7023 = vadd.xlane.f32.xlu0 %v6622
  %v7024 = vpop.xlane.xlu0 %7023
  %7025 = vadd.xlane.f32.xlu0 %v6627
  %v7026 = vpop.xlane.xlu0 %7025
  %7027 = vadd.xlane.f32.xlu0 %v6630
  %v7028 = vpop.xlane.xlu0 %7027
  %7029 = vadd.xlane.f32.xlu0 %v6635
  %v7030 = vpop.xlane.xlu0 %7029
  %7031 = vadd.xlane.f32.xlu0 %v6638
  %v7032 = vpop.xlane.xlu0 %7031
  %7033 = vadd.xlane.f32.xlu0 %v6643
  %v7034 = vpop.xlane.xlu0 %7033
  %7035 = vadd.xlane.f32.xlu0 %v6646
  %v7036 = vpop.xlane.xlu0 %7035
  %7037 = vadd.xlane.f32.xlu0 %v6651
  %v7038 = vpop.xlane.xlu0 %7037
  %7039 = vadd.xlane.f32.xlu0 %v6654
  %v7040 = vpop.xlane.xlu0 %7039
  %7041 = vadd.xlane.f32.xlu0 %v6659
  %v7042 = vpop.xlane.xlu0 %7041
  %7043 = vadd.xlane.f32.xlu0 %v6662
  %v7044 = vpop.xlane.xlu0 %7043
  %7045 = vadd.xlane.f32.xlu0 %v6667
  %v7046 = vpop.xlane.xlu0 %7045
  %7047 = vadd.xlane.f32.xlu0 %v6670
  %v7048 = vpop.xlane.xlu0 %7047
  %7049 = vadd.xlane.f32.xlu0 %v6675
  %v7050 = vpop.xlane.xlu0 %7049
  %7051 = vadd.xlane.f32.xlu0 %v6678
  %v7052 = vpop.xlane.xlu0 %7051
  %7053 = vadd.xlane.f32.xlu0 %v6683
  %v7054 = vpop.xlane.xlu0 %7053
  %7055 = vadd.xlane.f32.xlu0 %v6686
  %v7056 = vpop.xlane.xlu0 %7055
  %7057 = vadd.xlane.f32.xlu0 %v6691
  %v7058 = vpop.xlane.xlu0 %7057
  %7059 = vadd.xlane.f32.xlu0 %v6694
  %v7060 = vpop.xlane.xlu0 %7059
  %7061 = vadd.xlane.f32.xlu0 %v6699
  %v7062 = vpop.xlane.xlu0 %7061
  %7063 = vadd.xlane.f32.xlu0 %v6702
  %v7064 = vpop.xlane.xlu0 %7063
  %7065 = vadd.xlane.f32.xlu0 %v6707
  %v7066 = vpop.xlane.xlu0 %7065
  %7067 = vadd.xlane.f32.xlu0 %v6710
  %v7068 = vpop.xlane.xlu0 %7067
  %7069 = vadd.xlane.f32.xlu0 %v6715
  %v7070 = vpop.xlane.xlu0 %7069
  %7071 = vadd.xlane.f32.xlu0 %v6718
  %v7072 = vpop.xlane.xlu0 %7071
  %7073 = vadd.xlane.f32.xlu0 %v6723
  %v7074 = vpop.xlane.xlu0 %7073
  %7075 = vadd.xlane.f32.xlu0 %v6726
  %v7076 = vpop.xlane.xlu0 %7075
  %7077 = vadd.xlane.f32.xlu0 %v6731
  %v7078 = vpop.xlane.xlu0 %7077
  %7079 = vadd.xlane.f32.xlu0 %v6734
  %v7080 = vpop.xlane.xlu0 %7079
  %7081 = vadd.xlane.f32.xlu0 %v6739
  %v7082 = vpop.xlane.xlu0 %7081
  %7083 = vadd.xlane.f32.xlu0 %v6742
  %v7084 = vpop.xlane.xlu0 %7083
  %7085 = vadd.xlane.f32.xlu0 %v6747
  %v7086 = vpop.xlane.xlu0 %7085
  %7087 = vadd.xlane.f32.xlu0 %v6750
  %v7088 = vpop.xlane.xlu0 %7087
  %7089 = vadd.xlane.f32.xlu0 %v6755
  %v7090 = vpop.xlane.xlu0 %7089
  %7091 = vadd.xlane.f32.xlu0 %v6758
  %v7092 = vpop.xlane.xlu0 %7091
  %7093 = vadd.xlane.f32.xlu0 %v6763
  %v7094 = vpop.xlane.xlu0 %7093
  %7095 = vadd.xlane.f32.xlu0 %v6766
  %v7096 = vpop.xlane.xlu0 %7095
  %7097 = vadd.xlane.f32.xlu0 %v6771
  %v7098 = vpop.xlane.xlu0 %7097
  %7099 = vadd.xlane.f32.xlu0 %v6774
  %v7100 = vpop.xlane.xlu0 %7099
  %7101 = vadd.xlane.f32.xlu0 %v6779
  %v7102 = vpop.xlane.xlu0 %7101
  %7103 = vadd.xlane.f32.xlu0 %v6782
  %v7104 = vpop.xlane.xlu0 %7103
  %7105 = vadd.xlane.f32.xlu0 %v6787
  %v7106 = vpop.xlane.xlu0 %7105
  %7107 = vadd.xlane.f32.xlu0 %v6790
  %v7108 = vpop.xlane.xlu0 %7107
  %7109 = vadd.xlane.f32.xlu0 %v6795
  %v7110 = vpop.xlane.xlu0 %7109
  %7111 = vadd.xlane.f32.xlu0 %v6798
  %v7112 = vpop.xlane.xlu0 %7111
  %7113 = vadd.xlane.f32.xlu0 %v6803
  %v7114 = vpop.xlane.xlu0 %7113
  %7115 = vadd.xlane.f32.xlu0 %v6806
  %v7116 = vpop.xlane.xlu0 %7115
  %7117 = vadd.xlane.f32.xlu0 %v6811
  %v7118 = vpop.xlane.xlu0 %7117
  %7119 = vadd.xlane.f32.xlu0 %v6814
  %v7120 = vpop.xlane.xlu0 %7119
  %7121 = vadd.xlane.f32.xlu0 %v6819
  %v7122 = vpop.xlane.xlu0 %7121
  %7123 = vadd.xlane.f32.xlu0 %v6822
  %v7124 = vpop.xlane.xlu0 %7123
  %7125 = vadd.xlane.f32.xlu0 %v6827
  %v7126 = vpop.xlane.xlu0 %7125
  %7127 = vadd.xlane.f32.xlu0 %v6830
  %v7128 = vpop.xlane.xlu0 %7127
  %7129 = vadd.xlane.f32.xlu0 %v6835
  %v7130 = vpop.xlane.xlu0 %7129
  %7131 = vadd.xlane.f32.xlu0 %v6838
  %v7132 = vpop.xlane.xlu0 %7131
  %7133 = vadd.xlane.f32.xlu0 %v6843
  %v7134 = vpop.xlane.xlu0 %7133
  %7135 = vadd.xlane.f32.xlu0 %v6846
  %v7136 = vpop.xlane.xlu0 %7135
  %7137 = vadd.xlane.f32.xlu0 %v6851
  %v7138 = vpop.xlane.xlu0 %7137
  %7139 = vadd.xlane.f32.xlu0 %v6854
  %v7140 = vpop.xlane.xlu0 %7139
  %7141 = vadd.xlane.f32.xlu0 %v6859
  %v7142 = vpop.xlane.xlu0 %7141
  %7143 = vadd.xlane.f32.xlu0 %v6862
  %v7144 = vpop.xlane.xlu0 %7143
  %7145 = vadd.xlane.f32.xlu0 %v6867
  %v7146 = vpop.xlane.xlu0 %7145
  %7147 = vadd.xlane.f32.xlu0 %v6870
  %v7148 = vpop.xlane.xlu0 %7147
  %7149 = vadd.xlane.f32.xlu0 %v6875
  %v7150 = vpop.xlane.xlu0 %7149
  %7151 = vadd.xlane.f32.xlu0 %v6878
  %v7152 = vpop.xlane.xlu0 %7151
  %7153 = vadd.xlane.f32.xlu0 %v6883
  %v7154 = vpop.xlane.xlu0 %7153
  %7155 = vadd.xlane.f32.xlu0 %v6886
  %v7156 = vpop.xlane.xlu0 %7155
  %7157 = vadd.xlane.f32.xlu0 %v6891
  %v7158 = vpop.xlane.xlu0 %7157
  %7159 = vadd.xlane.f32.xlu0 %v6894
  %v7160 = vpop.xlane.xlu0 %7159
  %7161 = vadd.xlane.f32.xlu0 %v6899
  %v7162 = vpop.xlane.xlu0 %7161
  %7163 = vadd.xlane.f32.xlu0 %v6902
  %v7164 = vpop.xlane.xlu0 %7163
  %7165 = vadd.xlane.f32.xlu0 %v6907
  %v7166 = vpop.xlane.xlu0 %7165
  %7167 = vadd.xlane.f32.xlu0 %v6910
  %v7168 = vpop.xlane.xlu0 %7167
  %v7169 = vadd.f32 %v6914, %v6916
  %v7170 = vadd.f32 %v7169, %v6918
  %v7171 = vadd.f32 %v7170, %v6920
  %v7172 = vadd.f32 %v7171, %v6922
  %v7173 = vadd.f32 %v7172, %v6924
  %v7174 = vadd.f32 %v7173, %v6926
  %v7175 = vadd.f32 %v7174, %v6928
  %v7176 = vrot.slane %v7175, 4
  %v7177 = vadd.f32 %v7175, %v7176
  %v7178 = vrot.slane %v7177, 2
  %v7179 = vadd.f32 %v7177, %v7178
  %v7180 = vrot.slane %v7179, 1
  %v7181 = vadd.f32 %v7179, %v7180
  %v7182 = vadd.f32 %v6930, %v6932
  %v7183 = vadd.f32 %v7182, %v6934
  %v7184 = vadd.f32 %v7183, %v6936
  %v7185 = vadd.f32 %v7184, %v6938
  %v7186 = vadd.f32 %v7185, %v6940
  %v7187 = vadd.f32 %v7186, %v6942
  %v7188 = vadd.f32 %v7187, %v6944
  %v7189 = vrot.slane %v7188, 4
  %v7190 = vadd.f32 %v7188, %v7189
  %v7191 = vrot.slane %v7190, 2
  %v7192 = vadd.f32 %v7190, %v7191
  %v7193 = vrot.slane %v7192, 1
  %v7194 = vadd.f32 %v7192, %v7193
  %v7195 = vadd.f32 %v6946, %v6948
  %v7196 = vadd.f32 %v7195, %v6950
  %v7197 = vadd.f32 %v7196, %v6952
  %v7198 = vadd.f32 %v7197, %v6954
  %v7199 = vadd.f32 %v7198, %v6956
  %v7200 = vadd.f32 %v7199, %v6958
  %v7201 = vadd.f32 %v7200, %v6960
  %v7202 = vrot.slane %v7201, 4
  %v7203 = vadd.f32 %v7201, %v7202
  %v7204 = vrot.slane %v7203, 2
  %v7205 = vadd.f32 %v7203, %v7204
  %v7206 = vrot.slane %v7205, 1
  %v7207 = vadd.f32 %v7205, %v7206
  %v7208 = vadd.f32 %v6962, %v6964
  %v7209 = vadd.f32 %v7208, %v6966
  %v7210 = vadd.f32 %v7209, %v6968
  %v7211 = vadd.f32 %v7210, %v6970
  %v7212 = vadd.f32 %v7211, %v6972
  %v7213 = vadd.f32 %v7212, %v6974
  %v7214 = vadd.f32 %v7213, %v6976
  %v7215 = vrot.slane %v7214, 4
  %v7216 = vadd.f32 %v7214, %v7215
  %v7217 = vrot.slane %v7216, 2
  %v7218 = vadd.f32 %v7216, %v7217
  %v7219 = vrot.slane %v7218, 1
  %v7220 = vadd.f32 %v7218, %v7219
  %v7221 = vadd.f32 %v6978, %v6980
  %v7222 = vadd.f32 %v7221, %v6982
  %v7223 = vadd.f32 %v7222, %v6984
  %v7224 = vadd.f32 %v7223, %v6986
  %v7225 = vadd.f32 %v7224, %v6988
  %v7226 = vadd.f32 %v7225, %v6990
  %v7227 = vadd.f32 %v7226, %v6992
  %v7228 = vrot.slane %v7227, 4
  %v7229 = vadd.f32 %v7227, %v7228
  %v7230 = vrot.slane %v7229, 2
  %v7231 = vadd.f32 %v7229, %v7230
  %v7232 = vrot.slane %v7231, 1
  %v7233 = vadd.f32 %v7231, %v7232
  %v7234 = vadd.f32 %v6994, %v6996
  %v7235 = vadd.f32 %v7234, %v6998
  %v7236 = vadd.f32 %v7235, %v7000
  %v7237 = vadd.f32 %v7236, %v7002
  %v7238 = vadd.f32 %v7237, %v7004
  %v7239 = vadd.f32 %v7238, %v7006
  %v7240 = vadd.f32 %v7239, %v7008
  %v7241 = vrot.slane %v7240, 4
  %v7242 = vadd.f32 %v7240, %v7241
  %v7243 = vrot.slane %v7242, 2
  %v7244 = vadd.f32 %v7242, %v7243
  %v7245 = vrot.slane %v7244, 1
  %v7246 = vadd.f32 %v7244, %v7245
  %v7247 = vadd.f32 %v7010, %v7012
  %v7248 = vadd.f32 %v7247, %v7014
  %v7249 = vadd.f32 %v7248, %v7016
  %v7250 = vadd.f32 %v7249, %v7018
  %v7251 = vadd.f32 %v7250, %v7020
  %v7252 = vadd.f32 %v7251, %v7022
  %v7253 = vadd.f32 %v7252, %v7024
  %v7254 = vrot.slane %v7253, 4
  %v7255 = vadd.f32 %v7253, %v7254
  %v7256 = vrot.slane %v7255, 2
  %v7257 = vadd.f32 %v7255, %v7256
  %v7258 = vrot.slane %v7257, 1
  %v7259 = vadd.f32 %v7257, %v7258
  %v7260 = vadd.f32 %v7026, %v7028
  %v7261 = vadd.f32 %v7260, %v7030
  %v7262 = vadd.f32 %v7261, %v7032
  %v7263 = vadd.f32 %v7262, %v7034
  %v7264 = vadd.f32 %v7263, %v7036
  %v7265 = vadd.f32 %v7264, %v7038
  %v7266 = vadd.f32 %v7265, %v7040
  %v7267 = vrot.slane %v7266, 4
  %v7268 = vadd.f32 %v7266, %v7267
  %v7269 = vrot.slane %v7268, 2
  %v7270 = vadd.f32 %v7268, %v7269
  %v7271 = vrot.slane %v7270, 1
  %v7272 = vadd.f32 %v7270, %v7271
  %v7273 = vadd.f32 %v7042, %v7044
  %v7274 = vadd.f32 %v7273, %v7046
  %v7275 = vadd.f32 %v7274, %v7048
  %v7276 = vadd.f32 %v7275, %v7050
  %v7277 = vadd.f32 %v7276, %v7052
  %v7278 = vadd.f32 %v7277, %v7054
  %v7279 = vadd.f32 %v7278, %v7056
  %v7280 = vrot.slane %v7279, 4
  %v7281 = vadd.f32 %v7279, %v7280
  %v7282 = vrot.slane %v7281, 2
  %v7283 = vadd.f32 %v7281, %v7282
  %v7284 = vrot.slane %v7283, 1
  %v7285 = vadd.f32 %v7283, %v7284
  %v7286 = vadd.f32 %v7058, %v7060
  %v7287 = vadd.f32 %v7286, %v7062
  %v7288 = vadd.f32 %v7287, %v7064
  %v7289 = vadd.f32 %v7288, %v7066
  %v7290 = vadd.f32 %v7289, %v7068
  %v7291 = vadd.f32 %v7290, %v7070
  %v7292 = vadd.f32 %v7291, %v7072
  %v7293 = vrot.slane %v7292, 4
  %v7294 = vadd.f32 %v7292, %v7293
  %v7295 = vrot.slane %v7294, 2
  %v7296 = vadd.f32 %v7294, %v7295
  %v7297 = vrot.slane %v7296, 1
  %v7298 = vadd.f32 %v7296, %v7297
  %v7299 = vadd.f32 %v7074, %v7076
  %v7300 = vadd.f32 %v7299, %v7078
  %v7301 = vadd.f32 %v7300, %v7080
  %v7302 = vadd.f32 %v7301, %v7082
  %v7303 = vadd.f32 %v7302, %v7084
  %v7304 = vadd.f32 %v7303, %v7086
  %v7305 = vadd.f32 %v7304, %v7088
  %v7306 = vrot.slane %v7305, 4
  %v7307 = vadd.f32 %v7305, %v7306
  %v7308 = vrot.slane %v7307, 2
  %v7309 = vadd.f32 %v7307, %v7308
  %v7310 = vrot.slane %v7309, 1
  %v7311 = vadd.f32 %v7309, %v7310
  %v7312 = vadd.f32 %v7090, %v7092
  %v7313 = vadd.f32 %v7312, %v7094
  %v7314 = vadd.f32 %v7313, %v7096
  %v7315 = vadd.f32 %v7314, %v7098
  %v7316 = vadd.f32 %v7315, %v7100
  %v7317 = vadd.f32 %v7316, %v7102
  %v7318 = vadd.f32 %v7317, %v7104
  %v7319 = vrot.slane %v7318, 4
  %v7320 = vadd.f32 %v7318, %v7319
  %v7321 = vrot.slane %v7320, 2
  %v7322 = vadd.f32 %v7320, %v7321
  %v7323 = vrot.slane %v7322, 1
  %v7324 = vadd.f32 %v7322, %v7323
  %v7325 = vadd.f32 %v7106, %v7108
  %v7326 = vadd.f32 %v7325, %v7110
  %v7327 = vadd.f32 %v7326, %v7112
  %v7328 = vadd.f32 %v7327, %v7114
  %v7329 = vadd.f32 %v7328, %v7116
  %v7330 = vadd.f32 %v7329, %v7118
  %v7331 = vadd.f32 %v7330, %v7120
  %v7332 = vrot.slane %v7331, 4
  %v7333 = vadd.f32 %v7331, %v7332
  %v7334 = vrot.slane %v7333, 2
  %v7335 = vadd.f32 %v7333, %v7334
  %v7336 = vrot.slane %v7335, 1
  %v7337 = vadd.f32 %v7335, %v7336
  %v7338 = vadd.f32 %v7122, %v7124
  %v7339 = vadd.f32 %v7338, %v7126
  %v7340 = vadd.f32 %v7339, %v7128
  %v7341 = vadd.f32 %v7340, %v7130
  %v7342 = vadd.f32 %v7341, %v7132
  %v7343 = vadd.f32 %v7342, %v7134
  %v7344 = vadd.f32 %v7343, %v7136
  %v7345 = vrot.slane %v7344, 4
  %v7346 = vadd.f32 %v7344, %v7345
  %v7347 = vrot.slane %v7346, 2
  %v7348 = vadd.f32 %v7346, %v7347
  %v7349 = vrot.slane %v7348, 1
  %v7350 = vadd.f32 %v7348, %v7349
  %v7351 = vadd.f32 %v7138, %v7140
  %v7352 = vadd.f32 %v7351, %v7142
  %v7353 = vadd.f32 %v7352, %v7144
  %v7354 = vadd.f32 %v7353, %v7146
  %v7355 = vadd.f32 %v7354, %v7148
  %v7356 = vadd.f32 %v7355, %v7150
  %v7357 = vadd.f32 %v7356, %v7152
  %v7358 = vrot.slane %v7357, 4
  %v7359 = vadd.f32 %v7357, %v7358
  %v7360 = vrot.slane %v7359, 2
  %v7361 = vadd.f32 %v7359, %v7360
  %v7362 = vrot.slane %v7361, 1
  %v7363 = vadd.f32 %v7361, %v7362
  %v7364 = vadd.f32 %v7154, %v7156
  %v7365 = vadd.f32 %v7364, %v7158
  %v7366 = vadd.f32 %v7365, %v7160
  %v7367 = vadd.f32 %v7366, %v7162
  %v7368 = vadd.f32 %v7367, %v7164
  %v7369 = vadd.f32 %v7368, %v7166
  %v7370 = vadd.f32 %v7369, %v7168
  %v7371 = vrot.slane %v7370, 4
  %v7372 = vadd.f32 %v7370, %v7371
  %v7373 = vrot.slane %v7372, 2
  %v7374 = vadd.f32 %v7372, %v7373
  %v7375 = vrot.slane %v7374, 1
  %v7376 = vadd.f32 %v7374, %v7375
  %v7377 = vrcp.pop 8192.0
  %v7378 = vmul.f32 %v7181, %v7377
  %v7379 = vmul.f32 %v7194, %v7377
  %v7380 = vmul.f32 %v7207, %v7377
  %v7381 = vmul.f32 %v7220, %v7377
  %v7382 = vmul.f32 %v7233, %v7377
  %v7383 = vmul.f32 %v7246, %v7377
  %v7384 = vmul.f32 %v7259, %v7377
  %v7385 = vmul.f32 %v7272, %v7377
  %v7386 = vmul.f32 %v7285, %v7377
  %v7387 = vmul.f32 %v7298, %v7377
  %v7388 = vmul.f32 %v7311, %v7377
  %v7389 = vmul.f32 %v7324, %v7377
  %v7390 = vmul.f32 %v7337, %v7377
  %v7391 = vmul.f32 %v7350, %v7377
  %v7392 = vmul.f32 %v7363, %v7377
  %v7393 = vmul.f32 %v7376, %v7377
  %v7394 = vsub.f32 %v6403, %v7378
  %v7395 = vsub.f32 %v6406, %v7378
  %v7396 = vsub.f32 %v6411, %v7378
  %v7397 = vsub.f32 %v6414, %v7378
  %v7398 = vsub.f32 %v6419, %v7378
  %v7399 = vsub.f32 %v6422, %v7378
  %v7400 = vsub.f32 %v6427, %v7378
  %v7401 = vsub.f32 %v6430, %v7378
  %v7402 = vsub.f32 %v6435, %v7379
  %v7403 = vsub.f32 %v6438, %v7379
  %v7404 = vsub.f32 %v6443, %v7379
  %v7405 = vsub.f32 %v6446, %v7379
  %v7406 = vsub.f32 %v6451, %v7379
  %v7407 = vsub.f32 %v6454, %v7379
  %v7408 = vsub.f32 %v6459, %v7379
  %v7409 = vsub.f32 %v6462, %v7379
  %v7410 = vsub.f32 %v6467, %v7380
  %v7411 = vsub.f32 %v6470, %v7380
  %v7412 = vsub.f32 %v6475, %v7380
  %v7413 = vsub.f32 %v6478, %v7380
  %v7414 = vsub.f32 %v6483, %v7380
  %v7415 = vsub.f32 %v6486, %v7380
  %v7416 = vsub.f32 %v6491, %v7380
  %v7417 = vsub.f32 %v6494, %v7380
  %v7418 = vsub.f32 %v6499, %v7381
  %v7419 = vsub.f32 %v6502, %v7381
  %v7420 = vsub.f32 %v6507, %v7381
  %v7421 = vsub.f32 %v6510, %v7381
  %v7422 = vsub.f32 %v6515, %v7381
  %v7423 = vsub.f32 %v6518, %v7381
  %v7424 = vsub.f32 %v6523, %v7381
  %v7425 = vsub.f32 %v6526, %v7381
  %v7426 = vsub.f32 %v6531, %v7382
  %v7427 = vsub.f32 %v6534, %v7382
  %v7428 = vsub.f32 %v6539, %v7382
  %v7429 = vsub.f32 %v6542, %v7382
  %v7430 = vsub.f32 %v6547, %v7382
  %v7431 = vsub.f32 %v6550, %v7382
  %v7432 = vsub.f32 %v6555, %v7382
  %v7433 = vsub.f32 %v6558, %v7382
  %v7434 = vsub.f32 %v6563, %v7383
  %v7435 = vsub.f32 %v6566, %v7383
  %v7436 = vsub.f32 %v6571, %v7383
  %v7437 = vsub.f32 %v6574, %v7383
  %v7438 = vsub.f32 %v6579, %v7383
  %v7439 = vsub.f32 %v6582, %v7383
  %v7440 = vsub.f32 %v6587, %v7383
  %v7441 = vsub.f32 %v6590, %v7383
  %v7442 = vsub.f32 %v6595, %v7384
  %v7443 = vsub.f32 %v6598, %v7384
  %v7444 = vsub.f32 %v6603, %v7384
  %v7445 = vsub.f32 %v6606, %v7384
  %v7446 = vsub.f32 %v6611, %v7384
  %v7447 = vsub.f32 %v6614, %v7384
  %v7448 = vsub.f32 %v6619, %v7384
  %v7449 = vsub.f32 %v6622, %v7384
  %v7450 = vsub.f32 %v6627, %v7385
  %v7451 = vsub.f32 %v6630, %v7385
  %v7452 = vsub.f32 %v6635, %v7385
  %v7453 = vsub.f32 %v6638, %v7385
  %v7454 = vsub.f32 %v6643, %v7385
  %v7455 = vsub.f32 %v6646, %v7385
  %v7456 = vsub.f32 %v6651, %v7385
  %v7457 = vsub.f32 %v6654, %v7385
  %v7458 = vsub.f32 %v6659, %v7386
  %v7459 = vsub.f32 %v6662, %v7386
  %v7460 = vsub.f32 %v6667, %v7386
  %v7461 = vsub.f32 %v6670, %v7386
  %v7462 = vsub.f32 %v6675, %v7386
  %v7463 = vsub.f32 %v6678, %v7386
  %v7464 = vsub.f32 %v6683, %v7386
  %v7465 = vsub.f32 %v6686, %v7386
  %v7466 = vsub.f32 %v6691, %v7387
  %v7467 = vsub.f32 %v6694, %v7387
  %v7468 = vsub.f32 %v6699, %v7387
  %v7469 = vsub.f32 %v6702, %v7387
  %v7470 = vsub.f32 %v6707, %v7387
  %v7471 = vsub.f32 %v6710, %v7387
  %v7472 = vsub.f32 %v6715, %v7387
  %v7473 = vsub.f32 %v6718, %v7387
  %v7474 = vsub.f32 %v6723, %v7388
  %v7475 = vsub.f32 %v6726, %v7388
  %v7476 = vsub.f32 %v6731, %v7388
  %v7477 = vsub.f32 %v6734, %v7388
  %v7478 = vsub.f32 %v6739, %v7388
  %v7479 = vsub.f32 %v6742, %v7388
  %v7480 = vsub.f32 %v6747, %v7388
  %v7481 = vsub.f32 %v6750, %v7388
  %v7482 = vsub.f32 %v6755, %v7389
  %v7483 = vsub.f32 %v6758, %v7389
  %v7484 = vsub.f32 %v6763, %v7389
  %v7485 = vsub.f32 %v6766, %v7389
  %v7486 = vsub.f32 %v6771, %v7389
  %v7487 = vsub.f32 %v6774, %v7389
  %v7488 = vsub.f32 %v6779, %v7389
  %v7489 = vsub.f32 %v6782, %v7389
  %v7490 = vsub.f32 %v6787, %v7390
  %v7491 = vsub.f32 %v6790, %v7390
  %v7492 = vsub.f32 %v6795, %v7390
  %v7493 = vsub.f32 %v6798, %v7390
  %v7494 = vsub.f32 %v6803, %v7390
  %v7495 = vsub.f32 %v6806, %v7390
  %v7496 = vsub.f32 %v6811, %v7390
  %v7497 = vsub.f32 %v6814, %v7390
  %v7498 = vsub.f32 %v6819, %v7391
  %v7499 = vsub.f32 %v6822, %v7391
  %v7500 = vsub.f32 %v6827, %v7391
  %v7501 = vsub.f32 %v6830, %v7391
  %v7502 = vsub.f32 %v6835, %v7391
  %v7503 = vsub.f32 %v6838, %v7391
  %v7504 = vsub.f32 %v6843, %v7391
  %v7505 = vsub.f32 %v6846, %v7391
  %v7506 = vsub.f32 %v6851, %v7392
  %v7507 = vsub.f32 %v6854, %v7392
  %v7508 = vsub.f32 %v6859, %v7392
  %v7509 = vsub.f32 %v6862, %v7392
  %v7510 = vsub.f32 %v6867, %v7392
  %v7511 = vsub.f32 %v6870, %v7392
  %v7512 = vsub.f32 %v6875, %v7392
  %v7513 = vsub.f32 %v6878, %v7392
  %v7514 = vsub.f32 %v6883, %v7393
  %v7515 = vsub.f32 %v6886, %v7393
  %v7516 = vsub.f32 %v6891, %v7393
  %v7517 = vsub.f32 %v6894, %v7393
  %v7518 = vsub.f32 %v6899, %v7393
  %v7519 = vsub.f32 %v6902, %v7393
  %v7520 = vsub.f32 %v6907, %v7393
  %v7521 = vsub.f32 %v6910, %v7393
  %v7522 = vmul.f32 %v7394, %v7394
  %v7523 = vmul.f32 %v7395, %v7395
  %v7524 = vmul.f32 %v7396, %v7396
  %v7525 = vmul.f32 %v7397, %v7397
  %v7526 = vmul.f32 %v7398, %v7398
  %v7527 = vmul.f32 %v7399, %v7399
  %v7528 = vmul.f32 %v7400, %v7400
  %v7529 = vmul.f32 %v7401, %v7401
  %v7530 = vmul.f32 %v7402, %v7402
  %v7531 = vmul.f32 %v7403, %v7403
  %v7532 = vmul.f32 %v7404, %v7404
  %v7533 = vmul.f32 %v7405, %v7405
  %v7534 = vmul.f32 %v7406, %v7406
  %v7535 = vmul.f32 %v7407, %v7407
  %v7536 = vmul.f32 %v7408, %v7408
  %v7537 = vmul.f32 %v7409, %v7409
  %v7538 = vmul.f32 %v7410, %v7410
  %v7539 = vmul.f32 %v7411, %v7411
  %v7540 = vmul.f32 %v7412, %v7412
  %v7541 = vmul.f32 %v7413, %v7413
  %v7542 = vmul.f32 %v7414, %v7414
  %v7543 = vmul.f32 %v7415, %v7415
  %v7544 = vmul.f32 %v7416, %v7416
  %v7545 = vmul.f32 %v7417, %v7417
  %v7546 = vmul.f32 %v7418, %v7418
  %v7547 = vmul.f32 %v7419, %v7419
  %v7548 = vmul.f32 %v7420, %v7420
  %v7549 = vmul.f32 %v7421, %v7421
  %v7550 = vmul.f32 %v7422, %v7422
  %v7551 = vmul.f32 %v7423, %v7423
  %v7552 = vmul.f32 %v7424, %v7424
  %v7553 = vmul.f32 %v7425, %v7425
  %v7554 = vmul.f32 %v7426, %v7426
  %v7555 = vmul.f32 %v7427, %v7427
  %v7556 = vmul.f32 %v7428, %v7428
  %v7557 = vmul.f32 %v7429, %v7429
  %v7558 = vmul.f32 %v7430, %v7430
  %v7559 = vmul.f32 %v7431, %v7431
  %v7560 = vmul.f32 %v7432, %v7432
  %v7561 = vmul.f32 %v7433, %v7433
  %v7562 = vmul.f32 %v7434, %v7434
  %v7563 = vmul.f32 %v7435, %v7435
  %v7564 = vmul.f32 %v7436, %v7436
  %v7565 = vmul.f32 %v7437, %v7437
  %v7566 = vmul.f32 %v7438, %v7438
  %v7567 = vmul.f32 %v7439, %v7439
  %v7568 = vmul.f32 %v7440, %v7440
  %v7569 = vmul.f32 %v7441, %v7441
  %v7570 = vmul.f32 %v7442, %v7442
  %v7571 = vmul.f32 %v7443, %v7443
  %v7572 = vmul.f32 %v7444, %v7444
  %v7573 = vmul.f32 %v7445, %v7445
  %v7574 = vmul.f32 %v7446, %v7446
  %v7575 = vmul.f32 %v7447, %v7447
  %v7576 = vmul.f32 %v7448, %v7448
  %v7577 = vmul.f32 %v7449, %v7449
  %v7578 = vmul.f32 %v7450, %v7450
  %v7579 = vmul.f32 %v7451, %v7451
  %v7580 = vmul.f32 %v7452, %v7452
  %v7581 = vmul.f32 %v7453, %v7453
  %v7582 = vmul.f32 %v7454, %v7454
  %v7583 = vmul.f32 %v7455, %v7455
  %v7584 = vmul.f32 %v7456, %v7456
  %v7585 = vmul.f32 %v7457, %v7457
  %v7586 = vmul.f32 %v7458, %v7458
  %v7587 = vmul.f32 %v7459, %v7459
  %v7588 = vmul.f32 %v7460, %v7460
  %v7589 = vmul.f32 %v7461, %v7461
  %v7590 = vmul.f32 %v7462, %v7462
  %v7591 = vmul.f32 %v7463, %v7463
  %v7592 = vmul.f32 %v7464, %v7464
  %v7593 = vmul.f32 %v7465, %v7465
  %v7594 = vmul.f32 %v7466, %v7466
  %v7595 = vmul.f32 %v7467, %v7467
  %v7596 = vmul.f32 %v7468, %v7468
  %v7597 = vmul.f32 %v7469, %v7469
  %v7598 = vmul.f32 %v7470, %v7470
  %v7599 = vmul.f32 %v7471, %v7471
  %v7600 = vmul.f32 %v7472, %v7472
  %v7601 = vmul.f32 %v7473, %v7473
  %v7602 = vmul.f32 %v7474, %v7474
  %v7603 = vmul.f32 %v7475, %v7475
  %v7604 = vmul.f32 %v7476, %v7476
  %v7605 = vmul.f32 %v7477, %v7477
  %v7606 = vmul.f32 %v7478, %v7478
  %v7607 = vmul.f32 %v7479, %v7479
  %v7608 = vmul.f32 %v7480, %v7480
  %v7609 = vmul.f32 %v7481, %v7481
  %v7610 = vmul.f32 %v7482, %v7482
  %v7611 = vmul.f32 %v7483, %v7483
  %v7612 = vmul.f32 %v7484, %v7484
  %v7613 = vmul.f32 %v7485, %v7485
  %v7614 = vmul.f32 %v7486, %v7486
  %v7615 = vmul.f32 %v7487, %v7487
  %v7616 = vmul.f32 %v7488, %v7488
  %v7617 = vmul.f32 %v7489, %v7489
  %v7618 = vmul.f32 %v7490, %v7490
  %v7619 = vmul.f32 %v7491, %v7491
  %v7620 = vmul.f32 %v7492, %v7492
  %v7621 = vmul.f32 %v7493, %v7493
  %v7622 = vmul.f32 %v7494, %v7494
  %v7623 = vmul.f32 %v7495, %v7495
  %v7624 = vmul.f32 %v7496, %v7496
  %v7625 = vmul.f32 %v7497, %v7497
  %v7626 = vmul.f32 %v7498, %v7498
  %v7627 = vmul.f32 %v7499, %v7499
  %v7628 = vmul.f32 %v7500, %v7500
  %v7629 = vmul.f32 %v7501, %v7501
  %v7630 = vmul.f32 %v7502, %v7502
  %v7631 = vmul.f32 %v7503, %v7503
  %v7632 = vmul.f32 %v7504, %v7504
  %v7633 = vmul.f32 %v7505, %v7505
  %v7634 = vmul.f32 %v7506, %v7506
  %v7635 = vmul.f32 %v7507, %v7507
  %v7636 = vmul.f32 %v7508, %v7508
  %v7637 = vmul.f32 %v7509, %v7509
  %v7638 = vmul.f32 %v7510, %v7510
  %v7639 = vmul.f32 %v7511, %v7511
  %v7640 = vmul.f32 %v7512, %v7512
  %v7641 = vmul.f32 %v7513, %v7513
  %v7642 = vmul.f32 %v7514, %v7514
  %v7643 = vmul.f32 %v7515, %v7515
  %v7644 = vmul.f32 %v7516, %v7516
  %v7645 = vmul.f32 %v7517, %v7517
  %v7646 = vmul.f32 %v7518, %v7518
  %v7647 = vmul.f32 %v7519, %v7519
  %v7648 = vmul.f32 %v7520, %v7520
  %v7649 = vmul.f32 %v7521, %v7521
  %7650 = vadd.xlane.f32.xlu0 %v7522
  %v7651 = vpop.xlane.xlu0 %7650
  %7652 = vadd.xlane.f32.xlu0 %v7523
  %v7653 = vpop.xlane.xlu0 %7652
  %7654 = vadd.xlane.f32.xlu0 %v7524
  %v7655 = vpop.xlane.xlu0 %7654
  %7656 = vadd.xlane.f32.xlu0 %v7525
  %v7657 = vpop.xlane.xlu0 %7656
  %7658 = vadd.xlane.f32.xlu0 %v7526
  %v7659 = vpop.xlane.xlu0 %7658
  %7660 = vadd.xlane.f32.xlu0 %v7527
  %v7661 = vpop.xlane.xlu0 %7660
  %7662 = vadd.xlane.f32.xlu0 %v7528
  %v7663 = vpop.xlane.xlu0 %7662
  %7664 = vadd.xlane.f32.xlu0 %v7529
  %v7665 = vpop.xlane.xlu0 %7664
  %7666 = vadd.xlane.f32.xlu0 %v7530
  %v7667 = vpop.xlane.xlu0 %7666
  %7668 = vadd.xlane.f32.xlu0 %v7531
  %v7669 = vpop.xlane.xlu0 %7668
  %7670 = vadd.xlane.f32.xlu0 %v7532
  %v7671 = vpop.xlane.xlu0 %7670
  %7672 = vadd.xlane.f32.xlu0 %v7533
  %v7673 = vpop.xlane.xlu0 %7672
  %7674 = vadd.xlane.f32.xlu0 %v7534
  %v7675 = vpop.xlane.xlu0 %7674
  %7676 = vadd.xlane.f32.xlu0 %v7535
  %v7677 = vpop.xlane.xlu0 %7676
  %7678 = vadd.xlane.f32.xlu0 %v7536
  %v7679 = vpop.xlane.xlu0 %7678
  %7680 = vadd.xlane.f32.xlu0 %v7537
  %v7681 = vpop.xlane.xlu0 %7680
  %7682 = vadd.xlane.f32.xlu0 %v7538
  %v7683 = vpop.xlane.xlu0 %7682
  %7684 = vadd.xlane.f32.xlu0 %v7539
  %v7685 = vpop.xlane.xlu0 %7684
  %7686 = vadd.xlane.f32.xlu0 %v7540
  %v7687 = vpop.xlane.xlu0 %7686
  %7688 = vadd.xlane.f32.xlu0 %v7541
  %v7689 = vpop.xlane.xlu0 %7688
  %7690 = vadd.xlane.f32.xlu0 %v7542
  %v7691 = vpop.xlane.xlu0 %7690
  %7692 = vadd.xlane.f32.xlu0 %v7543
  %v7693 = vpop.xlane.xlu0 %7692
  %7694 = vadd.xlane.f32.xlu0 %v7544
  %v7695 = vpop.xlane.xlu0 %7694
  %7696 = vadd.xlane.f32.xlu0 %v7545
  %v7697 = vpop.xlane.xlu0 %7696
  %7698 = vadd.xlane.f32.xlu0 %v7546
  %v7699 = vpop.xlane.xlu0 %7698
  %7700 = vadd.xlane.f32.xlu0 %v7547
  %v7701 = vpop.xlane.xlu0 %7700
  %7702 = vadd.xlane.f32.xlu0 %v7548
  %v7703 = vpop.xlane.xlu0 %7702
  %7704 = vadd.xlane.f32.xlu0 %v7549
  %v7705 = vpop.xlane.xlu0 %7704
  %7706 = vadd.xlane.f32.xlu0 %v7550
  %v7707 = vpop.xlane.xlu0 %7706
  %7708 = vadd.xlane.f32.xlu0 %v7551
  %v7709 = vpop.xlane.xlu0 %7708
  %7710 = vadd.xlane.f32.xlu0 %v7552
  %v7711 = vpop.xlane.xlu0 %7710
  %7712 = vadd.xlane.f32.xlu0 %v7553
  %v7713 = vpop.xlane.xlu0 %7712
  %7714 = vadd.xlane.f32.xlu0 %v7554
  %v7715 = vpop.xlane.xlu0 %7714
  %7716 = vadd.xlane.f32.xlu0 %v7555
  %v7717 = vpop.xlane.xlu0 %7716
  %7718 = vadd.xlane.f32.xlu0 %v7556
  %v7719 = vpop.xlane.xlu0 %7718
  %7720 = vadd.xlane.f32.xlu0 %v7557
  %v7721 = vpop.xlane.xlu0 %7720
  %7722 = vadd.xlane.f32.xlu0 %v7558
  %v7723 = vpop.xlane.xlu0 %7722
  %7724 = vadd.xlane.f32.xlu0 %v7559
  %v7725 = vpop.xlane.xlu0 %7724
  %7726 = vadd.xlane.f32.xlu0 %v7560
  %v7727 = vpop.xlane.xlu0 %7726
  %7728 = vadd.xlane.f32.xlu0 %v7561
  %v7729 = vpop.xlane.xlu0 %7728
  %7730 = vadd.xlane.f32.xlu0 %v7562
  %v7731 = vpop.xlane.xlu0 %7730
  %7732 = vadd.xlane.f32.xlu0 %v7563
  %v7733 = vpop.xlane.xlu0 %7732
  %7734 = vadd.xlane.f32.xlu0 %v7564
  %v7735 = vpop.xlane.xlu0 %7734
  %7736 = vadd.xlane.f32.xlu0 %v7565
  %v7737 = vpop.xlane.xlu0 %7736
  %7738 = vadd.xlane.f32.xlu0 %v7566
  %v7739 = vpop.xlane.xlu0 %7738
  %7740 = vadd.xlane.f32.xlu0 %v7567
  %v7741 = vpop.xlane.xlu0 %7740
  %7742 = vadd.xlane.f32.xlu0 %v7568
  %v7743 = vpop.xlane.xlu0 %7742
  %7744 = vadd.xlane.f32.xlu0 %v7569
  %v7745 = vpop.xlane.xlu0 %7744
  %7746 = vadd.xlane.f32.xlu0 %v7570
  %v7747 = vpop.xlane.xlu0 %7746
  %7748 = vadd.xlane.f32.xlu0 %v7571
  %v7749 = vpop.xlane.xlu0 %7748
  %7750 = vadd.xlane.f32.xlu0 %v7572
  %v7751 = vpop.xlane.xlu0 %7750
  %7752 = vadd.xlane.f32.xlu0 %v7573
  %v7753 = vpop.xlane.xlu0 %7752
  %7754 = vadd.xlane.f32.xlu0 %v7574
  %v7755 = vpop.xlane.xlu0 %7754
  %7756 = vadd.xlane.f32.xlu0 %v7575
  %v7757 = vpop.xlane.xlu0 %7756
  %7758 = vadd.xlane.f32.xlu0 %v7576
  %v7759 = vpop.xlane.xlu0 %7758
  %7760 = vadd.xlane.f32.xlu0 %v7577
  %v7761 = vpop.xlane.xlu0 %7760
  %7762 = vadd.xlane.f32.xlu0 %v7578
  %v7763 = vpop.xlane.xlu0 %7762
  %7764 = vadd.xlane.f32.xlu0 %v7579
  %v7765 = vpop.xlane.xlu0 %7764
  %7766 = vadd.xlane.f32.xlu0 %v7580
  %v7767 = vpop.xlane.xlu0 %7766
  %7768 = vadd.xlane.f32.xlu0 %v7581
  %v7769 = vpop.xlane.xlu0 %7768
  %7770 = vadd.xlane.f32.xlu0 %v7582
  %v7771 = vpop.xlane.xlu0 %7770
  %7772 = vadd.xlane.f32.xlu0 %v7583
  %v7773 = vpop.xlane.xlu0 %7772
  %7774 = vadd.xlane.f32.xlu0 %v7584
  %v7775 = vpop.xlane.xlu0 %7774
  %7776 = vadd.xlane.f32.xlu0 %v7585
  %v7777 = vpop.xlane.xlu0 %7776
  %7778 = vadd.xlane.f32.xlu0 %v7586
  %v7779 = vpop.xlane.xlu0 %7778
  %7780 = vadd.xlane.f32.xlu0 %v7587
  %v7781 = vpop.xlane.xlu0 %7780
  %7782 = vadd.xlane.f32.xlu0 %v7588
  %v7783 = vpop.xlane.xlu0 %7782
  %7784 = vadd.xlane.f32.xlu0 %v7589
  %v7785 = vpop.xlane.xlu0 %7784
  %7786 = vadd.xlane.f32.xlu0 %v7590
  %v7787 = vpop.xlane.xlu0 %7786
  %7788 = vadd.xlane.f32.xlu0 %v7591
  %v7789 = vpop.xlane.xlu0 %7788
  %7790 = vadd.xlane.f32.xlu0 %v7592
  %v7791 = vpop.xlane.xlu0 %7790
  %7792 = vadd.xlane.f32.xlu0 %v7593
  %v7793 = vpop.xlane.xlu0 %7792
  %7794 = vadd.xlane.f32.xlu0 %v7594
  %v7795 = vpop.xlane.xlu0 %7794
  %7796 = vadd.xlane.f32.xlu0 %v7595
  %v7797 = vpop.xlane.xlu0 %7796
  %7798 = vadd.xlane.f32.xlu0 %v7596
  %v7799 = vpop.xlane.xlu0 %7798
  %7800 = vadd.xlane.f32.xlu0 %v7597
  %v7801 = vpop.xlane.xlu0 %7800
  %7802 = vadd.xlane.f32.xlu0 %v7598
  %v7803 = vpop.xlane.xlu0 %7802
  %7804 = vadd.xlane.f32.xlu0 %v7599
  %v7805 = vpop.xlane.xlu0 %7804
  %7806 = vadd.xlane.f32.xlu0 %v7600
  %v7807 = vpop.xlane.xlu0 %7806
  %7808 = vadd.xlane.f32.xlu0 %v7601
  %v7809 = vpop.xlane.xlu0 %7808
  %7810 = vadd.xlane.f32.xlu0 %v7602
  %v7811 = vpop.xlane.xlu0 %7810
  %7812 = vadd.xlane.f32.xlu0 %v7603
  %v7813 = vpop.xlane.xlu0 %7812
  %7814 = vadd.xlane.f32.xlu0 %v7604
  %v7815 = vpop.xlane.xlu0 %7814
  %7816 = vadd.xlane.f32.xlu0 %v7605
  %v7817 = vpop.xlane.xlu0 %7816
  %7818 = vadd.xlane.f32.xlu0 %v7606
  %v7819 = vpop.xlane.xlu0 %7818
  %7820 = vadd.xlane.f32.xlu0 %v7607
  %v7821 = vpop.xlane.xlu0 %7820
  %7822 = vadd.xlane.f32.xlu0 %v7608
  %v7823 = vpop.xlane.xlu0 %7822
  %7824 = vadd.xlane.f32.xlu0 %v7609
  %v7825 = vpop.xlane.xlu0 %7824
  %7826 = vadd.xlane.f32.xlu0 %v7610
  %v7827 = vpop.xlane.xlu0 %7826
  %7828 = vadd.xlane.f32.xlu0 %v7611
  %v7829 = vpop.xlane.xlu0 %7828
  %7830 = vadd.xlane.f32.xlu0 %v7612
  %v7831 = vpop.xlane.xlu0 %7830
  %7832 = vadd.xlane.f32.xlu0 %v7613
  %v7833 = vpop.xlane.xlu0 %7832
  %7834 = vadd.xlane.f32.xlu0 %v7614
  %v7835 = vpop.xlane.xlu0 %7834
  %7836 = vadd.xlane.f32.xlu0 %v7615
  %v7837 = vpop.xlane.xlu0 %7836
  %7838 = vadd.xlane.f32.xlu0 %v7616
  %v7839 = vpop.xlane.xlu0 %7838
  %7840 = vadd.xlane.f32.xlu0 %v7617
  %v7841 = vpop.xlane.xlu0 %7840
  %7842 = vadd.xlane.f32.xlu0 %v7618
  %v7843 = vpop.xlane.xlu0 %7842
  %7844 = vadd.xlane.f32.xlu0 %v7619
  %v7845 = vpop.xlane.xlu0 %7844
  %7846 = vadd.xlane.f32.xlu0 %v7620
  %v7847 = vpop.xlane.xlu0 %7846
  %7848 = vadd.xlane.f32.xlu0 %v7621
  %v7849 = vpop.xlane.xlu0 %7848
  %7850 = vadd.xlane.f32.xlu0 %v7622
  %v7851 = vpop.xlane.xlu0 %7850
  %7852 = vadd.xlane.f32.xlu0 %v7623
  %v7853 = vpop.xlane.xlu0 %7852
  %7854 = vadd.xlane.f32.xlu0 %v7624
  %v7855 = vpop.xlane.xlu0 %7854
  %7856 = vadd.xlane.f32.xlu0 %v7625
  %v7857 = vpop.xlane.xlu0 %7856
  %7858 = vadd.xlane.f32.xlu0 %v7626
  %v7859 = vpop.xlane.xlu0 %7858
  %7860 = vadd.xlane.f32.xlu0 %v7627
  %v7861 = vpop.xlane.xlu0 %7860
  %7862 = vadd.xlane.f32.xlu0 %v7628
  %v7863 = vpop.xlane.xlu0 %7862
  %7864 = vadd.xlane.f32.xlu0 %v7629
  %v7865 = vpop.xlane.xlu0 %7864
  %7866 = vadd.xlane.f32.xlu0 %v7630
  %v7867 = vpop.xlane.xlu0 %7866
  %7868 = vadd.xlane.f32.xlu0 %v7631
  %v7869 = vpop.xlane.xlu0 %7868
  %7870 = vadd.xlane.f32.xlu0 %v7632
  %v7871 = vpop.xlane.xlu0 %7870
  %7872 = vadd.xlane.f32.xlu0 %v7633
  %v7873 = vpop.xlane.xlu0 %7872
  %7874 = vadd.xlane.f32.xlu0 %v7634
  %v7875 = vpop.xlane.xlu0 %7874
  %7876 = vadd.xlane.f32.xlu0 %v7635
  %v7877 = vpop.xlane.xlu0 %7876
  %7878 = vadd.xlane.f32.xlu0 %v7636
  %v7879 = vpop.xlane.xlu0 %7878
  %7880 = vadd.xlane.f32.xlu0 %v7637
  %v7881 = vpop.xlane.xlu0 %7880
  %7882 = vadd.xlane.f32.xlu0 %v7638
  %v7883 = vpop.xlane.xlu0 %7882
  %7884 = vadd.xlane.f32.xlu0 %v7639
  %v7885 = vpop.xlane.xlu0 %7884
  %7886 = vadd.xlane.f32.xlu0 %v7640
  %v7887 = vpop.xlane.xlu0 %7886
  %7888 = vadd.xlane.f32.xlu0 %v7641
  %v7889 = vpop.xlane.xlu0 %7888
  %7890 = vadd.xlane.f32.xlu0 %v7642
  %v7891 = vpop.xlane.xlu0 %7890
  %7892 = vadd.xlane.f32.xlu0 %v7643
  %v7893 = vpop.xlane.xlu0 %7892
  %7894 = vadd.xlane.f32.xlu0 %v7644
  %v7895 = vpop.xlane.xlu0 %7894
  %7896 = vadd.xlane.f32.xlu0 %v7645
  %v7897 = vpop.xlane.xlu0 %7896
  %7898 = vadd.xlane.f32.xlu0 %v7646
  %v7899 = vpop.xlane.xlu0 %7898
  %7900 = vadd.xlane.f32.xlu0 %v7647
  %v7901 = vpop.xlane.xlu0 %7900
  %7902 = vadd.xlane.f32.xlu0 %v7648
  %v7903 = vpop.xlane.xlu0 %7902
  %7904 = vadd.xlane.f32.xlu0 %v7649
  %v7905 = vpop.xlane.xlu0 %7904
  %v7906 = vadd.f32 %v7651, %v7653
  %v7907 = vadd.f32 %v7906, %v7655
  %v7908 = vadd.f32 %v7907, %v7657
  %v7909 = vadd.f32 %v7908, %v7659
  %v7910 = vadd.f32 %v7909, %v7661
  %v7911 = vadd.f32 %v7910, %v7663
  %v7912 = vadd.f32 %v7911, %v7665
  %v7913 = vrot.slane %v7912, 4
  %v7914 = vadd.f32 %v7912, %v7913
  %v7915 = vrot.slane %v7914, 2
  %v7916 = vadd.f32 %v7914, %v7915
  %v7917 = vrot.slane %v7916, 1
  %v7918 = vadd.f32 %v7916, %v7917
  %v7919 = vadd.f32 %v7667, %v7669
  %v7920 = vadd.f32 %v7919, %v7671
  %v7921 = vadd.f32 %v7920, %v7673
  %v7922 = vadd.f32 %v7921, %v7675
  %v7923 = vadd.f32 %v7922, %v7677
  %v7924 = vadd.f32 %v7923, %v7679
  %v7925 = vadd.f32 %v7924, %v7681
  %v7926 = vrot.slane %v7925, 4
  %v7927 = vadd.f32 %v7925, %v7926
  %v7928 = vrot.slane %v7927, 2
  %v7929 = vadd.f32 %v7927, %v7928
  %v7930 = vrot.slane %v7929, 1
  %v7931 = vadd.f32 %v7929, %v7930
  %v7932 = vadd.f32 %v7683, %v7685
  %v7933 = vadd.f32 %v7932, %v7687
  %v7934 = vadd.f32 %v7933, %v7689
  %v7935 = vadd.f32 %v7934, %v7691
  %v7936 = vadd.f32 %v7935, %v7693
  %v7937 = vadd.f32 %v7936, %v7695
  %v7938 = vadd.f32 %v7937, %v7697
  %v7939 = vrot.slane %v7938, 4
  %v7940 = vadd.f32 %v7938, %v7939
  %v7941 = vrot.slane %v7940, 2
  %v7942 = vadd.f32 %v7940, %v7941
  %v7943 = vrot.slane %v7942, 1
  %v7944 = vadd.f32 %v7942, %v7943
  %v7945 = vadd.f32 %v7699, %v7701
  %v7946 = vadd.f32 %v7945, %v7703
  %v7947 = vadd.f32 %v7946, %v7705
  %v7948 = vadd.f32 %v7947, %v7707
  %v7949 = vadd.f32 %v7948, %v7709
  %v7950 = vadd.f32 %v7949, %v7711
  %v7951 = vadd.f32 %v7950, %v7713
  %v7952 = vrot.slane %v7951, 4
  %v7953 = vadd.f32 %v7951, %v7952
  %v7954 = vrot.slane %v7953, 2
  %v7955 = vadd.f32 %v7953, %v7954
  %v7956 = vrot.slane %v7955, 1
  %v7957 = vadd.f32 %v7955, %v7956
  %v7958 = vadd.f32 %v7715, %v7717
  %v7959 = vadd.f32 %v7958, %v7719
  %v7960 = vadd.f32 %v7959, %v7721
  %v7961 = vadd.f32 %v7960, %v7723
  %v7962 = vadd.f32 %v7961, %v7725
  %v7963 = vadd.f32 %v7962, %v7727
  %v7964 = vadd.f32 %v7963, %v7729
  %v7965 = vrot.slane %v7964, 4
  %v7966 = vadd.f32 %v7964, %v7965
  %v7967 = vrot.slane %v7966, 2
  %v7968 = vadd.f32 %v7966, %v7967
  %v7969 = vrot.slane %v7968, 1
  %v7970 = vadd.f32 %v7968, %v7969
  %v7971 = vadd.f32 %v7731, %v7733
  %v7972 = vadd.f32 %v7971, %v7735
  %v7973 = vadd.f32 %v7972, %v7737
  %v7974 = vadd.f32 %v7973, %v7739
  %v7975 = vadd.f32 %v7974, %v7741
  %v7976 = vadd.f32 %v7975, %v7743
  %v7977 = vadd.f32 %v7976, %v7745
  %v7978 = vrot.slane %v7977, 4
  %v7979 = vadd.f32 %v7977, %v7978
  %v7980 = vrot.slane %v7979, 2
  %v7981 = vadd.f32 %v7979, %v7980
  %v7982 = vrot.slane %v7981, 1
  %v7983 = vadd.f32 %v7981, %v7982
  %v7984 = vadd.f32 %v7747, %v7749
  %v7985 = vadd.f32 %v7984, %v7751
  %v7986 = vadd.f32 %v7985, %v7753
  %v7987 = vadd.f32 %v7986, %v7755
  %v7988 = vadd.f32 %v7987, %v7757
  %v7989 = vadd.f32 %v7988, %v7759
  %v7990 = vadd.f32 %v7989, %v7761
  %v7991 = vrot.slane %v7990, 4
  %v7992 = vadd.f32 %v7990, %v7991
  %v7993 = vrot.slane %v7992, 2
  %v7994 = vadd.f32 %v7992, %v7993
  %v7995 = vrot.slane %v7994, 1
  %v7996 = vadd.f32 %v7994, %v7995
  %v7997 = vadd.f32 %v7763, %v7765
  %v7998 = vadd.f32 %v7997, %v7767
  %v7999 = vadd.f32 %v7998, %v7769
  %v8000 = vadd.f32 %v7999, %v7771
  %v8001 = vadd.f32 %v8000, %v7773
  %v8002 = vadd.f32 %v8001, %v7775
  %v8003 = vadd.f32 %v8002, %v7777
  %v8004 = vrot.slane %v8003, 4
  %v8005 = vadd.f32 %v8003, %v8004
  %v8006 = vrot.slane %v8005, 2
  %v8007 = vadd.f32 %v8005, %v8006
  %v8008 = vrot.slane %v8007, 1
  %v8009 = vadd.f32 %v8007, %v8008
  %v8010 = vadd.f32 %v7779, %v7781
  %v8011 = vadd.f32 %v8010, %v7783
  %v8012 = vadd.f32 %v8011, %v7785
  %v8013 = vadd.f32 %v8012, %v7787
  %v8014 = vadd.f32 %v8013, %v7789
  %v8015 = vadd.f32 %v8014, %v7791
  %v8016 = vadd.f32 %v8015, %v7793
  %v8017 = vrot.slane %v8016, 4
  %v8018 = vadd.f32 %v8016, %v8017
  %v8019 = vrot.slane %v8018, 2
  %v8020 = vadd.f32 %v8018, %v8019
  %v8021 = vrot.slane %v8020, 1
  %v8022 = vadd.f32 %v8020, %v8021
  %v8023 = vadd.f32 %v7795, %v7797
  %v8024 = vadd.f32 %v8023, %v7799
  %v8025 = vadd.f32 %v8024, %v7801
  %v8026 = vadd.f32 %v8025, %v7803
  %v8027 = vadd.f32 %v8026, %v7805
  %v8028 = vadd.f32 %v8027, %v7807
  %v8029 = vadd.f32 %v8028, %v7809
  %v8030 = vrot.slane %v8029, 4
  %v8031 = vadd.f32 %v8029, %v8030
  %v8032 = vrot.slane %v8031, 2
  %v8033 = vadd.f32 %v8031, %v8032
  %v8034 = vrot.slane %v8033, 1
  %v8035 = vadd.f32 %v8033, %v8034
  %v8036 = vadd.f32 %v7811, %v7813
  %v8037 = vadd.f32 %v8036, %v7815
  %v8038 = vadd.f32 %v8037, %v7817
  %v8039 = vadd.f32 %v8038, %v7819
  %v8040 = vadd.f32 %v8039, %v7821
  %v8041 = vadd.f32 %v8040, %v7823
  %v8042 = vadd.f32 %v8041, %v7825
  %v8043 = vrot.slane %v8042, 4
  %v8044 = vadd.f32 %v8042, %v8043
  %v8045 = vrot.slane %v8044, 2
  %v8046 = vadd.f32 %v8044, %v8045
  %v8047 = vrot.slane %v8046, 1
  %v8048 = vadd.f32 %v8046, %v8047
  %v8049 = vadd.f32 %v7827, %v7829
  %v8050 = vadd.f32 %v8049, %v7831
  %v8051 = vadd.f32 %v8050, %v7833
  %v8052 = vadd.f32 %v8051, %v7835
  %v8053 = vadd.f32 %v8052, %v7837
  %v8054 = vadd.f32 %v8053, %v7839
  %v8055 = vadd.f32 %v8054, %v7841
  %v8056 = vrot.slane %v8055, 4
  %v8057 = vadd.f32 %v8055, %v8056
  %v8058 = vrot.slane %v8057, 2
  %v8059 = vadd.f32 %v8057, %v8058
  %v8060 = vrot.slane %v8059, 1
  %v8061 = vadd.f32 %v8059, %v8060
  %v8062 = vadd.f32 %v7843, %v7845
  %v8063 = vadd.f32 %v8062, %v7847
  %v8064 = vadd.f32 %v8063, %v7849
  %v8065 = vadd.f32 %v8064, %v7851
  %v8066 = vadd.f32 %v8065, %v7853
  %v8067 = vadd.f32 %v8066, %v7855
  %v8068 = vadd.f32 %v8067, %v7857
  %v8069 = vrot.slane %v8068, 4
  %v8070 = vadd.f32 %v8068, %v8069
  %v8071 = vrot.slane %v8070, 2
  %v8072 = vadd.f32 %v8070, %v8071
  %v8073 = vrot.slane %v8072, 1
  %v8074 = vadd.f32 %v8072, %v8073
  %v8075 = vadd.f32 %v7859, %v7861
  %v8076 = vadd.f32 %v8075, %v7863
  %v8077 = vadd.f32 %v8076, %v7865
  %v8078 = vadd.f32 %v8077, %v7867
  %v8079 = vadd.f32 %v8078, %v7869
  %v8080 = vadd.f32 %v8079, %v7871
  %v8081 = vadd.f32 %v8080, %v7873
  %v8082 = vrot.slane %v8081, 4
  %v8083 = vadd.f32 %v8081, %v8082
  %v8084 = vrot.slane %v8083, 2
  %v8085 = vadd.f32 %v8083, %v8084
  %v8086 = vrot.slane %v8085, 1
  %v8087 = vadd.f32 %v8085, %v8086
  %v8088 = vadd.f32 %v7875, %v7877
  %v8089 = vadd.f32 %v8088, %v7879
  %v8090 = vadd.f32 %v8089, %v7881
  %v8091 = vadd.f32 %v8090, %v7883
  %v8092 = vadd.f32 %v8091, %v7885
  %v8093 = vadd.f32 %v8092, %v7887
  %v8094 = vadd.f32 %v8093, %v7889
  %v8095 = vrot.slane %v8094, 4
  %v8096 = vadd.f32 %v8094, %v8095
  %v8097 = vrot.slane %v8096, 2
  %v8098 = vadd.f32 %v8096, %v8097
  %v8099 = vrot.slane %v8098, 1
  %v8100 = vadd.f32 %v8098, %v8099
  %v8101 = vadd.f32 %v7891, %v7893
  %v8102 = vadd.f32 %v8101, %v7895
  %v8103 = vadd.f32 %v8102, %v7897
  %v8104 = vadd.f32 %v8103, %v7899
  %v8105 = vadd.f32 %v8104, %v7901
  %v8106 = vadd.f32 %v8105, %v7903
  %v8107 = vadd.f32 %v8106, %v7905
  %v8108 = vrot.slane %v8107, 4
  %v8109 = vadd.f32 %v8107, %v8108
  %v8110 = vrot.slane %v8109, 2
  %v8111 = vadd.f32 %v8109, %v8110
  %v8112 = vrot.slane %v8111, 1
  %v8113 = vadd.f32 %v8111, %v8112
  %v8114 = vmul.f32 %v7918, %v7377
  %v8115 = vmul.f32 %v7931, %v7377
  %v8116 = vmul.f32 %v7944, %v7377
  %v8117 = vmul.f32 %v7957, %v7377
  %v8118 = vmul.f32 %v7970, %v7377
  %v8119 = vmul.f32 %v7983, %v7377
  %v8120 = vmul.f32 %v7996, %v7377
  %v8121 = vmul.f32 %v8009, %v7377
  %v8122 = vmul.f32 %v8022, %v7377
  %v8123 = vmul.f32 %v8035, %v7377
  %v8124 = vmul.f32 %v8048, %v7377
  %v8125 = vmul.f32 %v8061, %v7377
  %v8126 = vmul.f32 %v8074, %v7377
  %v8127 = vmul.f32 %v8087, %v7377
  %v8128 = vmul.f32 %v8100, %v7377
  %v8129 = vmul.f32 %v8113, %v7377
  %v8130 = vadd.f32 %v8114, 1e-05
  %v8131 = vadd.f32 %v8115, 1e-05
  %v8132 = vadd.f32 %v8116, 1e-05
  %v8133 = vadd.f32 %v8117, 1e-05
  %v8134 = vadd.f32 %v8118, 1e-05
  %v8135 = vadd.f32 %v8119, 1e-05
  %v8136 = vadd.f32 %v8120, 1e-05
  %v8137 = vadd.f32 %v8121, 1e-05
  %v8138 = vadd.f32 %v8122, 1e-05
  %v8139 = vadd.f32 %v8123, 1e-05
  %v8140 = vadd.f32 %v8124, 1e-05
  %v8141 = vadd.f32 %v8125, 1e-05
  %v8142 = vadd.f32 %v8126, 1e-05
  %v8143 = vadd.f32 %v8127, 1e-05
  %v8144 = vadd.f32 %v8128, 1e-05
  %v8145 = vadd.f32 %v8129, 1e-05
  %v8146 = vrsqrt.pop %v8130
  %v8147 = vrsqrt.pop %v8131
  %v8148 = vrsqrt.pop %v8132
  %v8149 = vrsqrt.pop %v8133
  %v8150 = vrsqrt.pop %v8134
  %v8151 = vrsqrt.pop %v8135
  %v8152 = vrsqrt.pop %v8136
  %v8153 = vrsqrt.pop %v8137
  %v8154 = vrsqrt.pop %v8138
  %v8155 = vrsqrt.pop %v8139
  %v8156 = vrsqrt.pop %v8140
  %v8157 = vrsqrt.pop %v8141
  %v8158 = vrsqrt.pop %v8142
  %v8159 = vrsqrt.pop %v8143
  %v8160 = vrsqrt.pop %v8144
  %v8161 = vrsqrt.pop %v8145
  %v8162 = vmul.f32 %v7394, %v8146
  %v8163 = vmul.f32 %v7395, %v8146
  %v8164 = vmul.f32 %v7396, %v8146
  %v8165 = vmul.f32 %v7397, %v8146
  %v8166 = vmul.f32 %v7398, %v8146
  %v8167 = vmul.f32 %v7399, %v8146
  %v8168 = vmul.f32 %v7400, %v8146
  %v8169 = vmul.f32 %v7401, %v8146
  %v8170 = vmul.f32 %v7402, %v8147
  %v8171 = vmul.f32 %v7403, %v8147
  %v8172 = vmul.f32 %v7404, %v8147
  %v8173 = vmul.f32 %v7405, %v8147
  %v8174 = vmul.f32 %v7406, %v8147
  %v8175 = vmul.f32 %v7407, %v8147
  %v8176 = vmul.f32 %v7408, %v8147
  %v8177 = vmul.f32 %v7409, %v8147
  %v8178 = vmul.f32 %v7410, %v8148
  %v8179 = vmul.f32 %v7411, %v8148
  %v8180 = vmul.f32 %v7412, %v8148
  %v8181 = vmul.f32 %v7413, %v8148
  %v8182 = vmul.f32 %v7414, %v8148
  %v8183 = vmul.f32 %v7415, %v8148
  %v8184 = vmul.f32 %v7416, %v8148
  %v8185 = vmul.f32 %v7417, %v8148
  %v8186 = vmul.f32 %v7418, %v8149
  %v8187 = vmul.f32 %v7419, %v8149
  %v8188 = vmul.f32 %v7420, %v8149
  %v8189 = vmul.f32 %v7421, %v8149
  %v8190 = vmul.f32 %v7422, %v8149
  %v8191 = vmul.f32 %v7423, %v8149
  %v8192 = vmul.f32 %v7424, %v8149
  %v8193 = vmul.f32 %v7425, %v8149
  %v8194 = vmul.f32 %v7426, %v8150
  %v8195 = vmul.f32 %v7427, %v8150
  %v8196 = vmul.f32 %v7428, %v8150
  %v8197 = vmul.f32 %v7429, %v8150
  %v8198 = vmul.f32 %v7430, %v8150
  %v8199 = vmul.f32 %v7431, %v8150
  %v8200 = vmul.f32 %v7432, %v8150
  %v8201 = vmul.f32 %v7433, %v8150
  %v8202 = vmul.f32 %v7434, %v8151
  %v8203 = vmul.f32 %v7435, %v8151
  %v8204 = vmul.f32 %v7436, %v8151
  %v8205 = vmul.f32 %v7437, %v8151
  %v8206 = vmul.f32 %v7438, %v8151
  %v8207 = vmul.f32 %v7439, %v8151
  %v8208 = vmul.f32 %v7440, %v8151
  %v8209 = vmul.f32 %v7441, %v8151
  %v8210 = vmul.f32 %v7442, %v8152
  %v8211 = vmul.f32 %v7443, %v8152
  %v8212 = vmul.f32 %v7444, %v8152
  %v8213 = vmul.f32 %v7445, %v8152
  %v8214 = vmul.f32 %v7446, %v8152
  %v8215 = vmul.f32 %v7447, %v8152
  %v8216 = vmul.f32 %v7448, %v8152
  %v8217 = vmul.f32 %v7449, %v8152
  %v8218 = vmul.f32 %v7450, %v8153
  %v8219 = vmul.f32 %v7451, %v8153
  %v8220 = vmul.f32 %v7452, %v8153
  %v8221 = vmul.f32 %v7453, %v8153
  %v8222 = vmul.f32 %v7454, %v8153
  %v8223 = vmul.f32 %v7455, %v8153
  %v8224 = vmul.f32 %v7456, %v8153
  %v8225 = vmul.f32 %v7457, %v8153
  %v8226 = vmul.f32 %v7458, %v8154
  %v8227 = vmul.f32 %v7459, %v8154
  %v8228 = vmul.f32 %v7460, %v8154
  %v8229 = vmul.f32 %v7461, %v8154
  %v8230 = vmul.f32 %v7462, %v8154
  %v8231 = vmul.f32 %v7463, %v8154
  %v8232 = vmul.f32 %v7464, %v8154
  %v8233 = vmul.f32 %v7465, %v8154
  %v8234 = vmul.f32 %v7466, %v8155
  %v8235 = vmul.f32 %v7467, %v8155
  %v8236 = vmul.f32 %v7468, %v8155
  %v8237 = vmul.f32 %v7469, %v8155
  %v8238 = vmul.f32 %v7470, %v8155
  %v8239 = vmul.f32 %v7471, %v8155
  %v8240 = vmul.f32 %v7472, %v8155
  %v8241 = vmul.f32 %v7473, %v8155
  %v8242 = vmul.f32 %v7474, %v8156
  %v8243 = vmul.f32 %v7475, %v8156
  %v8244 = vmul.f32 %v7476, %v8156
  %v8245 = vmul.f32 %v7477, %v8156
  %v8246 = vmul.f32 %v7478, %v8156
  %v8247 = vmul.f32 %v7479, %v8156
  %v8248 = vmul.f32 %v7480, %v8156
  %v8249 = vmul.f32 %v7481, %v8156
  %v8250 = vmul.f32 %v7482, %v8157
  %v8251 = vmul.f32 %v7483, %v8157
  %v8252 = vmul.f32 %v7484, %v8157
  %v8253 = vmul.f32 %v7485, %v8157
  %v8254 = vmul.f32 %v7486, %v8157
  %v8255 = vmul.f32 %v7487, %v8157
  %v8256 = vmul.f32 %v7488, %v8157
  %v8257 = vmul.f32 %v7489, %v8157
  %v8258 = vmul.f32 %v7490, %v8158
  %v8259 = vmul.f32 %v7491, %v8158
  %v8260 = vmul.f32 %v7492, %v8158
  %v8261 = vmul.f32 %v7493, %v8158
  %v8262 = vmul.f32 %v7494, %v8158
  %v8263 = vmul.f32 %v7495, %v8158
  %v8264 = vmul.f32 %v7496, %v8158
  %v8265 = vmul.f32 %v7497, %v8158
  %v8266 = vmul.f32 %v7498, %v8159
  %v8267 = vmul.f32 %v7499, %v8159
  %v8268 = vmul.f32 %v7500, %v8159
  %v8269 = vmul.f32 %v7501, %v8159
  %v8270 = vmul.f32 %v7502, %v8159
  %v8271 = vmul.f32 %v7503, %v8159
  %v8272 = vmul.f32 %v7504, %v8159
  %v8273 = vmul.f32 %v7505, %v8159
  %v8274 = vmul.f32 %v7506, %v8160
  %v8275 = vmul.f32 %v7507, %v8160
  %v8276 = vmul.f32 %v7508, %v8160
  %v8277 = vmul.f32 %v7509, %v8160
  %v8278 = vmul.f32 %v7510, %v8160
  %v8279 = vmul.f32 %v7511, %v8160
  %v8280 = vmul.f32 %v7512, %v8160
  %v8281 = vmul.f32 %v7513, %v8160
  %v8282 = vmul.f32 %v7514, %v8161
  %v8283 = vmul.f32 %v7515, %v8161
  %v8284 = vmul.f32 %v7516, %v8161
  %v8285 = vmul.f32 %v7517, %v8161
  %v8286 = vmul.f32 %v7518, %v8161
  %v8287 = vmul.f32 %v7519, %v8161
  %v8288 = vmul.f32 %v7520, %v8161
  %v8289 = vmul.f32 %v7521, %v8161
  %v8290 = vld [vmem:[%s3] sm:$0xff]
  %v8291 = vld [vmem:[%s3 + $0x8] sm:$0xff]
  %v8292 = vld [vmem:[%s3 + $0x10] sm:$0xff]
  %v8293 = vld [vmem:[%s3 + $0x18] sm:$0xff]
  %v8294 = vld [vmem:[%s3 + $0x20] sm:$0xff]
  %v8295 = vld [vmem:[%s3 + $0x28] sm:$0xff]
  %v8296 = vld [vmem:[%s3 + $0x30] sm:$0xff]
  %v8297 = vld [vmem:[%s3 + $0x38] sm:$0xff]
  %v8298 = vmul.f32 %v8162, %v8290
  %v8299 = vmul.f32 %v8163, %v8291
  %v8300 = vmul.f32 %v8164, %v8292
  %v8301 = vmul.f32 %v8165, %v8293
  %v8302 = vmul.f32 %v8166, %v8294
  %v8303 = vmul.f32 %v8167, %v8295
  %v8304 = vmul.f32 %v8168, %v8296
  %v8305 = vmul.f32 %v8169, %v8297
  %v8306 = vmul.f32 %v8170, %v8290
  %v8307 = vmul.f32 %v8171, %v8291
  %v8308 = vmul.f32 %v8172, %v8292
  %v8309 = vmul.f32 %v8173, %v8293
  %v8310 = vmul.f32 %v8174, %v8294
  %v8311 = vmul.f32 %v8175, %v8295
  %v8312 = vmul.f32 %v8176, %v8296
  %v8313 = vmul.f32 %v8177, %v8297
  %v8314 = vmul.f32 %v8178, %v8290
  %v8315 = vmul.f32 %v8179, %v8291
  %v8316 = vmul.f32 %v8180, %v8292
  %v8317 = vmul.f32 %v8181, %v8293
  %v8318 = vmul.f32 %v8182, %v8294
  %v8319 = vmul.f32 %v8183, %v8295
  %v8320 = vmul.f32 %v8184, %v8296
  %v8321 = vmul.f32 %v8185, %v8297
  %v8322 = vmul.f32 %v8186, %v8290
  %v8323 = vmul.f32 %v8187, %v8291
  %v8324 = vmul.f32 %v8188, %v8292
  %v8325 = vmul.f32 %v8189, %v8293
  %v8326 = vmul.f32 %v8190, %v8294
  %v8327 = vmul.f32 %v8191, %v8295
  %v8328 = vmul.f32 %v8192, %v8296
  %v8329 = vmul.f32 %v8193, %v8297
  %v8330 = vmul.f32 %v8194, %v8290
  %v8331 = vmul.f32 %v8195, %v8291
  %v8332 = vmul.f32 %v8196, %v8292
  %v8333 = vmul.f32 %v8197, %v8293
  %v8334 = vmul.f32 %v8198, %v8294
  %v8335 = vmul.f32 %v8199, %v8295
  %v8336 = vmul.f32 %v8200, %v8296
  %v8337 = vmul.f32 %v8201, %v8297
  %v8338 = vmul.f32 %v8202, %v8290
  %v8339 = vmul.f32 %v8203, %v8291
  %v8340 = vmul.f32 %v8204, %v8292
  %v8341 = vmul.f32 %v8205, %v8293
  %v8342 = vmul.f32 %v8206, %v8294
  %v8343 = vmul.f32 %v8207, %v8295
  %v8344 = vmul.f32 %v8208, %v8296
  %v8345 = vmul.f32 %v8209, %v8297
  %v8346 = vmul.f32 %v8210, %v8290
  %v8347 = vmul.f32 %v8211, %v8291
  %v8348 = vmul.f32 %v8212, %v8292
  %v8349 = vmul.f32 %v8213, %v8293
  %v8350 = vmul.f32 %v8214, %v8294
  %v8351 = vmul.f32 %v8215, %v8295
  %v8352 = vmul.f32 %v8216, %v8296
  %v8353 = vmul.f32 %v8217, %v8297
  %v8354 = vmul.f32 %v8218, %v8290
  %v8355 = vmul.f32 %v8219, %v8291
  %v8356 = vmul.f32 %v8220, %v8292
  %v8357 = vmul.f32 %v8221, %v8293
  %v8358 = vmul.f32 %v8222, %v8294
  %v8359 = vmul.f32 %v8223, %v8295
  %v8360 = vmul.f32 %v8224, %v8296
  %v8361 = vmul.f32 %v8225, %v8297
  %v8362 = vmul.f32 %v8226, %v8290
  %v8363 = vmul.f32 %v8227, %v8291
  %v8364 = vmul.f32 %v8228, %v8292
  %v8365 = vmul.f32 %v8229, %v8293
  %v8366 = vmul.f32 %v8230, %v8294
  %v8367 = vmul.f32 %v8231, %v8295
  %v8368 = vmul.f32 %v8232, %v8296
  %v8369 = vmul.f32 %v8233, %v8297
  %v8370 = vmul.f32 %v8234, %v8290
  %v8371 = vmul.f32 %v8235, %v8291
  %v8372 = vmul.f32 %v8236, %v8292
  %v8373 = vmul.f32 %v8237, %v8293
  %v8374 = vmul.f32 %v8238, %v8294
  %v8375 = vmul.f32 %v8239, %v8295
  %v8376 = vmul.f32 %v8240, %v8296
  %v8377 = vmul.f32 %v8241, %v8297
  %v8378 = vmul.f32 %v8242, %v8290
  %v8379 = vmul.f32 %v8243, %v8291
  %v8380 = vmul.f32 %v8244, %v8292
  %v8381 = vmul.f32 %v8245, %v8293
  %v8382 = vmul.f32 %v8246, %v8294
  %v8383 = vmul.f32 %v8247, %v8295
  %v8384 = vmul.f32 %v8248, %v8296
  %v8385 = vmul.f32 %v8249, %v8297
  %v8386 = vmul.f32 %v8250, %v8290
  %v8387 = vmul.f32 %v8251, %v8291
  %v8388 = vmul.f32 %v8252, %v8292
  %v8389 = vmul.f32 %v8253, %v8293
  %v8390 = vmul.f32 %v8254, %v8294
  %v8391 = vmul.f32 %v8255, %v8295
  %v8392 = vmul.f32 %v8256, %v8296
  %v8393 = vmul.f32 %v8257, %v8297
  %v8394 = vmul.f32 %v8258, %v8290
  %v8395 = vmul.f32 %v8259, %v8291
  %v8396 = vmul.f32 %v8260, %v8292
  %v8397 = vmul.f32 %v8261, %v8293
  %v8398 = vmul.f32 %v8262, %v8294
  %v8399 = vmul.f32 %v8263, %v8295
  %v8400 = vmul.f32 %v8264, %v8296
  %v8401 = vmul.f32 %v8265, %v8297
  %v8402 = vmul.f32 %v8266, %v8290
  %v8403 = vmul.f32 %v8267, %v8291
  %v8404 = vmul.f32 %v8268, %v8292
  %v8405 = vmul.f32 %v8269, %v8293
  %v8406 = vmul.f32 %v8270, %v8294
  %v8407 = vmul.f32 %v8271, %v8295
  %v8408 = vmul.f32 %v8272, %v8296
  %v8409 = vmul.f32 %v8273, %v8297
  %v8410 = vmul.f32 %v8274, %v8290
  %v8411 = vmul.f32 %v8275, %v8291
  %v8412 = vmul.f32 %v8276, %v8292
  %v8413 = vmul.f32 %v8277, %v8293
  %v8414 = vmul.f32 %v8278, %v8294
  %v8415 = vmul.f32 %v8279, %v8295
  %v8416 = vmul.f32 %v8280, %v8296
  %v8417 = vmul.f32 %v8281, %v8297
  %v8418 = vmul.f32 %v8282, %v8290
  %v8419 = vmul.f32 %v8283, %v8291
  %v8420 = vmul.f32 %v8284, %v8292
  %v8421 = vmul.f32 %v8285, %v8293
  %v8422 = vmul.f32 %v8286, %v8294
  %v8423 = vmul.f32 %v8287, %v8295
  %v8424 = vmul.f32 %v8288, %v8296
  %v8425 = vmul.f32 %v8289, %v8297
  %v8426 = vld [vmem:[%s4] sm:$0xff]
  %v8427 = vld [vmem:[%s4 + $0x8] sm:$0xff]
  %v8428 = vld [vmem:[%s4 + $0x10] sm:$0xff]
  %v8429 = vld [vmem:[%s4 + $0x18] sm:$0xff]
  %v8430 = vld [vmem:[%s4 + $0x20] sm:$0xff]
  %v8431 = vld [vmem:[%s4 + $0x28] sm:$0xff]
  %v8432 = vld [vmem:[%s4 + $0x30] sm:$0xff]
  %v8433 = vld [vmem:[%s4 + $0x38] sm:$0xff]
  %v8434 = vadd.f32 %v8298, %v8426
  %v8435 = vadd.f32 %v8299, %v8427
  %v8436 = vadd.f32 %v8300, %v8428
  %v8437 = vadd.f32 %v8301, %v8429
  %v8438 = vadd.f32 %v8302, %v8430
  %v8439 = vadd.f32 %v8303, %v8431
  %v8440 = vadd.f32 %v8304, %v8432
  %v8441 = vadd.f32 %v8305, %v8433
  %v8442 = vadd.f32 %v8306, %v8426
  %v8443 = vadd.f32 %v8307, %v8427
  %v8444 = vadd.f32 %v8308, %v8428
  %v8445 = vadd.f32 %v8309, %v8429
  %v8446 = vadd.f32 %v8310, %v8430
  %v8447 = vadd.f32 %v8311, %v8431
  %v8448 = vadd.f32 %v8312, %v8432
  %v8449 = vadd.f32 %v8313, %v8433
  %v8450 = vadd.f32 %v8314, %v8426
  %v8451 = vadd.f32 %v8315, %v8427
  %v8452 = vadd.f32 %v8316, %v8428
  %v8453 = vadd.f32 %v8317, %v8429
  %v8454 = vadd.f32 %v8318, %v8430
  %v8455 = vadd.f32 %v8319, %v8431
  %v8456 = vadd.f32 %v8320, %v8432
  %v8457 = vadd.f32 %v8321, %v8433
  %v8458 = vadd.f32 %v8322, %v8426
  %v8459 = vadd.f32 %v8323, %v8427
  %v8460 = vadd.f32 %v8324, %v8428
  %v8461 = vadd.f32 %v8325, %v8429
  %v8462 = vadd.f32 %v8326, %v8430
  %v8463 = vadd.f32 %v8327, %v8431
  %v8464 = vadd.f32 %v8328, %v8432
  %v8465 = vadd.f32 %v8329, %v8433
  %v8466 = vadd.f32 %v8330, %v8426
  %v8467 = vadd.f32 %v8331, %v8427
  %v8468 = vadd.f32 %v8332, %v8428
  %v8469 = vadd.f32 %v8333, %v8429
  %v8470 = vadd.f32 %v8334, %v8430
  %v8471 = vadd.f32 %v8335, %v8431
  %v8472 = vadd.f32 %v8336, %v8432
  %v8473 = vadd.f32 %v8337, %v8433
  %v8474 = vadd.f32 %v8338, %v8426
  %v8475 = vadd.f32 %v8339, %v8427
  %v8476 = vadd.f32 %v8340, %v8428
  %v8477 = vadd.f32 %v8341, %v8429
  %v8478 = vadd.f32 %v8342, %v8430
  %v8479 = vadd.f32 %v8343, %v8431
  %v8480 = vadd.f32 %v8344, %v8432
  %v8481 = vadd.f32 %v8345, %v8433
  %v8482 = vadd.f32 %v8346, %v8426
  %v8483 = vadd.f32 %v8347, %v8427
  %v8484 = vadd.f32 %v8348, %v8428
  %v8485 = vadd.f32 %v8349, %v8429
  %v8486 = vadd.f32 %v8350, %v8430
  %v8487 = vadd.f32 %v8351, %v8431
  %v8488 = vadd.f32 %v8352, %v8432
  %v8489 = vadd.f32 %v8353, %v8433
  %v8490 = vadd.f32 %v8354, %v8426
  %v8491 = vadd.f32 %v8355, %v8427
  %v8492 = vadd.f32 %v8356, %v8428
  %v8493 = vadd.f32 %v8357, %v8429
  %v8494 = vadd.f32 %v8358, %v8430
  %v8495 = vadd.f32 %v8359, %v8431
  %v8496 = vadd.f32 %v8360, %v8432
  %v8497 = vadd.f32 %v8361, %v8433
  %v8498 = vadd.f32 %v8362, %v8426
  %v8499 = vadd.f32 %v8363, %v8427
  %v8500 = vadd.f32 %v8364, %v8428
  %v8501 = vadd.f32 %v8365, %v8429
  %v8502 = vadd.f32 %v8366, %v8430
  %v8503 = vadd.f32 %v8367, %v8431
  %v8504 = vadd.f32 %v8368, %v8432
  %v8505 = vadd.f32 %v8369, %v8433
  %v8506 = vadd.f32 %v8370, %v8426
  %v8507 = vadd.f32 %v8371, %v8427
  %v8508 = vadd.f32 %v8372, %v8428
  %v8509 = vadd.f32 %v8373, %v8429
  %v8510 = vadd.f32 %v8374, %v8430
  %v8511 = vadd.f32 %v8375, %v8431
  %v8512 = vadd.f32 %v8376, %v8432
  %v8513 = vadd.f32 %v8377, %v8433
  %v8514 = vadd.f32 %v8378, %v8426
  %v8515 = vadd.f32 %v8379, %v8427
  %v8516 = vadd.f32 %v8380, %v8428
  %v8517 = vadd.f32 %v8381, %v8429
  %v8518 = vadd.f32 %v8382, %v8430
  %v8519 = vadd.f32 %v8383, %v8431
  %v8520 = vadd.f32 %v8384, %v8432
  %v8521 = vadd.f32 %v8385, %v8433
  %v8522 = vadd.f32 %v8386, %v8426
  %v8523 = vadd.f32 %v8387, %v8427
  %v8524 = vadd.f32 %v8388, %v8428
  %v8525 = vadd.f32 %v8389, %v8429
  %v8526 = vadd.f32 %v8390, %v8430
  %v8527 = vadd.f32 %v8391, %v8431
  %v8528 = vadd.f32 %v8392, %v8432
  %v8529 = vadd.f32 %v8393, %v8433
  %v8530 = vadd.f32 %v8394, %v8426
  %v8531 = vadd.f32 %v8395, %v8427
  %v8532 = vadd.f32 %v8396, %v8428
  %v8533 = vadd.f32 %v8397, %v8429
  %v8534 = vadd.f32 %v8398, %v8430
  %v8535 = vadd.f32 %v8399, %v8431
  %v8536 = vadd.f32 %v8400, %v8432
  %v8537 = vadd.f32 %v8401, %v8433
  %v8538 = vadd.f32 %v8402, %v8426
  %v8539 = vadd.f32 %v8403, %v8427
  %v8540 = vadd.f32 %v8404, %v8428
  %v8541 = vadd.f32 %v8405, %v8429
  %v8542 = vadd.f32 %v8406, %v8430
  %v8543 = vadd.f32 %v8407, %v8431
  %v8544 = vadd.f32 %v8408, %v8432
  %v8545 = vadd.f32 %v8409, %v8433
  %v8546 = vadd.f32 %v8410, %v8426
  %v8547 = vadd.f32 %v8411, %v8427
  %v8548 = vadd.f32 %v8412, %v8428
  %v8549 = vadd.f32 %v8413, %v8429
  %v8550 = vadd.f32 %v8414, %v8430
  %v8551 = vadd.f32 %v8415, %v8431
  %v8552 = vadd.f32 %v8416, %v8432
  %v8553 = vadd.f32 %v8417, %v8433
  %v8554 = vadd.f32 %v8418, %v8426
  %v8555 = vadd.f32 %v8419, %v8427
  %v8556 = vadd.f32 %v8420, %v8428
  %v8557 = vadd.f32 %v8421, %v8429
  %v8558 = vadd.f32 %v8422, %v8430
  %v8559 = vadd.f32 %v8423, %v8431
  %v8560 = vadd.f32 %v8424, %v8432
  %v8561 = vadd.f32 %v8425, %v8433
  %v8562 = vtanh.pop %v8434
  %v8563 = vtanh.pop %v8435
  %v8564 = vtanh.pop %v8436
  %v8565 = vtanh.pop %v8437
  %v8566 = vtanh.pop %v8438
  %v8567 = vtanh.pop %v8439
  %v8568 = vtanh.pop %v8440
  %v8569 = vtanh.pop %v8441
  %v8570 = vtanh.pop %v8442
  %v8571 = vtanh.pop %v8443
  %v8572 = vtanh.pop %v8444
  %v8573 = vtanh.pop %v8445
  %v8574 = vtanh.pop %v8446
  %v8575 = vtanh.pop %v8447
  %v8576 = vtanh.pop %v8448
  %v8577 = vtanh.pop %v8449
  %v8578 = vtanh.pop %v8450
  %v8579 = vtanh.pop %v8451
  %v8580 = vtanh.pop %v8452
  %v8581 = vtanh.pop %v8453
  %v8582 = vtanh.pop %v8454
  %v8583 = vtanh.pop %v8455
  %v8584 = vtanh.pop %v8456
  %v8585 = vtanh.pop %v8457
  %v8586 = vtanh.pop %v8458
  %v8587 = vtanh.pop %v8459
  %v8588 = vtanh.pop %v8460
  %v8589 = vtanh.pop %v8461
  %v8590 = vtanh.pop %v8462
  %v8591 = vtanh.pop %v8463
  %v8592 = vtanh.pop %v8464
  %v8593 = vtanh.pop %v8465
  %v8594 = vtanh.pop %v8466
  %v8595 = vtanh.pop %v8467
  %v8596 = vtanh.pop %v8468
  %v8597 = vtanh.pop %v8469
  %v8598 = vtanh.pop %v8470
  %v8599 = vtanh.pop %v8471
  %v8600 = vtanh.pop %v8472
  %v8601 = vtanh.pop %v8473
  %v8602 = vtanh.pop %v8474
  %v8603 = vtanh.pop %v8475
  %v8604 = vtanh.pop %v8476
  %v8605 = vtanh.pop %v8477
  %v8606 = vtanh.pop %v8478
  %v8607 = vtanh.pop %v8479
  %v8608 = vtanh.pop %v8480
  %v8609 = vtanh.pop %v8481
  %v8610 = vtanh.pop %v8482
  %v8611 = vtanh.pop %v8483
  %v8612 = vtanh.pop %v8484
  %v8613 = vtanh.pop %v8485
  %v8614 = vtanh.pop %v8486
  %v8615 = vtanh.pop %v8487
  %v8616 = vtanh.pop %v8488
  %v8617 = vtanh.pop %v8489
  %v8618 = vtanh.pop %v8490
  %v8619 = vtanh.pop %v8491
  %v8620 = vtanh.pop %v8492
  %v8621 = vtanh.pop %v8493
  %v8622 = vtanh.pop %v8494
  %v8623 = vtanh.pop %v8495
  %v8624 = vtanh.pop %v8496
  %v8625 = vtanh.pop %v8497
  %v8626 = vtanh.pop %v8498
  %v8627 = vtanh.pop %v8499
  %v8628 = vtanh.pop %v8500
  %v8629 = vtanh.pop %v8501
  %v8630 = vtanh.pop %v8502
  %v8631 = vtanh.pop %v8503
  %v8632 = vtanh.pop %v8504
  %v8633 = vtanh.pop %v8505
  %v8634 = vtanh.pop %v8506
  %v8635 = vtanh.pop %v8507
  %v8636 = vtanh.pop %v8508
  %v8637 = vtanh.pop %v8509
  %v8638 = vtanh.pop %v8510
  %v8639 = vtanh.pop %v8511
  %v8640 = vtanh.pop %v8512
  %v8641 = vtanh.pop %v8513
  %v8642 = vtanh.pop %v8514
  %v8643 = vtanh.pop %v8515
  %v8644 = vtanh.pop %v8516
  %v8645 = vtanh.pop %v8517
  %v8646 = vtanh.pop %v8518
  %v8647 = vtanh.pop %v8519
  %v8648 = vtanh.pop %v8520
  %v8649 = vtanh.pop %v8521
  %v8650 = vtanh.pop %v8522
  %v8651 = vtanh.pop %v8523
  %v8652 = vtanh.pop %v8524
  %v8653 = vtanh.pop %v8525
  %v8654 = vtanh.pop %v8526
  %v8655 = vtanh.pop %v8527
  %v8656 = vtanh.pop %v8528
  %v8657 = vtanh.pop %v8529
  %v8658 = vtanh.pop %v8530
  %v8659 = vtanh.pop %v8531
  %v8660 = vtanh.pop %v8532
  %v8661 = vtanh.pop %v8533
  %v8662 = vtanh.pop %v8534
  %v8663 = vtanh.pop %v8535
  %v8664 = vtanh.pop %v8536
  %v8665 = vtanh.pop %v8537
  %v8666 = vtanh.pop %v8538
  %v8667 = vtanh.pop %v8539
  %v8668 = vtanh.pop %v8540
  %v8669 = vtanh.pop %v8541
  %v8670 = vtanh.pop %v8542
  %v8671 = vtanh.pop %v8543
  %v8672 = vtanh.pop %v8544
  %v8673 = vtanh.pop %v8545
  %v8674 = vtanh.pop %v8546
  %v8675 = vtanh.pop %v8547
  %v8676 = vtanh.pop %v8548
  %v8677 = vtanh.pop %v8549
  %v8678 = vtanh.pop %v8550
  %v8679 = vtanh.pop %v8551
  %v8680 = vtanh.pop %v8552
  %v8681 = vtanh.pop %v8553
  %v8682 = vtanh.pop %v8554
  %v8683 = vtanh.pop %v8555
  %v8684 = vtanh.pop %v8556
  %v8685 = vtanh.pop %v8557
  %v8686 = vtanh.pop %v8558
  %v8687 = vtanh.pop %v8559
  %v8688 = vtanh.pop %v8560
  %v8689 = vtanh.pop %v8561
  %v8690 = vpack.c.bf16 %v8563, %v8562
  %v8691 = vpack.c.bf16 %v8565, %v8564
  %v8692 = vpack.c.bf16 %v8567, %v8566
  %v8693 = vpack.c.bf16 %v8569, %v8568
  %v8694 = vpack.c.bf16 %v8571, %v8570
  %v8695 = vpack.c.bf16 %v8573, %v8572
  %v8696 = vpack.c.bf16 %v8575, %v8574
  %v8697 = vpack.c.bf16 %v8577, %v8576
  %v8698 = vpack.c.bf16 %v8579, %v8578
  %v8699 = vpack.c.bf16 %v8581, %v8580
  %v8700 = vpack.c.bf16 %v8583, %v8582
  %v8701 = vpack.c.bf16 %v8585, %v8584
  %v8702 = vpack.c.bf16 %v8587, %v8586
  %v8703 = vpack.c.bf16 %v8589, %v8588
  %v8704 = vpack.c.bf16 %v8591, %v8590
  %v8705 = vpack.c.bf16 %v8593, %v8592
  %v8706 = vpack.c.bf16 %v8595, %v8594
  %v8707 = vpack.c.bf16 %v8597, %v8596
  %v8708 = vpack.c.bf16 %v8599, %v8598
  %v8709 = vpack.c.bf16 %v8601, %v8600
  %v8710 = vpack.c.bf16 %v8603, %v8602
  %v8711 = vpack.c.bf16 %v8605, %v8604
  %v8712 = vpack.c.bf16 %v8607, %v8606
  %v8713 = vpack.c.bf16 %v8609, %v8608
  %v8714 = vpack.c.bf16 %v8611, %v8610
  %v8715 = vpack.c.bf16 %v8613, %v8612
  %v8716 = vpack.c.bf16 %v8615, %v8614
  %v8717 = vpack.c.bf16 %v8617, %v8616
  %v8718 = vpack.c.bf16 %v8619, %v8618
  %v8719 = vpack.c.bf16 %v8621, %v8620
  %v8720 = vpack.c.bf16 %v8623, %v8622
  %v8721 = vpack.c.bf16 %v8625, %v8624
  %v8722 = vpack.c.bf16 %v8627, %v8626
  %v8723 = vpack.c.bf16 %v8629, %v8628
  %v8724 = vpack.c.bf16 %v8631, %v8630
  %v8725 = vpack.c.bf16 %v8633, %v8632
  %v8726 = vpack.c.bf16 %v8635, %v8634
  %v8727 = vpack.c.bf16 %v8637, %v8636
  %v8728 = vpack.c.bf16 %v8639, %v8638
  %v8729 = vpack.c.bf16 %v8641, %v8640
  %v8730 = vpack.c.bf16 %v8643, %v8642
  %v8731 = vpack.c.bf16 %v8645, %v8644
  %v8732 = vpack.c.bf16 %v8647, %v8646
  %v8733 = vpack.c.bf16 %v8649, %v8648
  %v8734 = vpack.c.bf16 %v8651, %v8650
  %v8735 = vpack.c.bf16 %v8653, %v8652
  %v8736 = vpack.c.bf16 %v8655, %v8654
  %v8737 = vpack.c.bf16 %v8657, %v8656
  %v8738 = vpack.c.bf16 %v8659, %v8658
  %v8739 = vpack.c.bf16 %v8661, %v8660
  %v8740 = vpack.c.bf16 %v8663, %v8662
  %v8741 = vpack.c.bf16 %v8665, %v8664
  %v8742 = vpack.c.bf16 %v8667, %v8666
  %v8743 = vpack.c.bf16 %v8669, %v8668
  %v8744 = vpack.c.bf16 %v8671, %v8670
  %v8745 = vpack.c.bf16 %v8673, %v8672
  %v8746 = vpack.c.bf16 %v8675, %v8674
  %v8747 = vpack.c.bf16 %v8677, %v8676
  %v8748 = vpack.c.bf16 %v8679, %v8678
  %v8749 = vpack.c.bf16 %v8681, %v8680
  %v8750 = vpack.c.bf16 %v8683, %v8682
  %v8751 = vpack.c.bf16 %v8685, %v8684
  %v8752 = vpack.c.bf16 %v8687, %v8686
  %v8753 = vpack.c.bf16 %v8689, %v8688
  %v8818 = vunpack.c.l.b16 %v8690
  %v8819 = vunpack.c.h.b16 %v8690
  %v8820 = vunpack.c.l.b16 %v8691
  %v8821 = vunpack.c.h.b16 %v8691
  %v8822 = vunpack.c.l.b16 %v8692
  %v8823 = vunpack.c.h.b16 %v8692
  %v8824 = vunpack.c.l.b16 %v8693
  %v8825 = vunpack.c.h.b16 %v8693
  %v8826 = vunpack.c.l.b16 %v8694
  %v8827 = vunpack.c.h.b16 %v8694
  %v8828 = vunpack.c.l.b16 %v8695
  %v8829 = vunpack.c.h.b16 %v8695
  %v8830 = vunpack.c.l.b16 %v8696
  %v8831 = vunpack.c.h.b16 %v8696
  %v8832 = vunpack.c.l.b16 %v8697
  %v8833 = vunpack.c.h.b16 %v8697
  %v8834 = vunpack.c.l.b16 %v8698
  %v8835 = vunpack.c.h.b16 %v8698
  %v8836 = vunpack.c.l.b16 %v8699
  %v8837 = vunpack.c.h.b16 %v8699
  %v8838 = vunpack.c.l.b16 %v8700
  %v8839 = vunpack.c.h.b16 %v8700
  %v8840 = vunpack.c.l.b16 %v8701
  %v8841 = vunpack.c.h.b16 %v8701
  %v8842 = vunpack.c.l.b16 %v8702
  %v8843 = vunpack.c.h.b16 %v8702
  %v8844 = vunpack.c.l.b16 %v8703
  %v8845 = vunpack.c.h.b16 %v8703
  %v8846 = vunpack.c.l.b16 %v8704
  %v8847 = vunpack.c.h.b16 %v8704
  %v8848 = vunpack.c.l.b16 %v8705
  %v8849 = vunpack.c.h.b16 %v8705
  %v8850 = vunpack.c.l.b16 %v8706
  %v8851 = vunpack.c.h.b16 %v8706
  %v8852 = vunpack.c.l.b16 %v8707
  %v8853 = vunpack.c.h.b16 %v8707
  %v8854 = vunpack.c.l.b16 %v8708
  %v8855 = vunpack.c.h.b16 %v8708
  %v8856 = vunpack.c.l.b16 %v8709
  %v8857 = vunpack.c.h.b16 %v8709
  %v8858 = vunpack.c.l.b16 %v8710
  %v8859 = vunpack.c.h.b16 %v8710
  %v8860 = vunpack.c.l.b16 %v8711
  %v8861 = vunpack.c.h.b16 %v8711
  %v8862 = vunpack.c.l.b16 %v8712
  %v8863 = vunpack.c.h.b16 %v8712
  %v8864 = vunpack.c.l.b16 %v8713
  %v8865 = vunpack.c.h.b16 %v8713
  %v8866 = vunpack.c.l.b16 %v8714
  %v8867 = vunpack.c.h.b16 %v8714
  %v8868 = vunpack.c.l.b16 %v8715
  %v8869 = vunpack.c.h.b16 %v8715
  %v8870 = vunpack.c.l.b16 %v8716
  %v8871 = vunpack.c.h.b16 %v8716
  %v8872 = vunpack.c.l.b16 %v8717
  %v8873 = vunpack.c.h.b16 %v8717
  %v8874 = vunpack.c.l.b16 %v8718
  %v8875 = vunpack.c.h.b16 %v8718
  %v8876 = vunpack.c.l.b16 %v8719
  %v8877 = vunpack.c.h.b16 %v8719
  %v8878 = vunpack.c.l.b16 %v8720
  %v8879 = vunpack.c.h.b16 %v8720
  %v8880 = vunpack.c.l.b16 %v8721
  %v8881 = vunpack.c.h.b16 %v8721
  %v8882 = vunpack.c.l.b16 %v8722
  %v8883 = vunpack.c.h.b16 %v8722
  %v8884 = vunpack.c.l.b16 %v8723
  %v8885 = vunpack.c.h.b16 %v8723
  %v8886 = vunpack.c.l.b16 %v8724
  %v8887 = vunpack.c.h.b16 %v8724
  %v8888 = vunpack.c.l.b16 %v8725
  %v8889 = vunpack.c.h.b16 %v8725
  %v8890 = vunpack.c.l.b16 %v8726
  %v8891 = vunpack.c.h.b16 %v8726
  %v8892 = vunpack.c.l.b16 %v8727
  %v8893 = vunpack.c.h.b16 %v8727
  %v8894 = vunpack.c.l.b16 %v8728
  %v8895 = vunpack.c.h.b16 %v8728
  %v8896 = vunpack.c.l.b16 %v8729
  %v8897 = vunpack.c.h.b16 %v8729
  %v8898 = vunpack.c.l.b16 %v8730
  %v8899 = vunpack.c.h.b16 %v8730
  %v8900 = vunpack.c.l.b16 %v8731
  %v8901 = vunpack.c.h.b16 %v8731
  %v8902 = vunpack.c.l.b16 %v8732
  %v8903 = vunpack.c.h.b16 %v8732
  %v8904 = vunpack.c.l.b16 %v8733
  %v8905 = vunpack.c.h.b16 %v8733
  %v8906 = vunpack.c.l.b16 %v8734
  %v8907 = vunpack.c.h.b16 %v8734
  %v8908 = vunpack.c.l.b16 %v8735
  %v8909 = vunpack.c.h.b16 %v8735
  %v8910 = vunpack.c.l.b16 %v8736
  %v8911 = vunpack.c.h.b16 %v8736
  %v8912 = vunpack.c.l.b16 %v8737
  %v8913 = vunpack.c.h.b16 %v8737
  %v8914 = vunpack.c.l.b16 %v8738
  %v8915 = vunpack.c.h.b16 %v8738
  %v8916 = vunpack.c.l.b16 %v8739
  %v8917 = vunpack.c.h.b16 %v8739
  %v8918 = vunpack.c.l.b16 %v8740
  %v8919 = vunpack.c.h.b16 %v8740
  %v8920 = vunpack.c.l.b16 %v8741
  %v8921 = vunpack.c.h.b16 %v8741
  %v8922 = vunpack.c.l.b16 %v8742
  %v8923 = vunpack.c.h.b16 %v8742
  %v8924 = vunpack.c.l.b16 %v8743
  %v8925 = vunpack.c.h.b16 %v8743
  %v8926 = vunpack.c.l.b16 %v8744
  %v8927 = vunpack.c.h.b16 %v8744
  %v8928 = vunpack.c.l.b16 %v8745
  %v8929 = vunpack.c.h.b16 %v8745
  %v8930 = vunpack.c.l.b16 %v8746
  %v8931 = vunpack.c.h.b16 %v8746
  %v8932 = vunpack.c.l.b16 %v8747
  %v8933 = vunpack.c.h.b16 %v8747
  %v8934 = vunpack.c.l.b16 %v8748
  %v8935 = vunpack.c.h.b16 %v8748
  %v8936 = vunpack.c.l.b16 %v8749
  %v8937 = vunpack.c.h.b16 %v8749
  %v8938 = vunpack.c.l.b16 %v8750
  %v8939 = vunpack.c.h.b16 %v8750
  %v8940 = vunpack.c.l.b16 %v8751
  %v8941 = vunpack.c.h.b16 %v8751
  %v8942 = vunpack.c.l.b16 %v8752
  %v8943 = vunpack.c.h.b16 %v8752
  %v8944 = vunpack.c.l.b16 %v8753
  %v8945 = vunpack.c.h.b16 %v8753
  %v8946 = vpack.c.b16 %v8818, %v8818
  %v8947 = vpack.c.b16 %v8819, %v8819
  %v8948 = vpack.c.b16 %v8820, %v8820
  %v8949 = vpack.c.b16 %v8821, %v8821
  %v8950 = vpack.c.b16 %v8822, %v8822
  %v8951 = vpack.c.b16 %v8823, %v8823
  %v8952 = vpack.c.b16 %v8824, %v8824
  %v8953 = vpack.c.b16 %v8825, %v8825
  %v8954 = vpack.c.b16 %v8826, %v8826
  %v8955 = vpack.c.b16 %v8827, %v8827
  %v8956 = vpack.c.b16 %v8828, %v8828
  %v8957 = vpack.c.b16 %v8829, %v8829
  %v8958 = vpack.c.b16 %v8830, %v8830
  %v8959 = vpack.c.b16 %v8831, %v8831
  %v8960 = vpack.c.b16 %v8832, %v8832
  %v8961 = vpack.c.b16 %v8833, %v8833
  %v8962 = vpack.c.b16 %v8834, %v8834
  %v8963 = vpack.c.b16 %v8835, %v8835
  %v8964 = vpack.c.b16 %v8836, %v8836
  %v8965 = vpack.c.b16 %v8837, %v8837
  %v8966 = vpack.c.b16 %v8838, %v8838
  %v8967 = vpack.c.b16 %v8839, %v8839
  %v8968 = vpack.c.b16 %v8840, %v8840
  %v8969 = vpack.c.b16 %v8841, %v8841
  %v8970 = vpack.c.b16 %v8842, %v8842
  %v8971 = vpack.c.b16 %v8843, %v8843
  %v8972 = vpack.c.b16 %v8844, %v8844
  %v8973 = vpack.c.b16 %v8845, %v8845
  %v8974 = vpack.c.b16 %v8846, %v8846
  %v8975 = vpack.c.b16 %v8847, %v8847
  %v8976 = vpack.c.b16 %v8848, %v8848
  %v8977 = vpack.c.b16 %v8849, %v8849
  %v8978 = vpack.c.b16 %v8850, %v8850
  %v8979 = vpack.c.b16 %v8851, %v8851
  %v8980 = vpack.c.b16 %v8852, %v8852
  %v8981 = vpack.c.b16 %v8853, %v8853
  %v8982 = vpack.c.b16 %v8854, %v8854
  %v8983 = vpack.c.b16 %v8855, %v8855
  %v8984 = vpack.c.b16 %v8856, %v8856
  %v8985 = vpack.c.b16 %v8857, %v8857
  %v8986 = vpack.c.b16 %v8858, %v8858
  %v8987 = vpack.c.b16 %v8859, %v8859
  %v8988 = vpack.c.b16 %v8860, %v8860
  %v8989 = vpack.c.b16 %v8861, %v8861
  %v8990 = vpack.c.b16 %v8862, %v8862
  %v8991 = vpack.c.b16 %v8863, %v8863
  %v8992 = vpack.c.b16 %v8864, %v8864
  %v8993 = vpack.c.b16 %v8865, %v8865
  %v8994 = vpack.c.b16 %v8866, %v8866
  %v8995 = vpack.c.b16 %v8867, %v8867
  %v8996 = vpack.c.b16 %v8868, %v8868
  %v8997 = vpack.c.b16 %v8869, %v8869
  %v8998 = vpack.c.b16 %v8870, %v8870
  %v8999 = vpack.c.b16 %v8871, %v8871
  %v9000 = vpack.c.b16 %v8872, %v8872
  %v9001 = vpack.c.b16 %v8873, %v8873
  %v9002 = vpack.c.b16 %v8874, %v8874
  %v9003 = vpack.c.b16 %v8875, %v8875
  %v9004 = vpack.c.b16 %v8876, %v8876
  %v9005 = vpack.c.b16 %v8877, %v8877
  %v9006 = vpack.c.b16 %v8878, %v8878
  %v9007 = vpack.c.b16 %v8879, %v8879
  %v9008 = vpack.c.b16 %v8880, %v8880
  %v9009 = vpack.c.b16 %v8881, %v8881
  %v9010 = vpack.c.b16 %v8882, %v8882
  %v9011 = vpack.c.b16 %v8883, %v8883
  %v9012 = vpack.c.b16 %v8884, %v8884
  %v9013 = vpack.c.b16 %v8885, %v8885
  %v9014 = vpack.c.b16 %v8886, %v8886
  %v9015 = vpack.c.b16 %v8887, %v8887
  %v9016 = vpack.c.b16 %v8888, %v8888
  %v9017 = vpack.c.b16 %v8889, %v8889
  %v9018 = vpack.c.b16 %v8890, %v8890
  %v9019 = vpack.c.b16 %v8891, %v8891
  %v9020 = vpack.c.b16 %v8892, %v8892
  %v9021 = vpack.c.b16 %v8893, %v8893
  %v9022 = vpack.c.b16 %v8894, %v8894
  %v9023 = vpack.c.b16 %v8895, %v8895
  %v9024 = vpack.c.b16 %v8896, %v8896
  %v9025 = vpack.c.b16 %v8897, %v8897
  %v9026 = vpack.c.b16 %v8898, %v8898
  %v9027 = vpack.c.b16 %v8899, %v8899
  %v9028 = vpack.c.b16 %v8900, %v8900
  %v9029 = vpack.c.b16 %v8901, %v8901
  %v9030 = vpack.c.b16 %v8902, %v8902
  %v9031 = vpack.c.b16 %v8903, %v8903
  %v9032 = vpack.c.b16 %v8904, %v8904
  %v9033 = vpack.c.b16 %v8905, %v8905
  %v9034 = vpack.c.b16 %v8906, %v8906
  %v9035 = vpack.c.b16 %v8907, %v8907
  %v9036 = vpack.c.b16 %v8908, %v8908
  %v9037 = vpack.c.b16 %v8909, %v8909
  %v9038 = vpack.c.b16 %v8910, %v8910
  %v9039 = vpack.c.b16 %v8911, %v8911
  %v9040 = vpack.c.b16 %v8912, %v8912
  %v9041 = vpack.c.b16 %v8913, %v8913
  %v9042 = vpack.c.b16 %v8914, %v8914
  %v9043 = vpack.c.b16 %v8915, %v8915
  %v9044 = vpack.c.b16 %v8916, %v8916
  %v9045 = vpack.c.b16 %v8917, %v8917
  %v9046 = vpack.c.b16 %v8918, %v8918
  %v9047 = vpack.c.b16 %v8919, %v8919
  %v9048 = vpack.c.b16 %v8920, %v8920
  %v9049 = vpack.c.b16 %v8921, %v8921
  %v9050 = vpack.c.b16 %v8922, %v8922
  %v9051 = vpack.c.b16 %v8923, %v8923
  %v9052 = vpack.c.b16 %v8924, %v8924
  %v9053 = vpack.c.b16 %v8925, %v8925
  %v9054 = vpack.c.b16 %v8926, %v8926
  %v9055 = vpack.c.b16 %v8927, %v8927
  %v9056 = vpack.c.b16 %v8928, %v8928
  %v9057 = vpack.c.b16 %v8929, %v8929
  %v9058 = vpack.c.b16 %v8930, %v8930
  %v9059 = vpack.c.b16 %v8931, %v8931
  %v9060 = vpack.c.b16 %v8932, %v8932
  %v9061 = vpack.c.b16 %v8933, %v8933
  %v9062 = vpack.c.b16 %v8934, %v8934
  %v9063 = vpack.c.b16 %v8935, %v8935
  %v9064 = vpack.c.b16 %v8936, %v8936
  %v9065 = vpack.c.b16 %v8937, %v8937
  %v9066 = vpack.c.b16 %v8938, %v8938
  %v9067 = vpack.c.b16 %v8939, %v8939
  %v9068 = vpack.c.b16 %v8940, %v8940
  %v9069 = vpack.c.b16 %v8941, %v8941
  %v9070 = vpack.c.b16 %v8942, %v8942
  %v9071 = vpack.c.b16 %v8943, %v8943
  %v9072 = vpack.c.b16 %v8944, %v8944
  %v9073 = vpack.c.b16 %v8945, %v8945
  %9202 = vst [vmem:[%s5] sm:$0xf] %v8946
  %9203 = vst [vmem:[%s5 + $0x4] sm:$0xf] %v8947
  %9204 = vst [vmem:[%s5 + $0x8] sm:$0xf] %v8948
  %9205 = vst [vmem:[%s5 + $0xc] sm:$0xf] %v8949
  %9206 = vst [vmem:[%s5 + $0x10] sm:$0xf] %v8950
  %9207 = vst [vmem:[%s5 + $0x14] sm:$0xf] %v8951
  %9208 = vst [vmem:[%s5 + $0x18] sm:$0xf] %v8952
  %9209 = vst [vmem:[%s5 + $0x1c] sm:$0xf] %v8953
  %9210 = vst [vmem:[%s5 + $0x20] sm:$0xf] %v8954
  %9211 = vst [vmem:[%s5 + $0x24] sm:$0xf] %v8955
  %9212 = vst [vmem:[%s5 + $0x28] sm:$0xf] %v8956
  %9213 = vst [vmem:[%s5 + $0x2c] sm:$0xf] %v8957
  %9214 = vst [vmem:[%s5 + $0x30] sm:$0xf] %v8958
  %9215 = vst [vmem:[%s5 + $0x34] sm:$0xf] %v8959
  %9216 = vst [vmem:[%s5 + $0x38] sm:$0xf] %v8960
  %9217 = vst [vmem:[%s5 + $0x3c] sm:$0xf] %v8961
  %9218 = vst [vmem:[%s5 + $0x40] sm:$0xf] %v8962
  %9219 = vst [vmem:[%s5 + $0x44] sm:$0xf] %v8963
  %9220 = vst [vmem:[%s5 + $0x48] sm:$0xf] %v8964
  %9221 = vst [vmem:[%s5 + $0x4c] sm:$0xf] %v8965
  %9222 = vst [vmem:[%s5 + $0x50] sm:$0xf] %v8966
  %9223 = vst [vmem:[%s5 + $0x54] sm:$0xf] %v8967
  %9224 = vst [vmem:[%s5 + $0x58] sm:$0xf] %v8968
  %9225 = vst [vmem:[%s5 + $0x5c] sm:$0xf] %v8969
  %9226 = vst [vmem:[%s5 + $0x60] sm:$0xf] %v8970
  %9227 = vst [vmem:[%s5 + $0x64] sm:$0xf] %v8971
  %9228 = vst [vmem:[%s5 + $0x68] sm:$0xf] %v8972
  %9229 = vst [vmem:[%s5 + $0x6c] sm:$0xf] %v8973
  %9230 = vst [vmem:[%s5 + $0x70] sm:$0xf] %v8974
  %9231 = vst [vmem:[%s5 + $0x74] sm:$0xf] %v8975
  %9232 = vst [vmem:[%s5 + $0x78] sm:$0xf] %v8976
  %9233 = vst [vmem:[%s5 + $0x7c] sm:$0xf] %v8977
  %9234 = vst [vmem:[%s5 + $0x80] sm:$0xf] %v8978
  %9235 = vst [vmem:[%s5 + $0x84] sm:$0xf] %v8979
  %9236 = vst [vmem:[%s5 + $0x88] sm:$0xf] %v8980
  %9237 = vst [vmem:[%s5 + $0x8c] sm:$0xf] %v8981
  %9238 = vst [vmem:[%s5 + $0x90] sm:$0xf] %v8982
  %9239 = vst [vmem:[%s5 + $0x94] sm:$0xf] %v8983
  %9240 = vst [vmem:[%s5 + $0x98] sm:$0xf] %v8984
  %9241 = vst [vmem:[%s5 + $0x9c] sm:$0xf] %v8985
  %9242 = vst [vmem:[%s5 + $0xa0] sm:$0xf] %v8986
  %9243 = vst [vmem:[%s5 + $0xa4] sm:$0xf] %v8987
  %9244 = vst [vmem:[%s5 + $0xa8] sm:$0xf] %v8988
  %9245 = vst [vmem:[%s5 + $0xac] sm:$0xf] %v8989
  %9246 = vst [vmem:[%s5 + $0xb0] sm:$0xf] %v8990
  %9247 = vst [vmem:[%s5 + $0xb4] sm:$0xf] %v8991
  %9248 = vst [vmem:[%s5 + $0xb8] sm:$0xf] %v8992
  %9249 = vst [vmem:[%s5 + $0xbc] sm:$0xf] %v8993
  %9250 = vst [vmem:[%s5 + $0xc0] sm:$0xf] %v8994
  %9251 = vst [vmem:[%s5 + $0xc4] sm:$0xf] %v8995
  %9252 = vst [vmem:[%s5 + $0xc8] sm:$0xf] %v8996
  %9253 = vst [vmem:[%s5 + $0xcc] sm:$0xf] %v8997
  %9254 = vst [vmem:[%s5 + $0xd0] sm:$0xf] %v8998
  %9255 = vst [vmem:[%s5 + $0xd4] sm:$0xf] %v8999
  %9256 = vst [vmem:[%s5 + $0xd8] sm:$0xf] %v9000
  %9257 = vst [vmem:[%s5 + $0xdc] sm:$0xf] %v9001
  %9258 = vst [vmem:[%s5 + $0xe0] sm:$0xf] %v9002
  %9259 = vst [vmem:[%s5 + $0xe4] sm:$0xf] %v9003
  %9260 = vst [vmem:[%s5 + $0xe8] sm:$0xf] %v9004
  %9261 = vst [vmem:[%s5 + $0xec] sm:$0xf] %v9005
  %9262 = vst [vmem:[%s5 + $0xf0] sm:$0xf] %v9006
  %9263 = vst [vmem:[%s5 + $0xf4] sm:$0xf] %v9007
  %9264 = vst [vmem:[%s5 + $0xf8] sm:$0xf] %v9008
  %9265 = vst [vmem:[%s5 + $0xfc] sm:$0xf] %v9009
  %9266 = vst [vmem:[%s5 + $0x100] sm:$0xf] %v9010
  %9267 = vst [vmem:[%s5 + $0x104] sm:$0xf] %v9011
  %9268 = vst [vmem:[%s5 + $0x108] sm:$0xf] %v9012
  %9269 = vst [vmem:[%s5 + $0x10c] sm:$0xf] %v9013
  %9270 = vst [vmem:[%s5 + $0x110] sm:$0xf] %v9014
  %9271 = vst [vmem:[%s5 + $0x114] sm:$0xf] %v9015
  %9272 = vst [vmem:[%s5 + $0x118] sm:$0xf] %v9016
  %9273 = vst [vmem:[%s5 + $0x11c] sm:$0xf] %v9017
  %9274 = vst [vmem:[%s5 + $0x120] sm:$0xf] %v9018
  %9275 = vst [vmem:[%s5 + $0x124] sm:$0xf] %v9019
  %9276 = vst [vmem:[%s5 + $0x128] sm:$0xf] %v9020
  %9277 = vst [vmem:[%s5 + $0x12c] sm:$0xf] %v9021
  %9278 = vst [vmem:[%s5 + $0x130] sm:$0xf] %v9022
  %9279 = vst [vmem:[%s5 + $0x134] sm:$0xf] %v9023
  %9280 = vst [vmem:[%s5 + $0x138] sm:$0xf] %v9024
  %9281 = vst [vmem:[%s5 + $0x13c] sm:$0xf] %v9025
  %9282 = vst [vmem:[%s5 + $0x140] sm:$0xf] %v9026
  %9283 = vst [vmem:[%s5 + $0x144] sm:$0xf] %v9027
  %9284 = vst [vmem:[%s5 + $0x148] sm:$0xf] %v9028
  %9285 = vst [vmem:[%s5 + $0x14c] sm:$0xf] %v9029
  %9286 = vst [vmem:[%s5 + $0x150] sm:$0xf] %v9030
  %9287 = vst [vmem:[%s5 + $0x154] sm:$0xf] %v9031
  %9288 = vst [vmem:[%s5 + $0x158] sm:$0xf] %v9032
  %9289 = vst [vmem:[%s5 + $0x15c] sm:$0xf] %v9033
  %9290 = vst [vmem:[%s5 + $0x160] sm:$0xf] %v9034
  %9291 = vst [vmem:[%s5 + $0x164] sm:$0xf] %v9035
  %9292 = vst [vmem:[%s5 + $0x168] sm:$0xf] %v9036
  %9293 = vst [vmem:[%s5 + $0x16c] sm:$0xf] %v9037
  %9294 = vst [vmem:[%s5 + $0x170] sm:$0xf] %v9038
  %9295 = vst [vmem:[%s5 + $0x174] sm:$0xf] %v9039
  %9296 = vst [vmem:[%s5 + $0x178] sm:$0xf] %v9040
  %9297 = vst [vmem:[%s5 + $0x17c] sm:$0xf] %v9041
  %9298 = vst [vmem:[%s5 + $0x180] sm:$0xf] %v9042
  %9299 = vst [vmem:[%s5 + $0x184] sm:$0xf] %v9043
  %9300 = vst [vmem:[%s5 + $0x188] sm:$0xf] %v9044
  %9301 = vst [vmem:[%s5 + $0x18c] sm:$0xf] %v9045
  %9302 = vst [vmem:[%s5 + $0x190] sm:$0xf] %v9046
  %9303 = vst [vmem:[%s5 + $0x194] sm:$0xf] %v9047
  %9304 = vst [vmem:[%s5 + $0x198] sm:$0xf] %v9048
  %9305 = vst [vmem:[%s5 + $0x19c] sm:$0xf] %v9049
  %9306 = vst [vmem:[%s5 + $0x1a0] sm:$0xf] %v9050
  %9307 = vst [vmem:[%s5 + $0x1a4] sm:$0xf] %v9051
  %9308 = vst [vmem:[%s5 + $0x1a8] sm:$0xf] %v9052
  %9309 = vst [vmem:[%s5 + $0x1ac] sm:$0xf] %v9053
  %9310 = vst [vmem:[%s5 + $0x1b0] sm:$0xf] %v9054
  %9311 = vst [vmem:[%s5 + $0x1b4] sm:$0xf] %v9055
  %9312 = vst [vmem:[%s5 + $0x1b8] sm:$0xf] %v9056
  %9313 = vst [vmem:[%s5 + $0x1bc] sm:$0xf] %v9057
  %9314 = vst [vmem:[%s5 + $0x1c0] sm:$0xf] %v9058
  %9315 = vst [vmem:[%s5 + $0x1c4] sm:$0xf] %v9059
  %9316 = vst [vmem:[%s5 + $0x1c8] sm:$0xf] %v9060
  %9317 = vst [vmem:[%s5 + $0x1cc] sm:$0xf] %v9061
  %9318 = vst [vmem:[%s5 + $0x1d0] sm:$0xf] %v9062
  %9319 = vst [vmem:[%s5 + $0x1d4] sm:$0xf] %v9063
  %9320 = vst [vmem:[%s5 + $0x1d8] sm:$0xf] %v9064
  %9321 = vst [vmem:[%s5 + $0x1dc] sm:$0xf] %v9065
  %9322 = vst [vmem:[%s5 + $0x1e0] sm:$0xf] %v9066
  %9323 = vst [vmem:[%s5 + $0x1e4] sm:$0xf] %v9067
  %9324 = vst [vmem:[%s5 + $0x1e8] sm:$0xf] %v9068
  %9325 = vst [vmem:[%s5 + $0x1ec] sm:$0xf] %v9069
  %9326 = vst [vmem:[%s5 + $0x1f0] sm:$0xf] %v9070
  %9327 = vst [vmem:[%s5 + $0x1f4] sm:$0xf] %v9071
  %9328 = vst [vmem:[%s5 + $0x1f8] sm:$0xf] %v9072
  %9329 = vst [vmem:[%s5 + $0x1fc] sm:$0xf] %v9073
  // Predicated region
  $region22: #{tim_block_forward.2} parent=0 // pred_check
    _
  $region23: #{tim_block_forward.2} parent=0 // pred_check_branch
    %9331 = sbr.rel (0) target = $region25
  $region24: #{tim_block_forward.2} parent=0 // pred_region
    _
  $region25: #{tim_block_forward.2} parent=0 // pred_fallthru
    _
  // Predicated region
  $region26: #{tim_block_forward.2} parent=0 // pred_check
    _
  $region27: #{tim_block_forward.2} parent=0 // pred_check_branch
    %9333 = sbr.rel (0) target = $region29
  $region28: #{tim_block_forward.2} parent=0 // pred_region
    _
  $region29: #{tim_block_forward.2} parent=0 // pred_fallthru
    _

</llo_original>
